<compile_context>
chip_gen: v5e
topology: v5e:2x2
jax: 0.10.0
libtpu: 0.0.40
codegen_flags: <defaults>
</compile_context>

<pallas_src>
import functools
import math

import jax
import jax.numpy as jnp
from jax.experimental import pallas as pl
from jax.experimental.pallas import tpu as pltpu


def _relpos_bias_kernel(emb_ref, o_ref, *, tile_i, j, heads, num_buckets,
                        max_distance):
    # emb_ref: (num_buckets, heads) in SMEM (resident for all grid steps)
    # o_ref:   (heads, tile_i, j)   output block in VMEM
    row0 = pl.program_id(0) * tile_i

    # Relative distance n[q, k] = max(q - k, 0), computed from 2-D iotas.
    q_pos = row0 + jax.lax.broadcasted_iota(jnp.int32, (tile_i, j), 0)
    k_pos = jax.lax.broadcasted_iota(jnp.int32, (tile_i, j), 1)
    n = jnp.maximum(q_pos - k_pos, 0)

    max_exact = num_buckets // 2
    is_small = n < max_exact

    # Clamp to >= 1 before the log to avoid -inf; those entries are overridden
    # by the is_small branch anyway (faithful to the torch reference output).
    n_f = jnp.maximum(n, 1).astype(jnp.float32)
    val_if_large = max_exact + (
        jnp.log(n_f / max_exact)
        / math.log(max_distance / max_exact)
        * (num_buckets - max_exact)
    ).astype(jnp.int32)                      # trunc-toward-zero == .long() here
    val_if_large = jnp.minimum(val_if_large, num_buckets - 1)
    bucket = jnp.where(is_small, n, val_if_large)   # int32 in [0, num_buckets)

    # Gather emb[bucket, h] via a select chain (each element matches exactly
    # one bucket, so overwriting selects are sufficient: 31 cmp+sel per head).
    for h in range(heads):
        acc = jnp.full((tile_i, j), emb_ref[0, h], dtype=jnp.float32)
        for b in range(1, num_buckets):
            acc = jnp.where(bucket == b, emb_ref[b, h], acc)
        o_ref[h] = acc.astype(o_ref.dtype)


def rel_pos_bias(emb: jax.Array, i: int, j: int, *, num_buckets: int = 32,
                 max_distance: int = 128, tile_i: int | None = None) -> jax.Array:
    """RelPosBias forward. emb = relative_attention_bias.weight, (num_buckets, heads).

    Returns (heads, i, j) with out[h, q, k] = emb[bucket(q - k), h].
    """
    assert emb.ndim == 2 and emb.shape[0] == num_buckets
    heads = emb.shape[1]
    out_dtype = emb.dtype
    itemsize = jnp.dtype(out_dtype).itemsize

    # Pick the largest row tile whose double-buffered output block fits a
    # conservative VMEM budget (safe on v5e/v6e/v7x), multiple of 8 sublanes.
    if tile_i is None:
        block_budget = 6 * 1024 * 1024            # bytes per output block
        t = block_budget // max(1, heads * j * itemsize)
        t = max(8, min(1024, t))
        tile_i = (t // 8) * 8
    if tile_i >= i:
        tile_i = i                                 # full-dim block (always legal)
    else:
        tile_i = max(8, (tile_i // 8) * 8)

    grid = (pl.cdiv(i, tile_i),)                   # ragged tail handled by Pallas

    kernel = functools.partial(
        _relpos_bias_kernel, tile_i=tile_i, j=j, heads=heads,
        num_buckets=num_buckets, max_distance=max_distance)

    return pl.pallas_call(
        kernel,
        out_shape=jax.ShapeDtypeStruct((heads, i, j), out_dtype),
        grid_spec=pltpu.PrefetchScalarGridSpec(
            num_scalar_prefetch=0,
            grid=grid,
            in_specs=[
                # Small (32, 8) table -> SMEM, resident for all grid steps.
                pl.BlockSpec(memory_space=pltpu.MemorySpace.SMEM),
            ],
            out_specs=pl.BlockSpec((heads, tile_i, j), lambda r: (0, r, 0)),
        ),
        compiler_params=pltpu.CompilerParams(
            dimension_semantics=("parallel",),      # shardable across v7x TCs
            vmem_limit_bytes=32 * 1024 * 1024,      # explicit, safe on all gens
        ),
    )(emb)


def _reference_rel_pos_bias(emb, i, j, *, num_buckets=32, max_distance=128):
    """Pure-JAX reference, mirroring the PyTorch module."""
    q_pos = jnp.arange(i, dtype=jnp.int32)
    k_pos = jnp.arange(j, dtype=jnp.int32)
    n = jnp.maximum(q_pos[:, None] - k_pos[None, :], 0)   # = max(-rel_pos, 0)
    max_exact = num_buckets // 2
    is_small = n < max_exact
    n_f = jnp.maximum(n, 1).astype(jnp.float32)
    val_if_large = max_exact + (
        jnp.log(n_f / max_exact)
        / math.log(max_distance / max_exact)
        * (num_buckets - max_exact)
    ).astype(jnp.int32)
    val_if_large = jnp.minimum(val_if_large, num_buckets - 1)
    bucket = jnp.where(is_small, n, val_if_large)
    values = emb[bucket]                                   # (i, j, heads)
    return jnp.transpose(values, (2, 0, 1))                # (heads, i, j)


if __name__ == "__main__":
    key = jax.random.PRNGKey(0)
    heads, num_buckets, max_distance = 8, 32, 128

    # Embedding weight (nn.Embedding default init ~ N(0, 1)), deterministic.
    emb = jax.random.normal(key, (num_buckets, heads), dtype=jnp.float32)

    # Case 1: lane-dense square bias, single row tile.
    i1 = j1 = 128
    out1 = jax.block_until_ready(
        rel_pos_bias(emb, i1, j1, num_buckets=num_buckets,
                     max_distance=max_distance))
    ref1 = _reference_rel_pos_bias(emb, i1, j1, num_buckets=num_buckets,
                                   max_distance=max_distance)
    assert out1.shape == (heads, i1, j1) and out1.dtype == emb.dtype
    assert jnp.allclose(out1, ref1, atol=1e-5, rtol=1e-5), "mismatch (case 1)"

    # Case 2: multi-tile grid (exercises the program_id row offset).
    i2, j2 = 256, 128
    out2 = jax.block_until_ready(
        rel_pos_bias(emb, i2, j2, num_buckets=num_buckets,
                     max_distance=max_distance, tile_i=128))
    ref2 = _reference_rel_pos_bias(emb, i2, j2, num_buckets=num_buckets,
                                   max_distance=max_distance)
    assert out2.shape == (heads, i2, j2)
    assert jnp.allclose(out2, ref2, atol=1e-5, rtol=1e-5), "mismatch (case 2)"

    print("KERNEL_OK")
</pallas_src>

<mosaic_0001>
module attributes {stable_mosaic.version = 11 : i64} {
  func.func @_relpos_bias_kernel(%arg0: i32, %arg1: memref<32x8xf32, #tpu.memory_space<smem>>, %arg2: memref<8x128x128xf32, #tpu.memory_space<vmem>>) attributes {dimension_semantics = [#tpu.dimension_semantics<parallel>], iteration_bounds = array<i64: 1>, scalar_prefetch = 0 : i64, scratch_operands = 0 : i64, tpu.core_type = #tpu.core_type<tc>, window_params = [{transform_indices = @transform_0, window_bounds = array<i64: 32, 8>}, {transform_indices = @transform_1, window_bounds = array<i64: 8, 128, 128>}]} {
    %c128_i32 = arith.constant 128 : i32
    %0 = arith.muli %arg0, %c128_i32 : i32
    %1 = tpu.iota {dimensions = array<i32: 0>} : vector<128x128xi32>
    %2 = vector.broadcast %0 : i32 to vector<128x128xi32>
    %3 = arith.addi %2, %1 : vector<128x128xi32>
    %4 = tpu.iota {dimensions = array<i32: 1>} : vector<128x128xi32>
    %5 = arith.subi %3, %4 : vector<128x128xi32>
    %c0_i32 = arith.constant 0 : i32
    %6 = vector.broadcast %c0_i32 : i32 to vector<128x128xi32>
    %7 = arith.maxsi %5, %6 : vector<128x128xi32>
    %c16_i32 = arith.constant 16 : i32
    %8 = vector.broadcast %c16_i32 : i32 to vector<128x128xi32>
    %9 = arith.cmpi slt, %7, %8 : vector<128x128xi32>
    %c1_i32 = arith.constant 1 : i32
    %10 = vector.broadcast %c1_i32 : i32 to vector<128x128xi32>
    %11 = arith.maxsi %7, %10 : vector<128x128xi32>
    %12 = arith.sitofp %11 : vector<128x128xi32> to vector<128x128xf32>
    %cst = arith.constant 1.600000e+01 : f32
    %13 = vector.broadcast %cst : f32 to vector<128x128xf32>
    %14 = arith.divf %12, %13 : vector<128x128xf32>
    %15 = math.log %14 : vector<128x128xf32>
    %cst_0 = arith.constant 2.07944155 : f32
    %16 = vector.broadcast %cst_0 : f32 to vector<128x128xf32>
    %17 = arith.divf %15, %16 : vector<128x128xf32>
    %cst_1 = arith.constant 1.600000e+01 : f32
    %18 = vector.broadcast %cst_1 : f32 to vector<128x128xf32>
    %19 = arith.mulf %17, %18 : vector<128x128xf32>
    %20 = arith.fptosi %19 : vector<128x128xf32> to vector<128x128xi32>
    %c16_i32_2 = arith.constant 16 : i32
    %21 = vector.broadcast %c16_i32_2 : i32 to vector<128x128xi32>
    %22 = arith.addi %21, %20 : vector<128x128xi32>
    %c31_i32 = arith.constant 31 : i32
    %23 = vector.broadcast %c31_i32 : i32 to vector<128x128xi32>
    %24 = arith.minsi %22, %23 : vector<128x128xi32>
    %25 = arith.select %9, %7, %24 : vector<128x128xi1>, vector<128x128xi32>
    %c0 = arith.constant 0 : index
    %c0_3 = arith.constant 0 : index
    %26 = memref.load %arg1[%c0, %c0_3] : memref<32x8xf32, #tpu.memory_space<smem>>
    %27 = vector.broadcast %26 : f32 to vector<128x128xf32>
    %c1_i32_4 = arith.constant 1 : i32
    %28 = vector.broadcast %c1_i32_4 : i32 to vector<128x128xi32>
    %29 = arith.cmpi eq, %25, %28 : vector<128x128xi32>
    %c1 = arith.constant 1 : index
    %c0_5 = arith.constant 0 : index
    %30 = memref.load %arg1[%c1, %c0_5] : memref<32x8xf32, #tpu.memory_space<smem>>
    %31 = vector.broadcast %30 : f32 to vector<128x128xf32>
    %32 = arith.select %29, %31, %27 : vector<128x128xi1>, vector<128x128xf32>
    %c2_i32 = arith.constant 2 : i32
    %33 = vector.broadcast %c2_i32 : i32 to vector<128x128xi32>
    %34 = arith.cmpi eq, %25, %33 : vector<128x128xi32>
    %c2 = arith.constant 2 : index
    %c0_6 = arith.constant 0 : index
    %35 = memref.load %arg1[%c2, %c0_6] : memref<32x8xf32, #tpu.memory_space<smem>>
    %36 = vector.broadcast %35 : f32 to vector<128x128xf32>
    %37 = arith.select %34, %36, %32 : vector<128x128xi1>, vector<128x128xf32>
    %c3_i32 = arith.constant 3 : i32
    %38 = vector.broadcast %c3_i32 : i32 to vector<128x128xi32>
    %39 = arith.cmpi eq, %25, %38 : vector<128x128xi32>
    %c3 = arith.constant 3 : index
    %c0_7 = arith.constant 0 : index
    %40 = memref.load %arg1[%c3, %c0_7] : memref<32x8xf32, #tpu.memory_space<smem>>
    %41 = vector.broadcast %40 : f32 to vector<128x128xf32>
    %42 = arith.select %39, %41, %37 : vector<128x128xi1>, vector<128x128xf32>
    %c4_i32 = arith.constant 4 : i32
    %43 = vector.broadcast %c4_i32 : i32 to vector<128x128xi32>
    %44 = arith.cmpi eq, %25, %43 : vector<128x128xi32>
    %c4 = arith.constant 4 : index
    %c0_8 = arith.constant 0 : index
    %45 = memref.load %arg1[%c4, %c0_8] : memref<32x8xf32, #tpu.memory_space<smem>>
    %46 = vector.broadcast %45 : f32 to vector<128x128xf32>
    %47 = arith.select %44, %46, %42 : vector<128x128xi1>, vector<128x128xf32>
    %c5_i32 = arith.constant 5 : i32
    %48 = vector.broadcast %c5_i32 : i32 to vector<128x128xi32>
    %49 = arith.cmpi eq, %25, %48 : vector<128x128xi32>
    %c5 = arith.constant 5 : index
    %c0_9 = arith.constant 0 : index
    %50 = memref.load %arg1[%c5, %c0_9] : memref<32x8xf32, #tpu.memory_space<smem>>
    %51 = vector.broadcast %50 : f32 to vector<128x128xf32>
    %52 = arith.select %49, %51, %47 : vector<128x128xi1>, vector<128x128xf32>
    %c6_i32 = arith.constant 6 : i32
    %53 = vector.broadcast %c6_i32 : i32 to vector<128x128xi32>
    %54 = arith.cmpi eq, %25, %53 : vector<128x128xi32>
    %c6 = arith.constant 6 : index
    %c0_10 = arith.constant 0 : index
    %55 = memref.load %arg1[%c6, %c0_10] : memref<32x8xf32, #tpu.memory_space<smem>>
    %56 = vector.broadcast %55 : f32 to vector<128x128xf32>
    %57 = arith.select %54, %56, %52 : vector<128x128xi1>, vector<128x128xf32>
    %c7_i32 = arith.constant 7 : i32
    %58 = vector.broadcast %c7_i32 : i32 to vector<128x128xi32>
    %59 = arith.cmpi eq, %25, %58 : vector<128x128xi32>
    %c7 = arith.constant 7 : index
    %c0_11 = arith.constant 0 : index
    %60 = memref.load %arg1[%c7, %c0_11] : memref<32x8xf32, #tpu.memory_space<smem>>
    %61 = vector.broadcast %60 : f32 to vector<128x128xf32>
    %62 = arith.select %59, %61, %57 : vector<128x128xi1>, vector<128x128xf32>
    %c8_i32 = arith.constant 8 : i32
    %63 = vector.broadcast %c8_i32 : i32 to vector<128x128xi32>
    %64 = arith.cmpi eq, %25, %63 : vector<128x128xi32>
    %c8 = arith.constant 8 : index
    %c0_12 = arith.constant 0 : index
    %65 = memref.load %arg1[%c8, %c0_12] : memref<32x8xf32, #tpu.memory_space<smem>>
    %66 = vector.broadcast %65 : f32 to vector<128x128xf32>
    %67 = arith.select %64, %66, %62 : vector<128x128xi1>, vector<128x128xf32>
    %c9_i32 = arith.constant 9 : i32
    %68 = vector.broadcast %c9_i32 : i32 to vector<128x128xi32>
    %69 = arith.cmpi eq, %25, %68 : vector<128x128xi32>
    %c9 = arith.constant 9 : index
    %c0_13 = arith.constant 0 : index
    %70 = memref.load %arg1[%c9, %c0_13] : memref<32x8xf32, #tpu.memory_space<smem>>
    %71 = vector.broadcast %70 : f32 to vector<128x128xf32>
    %72 = arith.select %69, %71, %67 : vector<128x128xi1>, vector<128x128xf32>
    %c10_i32 = arith.constant 10 : i32
    %73 = vector.broadcast %c10_i32 : i32 to vector<128x128xi32>
    %74 = arith.cmpi eq, %25, %73 : vector<128x128xi32>
    %c10 = arith.constant 10 : index
    %c0_14 = arith.constant 0 : index
    %75 = memref.load %arg1[%c10, %c0_14] : memref<32x8xf32, #tpu.memory_space<smem>>
    %76 = vector.broadcast %75 : f32 to vector<128x128xf32>
    %77 = arith.select %74, %76, %72 : vector<128x128xi1>, vector<128x128xf32>
    %c11_i32 = arith.constant 11 : i32
    %78 = vector.broadcast %c11_i32 : i32 to vector<128x128xi32>
    %79 = arith.cmpi eq, %25, %78 : vector<128x128xi32>
    %c11 = arith.constant 11 : index
    %c0_15 = arith.constant 0 : index
    %80 = memref.load %arg1[%c11, %c0_15] : memref<32x8xf32, #tpu.memory_space<smem>>
    %81 = vector.broadcast %80 : f32 to vector<128x128xf32>
    %82 = arith.select %79, %81, %77 : vector<128x128xi1>, vector<128x128xf32>
    %c12_i32 = arith.constant 12 : i32
    %83 = vector.broadcast %c12_i32 : i32 to vector<128x128xi32>
    %84 = arith.cmpi eq, %25, %83 : vector<128x128xi32>
    %c12 = arith.constant 12 : index
    %c0_16 = arith.constant 0 : index
    %85 = memref.load %arg1[%c12, %c0_16] : memref<32x8xf32, #tpu.memory_space<smem>>
    %86 = vector.broadcast %85 : f32 to vector<128x128xf32>
    %87 = arith.select %84, %86, %82 : vector<128x128xi1>, vector<128x128xf32>
    %c13_i32 = arith.constant 13 : i32
    %88 = vector.broadcast %c13_i32 : i32 to vector<128x128xi32>
    %89 = arith.cmpi eq, %25, %88 : vector<128x128xi32>
    %c13 = arith.constant 13 : index
    %c0_17 = arith.constant 0 : index
    %90 = memref.load %arg1[%c13, %c0_17] : memref<32x8xf32, #tpu.memory_space<smem>>
    %91 = vector.broadcast %90 : f32 to vector<128x128xf32>
    %92 = arith.select %89, %91, %87 : vector<128x128xi1>, vector<128x128xf32>
    %c14_i32 = arith.constant 14 : i32
    %93 = vector.broadcast %c14_i32 : i32 to vector<128x128xi32>
    %94 = arith.cmpi eq, %25, %93 : vector<128x128xi32>
    %c14 = arith.constant 14 : index
    %c0_18 = arith.constant 0 : index
    %95 = memref.load %arg1[%c14, %c0_18] : memref<32x8xf32, #tpu.memory_space<smem>>
    %96 = vector.broadcast %95 : f32 to vector<128x128xf32>
    %97 = arith.select %94, %96, %92 : vector<128x128xi1>, vector<128x128xf32>
    %c15_i32 = arith.constant 15 : i32
    %98 = vector.broadcast %c15_i32 : i32 to vector<128x128xi32>
    %99 = arith.cmpi eq, %25, %98 : vector<128x128xi32>
    %c15 = arith.constant 15 : index
    %c0_19 = arith.constant 0 : index
    %100 = memref.load %arg1[%c15, %c0_19] : memref<32x8xf32, #tpu.memory_space<smem>>
    %101 = vector.broadcast %100 : f32 to vector<128x128xf32>
    %102 = arith.select %99, %101, %97 : vector<128x128xi1>, vector<128x128xf32>
    %c16_i32_20 = arith.constant 16 : i32
    %103 = vector.broadcast %c16_i32_20 : i32 to vector<128x128xi32>
    %104 = arith.cmpi eq, %25, %103 : vector<128x128xi32>
    %c16 = arith.constant 16 : index
    %c0_21 = arith.constant 0 : index
    %105 = memref.load %arg1[%c16, %c0_21] : memref<32x8xf32, #tpu.memory_space<smem>>
    %106 = vector.broadcast %105 : f32 to vector<128x128xf32>
    %107 = arith.select %104, %106, %102 : vector<128x128xi1>, vector<128x128xf32>
    %c17_i32 = arith.constant 17 : i32
    %108 = vector.broadcast %c17_i32 : i32 to vector<128x128xi32>
    %109 = arith.cmpi eq, %25, %108 : vector<128x128xi32>
    %c17 = arith.constant 17 : index
    %c0_22 = arith.constant 0 : index
    %110 = memref.load %arg1[%c17, %c0_22] : memref<32x8xf32, #tpu.memory_space<smem>>
    %111 = vector.broadcast %110 : f32 to vector<128x128xf32>
    %112 = arith.select %109, %111, %107 : vector<128x128xi1>, vector<128x128xf32>
    %c18_i32 = arith.constant 18 : i32
    %113 = vector.broadcast %c18_i32 : i32 to vector<128x128xi32>
    %114 = arith.cmpi eq, %25, %113 : vector<128x128xi32>
    %c18 = arith.constant 18 : index
    %c0_23 = arith.constant 0 : index
    %115 = memref.load %arg1[%c18, %c0_23] : memref<32x8xf32, #tpu.memory_space<smem>>
    %116 = vector.broadcast %115 : f32 to vector<128x128xf32>
    %117 = arith.select %114, %116, %112 : vector<128x128xi1>, vector<128x128xf32>
    %c19_i32 = arith.constant 19 : i32
    %118 = vector.broadcast %c19_i32 : i32 to vector<128x128xi32>
    %119 = arith.cmpi eq, %25, %118 : vector<128x128xi32>
    %c19 = arith.constant 19 : index
    %c0_24 = arith.constant 0 : index
    %120 = memref.load %arg1[%c19, %c0_24] : memref<32x8xf32, #tpu.memory_space<smem>>
    %121 = vector.broadcast %120 : f32 to vector<128x128xf32>
    %122 = arith.select %119, %121, %117 : vector<128x128xi1>, vector<128x128xf32>
    %c20_i32 = arith.constant 20 : i32
    %123 = vector.broadcast %c20_i32 : i32 to vector<128x128xi32>
    %124 = arith.cmpi eq, %25, %123 : vector<128x128xi32>
    %c20 = arith.constant 20 : index
    %c0_25 = arith.constant 0 : index
    %125 = memref.load %arg1[%c20, %c0_25] : memref<32x8xf32, #tpu.memory_space<smem>>
    %126 = vector.broadcast %125 : f32 to vector<128x128xf32>
    %127 = arith.select %124, %126, %122 : vector<128x128xi1>, vector<128x128xf32>
    %c21_i32 = arith.constant 21 : i32
    %128 = vector.broadcast %c21_i32 : i32 to vector<128x128xi32>
    %129 = arith.cmpi eq, %25, %128 : vector<128x128xi32>
    %c21 = arith.constant 21 : index
    %c0_26 = arith.constant 0 : index
    %130 = memref.load %arg1[%c21, %c0_26] : memref<32x8xf32, #tpu.memory_space<smem>>
    %131 = vector.broadcast %130 : f32 to vector<128x128xf32>
    %132 = arith.select %129, %131, %127 : vector<128x128xi1>, vector<128x128xf32>
    %c22_i32 = arith.constant 22 : i32
    %133 = vector.broadcast %c22_i32 : i32 to vector<128x128xi32>
    %134 = arith.cmpi eq, %25, %133 : vector<128x128xi32>
    %c22 = arith.constant 22 : index
    %c0_27 = arith.constant 0 : index
    %135 = memref.load %arg1[%c22, %c0_27] : memref<32x8xf32, #tpu.memory_space<smem>>
    %136 = vector.broadcast %135 : f32 to vector<128x128xf32>
    %137 = arith.select %134, %136, %132 : vector<128x128xi1>, vector<128x128xf32>
    %c23_i32 = arith.constant 23 : i32
    %138 = vector.broadcast %c23_i32 : i32 to vector<128x128xi32>
    %139 = arith.cmpi eq, %25, %138 : vector<128x128xi32>
    %c23 = arith.constant 23 : index
    %c0_28 = arith.constant 0 : index
    %140 = memref.load %arg1[%c23, %c0_28] : memref<32x8xf32, #tpu.memory_space<smem>>
    %141 = vector.broadcast %140 : f32 to vector<128x128xf32>
    %142 = arith.select %139, %141, %137 : vector<128x128xi1>, vector<128x128xf32>
    %c24_i32 = arith.constant 24 : i32
    %143 = vector.broadcast %c24_i32 : i32 to vector<128x128xi32>
    %144 = arith.cmpi eq, %25, %143 : vector<128x128xi32>
    %c24 = arith.constant 24 : index
    %c0_29 = arith.constant 0 : index
    %145 = memref.load %arg1[%c24, %c0_29] : memref<32x8xf32, #tpu.memory_space<smem>>
    %146 = vector.broadcast %145 : f32 to vector<128x128xf32>
    %147 = arith.select %144, %146, %142 : vector<128x128xi1>, vector<128x128xf32>
    %c25_i32 = arith.constant 25 : i32
    %148 = vector.broadcast %c25_i32 : i32 to vector<128x128xi32>
    %149 = arith.cmpi eq, %25, %148 : vector<128x128xi32>
    %c25 = arith.constant 25 : index
    %c0_30 = arith.constant 0 : index
    %150 = memref.load %arg1[%c25, %c0_30] : memref<32x8xf32, #tpu.memory_space<smem>>
    %151 = vector.broadcast %150 : f32 to vector<128x128xf32>
    %152 = arith.select %149, %151, %147 : vector<128x128xi1>, vector<128x128xf32>
    %c26_i32 = arith.constant 26 : i32
    %153 = vector.broadcast %c26_i32 : i32 to vector<128x128xi32>
    %154 = arith.cmpi eq, %25, %153 : vector<128x128xi32>
    %c26 = arith.constant 26 : index
    %c0_31 = arith.constant 0 : index
    %155 = memref.load %arg1[%c26, %c0_31] : memref<32x8xf32, #tpu.memory_space<smem>>
    %156 = vector.broadcast %155 : f32 to vector<128x128xf32>
    %157 = arith.select %154, %156, %152 : vector<128x128xi1>, vector<128x128xf32>
    %c27_i32 = arith.constant 27 : i32
    %158 = vector.broadcast %c27_i32 : i32 to vector<128x128xi32>
    %159 = arith.cmpi eq, %25, %158 : vector<128x128xi32>
    %c27 = arith.constant 27 : index
    %c0_32 = arith.constant 0 : index
    %160 = memref.load %arg1[%c27, %c0_32] : memref<32x8xf32, #tpu.memory_space<smem>>
    %161 = vector.broadcast %160 : f32 to vector<128x128xf32>
    %162 = arith.select %159, %161, %157 : vector<128x128xi1>, vector<128x128xf32>
    %c28_i32 = arith.constant 28 : i32
    %163 = vector.broadcast %c28_i32 : i32 to vector<128x128xi32>
    %164 = arith.cmpi eq, %25, %163 : vector<128x128xi32>
    %c28 = arith.constant 28 : index
    %c0_33 = arith.constant 0 : index
    %165 = memref.load %arg1[%c28, %c0_33] : memref<32x8xf32, #tpu.memory_space<smem>>
    %166 = vector.broadcast %165 : f32 to vector<128x128xf32>
    %167 = arith.select %164, %166, %162 : vector<128x128xi1>, vector<128x128xf32>
    %c29_i32 = arith.constant 29 : i32
    %168 = vector.broadcast %c29_i32 : i32 to vector<128x128xi32>
    %169 = arith.cmpi eq, %25, %168 : vector<128x128xi32>
    %c29 = arith.constant 29 : index
    %c0_34 = arith.constant 0 : index
    %170 = memref.load %arg1[%c29, %c0_34] : memref<32x8xf32, #tpu.memory_space<smem>>
    %171 = vector.broadcast %170 : f32 to vector<128x128xf32>
    %172 = arith.select %169, %171, %167 : vector<128x128xi1>, vector<128x128xf32>
    %c30_i32 = arith.constant 30 : i32
    %173 = vector.broadcast %c30_i32 : i32 to vector<128x128xi32>
    %174 = arith.cmpi eq, %25, %173 : vector<128x128xi32>
    %c30 = arith.constant 30 : index
    %c0_35 = arith.constant 0 : index
    %175 = memref.load %arg1[%c30, %c0_35] : memref<32x8xf32, #tpu.memory_space<smem>>
    %176 = vector.broadcast %175 : f32 to vector<128x128xf32>
    %177 = arith.select %174, %176, %172 : vector<128x128xi1>, vector<128x128xf32>
    %c31_i32_36 = arith.constant 31 : i32
    %178 = vector.broadcast %c31_i32_36 : i32 to vector<128x128xi32>
    %179 = arith.cmpi eq, %25, %178 : vector<128x128xi32>
    %c31 = arith.constant 31 : index
    %c0_37 = arith.constant 0 : index
    %180 = memref.load %arg1[%c31, %c0_37] : memref<32x8xf32, #tpu.memory_space<smem>>
    %181 = vector.broadcast %180 : f32 to vector<128x128xf32>
    %182 = arith.select %179, %181, %177 : vector<128x128xi1>, vector<128x128xf32>
    %c0_38 = arith.constant 0 : index
    %c0_39 = arith.constant 0 : index
    %c0_40 = arith.constant 0 : index
    %183 = vector.load %arg2[%c0_38, %c0_39, %c0_40] : memref<8x128x128xf32, #tpu.memory_space<vmem>>, vector<1x128x128xf32>
    %184 = vector.shape_cast %183 : vector<1x128x128xf32> to vector<128x128xf32>
    %185 = vector.shape_cast %182 : vector<128x128xf32> to vector<1x128x128xf32>
    tpu.vector_store %arg2[%c0_38, %c0_39, %c0_40], %185 {strides = array<i32>} : memref<8x128x128xf32, #tpu.memory_space<vmem>>, vector<1x128x128xf32>,
    %c0_41 = arith.constant 0 : index
    %c1_42 = arith.constant 1 : index
    %186 = memref.load %arg1[%c0_41, %c1_42] : memref<32x8xf32, #tpu.memory_space<smem>>
    %187 = vector.broadcast %186 : f32 to vector<128x128xf32>
    %c1_i32_43 = arith.constant 1 : i32
    %188 = vector.broadcast %c1_i32_43 : i32 to vector<128x128xi32>
    %189 = arith.cmpi eq, %25, %188 : vector<128x128xi32>
    %c1_44 = arith.constant 1 : index
    %c1_45 = arith.constant 1 : index
    %190 = memref.load %arg1[%c1_44, %c1_45] : memref<32x8xf32, #tpu.memory_space<smem>>
    %191 = vector.broadcast %190 : f32 to vector<128x128xf32>
    %192 = arith.select %189, %191, %187 : vector<128x128xi1>, vector<128x128xf32>
    %c2_i32_46 = arith.constant 2 : i32
    %193 = vector.broadcast %c2_i32_46 : i32 to vector<128x128xi32>
    %194 = arith.cmpi eq, %25, %193 : vector<128x128xi32>
    %c2_47 = arith.constant 2 : index
    %c1_48 = arith.constant 1 : index
    %195 = memref.load %arg1[%c2_47, %c1_48] : memref<32x8xf32, #tpu.memory_space<smem>>
    %196 = vector.broadcast %195 : f32 to vector<128x128xf32>
    %197 = arith.select %194, %196, %192 : vector<128x128xi1>, vector<128x128xf32>
    %c3_i32_49 = arith.constant 3 : i32
    %198 = vector.broadcast %c3_i32_49 : i32 to vector<128x128xi32>
    %199 = arith.cmpi eq, %25, %198 : vector<128x128xi32>
    %c3_50 = arith.constant 3 : index
    %c1_51 = arith.constant 1 : index
    %200 = memref.load %arg1[%c3_50, %c1_51] : memref<32x8xf32, #tpu.memory_space<smem>>
    %201 = vector.broadcast %200 : f32 to vector<128x128xf32>
    %202 = arith.select %199, %201, %197 : vector<128x128xi1>, vector<128x128xf32>
    %c4_i32_52 = arith.constant 4 : i32
    %203 = vector.broadcast %c4_i32_52 : i32 to vector<128x128xi32>
    %204 = arith.cmpi eq, %25, %203 : vector<128x128xi32>
    %c4_53 = arith.constant 4 : index
    %c1_54 = arith.constant 1 : index
    %205 = memref.load %arg1[%c4_53, %c1_54] : memref<32x8xf32, #tpu.memory_space<smem>>
    %206 = vector.broadcast %205 : f32 to vector<128x128xf32>
    %207 = arith.select %204, %206, %202 : vector<128x128xi1>, vector<128x128xf32>
    %c5_i32_55 = arith.constant 5 : i32
    %208 = vector.broadcast %c5_i32_55 : i32 to vector<128x128xi32>
    %209 = arith.cmpi eq, %25, %208 : vector<128x128xi32>
    %c5_56 = arith.constant 5 : index
    %c1_57 = arith.constant 1 : index
    %210 = memref.load %arg1[%c5_56, %c1_57] : memref<32x8xf32, #tpu.memory_space<smem>>
    %211 = vector.broadcast %210 : f32 to vector<128x128xf32>
    %212 = arith.select %209, %211, %207 : vector<128x128xi1>, vector<128x128xf32>
    %c6_i32_58 = arith.constant 6 : i32
    %213 = vector.broadcast %c6_i32_58 : i32 to vector<128x128xi32>
    %214 = arith.cmpi eq, %25, %213 : vector<128x128xi32>
    %c6_59 = arith.constant 6 : index
    %c1_60 = arith.constant 1 : index
    %215 = memref.load %arg1[%c6_59, %c1_60] : memref<32x8xf32, #tpu.memory_space<smem>>
    %216 = vector.broadcast %215 : f32 to vector<128x128xf32>
    %217 = arith.select %214, %216, %212 : vector<128x128xi1>, vector<128x128xf32>
    %c7_i32_61 = arith.constant 7 : i32
    %218 = vector.broadcast %c7_i32_61 : i32 to vector<128x128xi32>
    %219 = arith.cmpi eq, %25, %218 : vector<128x128xi32>
    %c7_62 = arith.constant 7 : index
    %c1_63 = arith.constant 1 : index
    %220 = memref.load %arg1[%c7_62, %c1_63] : memref<32x8xf32, #tpu.memory_space<smem>>
    %221 = vector.broadcast %220 : f32 to vector<128x128xf32>
    %222 = arith.select %219, %221, %217 : vector<128x128xi1>, vector<128x128xf32>
    %c8_i32_64 = arith.constant 8 : i32
    %223 = vector.broadcast %c8_i32_64 : i32 to vector<128x128xi32>
    %224 = arith.cmpi eq, %25, %223 : vector<128x128xi32>
    %c8_65 = arith.constant 8 : index
    %c1_66 = arith.constant 1 : index
    %225 = memref.load %arg1[%c8_65, %c1_66] : memref<32x8xf32, #tpu.memory_space<smem>>
    %226 = vector.broadcast %225 : f32 to vector<128x128xf32>
    %227 = arith.select %224, %226, %222 : vector<128x128xi1>, vector<128x128xf32>
    %c9_i32_67 = arith.constant 9 : i32
    %228 = vector.broadcast %c9_i32_67 : i32 to vector<128x128xi32>
    %229 = arith.cmpi eq, %25, %228 : vector<128x128xi32>
    %c9_68 = arith.constant 9 : index
    %c1_69 = arith.constant 1 : index
    %230 = memref.load %arg1[%c9_68, %c1_69] : memref<32x8xf32, #tpu.memory_space<smem>>
    %231 = vector.broadcast %230 : f32 to vector<128x128xf32>
    %232 = arith.select %229, %231, %227 : vector<128x128xi1>, vector<128x128xf32>
    %c10_i32_70 = arith.constant 10 : i32
    %233 = vector.broadcast %c10_i32_70 : i32 to vector<128x128xi32>
    %234 = arith.cmpi eq, %25, %233 : vector<128x128xi32>
    %c10_71 = arith.constant 10 : index
    %c1_72 = arith.constant 1 : index
    %235 = memref.load %arg1[%c10_71, %c1_72] : memref<32x8xf32, #tpu.memory_space<smem>>
    %236 = vector.broadcast %235 : f32 to vector<128x128xf32>
    %237 = arith.select %234, %236, %232 : vector<128x128xi1>, vector<128x128xf32>
    %c11_i32_73 = arith.constant 11 : i32
    %238 = vector.broadcast %c11_i32_73 : i32 to vector<128x128xi32>
    %239 = arith.cmpi eq, %25, %238 : vector<128x128xi32>
    %c11_74 = arith.constant 11 : index
    %c1_75 = arith.constant 1 : index
    %240 = memref.load %arg1[%c11_74, %c1_75] : memref<32x8xf32, #tpu.memory_space<smem>>
    %241 = vector.broadcast %240 : f32 to vector<128x128xf32>
    %242 = arith.select %239, %241, %237 : vector<128x128xi1>, vector<128x128xf32>
    %c12_i32_76 = arith.constant 12 : i32
    %243 = vector.broadcast %c12_i32_76 : i32 to vector<128x128xi32>
    %244 = arith.cmpi eq, %25, %243 : vector<128x128xi32>
    %c12_77 = arith.constant 12 : index
    %c1_78 = arith.constant 1 : index
    %245 = memref.load %arg1[%c12_77, %c1_78] : memref<32x8xf32, #tpu.memory_space<smem>>
    %246 = vector.broadcast %245 : f32 to vector<128x128xf32>
    %247 = arith.select %244, %246, %242 : vector<128x128xi1>, vector<128x128xf32>
    %c13_i32_79 = arith.constant 13 : i32
    %248 = vector.broadcast %c13_i32_79 : i32 to vector<128x128xi32>
    %249 = arith.cmpi eq, %25, %248 : vector<128x128xi32>
    %c13_80 = arith.constant 13 : index
    %c1_81 = arith.constant 1 : index
    %250 = memref.load %arg1[%c13_80, %c1_81] : memref<32x8xf32, #tpu.memory_space<smem>>
    %251 = vector.broadcast %250 : f32 to vector<128x128xf32>
    %252 = arith.select %249, %251, %247 : vector<128x128xi1>, vector<128x128xf32>
    %c14_i32_82 = arith.constant 14 : i32
    %253 = vector.broadcast %c14_i32_82 : i32 to vector<128x128xi32>
    %254 = arith.cmpi eq, %25, %253 : vector<128x128xi32>
    %c14_83 = arith.constant 14 : index
    %c1_84 = arith.constant 1 : index
    %255 = memref.load %arg1[%c14_83, %c1_84] : memref<32x8xf32, #tpu.memory_space<smem>>
    %256 = vector.broadcast %255 : f32 to vector<128x128xf32>
    %257 = arith.select %254, %256, %252 : vector<128x128xi1>, vector<128x128xf32>
    %c15_i32_85 = arith.constant 15 : i32
    %258 = vector.broadcast %c15_i32_85 : i32 to vector<128x128xi32>
    %259 = arith.cmpi eq, %25, %258 : vector<128x128xi32>
    %c15_86 = arith.constant 15 : index
    %c1_87 = arith.constant 1 : index
    %260 = memref.load %arg1[%c15_86, %c1_87] : memref<32x8xf32, #tpu.memory_space<smem>>
    %261 = vector.broadcast %260 : f32 to vector<128x128xf32>
    %262 = arith.select %259, %261, %257 : vector<128x128xi1>, vector<128x128xf32>
    %c16_i32_88 = arith.constant 16 : i32
    %263 = vector.broadcast %c16_i32_88 : i32 to vector<128x128xi32>
    %264 = arith.cmpi eq, %25, %263 : vector<128x128xi32>
    %c16_89 = arith.constant 16 : index
    %c1_90 = arith.constant 1 : index
    %265 = memref.load %arg1[%c16_89, %c1_90] : memref<32x8xf32, #tpu.memory_space<smem>>
    %266 = vector.broadcast %265 : f32 to vector<128x128xf32>
    %267 = arith.select %264, %266, %262 : vector<128x128xi1>, vector<128x128xf32>
    %c17_i32_91 = arith.constant 17 : i32
    %268 = vector.broadcast %c17_i32_91 : i32 to vector<128x128xi32>
    %269 = arith.cmpi eq, %25, %268 : vector<128x128xi32>
    %c17_92 = arith.constant 17 : index
    %c1_93 = arith.constant 1 : index
    %270 = memref.load %arg1[%c17_92, %c1_93] : memref<32x8xf32, #tpu.memory_space<smem>>
    %271 = vector.broadcast %270 : f32 to vector<128x128xf32>
    %272 = arith.select %269, %271, %267 : vector<128x128xi1>, vector<128x128xf32>
    %c18_i32_94 = arith.constant 18 : i32
    %273 = vector.broadcast %c18_i32_94 : i32 to vector<128x128xi32>
    %274 = arith.cmpi eq, %25, %273 : vector<128x128xi32>
    %c18_95 = arith.constant 18 : index
    %c1_96 = arith.constant 1 : index
    %275 = memref.load %arg1[%c18_95, %c1_96] : memref<32x8xf32, #tpu.memory_space<smem>>
    %276 = vector.broadcast %275 : f32 to vector<128x128xf32>
    %277 = arith.select %274, %276, %272 : vector<128x128xi1>, vector<128x128xf32>
    %c19_i32_97 = arith.constant 19 : i32
    %278 = vector.broadcast %c19_i32_97 : i32 to vector<128x128xi32>
    %279 = arith.cmpi eq, %25, %278 : vector<128x128xi32>
    %c19_98 = arith.constant 19 : index
    %c1_99 = arith.constant 1 : index
    %280 = memref.load %arg1[%c19_98, %c1_99] : memref<32x8xf32, #tpu.memory_space<smem>>
    %281 = vector.broadcast %280 : f32 to vector<128x128xf32>
    %282 = arith.select %279, %281, %277 : vector<128x128xi1>, vector<128x128xf32>
    %c20_i32_100 = arith.constant 20 : i32
    %283 = vector.broadcast %c20_i32_100 : i32 to vector<128x128xi32>
    %284 = arith.cmpi eq, %25, %283 : vector<128x128xi32>
    %c20_101 = arith.constant 20 : index
    %c1_102 = arith.constant 1 : index
    %285 = memref.load %arg1[%c20_101, %c1_102] : memref<32x8xf32, #tpu.memory_space<smem>>
    %286 = vector.broadcast %285 : f32 to vector<128x128xf32>
    %287 = arith.select %284, %286, %282 : vector<128x128xi1>, vector<128x128xf32>
    %c21_i32_103 = arith.constant 21 : i32
    %288 = vector.broadcast %c21_i32_103 : i32 to vector<128x128xi32>
    %289 = arith.cmpi eq, %25, %288 : vector<128x128xi32>
    %c21_104 = arith.constant 21 : index
    %c1_105 = arith.constant 1 : index
    %290 = memref.load %arg1[%c21_104, %c1_105] : memref<32x8xf32, #tpu.memory_space<smem>>
    %291 = vector.broadcast %290 : f32 to vector<128x128xf32>
    %292 = arith.select %289, %291, %287 : vector<128x128xi1>, vector<128x128xf32>
    %c22_i32_106 = arith.constant 22 : i32
    %293 = vector.broadcast %c22_i32_106 : i32 to vector<128x128xi32>
    %294 = arith.cmpi eq, %25, %293 : vector<128x128xi32>
    %c22_107 = arith.constant 22 : index
    %c1_108 = arith.constant 1 : index
    %295 = memref.load %arg1[%c22_107, %c1_108] : memref<32x8xf32, #tpu.memory_space<smem>>
    %296 = vector.broadcast %295 : f32 to vector<128x128xf32>
    %297 = arith.select %294, %296, %292 : vector<128x128xi1>, vector<128x128xf32>
    %c23_i32_109 = arith.constant 23 : i32
    %298 = vector.broadcast %c23_i32_109 : i32 to vector<128x128xi32>
    %299 = arith.cmpi eq, %25, %298 : vector<128x128xi32>
    %c23_110 = arith.constant 23 : index
    %c1_111 = arith.constant 1 : index
    %300 = memref.load %arg1[%c23_110, %c1_111] : memref<32x8xf32, #tpu.memory_space<smem>>
    %301 = vector.broadcast %300 : f32 to vector<128x128xf32>
    %302 = arith.select %299, %301, %297 : vector<128x128xi1>, vector<128x128xf32>
    %c24_i32_112 = arith.constant 24 : i32
    %303 = vector.broadcast %c24_i32_112 : i32 to vector<128x128xi32>
    %304 = arith.cmpi eq, %25, %303 : vector<128x128xi32>
    %c24_113 = arith.constant 24 : index
    %c1_114 = arith.constant 1 : index
    %305 = memref.load %arg1[%c24_113, %c1_114] : memref<32x8xf32, #tpu.memory_space<smem>>
    %306 = vector.broadcast %305 : f32 to vector<128x128xf32>
    %307 = arith.select %304, %306, %302 : vector<128x128xi1>, vector<128x128xf32>
    %c25_i32_115 = arith.constant 25 : i32
    %308 = vector.broadcast %c25_i32_115 : i32 to vector<128x128xi32>
    %309 = arith.cmpi eq, %25, %308 : vector<128x128xi32>
    %c25_116 = arith.constant 25 : index
    %c1_117 = arith.constant 1 : index
    %310 = memref.load %arg1[%c25_116, %c1_117] : memref<32x8xf32, #tpu.memory_space<smem>>
    %311 = vector.broadcast %310 : f32 to vector<128x128xf32>
    %312 = arith.select %309, %311, %307 : vector<128x128xi1>, vector<128x128xf32>
    %c26_i32_118 = arith.constant 26 : i32
    %313 = vector.broadcast %c26_i32_118 : i32 to vector<128x128xi32>
    %314 = arith.cmpi eq, %25, %313 : vector<128x128xi32>
    %c26_119 = arith.constant 26 : index
    %c1_120 = arith.constant 1 : index
    %315 = memref.load %arg1[%c26_119, %c1_120] : memref<32x8xf32, #tpu.memory_space<smem>>
    %316 = vector.broadcast %315 : f32 to vector<128x128xf32>
    %317 = arith.select %314, %316, %312 : vector<128x128xi1>, vector<128x128xf32>
    %c27_i32_121 = arith.constant 27 : i32
    %318 = vector.broadcast %c27_i32_121 : i32 to vector<128x128xi32>
    %319 = arith.cmpi eq, %25, %318 : vector<128x128xi32>
    %c27_122 = arith.constant 27 : index
    %c1_123 = arith.constant 1 : index
    %320 = memref.load %arg1[%c27_122, %c1_123] : memref<32x8xf32, #tpu.memory_space<smem>>
    %321 = vector.broadcast %320 : f32 to vector<128x128xf32>
    %322 = arith.select %319, %321, %317 : vector<128x128xi1>, vector<128x128xf32>
    %c28_i32_124 = arith.constant 28 : i32
    %323 = vector.broadcast %c28_i32_124 : i32 to vector<128x128xi32>
    %324 = arith.cmpi eq, %25, %323 : vector<128x128xi32>
    %c28_125 = arith.constant 28 : index
    %c1_126 = arith.constant 1 : index
    %325 = memref.load %arg1[%c28_125, %c1_126] : memref<32x8xf32, #tpu.memory_space<smem>>
    %326 = vector.broadcast %325 : f32 to vector<128x128xf32>
    %327 = arith.select %324, %326, %322 : vector<128x128xi1>, vector<128x128xf32>
    %c29_i32_127 = arith.constant 29 : i32
    %328 = vector.broadcast %c29_i32_127 : i32 to vector<128x128xi32>
    %329 = arith.cmpi eq, %25, %328 : vector<128x128xi32>
    %c29_128 = arith.constant 29 : index
    %c1_129 = arith.constant 1 : index
    %330 = memref.load %arg1[%c29_128, %c1_129] : memref<32x8xf32, #tpu.memory_space<smem>>
    %331 = vector.broadcast %330 : f32 to vector<128x128xf32>
    %332 = arith.select %329, %331, %327 : vector<128x128xi1>, vector<128x128xf32>
    %c30_i32_130 = arith.constant 30 : i32
    %333 = vector.broadcast %c30_i32_130 : i32 to vector<128x128xi32>
    %334 = arith.cmpi eq, %25, %333 : vector<128x128xi32>
    %c30_131 = arith.constant 30 : index
    %c1_132 = arith.constant 1 : index
    %335 = memref.load %arg1[%c30_131, %c1_132] : memref<32x8xf32, #tpu.memory_space<smem>>
    %336 = vector.broadcast %335 : f32 to vector<128x128xf32>
    %337 = arith.select %334, %336, %332 : vector<128x128xi1>, vector<128x128xf32>
    %c31_i32_133 = arith.constant 31 : i32
    %338 = vector.broadcast %c31_i32_133 : i32 to vector<128x128xi32>
    %339 = arith.cmpi eq, %25, %338 : vector<128x128xi32>
    %c31_134 = arith.constant 31 : index
    %c1_135 = arith.constant 1 : index
    %340 = memref.load %arg1[%c31_134, %c1_135] : memref<32x8xf32, #tpu.memory_space<smem>>
    %341 = vector.broadcast %340 : f32 to vector<128x128xf32>
    %342 = arith.select %339, %341, %337 : vector<128x128xi1>, vector<128x128xf32>
    %c1_136 = arith.constant 1 : index
    %c0_137 = arith.constant 0 : index
    %c0_138 = arith.constant 0 : index
    %343 = vector.load %arg2[%c1_136, %c0_137, %c0_138] : memref<8x128x128xf32, #tpu.memory_space<vmem>>, vector<1x128x128xf32>
    %344 = vector.shape_cast %343 : vector<1x128x128xf32> to vector<128x128xf32>
    %345 = vector.shape_cast %342 : vector<128x128xf32> to vector<1x128x128xf32>
    tpu.vector_store %arg2[%c1_136, %c0_137, %c0_138], %345 {strides = array<i32>} : memref<8x128x128xf32, #tpu.memory_space<vmem>>, vector<1x128x128xf32>,
    %c0_139 = arith.constant 0 : index
    %c2_140 = arith.constant 2 : index
    %346 = memref.load %arg1[%c0_139, %c2_140] : memref<32x8xf32, #tpu.memory_space<smem>>
    %347 = vector.broadcast %346 : f32 to vector<128x128xf32>
    %c1_i32_141 = arith.constant 1 : i32
    %348 = vector.broadcast %c1_i32_141 : i32 to vector<128x128xi32>
    %349 = arith.cmpi eq, %25, %348 : vector<128x128xi32>
    %c1_142 = arith.constant 1 : index
    %c2_143 = arith.constant 2 : index
    %350 = memref.load %arg1[%c1_142, %c2_143] : memref<32x8xf32, #tpu.memory_space<smem>>
    %351 = vector.broadcast %350 : f32 to vector<128x128xf32>
    %352 = arith.select %349, %351, %347 : vector<128x128xi1>, vector<128x128xf32>
    %c2_i32_144 = arith.constant 2 : i32
    %353 = vector.broadcast %c2_i32_144 : i32 to vector<128x128xi32>
    %354 = arith.cmpi eq, %25, %353 : vector<128x128xi32>
    %c2_145 = arith.constant 2 : index
    %c2_146 = arith.constant 2 : index
    %355 = memref.load %arg1[%c2_145, %c2_146] : memref<32x8xf32, #tpu.memory_space<smem>>
    %356 = vector.broadcast %355 : f32 to vector<128x128xf32>
    %357 = arith.select %354, %356, %352 : vector<128x128xi1>, vector<128x128xf32>
    %c3_i32_147 = arith.constant 3 : i32
    %358 = vector.broadcast %c3_i32_147 : i32 to vector<128x128xi32>
    %359 = arith.cmpi eq, %25, %358 : vector<128x128xi32>
    %c3_148 = arith.constant 3 : index
    %c2_149 = arith.constant 2 : index
    %360 = memref.load %arg1[%c3_148, %c2_149] : memref<32x8xf32, #tpu.memory_space<smem>>
    %361 = vector.broadcast %360 : f32 to vector<128x128xf32>
    %362 = arith.select %359, %361, %357 : vector<128x128xi1>, vector<128x128xf32>
    %c4_i32_150 = arith.constant 4 : i32
    %363 = vector.broadcast %c4_i32_150 : i32 to vector<128x128xi32>
    %364 = arith.cmpi eq, %25, %363 : vector<128x128xi32>
    %c4_151 = arith.constant 4 : index
    %c2_152 = arith.constant 2 : index
    %365 = memref.load %arg1[%c4_151, %c2_152] : memref<32x8xf32, #tpu.memory_space<smem>>
    %366 = vector.broadcast %365 : f32 to vector<128x128xf32>
    %367 = arith.select %364, %366, %362 : vector<128x128xi1>, vector<128x128xf32>
    %c5_i32_153 = arith.constant 5 : i32
    %368 = vector.broadcast %c5_i32_153 : i32 to vector<128x128xi32>
    %369 = arith.cmpi eq, %25, %368 : vector<128x128xi32>
    %c5_154 = arith.constant 5 : index
    %c2_155 = arith.constant 2 : index
    %370 = memref.load %arg1[%c5_154, %c2_155] : memref<32x8xf32, #tpu.memory_space<smem>>
    %371 = vector.broadcast %370 : f32 to vector<128x128xf32>
    %372 = arith.select %369, %371, %367 : vector<128x128xi1>, vector<128x128xf32>
    %c6_i32_156 = arith.constant 6 : i32
    %373 = vector.broadcast %c6_i32_156 : i32 to vector<128x128xi32>
    %374 = arith.cmpi eq, %25, %373 : vector<128x128xi32>
    %c6_157 = arith.constant 6 : index
    %c2_158 = arith.constant 2 : index
    %375 = memref.load %arg1[%c6_157, %c2_158] : memref<32x8xf32, #tpu.memory_space<smem>>
    %376 = vector.broadcast %375 : f32 to vector<128x128xf32>
    %377 = arith.select %374, %376, %372 : vector<128x128xi1>, vector<128x128xf32>
    %c7_i32_159 = arith.constant 7 : i32
    %378 = vector.broadcast %c7_i32_159 : i32 to vector<128x128xi32>
    %379 = arith.cmpi eq, %25, %378 : vector<128x128xi32>
    %c7_160 = arith.constant 7 : index
    %c2_161 = arith.constant 2 : index
    %380 = memref.load %arg1[%c7_160, %c2_161] : memref<32x8xf32, #tpu.memory_space<smem>>
    %381 = vector.broadcast %380 : f32 to vector<128x128xf32>
    %382 = arith.select %379, %381, %377 : vector<128x128xi1>, vector<128x128xf32>
    %c8_i32_162 = arith.constant 8 : i32
    %383 = vector.broadcast %c8_i32_162 : i32 to vector<128x128xi32>
    %384 = arith.cmpi eq, %25, %383 : vector<128x128xi32>
    %c8_163 = arith.constant 8 : index
    %c2_164 = arith.constant 2 : index
    %385 = memref.load %arg1[%c8_163, %c2_164] : memref<32x8xf32, #tpu.memory_space<smem>>
    %386 = vector.broadcast %385 : f32 to vector<128x128xf32>
    %387 = arith.select %384, %386, %382 : vector<128x128xi1>, vector<128x128xf32>
    %c9_i32_165 = arith.constant 9 : i32
    %388 = vector.broadcast %c9_i32_165 : i32 to vector<128x128xi32>
    %389 = arith.cmpi eq, %25, %388 : vector<128x128xi32>
    %c9_166 = arith.constant 9 : index
    %c2_167 = arith.constant 2 : index
    %390 = memref.load %arg1[%c9_166, %c2_167] : memref<32x8xf32, #tpu.memory_space<smem>>
    %391 = vector.broadcast %390 : f32 to vector<128x128xf32>
    %392 = arith.select %389, %391, %387 : vector<128x128xi1>, vector<128x128xf32>
    %c10_i32_168 = arith.constant 10 : i32
    %393 = vector.broadcast %c10_i32_168 : i32 to vector<128x128xi32>
    %394 = arith.cmpi eq, %25, %393 : vector<128x128xi32>
    %c10_169 = arith.constant 10 : index
    %c2_170 = arith.constant 2 : index
    %395 = memref.load %arg1[%c10_169, %c2_170] : memref<32x8xf32, #tpu.memory_space<smem>>
    %396 = vector.broadcast %395 : f32 to vector<128x128xf32>
    %397 = arith.select %394, %396, %392 : vector<128x128xi1>, vector<128x128xf32>
    %c11_i32_171 = arith.constant 11 : i32
    %398 = vector.broadcast %c11_i32_171 : i32 to vector<128x128xi32>
    %399 = arith.cmpi eq, %25, %398 : vector<128x128xi32>
    %c11_172 = arith.constant 11 : index
    %c2_173 = arith.constant 2 : index
    %400 = memref.load %arg1[%c11_172, %c2_173] : memref<32x8xf32, #tpu.memory_space<smem>>
    %401 = vector.broadcast %400 : f32 to vector<128x128xf32>
    %402 = arith.select %399, %401, %397 : vector<128x128xi1>, vector<128x128xf32>
    %c12_i32_174 = arith.constant 12 : i32
    %403 = vector.broadcast %c12_i32_174 : i32 to vector<128x128xi32>
    %404 = arith.cmpi eq, %25, %403 : vector<128x128xi32>
    %c12_175 = arith.constant 12 : index
    %c2_176 = arith.constant 2 : index
    %405 = memref.load %arg1[%c12_175, %c2_176] : memref<32x8xf32, #tpu.memory_space<smem>>
    %406 = vector.broadcast %405 : f32 to vector<128x128xf32>
    %407 = arith.select %404, %406, %402 : vector<128x128xi1>, vector<128x128xf32>
    %c13_i32_177 = arith.constant 13 : i32
    %408 = vector.broadcast %c13_i32_177 : i32 to vector<128x128xi32>
    %409 = arith.cmpi eq, %25, %408 : vector<128x128xi32>
    %c13_178 = arith.constant 13 : index
    %c2_179 = arith.constant 2 : index
    %410 = memref.load %arg1[%c13_178, %c2_179] : memref<32x8xf32, #tpu.memory_space<smem>>
    %411 = vector.broadcast %410 : f32 to vector<128x128xf32>
    %412 = arith.select %409, %411, %407 : vector<128x128xi1>, vector<128x128xf32>
    %c14_i32_180 = arith.constant 14 : i32
    %413 = vector.broadcast %c14_i32_180 : i32 to vector<128x128xi32>
    %414 = arith.cmpi eq, %25, %413 : vector<128x128xi32>
    %c14_181 = arith.constant 14 : index
    %c2_182 = arith.constant 2 : index
    %415 = memref.load %arg1[%c14_181, %c2_182] : memref<32x8xf32, #tpu.memory_space<smem>>
    %416 = vector.broadcast %415 : f32 to vector<128x128xf32>
    %417 = arith.select %414, %416, %412 : vector<128x128xi1>, vector<128x128xf32>
    %c15_i32_183 = arith.constant 15 : i32
    %418 = vector.broadcast %c15_i32_183 : i32 to vector<128x128xi32>
    %419 = arith.cmpi eq, %25, %418 : vector<128x128xi32>
    %c15_184 = arith.constant 15 : index
    %c2_185 = arith.constant 2 : index
    %420 = memref.load %arg1[%c15_184, %c2_185] : memref<32x8xf32, #tpu.memory_space<smem>>
    %421 = vector.broadcast %420 : f32 to vector<128x128xf32>
    %422 = arith.select %419, %421, %417 : vector<128x128xi1>, vector<128x128xf32>
    %c16_i32_186 = arith.constant 16 : i32
    %423 = vector.broadcast %c16_i32_186 : i32 to vector<128x128xi32>
    %424 = arith.cmpi eq, %25, %423 : vector<128x128xi32>
    %c16_187 = arith.constant 16 : index
    %c2_188 = arith.constant 2 : index
    %425 = memref.load %arg1[%c16_187, %c2_188] : memref<32x8xf32, #tpu.memory_space<smem>>
    %426 = vector.broadcast %425 : f32 to vector<128x128xf32>
    %427 = arith.select %424, %426, %422 : vector<128x128xi1>, vector<128x128xf32>
    %c17_i32_189 = arith.constant 17 : i32
    %428 = vector.broadcast %c17_i32_189 : i32 to vector<128x128xi32>
    %429 = arith.cmpi eq, %25, %428 : vector<128x128xi32>
    %c17_190 = arith.constant 17 : index
    %c2_191 = arith.constant 2 : index
    %430 = memref.load %arg1[%c17_190, %c2_191] : memref<32x8xf32, #tpu.memory_space<smem>>
    %431 = vector.broadcast %430 : f32 to vector<128x128xf32>
    %432 = arith.select %429, %431, %427 : vector<128x128xi1>, vector<128x128xf32>
    %c18_i32_192 = arith.constant 18 : i32
    %433 = vector.broadcast %c18_i32_192 : i32 to vector<128x128xi32>
    %434 = arith.cmpi eq, %25, %433 : vector<128x128xi32>
    %c18_193 = arith.constant 18 : index
    %c2_194 = arith.constant 2 : index
    %435 = memref.load %arg1[%c18_193, %c2_194] : memref<32x8xf32, #tpu.memory_space<smem>>
    %436 = vector.broadcast %435 : f32 to vector<128x128xf32>
    %437 = arith.select %434, %436, %432 : vector<128x128xi1>, vector<128x128xf32>
    %c19_i32_195 = arith.constant 19 : i32
    %438 = vector.broadcast %c19_i32_195 : i32 to vector<128x128xi32>
    %439 = arith.cmpi eq, %25, %438 : vector<128x128xi32>
    %c19_196 = arith.constant 19 : index
    %c2_197 = arith.constant 2 : index
    %440 = memref.load %arg1[%c19_196, %c2_197] : memref<32x8xf32, #tpu.memory_space<smem>>
    %441 = vector.broadcast %440 : f32 to vector<128x128xf32>
    %442 = arith.select %439, %441, %437 : vector<128x128xi1>, vector<128x128xf32>
    %c20_i32_198 = arith.constant 20 : i32
    %443 = vector.broadcast %c20_i32_198 : i32 to vector<128x128xi32>
    %444 = arith.cmpi eq, %25, %443 : vector<128x128xi32>
    %c20_199 = arith.constant 20 : index
    %c2_200 = arith.constant 2 : index
    %445 = memref.load %arg1[%c20_199, %c2_200] : memref<32x8xf32, #tpu.memory_space<smem>>
    %446 = vector.broadcast %445 : f32 to vector<128x128xf32>
    %447 = arith.select %444, %446, %442 : vector<128x128xi1>, vector<128x128xf32>
    %c21_i32_201 = arith.constant 21 : i32
    %448 = vector.broadcast %c21_i32_201 : i32 to vector<128x128xi32>
    %449 = arith.cmpi eq, %25, %448 : vector<128x128xi32>
    %c21_202 = arith.constant 21 : index
    %c2_203 = arith.constant 2 : index
    %450 = memref.load %arg1[%c21_202, %c2_203] : memref<32x8xf32, #tpu.memory_space<smem>>
    %451 = vector.broadcast %450 : f32 to vector<128x128xf32>
    %452 = arith.select %449, %451, %447 : vector<128x128xi1>, vector<128x128xf32>
    %c22_i32_204 = arith.constant 22 : i32
    %453 = vector.broadcast %c22_i32_204 : i32 to vector<128x128xi32>
    %454 = arith.cmpi eq, %25, %453 : vector<128x128xi32>
    %c22_205 = arith.constant 22 : index
    %c2_206 = arith.constant 2 : index
    %455 = memref.load %arg1[%c22_205, %c2_206] : memref<32x8xf32, #tpu.memory_space<smem>>
    %456 = vector.broadcast %455 : f32 to vector<128x128xf32>
    %457 = arith.select %454, %456, %452 : vector<128x128xi1>, vector<128x128xf32>
    %c23_i32_207 = arith.constant 23 : i32
    %458 = vector.broadcast %c23_i32_207 : i32 to vector<128x128xi32>
    %459 = arith.cmpi eq, %25, %458 : vector<128x128xi32>
    %c23_208 = arith.constant 23 : index
    %c2_209 = arith.constant 2 : index
    %460 = memref.load %arg1[%c23_208, %c2_209] : memref<32x8xf32, #tpu.memory_space<smem>>
    %461 = vector.broadcast %460 : f32 to vector<128x128xf32>
    %462 = arith.select %459, %461, %457 : vector<128x128xi1>, vector<128x128xf32>
    %c24_i32_210 = arith.constant 24 : i32
    %463 = vector.broadcast %c24_i32_210 : i32 to vector<128x128xi32>
    %464 = arith.cmpi eq, %25, %463 : vector<128x128xi32>
    %c24_211 = arith.constant 24 : index
    %c2_212 = arith.constant 2 : index
    %465 = memref.load %arg1[%c24_211, %c2_212] : memref<32x8xf32, #tpu.memory_space<smem>>
    %466 = vector.broadcast %465 : f32 to vector<128x128xf32>
    %467 = arith.select %464, %466, %462 : vector<128x128xi1>, vector<128x128xf32>
    %c25_i32_213 = arith.constant 25 : i32
    %468 = vector.broadcast %c25_i32_213 : i32 to vector<128x128xi32>
    %469 = arith.cmpi eq, %25, %468 : vector<128x128xi32>
    %c25_214 = arith.constant 25 : index
    %c2_215 = arith.constant 2 : index
    %470 = memref.load %arg1[%c25_214, %c2_215] : memref<32x8xf32, #tpu.memory_space<smem>>
    %471 = vector.broadcast %470 : f32 to vector<128x128xf32>
    %472 = arith.select %469, %471, %467 : vector<128x128xi1>, vector<128x128xf32>
    %c26_i32_216 = arith.constant 26 : i32
    %473 = vector.broadcast %c26_i32_216 : i32 to vector<128x128xi32>
    %474 = arith.cmpi eq, %25, %473 : vector<128x128xi32>
    %c26_217 = arith.constant 26 : index
    %c2_218 = arith.constant 2 : index
    %475 = memref.load %arg1[%c26_217, %c2_218] : memref<32x8xf32, #tpu.memory_space<smem>>
    %476 = vector.broadcast %475 : f32 to vector<128x128xf32>
    %477 = arith.select %474, %476, %472 : vector<128x128xi1>, vector<128x128xf32>
    %c27_i32_219 = arith.constant 27 : i32
    %478 = vector.broadcast %c27_i32_219 : i32 to vector<128x128xi32>
    %479 = arith.cmpi eq, %25, %478 : vector<128x128xi32>
    %c27_220 = arith.constant 27 : index
    %c2_221 = arith.constant 2 : index
    %480 = memref.load %arg1[%c27_220, %c2_221] : memref<32x8xf32, #tpu.memory_space<smem>>
    %481 = vector.broadcast %480 : f32 to vector<128x128xf32>
    %482 = arith.select %479, %481, %477 : vector<128x128xi1>, vector<128x128xf32>
    %c28_i32_222 = arith.constant 28 : i32
    %483 = vector.broadcast %c28_i32_222 : i32 to vector<128x128xi32>
    %484 = arith.cmpi eq, %25, %483 : vector<128x128xi32>
    %c28_223 = arith.constant 28 : index
    %c2_224 = arith.constant 2 : index
    %485 = memref.load %arg1[%c28_223, %c2_224] : memref<32x8xf32, #tpu.memory_space<smem>>
    %486 = vector.broadcast %485 : f32 to vector<128x128xf32>
    %487 = arith.select %484, %486, %482 : vector<128x128xi1>, vector<128x128xf32>
    %c29_i32_225 = arith.constant 29 : i32
    %488 = vector.broadcast %c29_i32_225 : i32 to vector<128x128xi32>
    %489 = arith.cmpi eq, %25, %488 : vector<128x128xi32>
    %c29_226 = arith.constant 29 : index
    %c2_227 = arith.constant 2 : index
    %490 = memref.load %arg1[%c29_226, %c2_227] : memref<32x8xf32, #tpu.memory_space<smem>>
    %491 = vector.broadcast %490 : f32 to vector<128x128xf32>
    %492 = arith.select %489, %491, %487 : vector<128x128xi1>, vector<128x128xf32>
    %c30_i32_228 = arith.constant 30 : i32
    %493 = vector.broadcast %c30_i32_228 : i32 to vector<128x128xi32>
    %494 = arith.cmpi eq, %25, %493 : vector<128x128xi32>
    %c30_229 = arith.constant 30 : index
    %c2_230 = arith.constant 2 : index
    %495 = memref.load %arg1[%c30_229, %c2_230] : memref<32x8xf32, #tpu.memory_space<smem>>
    %496 = vector.broadcast %495 : f32 to vector<128x128xf32>
    %497 = arith.select %494, %496, %492 : vector<128x128xi1>, vector<128x128xf32>
    %c31_i32_231 = arith.constant 31 : i32
    %498 = vector.broadcast %c31_i32_231 : i32 to vector<128x128xi32>
    %499 = arith.cmpi eq, %25, %498 : vector<128x128xi32>
    %c31_232 = arith.constant 31 : index
    %c2_233 = arith.constant 2 : index
    %500 = memref.load %arg1[%c31_232, %c2_233] : memref<32x8xf32, #tpu.memory_space<smem>>
    %501 = vector.broadcast %500 : f32 to vector<128x128xf32>
    %502 = arith.select %499, %501, %497 : vector<128x128xi1>, vector<128x128xf32>
    %c2_234 = arith.constant 2 : index
    %c0_235 = arith.constant 0 : index
    %c0_236 = arith.constant 0 : index
    %503 = vector.load %arg2[%c2_234, %c0_235, %c0_236] : memref<8x128x128xf32, #tpu.memory_space<vmem>>, vector<1x128x128xf32>
    %504 = vector.shape_cast %503 : vector<1x128x128xf32> to vector<128x128xf32>
    %505 = vector.shape_cast %502 : vector<128x128xf32> to vector<1x128x128xf32>
    tpu.vector_store %arg2[%c2_234, %c0_235, %c0_236], %505 {strides = array<i32>} : memref<8x128x128xf32, #tpu.memory_space<vmem>>, vector<1x128x128xf32>,
    %c0_237 = arith.constant 0 : index
    %c3_238 = arith.constant 3 : index
    %506 = memref.load %arg1[%c0_237, %c3_238] : memref<32x8xf32, #tpu.memory_space<smem>>
    %507 = vector.broadcast %506 : f32 to vector<128x128xf32>
    %c1_i32_239 = arith.constant 1 : i32
    %508 = vector.broadcast %c1_i32_239 : i32 to vector<128x128xi32>
    %509 = arith.cmpi eq, %25, %508 : vector<128x128xi32>
    %c1_240 = arith.constant 1 : index
    %c3_241 = arith.constant 3 : index
    %510 = memref.load %arg1[%c1_240, %c3_241] : memref<32x8xf32, #tpu.memory_space<smem>>
    %511 = vector.broadcast %510 : f32 to vector<128x128xf32>
    %512 = arith.select %509, %511, %507 : vector<128x128xi1>, vector<128x128xf32>
    %c2_i32_242 = arith.constant 2 : i32
    %513 = vector.broadcast %c2_i32_242 : i32 to vector<128x128xi32>
    %514 = arith.cmpi eq, %25, %513 : vector<128x128xi32>
    %c2_243 = arith.constant 2 : index
    %c3_244 = arith.constant 3 : index
    %515 = memref.load %arg1[%c2_243, %c3_244] : memref<32x8xf32, #tpu.memory_space<smem>>
    %516 = vector.broadcast %515 : f32 to vector<128x128xf32>
    %517 = arith.select %514, %516, %512 : vector<128x128xi1>, vector<128x128xf32>
    %c3_i32_245 = arith.constant 3 : i32
    %518 = vector.broadcast %c3_i32_245 : i32 to vector<128x128xi32>
    %519 = arith.cmpi eq, %25, %518 : vector<128x128xi32>
    %c3_246 = arith.constant 3 : index
    %c3_247 = arith.constant 3 : index
    %520 = memref.load %arg1[%c3_246, %c3_247] : memref<32x8xf32, #tpu.memory_space<smem>>
    %521 = vector.broadcast %520 : f32 to vector<128x128xf32>
    %522 = arith.select %519, %521, %517 : vector<128x128xi1>, vector<128x128xf32>
    %c4_i32_248 = arith.constant 4 : i32
    %523 = vector.broadcast %c4_i32_248 : i32 to vector<128x128xi32>
    %524 = arith.cmpi eq, %25, %523 : vector<128x128xi32>
    %c4_249 = arith.constant 4 : index
    %c3_250 = arith.constant 3 : index
    %525 = memref.load %arg1[%c4_249, %c3_250] : memref<32x8xf32, #tpu.memory_space<smem>>
    %526 = vector.broadcast %525 : f32 to vector<128x128xf32>
    %527 = arith.select %524, %526, %522 : vector<128x128xi1>, vector<128x128xf32>
    %c5_i32_251 = arith.constant 5 : i32
    %528 = vector.broadcast %c5_i32_251 : i32 to vector<128x128xi32>
    %529 = arith.cmpi eq, %25, %528 : vector<128x128xi32>
    %c5_252 = arith.constant 5 : index
    %c3_253 = arith.constant 3 : index
    %530 = memref.load %arg1[%c5_252, %c3_253] : memref<32x8xf32, #tpu.memory_space<smem>>
    %531 = vector.broadcast %530 : f32 to vector<128x128xf32>
    %532 = arith.select %529, %531, %527 : vector<128x128xi1>, vector<128x128xf32>
    %c6_i32_254 = arith.constant 6 : i32
    %533 = vector.broadcast %c6_i32_254 : i32 to vector<128x128xi32>
    %534 = arith.cmpi eq, %25, %533 : vector<128x128xi32>
    %c6_255 = arith.constant 6 : index
    %c3_256 = arith.constant 3 : index
    %535 = memref.load %arg1[%c6_255, %c3_256] : memref<32x8xf32, #tpu.memory_space<smem>>
    %536 = vector.broadcast %535 : f32 to vector<128x128xf32>
    %537 = arith.select %534, %536, %532 : vector<128x128xi1>, vector<128x128xf32>
    %c7_i32_257 = arith.constant 7 : i32
    %538 = vector.broadcast %c7_i32_257 : i32 to vector<128x128xi32>
    %539 = arith.cmpi eq, %25, %538 : vector<128x128xi32>
    %c7_258 = arith.constant 7 : index
    %c3_259 = arith.constant 3 : index
    %540 = memref.load %arg1[%c7_258, %c3_259] : memref<32x8xf32, #tpu.memory_space<smem>>
    %541 = vector.broadcast %540 : f32 to vector<128x128xf32>
    %542 = arith.select %539, %541, %537 : vector<128x128xi1>, vector<128x128xf32>
    %c8_i32_260 = arith.constant 8 : i32
    %543 = vector.broadcast %c8_i32_260 : i32 to vector<128x128xi32>
    %544 = arith.cmpi eq, %25, %543 : vector<128x128xi32>
    %c8_261 = arith.constant 8 : index
    %c3_262 = arith.constant 3 : index
    %545 = memref.load %arg1[%c8_261, %c3_262] : memref<32x8xf32, #tpu.memory_space<smem>>
    %546 = vector.broadcast %545 : f32 to vector<128x128xf32>
    %547 = arith.select %544, %546, %542 : vector<128x128xi1>, vector<128x128xf32>
    %c9_i32_263 = arith.constant 9 : i32
    %548 = vector.broadcast %c9_i32_263 : i32 to vector<128x128xi32>
    %549 = arith.cmpi eq, %25, %548 : vector<128x128xi32>
    %c9_264 = arith.constant 9 : index
    %c3_265 = arith.constant 3 : index
    %550 = memref.load %arg1[%c9_264, %c3_265] : memref<32x8xf32, #tpu.memory_space<smem>>
    %551 = vector.broadcast %550 : f32 to vector<128x128xf32>
    %552 = arith.select %549, %551, %547 : vector<128x128xi1>, vector<128x128xf32>
    %c10_i32_266 = arith.constant 10 : i32
    %553 = vector.broadcast %c10_i32_266 : i32 to vector<128x128xi32>
    %554 = arith.cmpi eq, %25, %553 : vector<128x128xi32>
    %c10_267 = arith.constant 10 : index
    %c3_268 = arith.constant 3 : index
    %555 = memref.load %arg1[%c10_267, %c3_268] : memref<32x8xf32, #tpu.memory_space<smem>>
    %556 = vector.broadcast %555 : f32 to vector<128x128xf32>
    %557 = arith.select %554, %556, %552 : vector<128x128xi1>, vector<128x128xf32>
    %c11_i32_269 = arith.constant 11 : i32
    %558 = vector.broadcast %c11_i32_269 : i32 to vector<128x128xi32>
    %559 = arith.cmpi eq, %25, %558 : vector<128x128xi32>
    %c11_270 = arith.constant 11 : index
    %c3_271 = arith.constant 3 : index
    %560 = memref.load %arg1[%c11_270, %c3_271] : memref<32x8xf32, #tpu.memory_space<smem>>
    %561 = vector.broadcast %560 : f32 to vector<128x128xf32>
    %562 = arith.select %559, %561, %557 : vector<128x128xi1>, vector<128x128xf32>
    %c12_i32_272 = arith.constant 12 : i32
    %563 = vector.broadcast %c12_i32_272 : i32 to vector<128x128xi32>
    %564 = arith.cmpi eq, %25, %563 : vector<128x128xi32>
    %c12_273 = arith.constant 12 : index
    %c3_274 = arith.constant 3 : index
    %565 = memref.load %arg1[%c12_273, %c3_274] : memref<32x8xf32, #tpu.memory_space<smem>>
    %566 = vector.broadcast %565 : f32 to vector<128x128xf32>
    %567 = arith.select %564, %566, %562 : vector<128x128xi1>, vector<128x128xf32>
    %c13_i32_275 = arith.constant 13 : i32
    %568 = vector.broadcast %c13_i32_275 : i32 to vector<128x128xi32>
    %569 = arith.cmpi eq, %25, %568 : vector<128x128xi32>
    %c13_276 = arith.constant 13 : index
    %c3_277 = arith.constant 3 : index
    %570 = memref.load %arg1[%c13_276, %c3_277] : memref<32x8xf32, #tpu.memory_space<smem>>
    %571 = vector.broadcast %570 : f32 to vector<128x128xf32>
    %572 = arith.select %569, %571, %567 : vector<128x128xi1>, vector<128x128xf32>
    %c14_i32_278 = arith.constant 14 : i32
    %573 = vector.broadcast %c14_i32_278 : i32 to vector<128x128xi32>
    %574 = arith.cmpi eq, %25, %573 : vector<128x128xi32>
    %c14_279 = arith.constant 14 : index
    %c3_280 = arith.constant 3 : index
    %575 = memref.load %arg1[%c14_279, %c3_280] : memref<32x8xf32, #tpu.memory_space<smem>>
    %576 = vector.broadcast %575 : f32 to vector<128x128xf32>
    %577 = arith.select %574, %576, %572 : vector<128x128xi1>, vector<128x128xf32>
    %c15_i32_281 = arith.constant 15 : i32
    %578 = vector.broadcast %c15_i32_281 : i32 to vector<128x128xi32>
    %579 = arith.cmpi eq, %25, %578 : vector<128x128xi32>
    %c15_282 = arith.constant 15 : index
    %c3_283 = arith.constant 3 : index
    %580 = memref.load %arg1[%c15_282, %c3_283] : memref<32x8xf32, #tpu.memory_space<smem>>
    %581 = vector.broadcast %580 : f32 to vector<128x128xf32>
    %582 = arith.select %579, %581, %577 : vector<128x128xi1>, vector<128x128xf32>
    %c16_i32_284 = arith.constant 16 : i32
    %583 = vector.broadcast %c16_i32_284 : i32 to vector<128x128xi32>
    %584 = arith.cmpi eq, %25, %583 : vector<128x128xi32>
    %c16_285 = arith.constant 16 : index
    %c3_286 = arith.constant 3 : index
    %585 = memref.load %arg1[%c16_285, %c3_286] : memref<32x8xf32, #tpu.memory_space<smem>>
    %586 = vector.broadcast %585 : f32 to vector<128x128xf32>
    %587 = arith.select %584, %586, %582 : vector<128x128xi1>, vector<128x128xf32>
    %c17_i32_287 = arith.constant 17 : i32
    %588 = vector.broadcast %c17_i32_287 : i32 to vector<128x128xi32>
    %589 = arith.cmpi eq, %25, %588 : vector<128x128xi32>
    %c17_288 = arith.constant 17 : index
    %c3_289 = arith.constant 3 : index
    %590 = memref.load %arg1[%c17_288, %c3_289] : memref<32x8xf32, #tpu.memory_space<smem>>
    %591 = vector.broadcast %590 : f32 to vector<128x128xf32>
    %592 = arith.select %589, %591, %587 : vector<128x128xi1>, vector<128x128xf32>
    %c18_i32_290 = arith.constant 18 : i32
    %593 = vector.broadcast %c18_i32_290 : i32 to vector<128x128xi32>
    %594 = arith.cmpi eq, %25, %593 : vector<128x128xi32>
    %c18_291 = arith.constant 18 : index
    %c3_292 = arith.constant 3 : index
    %595 = memref.load %arg1[%c18_291, %c3_292] : memref<32x8xf32, #tpu.memory_space<smem>>
    %596 = vector.broadcast %595 : f32 to vector<128x128xf32>
    %597 = arith.select %594, %596, %592 : vector<128x128xi1>, vector<128x128xf32>
    %c19_i32_293 = arith.constant 19 : i32
    %598 = vector.broadcast %c19_i32_293 : i32 to vector<128x128xi32>
    %599 = arith.cmpi eq, %25, %598 : vector<128x128xi32>
    %c19_294 = arith.constant 19 : index
    %c3_295 = arith.constant 3 : index
    %600 = memref.load %arg1[%c19_294, %c3_295] : memref<32x8xf32, #tpu.memory_space<smem>>
    %601 = vector.broadcast %600 : f32 to vector<128x128xf32>
    %602 = arith.select %599, %601, %597 : vector<128x128xi1>, vector<128x128xf32>
    %c20_i32_296 = arith.constant 20 : i32
    %603 = vector.broadcast %c20_i32_296 : i32 to vector<128x128xi32>
    %604 = arith.cmpi eq, %25, %603 : vector<128x128xi32>
    %c20_297 = arith.constant 20 : index
    %c3_298 = arith.constant 3 : index
    %605 = memref.load %arg1[%c20_297, %c3_298] : memref<32x8xf32, #tpu.memory_space<smem>>
    %606 = vector.broadcast %605 : f32 to vector<128x128xf32>
    %607 = arith.select %604, %606, %602 : vector<128x128xi1>, vector<128x128xf32>
    %c21_i32_299 = arith.constant 21 : i32
    %608 = vector.broadcast %c21_i32_299 : i32 to vector<128x128xi32>
    %609 = arith.cmpi eq, %25, %608 : vector<128x128xi32>
    %c21_300 = arith.constant 21 : index
    %c3_301 = arith.constant 3 : index
    %610 = memref.load %arg1[%c21_300, %c3_301] : memref<32x8xf32, #tpu.memory_space<smem>>
    %611 = vector.broadcast %610 : f32 to vector<128x128xf32>
    %612 = arith.select %609, %611, %607 : vector<128x128xi1>, vector<128x128xf32>
    %c22_i32_302 = arith.constant 22 : i32
    %613 = vector.broadcast %c22_i32_302 : i32 to vector<128x128xi32>
    %614 = arith.cmpi eq, %25, %613 : vector<128x128xi32>
    %c22_303 = arith.constant 22 : index
    %c3_304 = arith.constant 3 : index
    %615 = memref.load %arg1[%c22_303, %c3_304] : memref<32x8xf32, #tpu.memory_space<smem>>
    %616 = vector.broadcast %615 : f32 to vector<128x128xf32>
    %617 = arith.select %614, %616, %612 : vector<128x128xi1>, vector<128x128xf32>
    %c23_i32_305 = arith.constant 23 : i32
    %618 = vector.broadcast %c23_i32_305 : i32 to vector<128x128xi32>
    %619 = arith.cmpi eq, %25, %618 : vector<128x128xi32>
    %c23_306 = arith.constant 23 : index
    %c3_307 = arith.constant 3 : index
    %620 = memref.load %arg1[%c23_306, %c3_307] : memref<32x8xf32, #tpu.memory_space<smem>>
    %621 = vector.broadcast %620 : f32 to vector<128x128xf32>
    %622 = arith.select %619, %621, %617 : vector<128x128xi1>, vector<128x128xf32>
    %c24_i32_308 = arith.constant 24 : i32
    %623 = vector.broadcast %c24_i32_308 : i32 to vector<128x128xi32>
    %624 = arith.cmpi eq, %25, %623 : vector<128x128xi32>
    %c24_309 = arith.constant 24 : index
    %c3_310 = arith.constant 3 : index
    %625 = memref.load %arg1[%c24_309, %c3_310] : memref<32x8xf32, #tpu.memory_space<smem>>
    %626 = vector.broadcast %625 : f32 to vector<128x128xf32>
    %627 = arith.select %624, %626, %622 : vector<128x128xi1>, vector<128x128xf32>
    %c25_i32_311 = arith.constant 25 : i32
    %628 = vector.broadcast %c25_i32_311 : i32 to vector<128x128xi32>
    %629 = arith.cmpi eq, %25, %628 : vector<128x128xi32>
    %c25_312 = arith.constant 25 : index
    %c3_313 = arith.constant 3 : index
    %630 = memref.load %arg1[%c25_312, %c3_313] : memref<32x8xf32, #tpu.memory_space<smem>>
    %631 = vector.broadcast %630 : f32 to vector<128x128xf32>
    %632 = arith.select %629, %631, %627 : vector<128x128xi1>, vector<128x128xf32>
    %c26_i32_314 = arith.constant 26 : i32
    %633 = vector.broadcast %c26_i32_314 : i32 to vector<128x128xi32>
    %634 = arith.cmpi eq, %25, %633 : vector<128x128xi32>
    %c26_315 = arith.constant 26 : index
    %c3_316 = arith.constant 3 : index
    %635 = memref.load %arg1[%c26_315, %c3_316] : memref<32x8xf32, #tpu.memory_space<smem>>
    %636 = vector.broadcast %635 : f32 to vector<128x128xf32>
    %637 = arith.select %634, %636, %632 : vector<128x128xi1>, vector<128x128xf32>
    %c27_i32_317 = arith.constant 27 : i32
    %638 = vector.broadcast %c27_i32_317 : i32 to vector<128x128xi32>
    %639 = arith.cmpi eq, %25, %638 : vector<128x128xi32>
    %c27_318 = arith.constant 27 : index
    %c3_319 = arith.constant 3 : index
    %640 = memref.load %arg1[%c27_318, %c3_319] : memref<32x8xf32, #tpu.memory_space<smem>>
    %641 = vector.broadcast %640 : f32 to vector<128x128xf32>
    %642 = arith.select %639, %641, %637 : vector<128x128xi1>, vector<128x128xf32>
    %c28_i32_320 = arith.constant 28 : i32
    %643 = vector.broadcast %c28_i32_320 : i32 to vector<128x128xi32>
    %644 = arith.cmpi eq, %25, %643 : vector<128x128xi32>
    %c28_321 = arith.constant 28 : index
    %c3_322 = arith.constant 3 : index
    %645 = memref.load %arg1[%c28_321, %c3_322] : memref<32x8xf32, #tpu.memory_space<smem>>
    %646 = vector.broadcast %645 : f32 to vector<128x128xf32>
    %647 = arith.select %644, %646, %642 : vector<128x128xi1>, vector<128x128xf32>
    %c29_i32_323 = arith.constant 29 : i32
    %648 = vector.broadcast %c29_i32_323 : i32 to vector<128x128xi32>
    %649 = arith.cmpi eq, %25, %648 : vector<128x128xi32>
    %c29_324 = arith.constant 29 : index
    %c3_325 = arith.constant 3 : index
    %650 = memref.load %arg1[%c29_324, %c3_325] : memref<32x8xf32, #tpu.memory_space<smem>>
    %651 = vector.broadcast %650 : f32 to vector<128x128xf32>
    %652 = arith.select %649, %651, %647 : vector<128x128xi1>, vector<128x128xf32>
    %c30_i32_326 = arith.constant 30 : i32
    %653 = vector.broadcast %c30_i32_326 : i32 to vector<128x128xi32>
    %654 = arith.cmpi eq, %25, %653 : vector<128x128xi32>
    %c30_327 = arith.constant 30 : index
    %c3_328 = arith.constant 3 : index
    %655 = memref.load %arg1[%c30_327, %c3_328] : memref<32x8xf32, #tpu.memory_space<smem>>
    %656 = vector.broadcast %655 : f32 to vector<128x128xf32>
    %657 = arith.select %654, %656, %652 : vector<128x128xi1>, vector<128x128xf32>
    %c31_i32_329 = arith.constant 31 : i32
    %658 = vector.broadcast %c31_i32_329 : i32 to vector<128x128xi32>
    %659 = arith.cmpi eq, %25, %658 : vector<128x128xi32>
    %c31_330 = arith.constant 31 : index
    %c3_331 = arith.constant 3 : index
    %660 = memref.load %arg1[%c31_330, %c3_331] : memref<32x8xf32, #tpu.memory_space<smem>>
    %661 = vector.broadcast %660 : f32 to vector<128x128xf32>
    %662 = arith.select %659, %661, %657 : vector<128x128xi1>, vector<128x128xf32>
    %c3_332 = arith.constant 3 : index
    %c0_333 = arith.constant 0 : index
    %c0_334 = arith.constant 0 : index
    %663 = vector.load %arg2[%c3_332, %c0_333, %c0_334] : memref<8x128x128xf32, #tpu.memory_space<vmem>>, vector<1x128x128xf32>
    %664 = vector.shape_cast %663 : vector<1x128x128xf32> to vector<128x128xf32>
    %665 = vector.shape_cast %662 : vector<128x128xf32> to vector<1x128x128xf32>
    tpu.vector_store %arg2[%c3_332, %c0_333, %c0_334], %665 {strides = array<i32>} : memref<8x128x128xf32, #tpu.memory_space<vmem>>, vector<1x128x128xf32>,
    %c0_335 = arith.constant 0 : index
    %c4_336 = arith.constant 4 : index
    %666 = memref.load %arg1[%c0_335, %c4_336] : memref<32x8xf32, #tpu.memory_space<smem>>
    %667 = vector.broadcast %666 : f32 to vector<128x128xf32>
    %c1_i32_337 = arith.constant 1 : i32
    %668 = vector.broadcast %c1_i32_337 : i32 to vector<128x128xi32>
    %669 = arith.cmpi eq, %25, %668 : vector<128x128xi32>
    %c1_338 = arith.constant 1 : index
    %c4_339 = arith.constant 4 : index
    %670 = memref.load %arg1[%c1_338, %c4_339] : memref<32x8xf32, #tpu.memory_space<smem>>
    %671 = vector.broadcast %670 : f32 to vector<128x128xf32>
    %672 = arith.select %669, %671, %667 : vector<128x128xi1>, vector<128x128xf32>
    %c2_i32_340 = arith.constant 2 : i32
    %673 = vector.broadcast %c2_i32_340 : i32 to vector<128x128xi32>
    %674 = arith.cmpi eq, %25, %673 : vector<128x128xi32>
    %c2_341 = arith.constant 2 : index
    %c4_342 = arith.constant 4 : index
    %675 = memref.load %arg1[%c2_341, %c4_342] : memref<32x8xf32, #tpu.memory_space<smem>>
    %676 = vector.broadcast %675 : f32 to vector<128x128xf32>
    %677 = arith.select %674, %676, %672 : vector<128x128xi1>, vector<128x128xf32>
    %c3_i32_343 = arith.constant 3 : i32
    %678 = vector.broadcast %c3_i32_343 : i32 to vector<128x128xi32>
    %679 = arith.cmpi eq, %25, %678 : vector<128x128xi32>
    %c3_344 = arith.constant 3 : index
    %c4_345 = arith.constant 4 : index
    %680 = memref.load %arg1[%c3_344, %c4_345] : memref<32x8xf32, #tpu.memory_space<smem>>
    %681 = vector.broadcast %680 : f32 to vector<128x128xf32>
    %682 = arith.select %679, %681, %677 : vector<128x128xi1>, vector<128x128xf32>
    %c4_i32_346 = arith.constant 4 : i32
    %683 = vector.broadcast %c4_i32_346 : i32 to vector<128x128xi32>
    %684 = arith.cmpi eq, %25, %683 : vector<128x128xi32>
    %c4_347 = arith.constant 4 : index
    %c4_348 = arith.constant 4 : index
    %685 = memref.load %arg1[%c4_347, %c4_348] : memref<32x8xf32, #tpu.memory_space<smem>>
    %686 = vector.broadcast %685 : f32 to vector<128x128xf32>
    %687 = arith.select %684, %686, %682 : vector<128x128xi1>, vector<128x128xf32>
    %c5_i32_349 = arith.constant 5 : i32
    %688 = vector.broadcast %c5_i32_349 : i32 to vector<128x128xi32>
    %689 = arith.cmpi eq, %25, %688 : vector<128x128xi32>
    %c5_350 = arith.constant 5 : index
    %c4_351 = arith.constant 4 : index
    %690 = memref.load %arg1[%c5_350, %c4_351] : memref<32x8xf32, #tpu.memory_space<smem>>
    %691 = vector.broadcast %690 : f32 to vector<128x128xf32>
    %692 = arith.select %689, %691, %687 : vector<128x128xi1>, vector<128x128xf32>
    %c6_i32_352 = arith.constant 6 : i32
    %693 = vector.broadcast %c6_i32_352 : i32 to vector<128x128xi32>
    %694 = arith.cmpi eq, %25, %693 : vector<128x128xi32>
    %c6_353 = arith.constant 6 : index
    %c4_354 = arith.constant 4 : index
    %695 = memref.load %arg1[%c6_353, %c4_354] : memref<32x8xf32, #tpu.memory_space<smem>>
    %696 = vector.broadcast %695 : f32 to vector<128x128xf32>
    %697 = arith.select %694, %696, %692 : vector<128x128xi1>, vector<128x128xf32>
    %c7_i32_355 = arith.constant 7 : i32
    %698 = vector.broadcast %c7_i32_355 : i32 to vector<128x128xi32>
    %699 = arith.cmpi eq, %25, %698 : vector<128x128xi32>
    %c7_356 = arith.constant 7 : index
    %c4_357 = arith.constant 4 : index
    %700 = memref.load %arg1[%c7_356, %c4_357] : memref<32x8xf32, #tpu.memory_space<smem>>
    %701 = vector.broadcast %700 : f32 to vector<128x128xf32>
    %702 = arith.select %699, %701, %697 : vector<128x128xi1>, vector<128x128xf32>
    %c8_i32_358 = arith.constant 8 : i32
    %703 = vector.broadcast %c8_i32_358 : i32 to vector<128x128xi32>
    %704 = arith.cmpi eq, %25, %703 : vector<128x128xi32>
    %c8_359 = arith.constant 8 : index
    %c4_360 = arith.constant 4 : index
    %705 = memref.load %arg1[%c8_359, %c4_360] : memref<32x8xf32, #tpu.memory_space<smem>>
    %706 = vector.broadcast %705 : f32 to vector<128x128xf32>
    %707 = arith.select %704, %706, %702 : vector<128x128xi1>, vector<128x128xf32>
    %c9_i32_361 = arith.constant 9 : i32
    %708 = vector.broadcast %c9_i32_361 : i32 to vector<128x128xi32>
    %709 = arith.cmpi eq, %25, %708 : vector<128x128xi32>
    %c9_362 = arith.constant 9 : index
    %c4_363 = arith.constant 4 : index
    %710 = memref.load %arg1[%c9_362, %c4_363] : memref<32x8xf32, #tpu.memory_space<smem>>
    %711 = vector.broadcast %710 : f32 to vector<128x128xf32>
    %712 = arith.select %709, %711, %707 : vector<128x128xi1>, vector<128x128xf32>
    %c10_i32_364 = arith.constant 10 : i32
    %713 = vector.broadcast %c10_i32_364 : i32 to vector<128x128xi32>
    %714 = arith.cmpi eq, %25, %713 : vector<128x128xi32>
    %c10_365 = arith.constant 10 : index
    %c4_366 = arith.constant 4 : index
    %715 = memref.load %arg1[%c10_365, %c4_366] : memref<32x8xf32, #tpu.memory_space<smem>>
    %716 = vector.broadcast %715 : f32 to vector<128x128xf32>
    %717 = arith.select %714, %716, %712 : vector<128x128xi1>, vector<128x128xf32>
    %c11_i32_367 = arith.constant 11 : i32
    %718 = vector.broadcast %c11_i32_367 : i32 to vector<128x128xi32>
    %719 = arith.cmpi eq, %25, %718 : vector<128x128xi32>
    %c11_368 = arith.constant 11 : index
    %c4_369 = arith.constant 4 : index
    %720 = memref.load %arg1[%c11_368, %c4_369] : memref<32x8xf32, #tpu.memory_space<smem>>
    %721 = vector.broadcast %720 : f32 to vector<128x128xf32>
    %722 = arith.select %719, %721, %717 : vector<128x128xi1>, vector<128x128xf32>
    %c12_i32_370 = arith.constant 12 : i32
    %723 = vector.broadcast %c12_i32_370 : i32 to vector<128x128xi32>
    %724 = arith.cmpi eq, %25, %723 : vector<128x128xi32>
    %c12_371 = arith.constant 12 : index
    %c4_372 = arith.constant 4 : index
    %725 = memref.load %arg1[%c12_371, %c4_372] : memref<32x8xf32, #tpu.memory_space<smem>>
    %726 = vector.broadcast %725 : f32 to vector<128x128xf32>
    %727 = arith.select %724, %726, %722 : vector<128x128xi1>, vector<128x128xf32>
    %c13_i32_373 = arith.constant 13 : i32
    %728 = vector.broadcast %c13_i32_373 : i32 to vector<128x128xi32>
    %729 = arith.cmpi eq, %25, %728 : vector<128x128xi32>
    %c13_374 = arith.constant 13 : index
    %c4_375 = arith.constant 4 : index
    %730 = memref.load %arg1[%c13_374, %c4_375] : memref<32x8xf32, #tpu.memory_space<smem>>
    %731 = vector.broadcast %730 : f32 to vector<128x128xf32>
    %732 = arith.select %729, %731, %727 : vector<128x128xi1>, vector<128x128xf32>
    %c14_i32_376 = arith.constant 14 : i32
    %733 = vector.broadcast %c14_i32_376 : i32 to vector<128x128xi32>
    %734 = arith.cmpi eq, %25, %733 : vector<128x128xi32>
    %c14_377 = arith.constant 14 : index
    %c4_378 = arith.constant 4 : index
    %735 = memref.load %arg1[%c14_377, %c4_378] : memref<32x8xf32, #tpu.memory_space<smem>>
    %736 = vector.broadcast %735 : f32 to vector<128x128xf32>
    %737 = arith.select %734, %736, %732 : vector<128x128xi1>, vector<128x128xf32>
    %c15_i32_379 = arith.constant 15 : i32
    %738 = vector.broadcast %c15_i32_379 : i32 to vector<128x128xi32>
    %739 = arith.cmpi eq, %25, %738 : vector<128x128xi32>
    %c15_380 = arith.constant 15 : index
    %c4_381 = arith.constant 4 : index
    %740 = memref.load %arg1[%c15_380, %c4_381] : memref<32x8xf32, #tpu.memory_space<smem>>
    %741 = vector.broadcast %740 : f32 to vector<128x128xf32>
    %742 = arith.select %739, %741, %737 : vector<128x128xi1>, vector<128x128xf32>
    %c16_i32_382 = arith.constant 16 : i32
    %743 = vector.broadcast %c16_i32_382 : i32 to vector<128x128xi32>
    %744 = arith.cmpi eq, %25, %743 : vector<128x128xi32>
    %c16_383 = arith.constant 16 : index
    %c4_384 = arith.constant 4 : index
    %745 = memref.load %arg1[%c16_383, %c4_384] : memref<32x8xf32, #tpu.memory_space<smem>>
    %746 = vector.broadcast %745 : f32 to vector<128x128xf32>
    %747 = arith.select %744, %746, %742 : vector<128x128xi1>, vector<128x128xf32>
    %c17_i32_385 = arith.constant 17 : i32
    %748 = vector.broadcast %c17_i32_385 : i32 to vector<128x128xi32>
    %749 = arith.cmpi eq, %25, %748 : vector<128x128xi32>
    %c17_386 = arith.constant 17 : index
    %c4_387 = arith.constant 4 : index
    %750 = memref.load %arg1[%c17_386, %c4_387] : memref<32x8xf32, #tpu.memory_space<smem>>
    %751 = vector.broadcast %750 : f32 to vector<128x128xf32>
    %752 = arith.select %749, %751, %747 : vector<128x128xi1>, vector<128x128xf32>
    %c18_i32_388 = arith.constant 18 : i32
    %753 = vector.broadcast %c18_i32_388 : i32 to vector<128x128xi32>
    %754 = arith.cmpi eq, %25, %753 : vector<128x128xi32>
    %c18_389 = arith.constant 18 : index
    %c4_390 = arith.constant 4 : index
    %755 = memref.load %arg1[%c18_389, %c4_390] : memref<32x8xf32, #tpu.memory_space<smem>>
    %756 = vector.broadcast %755 : f32 to vector<128x128xf32>
    %757 = arith.select %754, %756, %752 : vector<128x128xi1>, vector<128x128xf32>
    %c19_i32_391 = arith.constant 19 : i32
    %758 = vector.broadcast %c19_i32_391 : i32 to vector<128x128xi32>
    %759 = arith.cmpi eq, %25, %758 : vector<128x128xi32>
    %c19_392 = arith.constant 19 : index
    %c4_393 = arith.constant 4 : index
    %760 = memref.load %arg1[%c19_392, %c4_393] : memref<32x8xf32, #tpu.memory_space<smem>>
    %761 = vector.broadcast %760 : f32 to vector<128x128xf32>
    %762 = arith.select %759, %761, %757 : vector<128x128xi1>, vector<128x128xf32>
    %c20_i32_394 = arith.constant 20 : i32
    %763 = vector.broadcast %c20_i32_394 : i32 to vector<128x128xi32>
    %764 = arith.cmpi eq, %25, %763 : vector<128x128xi32>
    %c20_395 = arith.constant 20 : index
    %c4_396 = arith.constant 4 : index
    %765 = memref.load %arg1[%c20_395, %c4_396] : memref<32x8xf32, #tpu.memory_space<smem>>
    %766 = vector.broadcast %765 : f32 to vector<128x128xf32>
    %767 = arith.select %764, %766, %762 : vector<128x128xi1>, vector<128x128xf32>
    %c21_i32_397 = arith.constant 21 : i32
    %768 = vector.broadcast %c21_i32_397 : i32 to vector<128x128xi32>
    %769 = arith.cmpi eq, %25, %768 : vector<128x128xi32>
    %c21_398 = arith.constant 21 : index
    %c4_399 = arith.constant 4 : index
    %770 = memref.load %arg1[%c21_398, %c4_399] : memref<32x8xf32, #tpu.memory_space<smem>>
    %771 = vector.broadcast %770 : f32 to vector<128x128xf32>
    %772 = arith.select %769, %771, %767 : vector<128x128xi1>, vector<128x128xf32>
    %c22_i32_400 = arith.constant 22 : i32
    %773 = vector.broadcast %c22_i32_400 : i32 to vector<128x128xi32>
    %774 = arith.cmpi eq, %25, %773 : vector<128x128xi32>
    %c22_401 = arith.constant 22 : index
    %c4_402 = arith.constant 4 : index
    %775 = memref.load %arg1[%c22_401, %c4_402] : memref<32x8xf32, #tpu.memory_space<smem>>
    %776 = vector.broadcast %775 : f32 to vector<128x128xf32>
    %777 = arith.select %774, %776, %772 : vector<128x128xi1>, vector<128x128xf32>
    %c23_i32_403 = arith.constant 23 : i32
    %778 = vector.broadcast %c23_i32_403 : i32 to vector<128x128xi32>
    %779 = arith.cmpi eq, %25, %778 : vector<128x128xi32>
    %c23_404 = arith.constant 23 : index
    %c4_405 = arith.constant 4 : index
    %780 = memref.load %arg1[%c23_404, %c4_405] : memref<32x8xf32, #tpu.memory_space<smem>>
    %781 = vector.broadcast %780 : f32 to vector<128x128xf32>
    %782 = arith.select %779, %781, %777 : vector<128x128xi1>, vector<128x128xf32>
    %c24_i32_406 = arith.constant 24 : i32
    %783 = vector.broadcast %c24_i32_406 : i32 to vector<128x128xi32>
    %784 = arith.cmpi eq, %25, %783 : vector<128x128xi32>
    %c24_407 = arith.constant 24 : index
    %c4_408 = arith.constant 4 : index
    %785 = memref.load %arg1[%c24_407, %c4_408] : memref<32x8xf32, #tpu.memory_space<smem>>
    %786 = vector.broadcast %785 : f32 to vector<128x128xf32>
    %787 = arith.select %784, %786, %782 : vector<128x128xi1>, vector<128x128xf32>
    %c25_i32_409 = arith.constant 25 : i32
    %788 = vector.broadcast %c25_i32_409 : i32 to vector<128x128xi32>
    %789 = arith.cmpi eq, %25, %788 : vector<128x128xi32>
    %c25_410 = arith.constant 25 : index
    %c4_411 = arith.constant 4 : index
    %790 = memref.load %arg1[%c25_410, %c4_411] : memref<32x8xf32, #tpu.memory_space<smem>>
    %791 = vector.broadcast %790 : f32 to vector<128x128xf32>
    %792 = arith.select %789, %791, %787 : vector<128x128xi1>, vector<128x128xf32>
    %c26_i32_412 = arith.constant 26 : i32
    %793 = vector.broadcast %c26_i32_412 : i32 to vector<128x128xi32>
    %794 = arith.cmpi eq, %25, %793 : vector<128x128xi32>
    %c26_413 = arith.constant 26 : index
    %c4_414 = arith.constant 4 : index
    %795 = memref.load %arg1[%c26_413, %c4_414] : memref<32x8xf32, #tpu.memory_space<smem>>
    %796 = vector.broadcast %795 : f32 to vector<128x128xf32>
    %797 = arith.select %794, %796, %792 : vector<128x128xi1>, vector<128x128xf32>
    %c27_i32_415 = arith.constant 27 : i32
    %798 = vector.broadcast %c27_i32_415 : i32 to vector<128x128xi32>
    %799 = arith.cmpi eq, %25, %798 : vector<128x128xi32>
    %c27_416 = arith.constant 27 : index
    %c4_417 = arith.constant 4 : index
    %800 = memref.load %arg1[%c27_416, %c4_417] : memref<32x8xf32, #tpu.memory_space<smem>>
    %801 = vector.broadcast %800 : f32 to vector<128x128xf32>
    %802 = arith.select %799, %801, %797 : vector<128x128xi1>, vector<128x128xf32>
    %c28_i32_418 = arith.constant 28 : i32
    %803 = vector.broadcast %c28_i32_418 : i32 to vector<128x128xi32>
    %804 = arith.cmpi eq, %25, %803 : vector<128x128xi32>
    %c28_419 = arith.constant 28 : index
    %c4_420 = arith.constant 4 : index
    %805 = memref.load %arg1[%c28_419, %c4_420] : memref<32x8xf32, #tpu.memory_space<smem>>
    %806 = vector.broadcast %805 : f32 to vector<128x128xf32>
    %807 = arith.select %804, %806, %802 : vector<128x128xi1>, vector<128x128xf32>
    %c29_i32_421 = arith.constant 29 : i32
    %808 = vector.broadcast %c29_i32_421 : i32 to vector<128x128xi32>
    %809 = arith.cmpi eq, %25, %808 : vector<128x128xi32>
    %c29_422 = arith.constant 29 : index
    %c4_423 = arith.constant 4 : index
    %810 = memref.load %arg1[%c29_422, %c4_423] : memref<32x8xf32, #tpu.memory_space<smem>>
    %811 = vector.broadcast %810 : f32 to vector<128x128xf32>
    %812 = arith.select %809, %811, %807 : vector<128x128xi1>, vector<128x128xf32>
    %c30_i32_424 = arith.constant 30 : i32
    %813 = vector.broadcast %c30_i32_424 : i32 to vector<128x128xi32>
    %814 = arith.cmpi eq, %25, %813 : vector<128x128xi32>
    %c30_425 = arith.constant 30 : index
    %c4_426 = arith.constant 4 : index
    %815 = memref.load %arg1[%c30_425, %c4_426] : memref<32x8xf32, #tpu.memory_space<smem>>
    %816 = vector.broadcast %815 : f32 to vector<128x128xf32>
    %817 = arith.select %814, %816, %812 : vector<128x128xi1>, vector<128x128xf32>
    %c31_i32_427 = arith.constant 31 : i32
    %818 = vector.broadcast %c31_i32_427 : i32 to vector<128x128xi32>
    %819 = arith.cmpi eq, %25, %818 : vector<128x128xi32>
    %c31_428 = arith.constant 31 : index
    %c4_429 = arith.constant 4 : index
    %820 = memref.load %arg1[%c31_428, %c4_429] : memref<32x8xf32, #tpu.memory_space<smem>>
    %821 = vector.broadcast %820 : f32 to vector<128x128xf32>
    %822 = arith.select %819, %821, %817 : vector<128x128xi1>, vector<128x128xf32>
    %c4_430 = arith.constant 4 : index
    %c0_431 = arith.constant 0 : index
    %c0_432 = arith.constant 0 : index
    %823 = vector.load %arg2[%c4_430, %c0_431, %c0_432] : memref<8x128x128xf32, #tpu.memory_space<vmem>>, vector<1x128x128xf32>
    %824 = vector.shape_cast %823 : vector<1x128x128xf32> to vector<128x128xf32>
    %825 = vector.shape_cast %822 : vector<128x128xf32> to vector<1x128x128xf32>
    tpu.vector_store %arg2[%c4_430, %c0_431, %c0_432], %825 {strides = array<i32>} : memref<8x128x128xf32, #tpu.memory_space<vmem>>, vector<1x128x128xf32>,
    %c0_433 = arith.constant 0 : index
    %c5_434 = arith.constant 5 : index
    %826 = memref.load %arg1[%c0_433, %c5_434] : memref<32x8xf32, #tpu.memory_space<smem>>
    %827 = vector.broadcast %826 : f32 to vector<128x128xf32>
    %c1_i32_435 = arith.constant 1 : i32
    %828 = vector.broadcast %c1_i32_435 : i32 to vector<128x128xi32>
    %829 = arith.cmpi eq, %25, %828 : vector<128x128xi32>
    %c1_436 = arith.constant 1 : index
    %c5_437 = arith.constant 5 : index
    %830 = memref.load %arg1[%c1_436, %c5_437] : memref<32x8xf32, #tpu.memory_space<smem>>
    %831 = vector.broadcast %830 : f32 to vector<128x128xf32>
    %832 = arith.select %829, %831, %827 : vector<128x128xi1>, vector<128x128xf32>
    %c2_i32_438 = arith.constant 2 : i32
    %833 = vector.broadcast %c2_i32_438 : i32 to vector<128x128xi32>
    %834 = arith.cmpi eq, %25, %833 : vector<128x128xi32>
    %c2_439 = arith.constant 2 : index
    %c5_440 = arith.constant 5 : index
    %835 = memref.load %arg1[%c2_439, %c5_440] : memref<32x8xf32, #tpu.memory_space<smem>>
    %836 = vector.broadcast %835 : f32 to vector<128x128xf32>
    %837 = arith.select %834, %836, %832 : vector<128x128xi1>, vector<128x128xf32>
    %c3_i32_441 = arith.constant 3 : i32
    %838 = vector.broadcast %c3_i32_441 : i32 to vector<128x128xi32>
    %839 = arith.cmpi eq, %25, %838 : vector<128x128xi32>
    %c3_442 = arith.constant 3 : index
    %c5_443 = arith.constant 5 : index
    %840 = memref.load %arg1[%c3_442, %c5_443] : memref<32x8xf32, #tpu.memory_space<smem>>
    %841 = vector.broadcast %840 : f32 to vector<128x128xf32>
    %842 = arith.select %839, %841, %837 : vector<128x128xi1>, vector<128x128xf32>
    %c4_i32_444 = arith.constant 4 : i32
    %843 = vector.broadcast %c4_i32_444 : i32 to vector<128x128xi32>
    %844 = arith.cmpi eq, %25, %843 : vector<128x128xi32>
    %c4_445 = arith.constant 4 : index
    %c5_446 = arith.constant 5 : index
    %845 = memref.load %arg1[%c4_445, %c5_446] : memref<32x8xf32, #tpu.memory_space<smem>>
    %846 = vector.broadcast %845 : f32 to vector<128x128xf32>
    %847 = arith.select %844, %846, %842 : vector<128x128xi1>, vector<128x128xf32>
    %c5_i32_447 = arith.constant 5 : i32
    %848 = vector.broadcast %c5_i32_447 : i32 to vector<128x128xi32>
    %849 = arith.cmpi eq, %25, %848 : vector<128x128xi32>
    %c5_448 = arith.constant 5 : index
    %c5_449 = arith.constant 5 : index
    %850 = memref.load %arg1[%c5_448, %c5_449] : memref<32x8xf32, #tpu.memory_space<smem>>
    %851 = vector.broadcast %850 : f32 to vector<128x128xf32>
    %852 = arith.select %849, %851, %847 : vector<128x128xi1>, vector<128x128xf32>
    %c6_i32_450 = arith.constant 6 : i32
    %853 = vector.broadcast %c6_i32_450 : i32 to vector<128x128xi32>
    %854 = arith.cmpi eq, %25, %853 : vector<128x128xi32>
    %c6_451 = arith.constant 6 : index
    %c5_452 = arith.constant 5 : index
    %855 = memref.load %arg1[%c6_451, %c5_452] : memref<32x8xf32, #tpu.memory_space<smem>>
    %856 = vector.broadcast %855 : f32 to vector<128x128xf32>
    %857 = arith.select %854, %856, %852 : vector<128x128xi1>, vector<128x128xf32>
    %c7_i32_453 = arith.constant 7 : i32
    %858 = vector.broadcast %c7_i32_453 : i32 to vector<128x128xi32>
    %859 = arith.cmpi eq, %25, %858 : vector<128x128xi32>
    %c7_454 = arith.constant 7 : index
    %c5_455 = arith.constant 5 : index
    %860 = memref.load %arg1[%c7_454, %c5_455] : memref<32x8xf32, #tpu.memory_space<smem>>
    %861 = vector.broadcast %860 : f32 to vector<128x128xf32>
    %862 = arith.select %859, %861, %857 : vector<128x128xi1>, vector<128x128xf32>
    %c8_i32_456 = arith.constant 8 : i32
    %863 = vector.broadcast %c8_i32_456 : i32 to vector<128x128xi32>
    %864 = arith.cmpi eq, %25, %863 : vector<128x128xi32>
    %c8_457 = arith.constant 8 : index
    %c5_458 = arith.constant 5 : index
    %865 = memref.load %arg1[%c8_457, %c5_458] : memref<32x8xf32, #tpu.memory_space<smem>>
    %866 = vector.broadcast %865 : f32 to vector<128x128xf32>
    %867 = arith.select %864, %866, %862 : vector<128x128xi1>, vector<128x128xf32>
    %c9_i32_459 = arith.constant 9 : i32
    %868 = vector.broadcast %c9_i32_459 : i32 to vector<128x128xi32>
    %869 = arith.cmpi eq, %25, %868 : vector<128x128xi32>
    %c9_460 = arith.constant 9 : index
    %c5_461 = arith.constant 5 : index
    %870 = memref.load %arg1[%c9_460, %c5_461] : memref<32x8xf32, #tpu.memory_space<smem>>
    %871 = vector.broadcast %870 : f32 to vector<128x128xf32>
    %872 = arith.select %869, %871, %867 : vector<128x128xi1>, vector<128x128xf32>
    %c10_i32_462 = arith.constant 10 : i32
    %873 = vector.broadcast %c10_i32_462 : i32 to vector<128x128xi32>
    %874 = arith.cmpi eq, %25, %873 : vector<128x128xi32>
    %c10_463 = arith.constant 10 : index
    %c5_464 = arith.constant 5 : index
    %875 = memref.load %arg1[%c10_463, %c5_464] : memref<32x8xf32, #tpu.memory_space<smem>>
    %876 = vector.broadcast %875 : f32 to vector<128x128xf32>
    %877 = arith.select %874, %876, %872 : vector<128x128xi1>, vector<128x128xf32>
    %c11_i32_465 = arith.constant 11 : i32
    %878 = vector.broadcast %c11_i32_465 : i32 to vector<128x128xi32>
    %879 = arith.cmpi eq, %25, %878 : vector<128x128xi32>
    %c11_466 = arith.constant 11 : index
    %c5_467 = arith.constant 5 : index
    %880 = memref.load %arg1[%c11_466, %c5_467] : memref<32x8xf32, #tpu.memory_space<smem>>
    %881 = vector.broadcast %880 : f32 to vector<128x128xf32>
    %882 = arith.select %879, %881, %877 : vector<128x128xi1>, vector<128x128xf32>
    %c12_i32_468 = arith.constant 12 : i32
    %883 = vector.broadcast %c12_i32_468 : i32 to vector<128x128xi32>
    %884 = arith.cmpi eq, %25, %883 : vector<128x128xi32>
    %c12_469 = arith.constant 12 : index
    %c5_470 = arith.constant 5 : index
    %885 = memref.load %arg1[%c12_469, %c5_470] : memref<32x8xf32, #tpu.memory_space<smem>>
    %886 = vector.broadcast %885 : f32 to vector<128x128xf32>
    %887 = arith.select %884, %886, %882 : vector<128x128xi1>, vector<128x128xf32>
    %c13_i32_471 = arith.constant 13 : i32
    %888 = vector.broadcast %c13_i32_471 : i32 to vector<128x128xi32>
    %889 = arith.cmpi eq, %25, %888 : vector<128x128xi32>
    %c13_472 = arith.constant 13 : index
    %c5_473 = arith.constant 5 : index
    %890 = memref.load %arg1[%c13_472, %c5_473] : memref<32x8xf32, #tpu.memory_space<smem>>
    %891 = vector.broadcast %890 : f32 to vector<128x128xf32>
    %892 = arith.select %889, %891, %887 : vector<128x128xi1>, vector<128x128xf32>
    %c14_i32_474 = arith.constant 14 : i32
    %893 = vector.broadcast %c14_i32_474 : i32 to vector<128x128xi32>
    %894 = arith.cmpi eq, %25, %893 : vector<128x128xi32>
    %c14_475 = arith.constant 14 : index
    %c5_476 = arith.constant 5 : index
    %895 = memref.load %arg1[%c14_475, %c5_476] : memref<32x8xf32, #tpu.memory_space<smem>>
    %896 = vector.broadcast %895 : f32 to vector<128x128xf32>
    %897 = arith.select %894, %896, %892 : vector<128x128xi1>, vector<128x128xf32>
    %c15_i32_477 = arith.constant 15 : i32
    %898 = vector.broadcast %c15_i32_477 : i32 to vector<128x128xi32>
    %899 = arith.cmpi eq, %25, %898 : vector<128x128xi32>
    %c15_478 = arith.constant 15 : index
    %c5_479 = arith.constant 5 : index
    %900 = memref.load %arg1[%c15_478, %c5_479] : memref<32x8xf32, #tpu.memory_space<smem>>
    %901 = vector.broadcast %900 : f32 to vector<128x128xf32>
    %902 = arith.select %899, %901, %897 : vector<128x128xi1>, vector<128x128xf32>
    %c16_i32_480 = arith.constant 16 : i32
    %903 = vector.broadcast %c16_i32_480 : i32 to vector<128x128xi32>
    %904 = arith.cmpi eq, %25, %903 : vector<128x128xi32>
    %c16_481 = arith.constant 16 : index
    %c5_482 = arith.constant 5 : index
    %905 = memref.load %arg1[%c16_481, %c5_482] : memref<32x8xf32, #tpu.memory_space<smem>>
    %906 = vector.broadcast %905 : f32 to vector<128x128xf32>
    %907 = arith.select %904, %906, %902 : vector<128x128xi1>, vector<128x128xf32>
    %c17_i32_483 = arith.constant 17 : i32
    %908 = vector.broadcast %c17_i32_483 : i32 to vector<128x128xi32>
    %909 = arith.cmpi eq, %25, %908 : vector<128x128xi32>
    %c17_484 = arith.constant 17 : index
    %c5_485 = arith.constant 5 : index
    %910 = memref.load %arg1[%c17_484, %c5_485] : memref<32x8xf32, #tpu.memory_space<smem>>
    %911 = vector.broadcast %910 : f32 to vector<128x128xf32>
    %912 = arith.select %909, %911, %907 : vector<128x128xi1>, vector<128x128xf32>
    %c18_i32_486 = arith.constant 18 : i32
    %913 = vector.broadcast %c18_i32_486 : i32 to vector<128x128xi32>
    %914 = arith.cmpi eq, %25, %913 : vector<128x128xi32>
    %c18_487 = arith.constant 18 : index
    %c5_488 = arith.constant 5 : index
    %915 = memref.load %arg1[%c18_487, %c5_488] : memref<32x8xf32, #tpu.memory_space<smem>>
    %916 = vector.broadcast %915 : f32 to vector<128x128xf32>
    %917 = arith.select %914, %916, %912 : vector<128x128xi1>, vector<128x128xf32>
    %c19_i32_489 = arith.constant 19 : i32
    %918 = vector.broadcast %c19_i32_489 : i32 to vector<128x128xi32>
    %919 = arith.cmpi eq, %25, %918 : vector<128x128xi32>
    %c19_490 = arith.constant 19 : index
    %c5_491 = arith.constant 5 : index
    %920 = memref.load %arg1[%c19_490, %c5_491] : memref<32x8xf32, #tpu.memory_space<smem>>
    %921 = vector.broadcast %920 : f32 to vector<128x128xf32>
    %922 = arith.select %919, %921, %917 : vector<128x128xi1>, vector<128x128xf32>
    %c20_i32_492 = arith.constant 20 : i32
    %923 = vector.broadcast %c20_i32_492 : i32 to vector<128x128xi32>
    %924 = arith.cmpi eq, %25, %923 : vector<128x128xi32>
    %c20_493 = arith.constant 20 : index
    %c5_494 = arith.constant 5 : index
    %925 = memref.load %arg1[%c20_493, %c5_494] : memref<32x8xf32, #tpu.memory_space<smem>>
    %926 = vector.broadcast %925 : f32 to vector<128x128xf32>
    %927 = arith.select %924, %926, %922 : vector<128x128xi1>, vector<128x128xf32>
    %c21_i32_495 = arith.constant 21 : i32
    %928 = vector.broadcast %c21_i32_495 : i32 to vector<128x128xi32>
    %929 = arith.cmpi eq, %25, %928 : vector<128x128xi32>
    %c21_496 = arith.constant 21 : index
    %c5_497 = arith.constant 5 : index
    %930 = memref.load %arg1[%c21_496, %c5_497] : memref<32x8xf32, #tpu.memory_space<smem>>
    %931 = vector.broadcast %930 : f32 to vector<128x128xf32>
    %932 = arith.select %929, %931, %927 : vector<128x128xi1>, vector<128x128xf32>
    %c22_i32_498 = arith.constant 22 : i32
    %933 = vector.broadcast %c22_i32_498 : i32 to vector<128x128xi32>
    %934 = arith.cmpi eq, %25, %933 : vector<128x128xi32>
    %c22_499 = arith.constant 22 : index
    %c5_500 = arith.constant 5 : index
    %935 = memref.load %arg1[%c22_499, %c5_500] : memref<32x8xf32, #tpu.memory_space<smem>>
    %936 = vector.broadcast %935 : f32 to vector<128x128xf32>
    %937 = arith.select %934, %936, %932 : vector<128x128xi1>, vector<128x128xf32>
    %c23_i32_501 = arith.constant 23 : i32
    %938 = vector.broadcast %c23_i32_501 : i32 to vector<128x128xi32>
    %939 = arith.cmpi eq, %25, %938 : vector<128x128xi32>
    %c23_502 = arith.constant 23 : index
    %c5_503 = arith.constant 5 : index
    %940 = memref.load %arg1[%c23_502, %c5_503] : memref<32x8xf32, #tpu.memory_space<smem>>
    %941 = vector.broadcast %940 : f32 to vector<128x128xf32>
    %942 = arith.select %939, %941, %937 : vector<128x128xi1>, vector<128x128xf32>
    %c24_i32_504 = arith.constant 24 : i32
    %943 = vector.broadcast %c24_i32_504 : i32 to vector<128x128xi32>
    %944 = arith.cmpi eq, %25, %943 : vector<128x128xi32>
    %c24_505 = arith.constant 24 : index
    %c5_506 = arith.constant 5 : index
    %945 = memref.load %arg1[%c24_505, %c5_506] : memref<32x8xf32, #tpu.memory_space<smem>>
    %946 = vector.broadcast %945 : f32 to vector<128x128xf32>
    %947 = arith.select %944, %946, %942 : vector<128x128xi1>, vector<128x128xf32>
    %c25_i32_507 = arith.constant 25 : i32
    %948 = vector.broadcast %c25_i32_507 : i32 to vector<128x128xi32>
    %949 = arith.cmpi eq, %25, %948 : vector<128x128xi32>
    %c25_508 = arith.constant 25 : index
    %c5_509 = arith.constant 5 : index
    %950 = memref.load %arg1[%c25_508, %c5_509] : memref<32x8xf32, #tpu.memory_space<smem>>
    %951 = vector.broadcast %950 : f32 to vector<128x128xf32>
    %952 = arith.select %949, %951, %947 : vector<128x128xi1>, vector<128x128xf32>
    %c26_i32_510 = arith.constant 26 : i32
    %953 = vector.broadcast %c26_i32_510 : i32 to vector<128x128xi32>
    %954 = arith.cmpi eq, %25, %953 : vector<128x128xi32>
    %c26_511 = arith.constant 26 : index
    %c5_512 = arith.constant 5 : index
    %955 = memref.load %arg1[%c26_511, %c5_512] : memref<32x8xf32, #tpu.memory_space<smem>>
    %956 = vector.broadcast %955 : f32 to vector<128x128xf32>
    %957 = arith.select %954, %956, %952 : vector<128x128xi1>, vector<128x128xf32>
    %c27_i32_513 = arith.constant 27 : i32
    %958 = vector.broadcast %c27_i32_513 : i32 to vector<128x128xi32>
    %959 = arith.cmpi eq, %25, %958 : vector<128x128xi32>
    %c27_514 = arith.constant 27 : index
    %c5_515 = arith.constant 5 : index
    %960 = memref.load %arg1[%c27_514, %c5_515] : memref<32x8xf32, #tpu.memory_space<smem>>
    %961 = vector.broadcast %960 : f32 to vector<128x128xf32>
    %962 = arith.select %959, %961, %957 : vector<128x128xi1>, vector<128x128xf32>
    %c28_i32_516 = arith.constant 28 : i32
    %963 = vector.broadcast %c28_i32_516 : i32 to vector<128x128xi32>
    %964 = arith.cmpi eq, %25, %963 : vector<128x128xi32>
    %c28_517 = arith.constant 28 : index
    %c5_518 = arith.constant 5 : index
    %965 = memref.load %arg1[%c28_517, %c5_518] : memref<32x8xf32, #tpu.memory_space<smem>>
    %966 = vector.broadcast %965 : f32 to vector<128x128xf32>
    %967 = arith.select %964, %966, %962 : vector<128x128xi1>, vector<128x128xf32>
    %c29_i32_519 = arith.constant 29 : i32
    %968 = vector.broadcast %c29_i32_519 : i32 to vector<128x128xi32>
    %969 = arith.cmpi eq, %25, %968 : vector<128x128xi32>
    %c29_520 = arith.constant 29 : index
    %c5_521 = arith.constant 5 : index
    %970 = memref.load %arg1[%c29_520, %c5_521] : memref<32x8xf32, #tpu.memory_space<smem>>
    %971 = vector.broadcast %970 : f32 to vector<128x128xf32>
    %972 = arith.select %969, %971, %967 : vector<128x128xi1>, vector<128x128xf32>
    %c30_i32_522 = arith.constant 30 : i32
    %973 = vector.broadcast %c30_i32_522 : i32 to vector<128x128xi32>
    %974 = arith.cmpi eq, %25, %973 : vector<128x128xi32>
    %c30_523 = arith.constant 30 : index
    %c5_524 = arith.constant 5 : index
    %975 = memref.load %arg1[%c30_523, %c5_524] : memref<32x8xf32, #tpu.memory_space<smem>>
    %976 = vector.broadcast %975 : f32 to vector<128x128xf32>
    %977 = arith.select %974, %976, %972 : vector<128x128xi1>, vector<128x128xf32>
    %c31_i32_525 = arith.constant 31 : i32
    %978 = vector.broadcast %c31_i32_525 : i32 to vector<128x128xi32>
    %979 = arith.cmpi eq, %25, %978 : vector<128x128xi32>
    %c31_526 = arith.constant 31 : index
    %c5_527 = arith.constant 5 : index
    %980 = memref.load %arg1[%c31_526, %c5_527] : memref<32x8xf32, #tpu.memory_space<smem>>
    %981 = vector.broadcast %980 : f32 to vector<128x128xf32>
    %982 = arith.select %979, %981, %977 : vector<128x128xi1>, vector<128x128xf32>
    %c5_528 = arith.constant 5 : index
    %c0_529 = arith.constant 0 : index
    %c0_530 = arith.constant 0 : index
    %983 = vector.load %arg2[%c5_528, %c0_529, %c0_530] : memref<8x128x128xf32, #tpu.memory_space<vmem>>, vector<1x128x128xf32>
    %984 = vector.shape_cast %983 : vector<1x128x128xf32> to vector<128x128xf32>
    %985 = vector.shape_cast %982 : vector<128x128xf32> to vector<1x128x128xf32>
    tpu.vector_store %arg2[%c5_528, %c0_529, %c0_530], %985 {strides = array<i32>} : memref<8x128x128xf32, #tpu.memory_space<vmem>>, vector<1x128x128xf32>,
    %c0_531 = arith.constant 0 : index
    %c6_532 = arith.constant 6 : index
    %986 = memref.load %arg1[%c0_531, %c6_532] : memref<32x8xf32, #tpu.memory_space<smem>>
    %987 = vector.broadcast %986 : f32 to vector<128x128xf32>
    %c1_i32_533 = arith.constant 1 : i32
    %988 = vector.broadcast %c1_i32_533 : i32 to vector<128x128xi32>
    %989 = arith.cmpi eq, %25, %988 : vector<128x128xi32>
    %c1_534 = arith.constant 1 : index
    %c6_535 = arith.constant 6 : index
    %990 = memref.load %arg1[%c1_534, %c6_535] : memref<32x8xf32, #tpu.memory_space<smem>>
    %991 = vector.broadcast %990 : f32 to vector<128x128xf32>
    %992 = arith.select %989, %991, %987 : vector<128x128xi1>, vector<128x128xf32>
    %c2_i32_536 = arith.constant 2 : i32
    %993 = vector.broadcast %c2_i32_536 : i32 to vector<128x128xi32>
    %994 = arith.cmpi eq, %25, %993 : vector<128x128xi32>
    %c2_537 = arith.constant 2 : index
    %c6_538 = arith.constant 6 : index
    %995 = memref.load %arg1[%c2_537, %c6_538] : memref<32x8xf32, #tpu.memory_space<smem>>
    %996 = vector.broadcast %995 : f32 to vector<128x128xf32>
    %997 = arith.select %994, %996, %992 : vector<128x128xi1>, vector<128x128xf32>
    %c3_i32_539 = arith.constant 3 : i32
    %998 = vector.broadcast %c3_i32_539 : i32 to vector<128x128xi32>
    %999 = arith.cmpi eq, %25, %998 : vector<128x128xi32>
    %c3_540 = arith.constant 3 : index
    %c6_541 = arith.constant 6 : index
    %1000 = memref.load %arg1[%c3_540, %c6_541] : memref<32x8xf32, #tpu.memory_space<smem>>
    %1001 = vector.broadcast %1000 : f32 to vector<128x128xf32>
    %1002 = arith.select %999, %1001, %997 : vector<128x128xi1>, vector<128x128xf32>
    %c4_i32_542 = arith.constant 4 : i32
    %1003 = vector.broadcast %c4_i32_542 : i32 to vector<128x128xi32>
    %1004 = arith.cmpi eq, %25, %1003 : vector<128x128xi32>
    %c4_543 = arith.constant 4 : index
    %c6_544 = arith.constant 6 : index
    %1005 = memref.load %arg1[%c4_543, %c6_544] : memref<32x8xf32, #tpu.memory_space<smem>>
    %1006 = vector.broadcast %1005 : f32 to vector<128x128xf32>
    %1007 = arith.select %1004, %1006, %1002 : vector<128x128xi1>, vector<128x128xf32>
    %c5_i32_545 = arith.constant 5 : i32
    %1008 = vector.broadcast %c5_i32_545 : i32 to vector<128x128xi32>
    %1009 = arith.cmpi eq, %25, %1008 : vector<128x128xi32>
    %c5_546 = arith.constant 5 : index
    %c6_547 = arith.constant 6 : index
    %1010 = memref.load %arg1[%c5_546, %c6_547] : memref<32x8xf32, #tpu.memory_space<smem>>
    %1011 = vector.broadcast %1010 : f32 to vector<128x128xf32>
    %1012 = arith.select %1009, %1011, %1007 : vector<128x128xi1>, vector<128x128xf32>
    %c6_i32_548 = arith.constant 6 : i32
    %1013 = vector.broadcast %c6_i32_548 : i32 to vector<128x128xi32>
    %1014 = arith.cmpi eq, %25, %1013 : vector<128x128xi32>
    %c6_549 = arith.constant 6 : index
    %c6_550 = arith.constant 6 : index
    %1015 = memref.load %arg1[%c6_549, %c6_550] : memref<32x8xf32, #tpu.memory_space<smem>>
    %1016 = vector.broadcast %1015 : f32 to vector<128x128xf32>
    %1017 = arith.select %1014, %1016, %1012 : vector<128x128xi1>, vector<128x128xf32>
    %c7_i32_551 = arith.constant 7 : i32
    %1018 = vector.broadcast %c7_i32_551 : i32 to vector<128x128xi32>
    %1019 = arith.cmpi eq, %25, %1018 : vector<128x128xi32>
    %c7_552 = arith.constant 7 : index
    %c6_553 = arith.constant 6 : index
    %1020 = memref.load %arg1[%c7_552, %c6_553] : memref<32x8xf32, #tpu.memory_space<smem>>
    %1021 = vector.broadcast %1020 : f32 to vector<128x128xf32>
    %1022 = arith.select %1019, %1021, %1017 : vector<128x128xi1>, vector<128x128xf32>
    %c8_i32_554 = arith.constant 8 : i32
    %1023 = vector.broadcast %c8_i32_554 : i32 to vector<128x128xi32>
    %1024 = arith.cmpi eq, %25, %1023 : vector<128x128xi32>
    %c8_555 = arith.constant 8 : index
    %c6_556 = arith.constant 6 : index
    %1025 = memref.load %arg1[%c8_555, %c6_556] : memref<32x8xf32, #tpu.memory_space<smem>>
    %1026 = vector.broadcast %1025 : f32 to vector<128x128xf32>
    %1027 = arith.select %1024, %1026, %1022 : vector<128x128xi1>, vector<128x128xf32>
    %c9_i32_557 = arith.constant 9 : i32
    %1028 = vector.broadcast %c9_i32_557 : i32 to vector<128x128xi32>
    %1029 = arith.cmpi eq, %25, %1028 : vector<128x128xi32>
    %c9_558 = arith.constant 9 : index
    %c6_559 = arith.constant 6 : index
    %1030 = memref.load %arg1[%c9_558, %c6_559] : memref<32x8xf32, #tpu.memory_space<smem>>
    %1031 = vector.broadcast %1030 : f32 to vector<128x128xf32>
    %1032 = arith.select %1029, %1031, %1027 : vector<128x128xi1>, vector<128x128xf32>
    %c10_i32_560 = arith.constant 10 : i32
    %1033 = vector.broadcast %c10_i32_560 : i32 to vector<128x128xi32>
    %1034 = arith.cmpi eq, %25, %1033 : vector<128x128xi32>
    %c10_561 = arith.constant 10 : index
    %c6_562 = arith.constant 6 : index
    %1035 = memref.load %arg1[%c10_561, %c6_562] : memref<32x8xf32, #tpu.memory_space<smem>>
    %1036 = vector.broadcast %1035 : f32 to vector<128x128xf32>
    %1037 = arith.select %1034, %1036, %1032 : vector<128x128xi1>, vector<128x128xf32>
    %c11_i32_563 = arith.constant 11 : i32
    %1038 = vector.broadcast %c11_i32_563 : i32 to vector<128x128xi32>
    %1039 = arith.cmpi eq, %25, %1038 : vector<128x128xi32>
    %c11_564 = arith.constant 11 : index
    %c6_565 = arith.constant 6 : index
    %1040 = memref.load %arg1[%c11_564, %c6_565] : memref<32x8xf32, #tpu.memory_space<smem>>
    %1041 = vector.broadcast %1040 : f32 to vector<128x128xf32>
    %1042 = arith.select %1039, %1041, %1037 : vector<128x128xi1>, vector<128x128xf32>
    %c12_i32_566 = arith.constant 12 : i32
    %1043 = vector.broadcast %c12_i32_566 : i32 to vector<128x128xi32>
    %1044 = arith.cmpi eq, %25, %1043 : vector<128x128xi32>
    %c12_567 = arith.constant 12 : index
    %c6_568 = arith.constant 6 : index
    %1045 = memref.load %arg1[%c12_567, %c6_568] : memref<32x8xf32, #tpu.memory_space<smem>>
    %1046 = vector.broadcast %1045 : f32 to vector<128x128xf32>
    %1047 = arith.select %1044, %1046, %1042 : vector<128x128xi1>, vector<128x128xf32>
    %c13_i32_569 = arith.constant 13 : i32
    %1048 = vector.broadcast %c13_i32_569 : i32 to vector<128x128xi32>
    %1049 = arith.cmpi eq, %25, %1048 : vector<128x128xi32>
    %c13_570 = arith.constant 13 : index
    %c6_571 = arith.constant 6 : index
    %1050 = memref.load %arg1[%c13_570, %c6_571] : memref<32x8xf32, #tpu.memory_space<smem>>
    %1051 = vector.broadcast %1050 : f32 to vector<128x128xf32>
    %1052 = arith.select %1049, %1051, %1047 : vector<128x128xi1>, vector<128x128xf32>
    %c14_i32_572 = arith.constant 14 : i32
    %1053 = vector.broadcast %c14_i32_572 : i32 to vector<128x128xi32>
    %1054 = arith.cmpi eq, %25, %1053 : vector<128x128xi32>
    %c14_573 = arith.constant 14 : index
    %c6_574 = arith.constant 6 : index
    %1055 = memref.load %arg1[%c14_573, %c6_574] : memref<32x8xf32, #tpu.memory_space<smem>>
    %1056 = vector.broadcast %1055 : f32 to vector<128x128xf32>
    %1057 = arith.select %1054, %1056, %1052 : vector<128x128xi1>, vector<128x128xf32>
    %c15_i32_575 = arith.constant 15 : i32
    %1058 = vector.broadcast %c15_i32_575 : i32 to vector<128x128xi32>
    %1059 = arith.cmpi eq, %25, %1058 : vector<128x128xi32>
    %c15_576 = arith.constant 15 : index
    %c6_577 = arith.constant 6 : index
    %1060 = memref.load %arg1[%c15_576, %c6_577] : memref<32x8xf32, #tpu.memory_space<smem>>
    %1061 = vector.broadcast %1060 : f32 to vector<128x128xf32>
    %1062 = arith.select %1059, %1061, %1057 : vector<128x128xi1>, vector<128x128xf32>
    %c16_i32_578 = arith.constant 16 : i32
    %1063 = vector.broadcast %c16_i32_578 : i32 to vector<128x128xi32>
    %1064 = arith.cmpi eq, %25, %1063 : vector<128x128xi32>
    %c16_579 = arith.constant 16 : index
    %c6_580 = arith.constant 6 : index
    %1065 = memref.load %arg1[%c16_579, %c6_580] : memref<32x8xf32, #tpu.memory_space<smem>>
    %1066 = vector.broadcast %1065 : f32 to vector<128x128xf32>
    %1067 = arith.select %1064, %1066, %1062 : vector<128x128xi1>, vector<128x128xf32>
    %c17_i32_581 = arith.constant 17 : i32
    %1068 = vector.broadcast %c17_i32_581 : i32 to vector<128x128xi32>
    %1069 = arith.cmpi eq, %25, %1068 : vector<128x128xi32>
    %c17_582 = arith.constant 17 : index
    %c6_583 = arith.constant 6 : index
    %1070 = memref.load %arg1[%c17_582, %c6_583] : memref<32x8xf32, #tpu.memory_space<smem>>
    %1071 = vector.broadcast %1070 : f32 to vector<128x128xf32>
    %1072 = arith.select %1069, %1071, %1067 : vector<128x128xi1>, vector<128x128xf32>
    %c18_i32_584 = arith.constant 18 : i32
    %1073 = vector.broadcast %c18_i32_584 : i32 to vector<128x128xi32>
    %1074 = arith.cmpi eq, %25, %1073 : vector<128x128xi32>
    %c18_585 = arith.constant 18 : index
    %c6_586 = arith.constant 6 : index
    %1075 = memref.load %arg1[%c18_585, %c6_586] : memref<32x8xf32, #tpu.memory_space<smem>>
    %1076 = vector.broadcast %1075 : f32 to vector<128x128xf32>
    %1077 = arith.select %1074, %1076, %1072 : vector<128x128xi1>, vector<128x128xf32>
    %c19_i32_587 = arith.constant 19 : i32
    %1078 = vector.broadcast %c19_i32_587 : i32 to vector<128x128xi32>
    %1079 = arith.cmpi eq, %25, %1078 : vector<128x128xi32>
    %c19_588 = arith.constant 19 : index
    %c6_589 = arith.constant 6 : index
    %1080 = memref.load %arg1[%c19_588, %c6_589] : memref<32x8xf32, #tpu.memory_space<smem>>
    %1081 = vector.broadcast %1080 : f32 to vector<128x128xf32>
    %1082 = arith.select %1079, %1081, %1077 : vector<128x128xi1>, vector<128x128xf32>
    %c20_i32_590 = arith.constant 20 : i32
    %1083 = vector.broadcast %c20_i32_590 : i32 to vector<128x128xi32>
    %1084 = arith.cmpi eq, %25, %1083 : vector<128x128xi32>
    %c20_591 = arith.constant 20 : index
    %c6_592 = arith.constant 6 : index
    %1085 = memref.load %arg1[%c20_591, %c6_592] : memref<32x8xf32, #tpu.memory_space<smem>>
    %1086 = vector.broadcast %1085 : f32 to vector<128x128xf32>
    %1087 = arith.select %1084, %1086, %1082 : vector<128x128xi1>, vector<128x128xf32>
    %c21_i32_593 = arith.constant 21 : i32
    %1088 = vector.broadcast %c21_i32_593 : i32 to vector<128x128xi32>
    %1089 = arith.cmpi eq, %25, %1088 : vector<128x128xi32>
    %c21_594 = arith.constant 21 : index
    %c6_595 = arith.constant 6 : index
    %1090 = memref.load %arg1[%c21_594, %c6_595] : memref<32x8xf32, #tpu.memory_space<smem>>
    %1091 = vector.broadcast %1090 : f32 to vector<128x128xf32>
    %1092 = arith.select %1089, %1091, %1087 : vector<128x128xi1>, vector<128x128xf32>
    %c22_i32_596 = arith.constant 22 : i32
    %1093 = vector.broadcast %c22_i32_596 : i32 to vector<128x128xi32>
    %1094 = arith.cmpi eq, %25, %1093 : vector<128x128xi32>
    %c22_597 = arith.constant 22 : index
    %c6_598 = arith.constant 6 : index
    %1095 = memref.load %arg1[%c22_597, %c6_598] : memref<32x8xf32, #tpu.memory_space<smem>>
    %1096 = vector.broadcast %1095 : f32 to vector<128x128xf32>
    %1097 = arith.select %1094, %1096, %1092 : vector<128x128xi1>, vector<128x128xf32>
    %c23_i32_599 = arith.constant 23 : i32
    %1098 = vector.broadcast %c23_i32_599 : i32 to vector<128x128xi32>
    %1099 = arith.cmpi eq, %25, %1098 : vector<128x128xi32>
    %c23_600 = arith.constant 23 : index
    %c6_601 = arith.constant 6 : index
    %1100 = memref.load %arg1[%c23_600, %c6_601] : memref<32x8xf32, #tpu.memory_space<smem>>
    %1101 = vector.broadcast %1100 : f32 to vector<128x128xf32>
    %1102 = arith.select %1099, %1101, %1097 : vector<128x128xi1>, vector<128x128xf32>
    %c24_i32_602 = arith.constant 24 : i32
    %1103 = vector.broadcast %c24_i32_602 : i32 to vector<128x128xi32>
    %1104 = arith.cmpi eq, %25, %1103 : vector<128x128xi32>
    %c24_603 = arith.constant 24 : index
    %c6_604 = arith.constant 6 : index
    %1105 = memref.load %arg1[%c24_603, %c6_604] : memref<32x8xf32, #tpu.memory_space<smem>>
    %1106 = vector.broadcast %1105 : f32 to vector<128x128xf32>
    %1107 = arith.select %1104, %1106, %1102 : vector<128x128xi1>, vector<128x128xf32>
    %c25_i32_605 = arith.constant 25 : i32
    %1108 = vector.broadcast %c25_i32_605 : i32 to vector<128x128xi32>
    %1109 = arith.cmpi eq, %25, %1108 : vector<128x128xi32>
    %c25_606 = arith.constant 25 : index
    %c6_607 = arith.constant 6 : index
    %1110 = memref.load %arg1[%c25_606, %c6_607] : memref<32x8xf32, #tpu.memory_space<smem>>
    %1111 = vector.broadcast %1110 : f32 to vector<128x128xf32>
    %1112 = arith.select %1109, %1111, %1107 : vector<128x128xi1>, vector<128x128xf32>
    %c26_i32_608 = arith.constant 26 : i32
    %1113 = vector.broadcast %c26_i32_608 : i32 to vector<128x128xi32>
    %1114 = arith.cmpi eq, %25, %1113 : vector<128x128xi32>
    %c26_609 = arith.constant 26 : index
    %c6_610 = arith.constant 6 : index
    %1115 = memref.load %arg1[%c26_609, %c6_610] : memref<32x8xf32, #tpu.memory_space<smem>>
    %1116 = vector.broadcast %1115 : f32 to vector<128x128xf32>
    %1117 = arith.select %1114, %1116, %1112 : vector<128x128xi1>, vector<128x128xf32>
    %c27_i32_611 = arith.constant 27 : i32
    %1118 = vector.broadcast %c27_i32_611 : i32 to vector<128x128xi32>
    %1119 = arith.cmpi eq, %25, %1118 : vector<128x128xi32>
    %c27_612 = arith.constant 27 : index
    %c6_613 = arith.constant 6 : index
    %1120 = memref.load %arg1[%c27_612, %c6_613] : memref<32x8xf32, #tpu.memory_space<smem>>
    %1121 = vector.broadcast %1120 : f32 to vector<128x128xf32>
    %1122 = arith.select %1119, %1121, %1117 : vector<128x128xi1>, vector<128x128xf32>
    %c28_i32_614 = arith.constant 28 : i32
    %1123 = vector.broadcast %c28_i32_614 : i32 to vector<128x128xi32>
    %1124 = arith.cmpi eq, %25, %1123 : vector<128x128xi32>
    %c28_615 = arith.constant 28 : index
    %c6_616 = arith.constant 6 : index
    %1125 = memref.load %arg1[%c28_615, %c6_616] : memref<32x8xf32, #tpu.memory_space<smem>>
    %1126 = vector.broadcast %1125 : f32 to vector<128x128xf32>
    %1127 = arith.select %1124, %1126, %1122 : vector<128x128xi1>, vector<128x128xf32>
    %c29_i32_617 = arith.constant 29 : i32
    %1128 = vector.broadcast %c29_i32_617 : i32 to vector<128x128xi32>
    %1129 = arith.cmpi eq, %25, %1128 : vector<128x128xi32>
    %c29_618 = arith.constant 29 : index
    %c6_619 = arith.constant 6 : index
    %1130 = memref.load %arg1[%c29_618, %c6_619] : memref<32x8xf32, #tpu.memory_space<smem>>
    %1131 = vector.broadcast %1130 : f32 to vector<128x128xf32>
    %1132 = arith.select %1129, %1131, %1127 : vector<128x128xi1>, vector<128x128xf32>
    %c30_i32_620 = arith.constant 30 : i32
    %1133 = vector.broadcast %c30_i32_620 : i32 to vector<128x128xi32>
    %1134 = arith.cmpi eq, %25, %1133 : vector<128x128xi32>
    %c30_621 = arith.constant 30 : index
    %c6_622 = arith.constant 6 : index
    %1135 = memref.load %arg1[%c30_621, %c6_622] : memref<32x8xf32, #tpu.memory_space<smem>>
    %1136 = vector.broadcast %1135 : f32 to vector<128x128xf32>
    %1137 = arith.select %1134, %1136, %1132 : vector<128x128xi1>, vector<128x128xf32>
    %c31_i32_623 = arith.constant 31 : i32
    %1138 = vector.broadcast %c31_i32_623 : i32 to vector<128x128xi32>
    %1139 = arith.cmpi eq, %25, %1138 : vector<128x128xi32>
    %c31_624 = arith.constant 31 : index
    %c6_625 = arith.constant 6 : index
    %1140 = memref.load %arg1[%c31_624, %c6_625] : memref<32x8xf32, #tpu.memory_space<smem>>
    %1141 = vector.broadcast %1140 : f32 to vector<128x128xf32>
    %1142 = arith.select %1139, %1141, %1137 : vector<128x128xi1>, vector<128x128xf32>
    %c6_626 = arith.constant 6 : index
    %c0_627 = arith.constant 0 : index
    %c0_628 = arith.constant 0 : index
    %1143 = vector.load %arg2[%c6_626, %c0_627, %c0_628] : memref<8x128x128xf32, #tpu.memory_space<vmem>>, vector<1x128x128xf32>
    %1144 = vector.shape_cast %1143 : vector<1x128x128xf32> to vector<128x128xf32>
    %1145 = vector.shape_cast %1142 : vector<128x128xf32> to vector<1x128x128xf32>
    tpu.vector_store %arg2[%c6_626, %c0_627, %c0_628], %1145 {strides = array<i32>} : memref<8x128x128xf32, #tpu.memory_space<vmem>>, vector<1x128x128xf32>,
    %c0_629 = arith.constant 0 : index
    %c7_630 = arith.constant 7 : index
    %1146 = memref.load %arg1[%c0_629, %c7_630] : memref<32x8xf32, #tpu.memory_space<smem>>
    %1147 = vector.broadcast %1146 : f32 to vector<128x128xf32>
    %c1_i32_631 = arith.constant 1 : i32
    %1148 = vector.broadcast %c1_i32_631 : i32 to vector<128x128xi32>
    %1149 = arith.cmpi eq, %25, %1148 : vector<128x128xi32>
    %c1_632 = arith.constant 1 : index
    %c7_633 = arith.constant 7 : index
    %1150 = memref.load %arg1[%c1_632, %c7_633] : memref<32x8xf32, #tpu.memory_space<smem>>
    %1151 = vector.broadcast %1150 : f32 to vector<128x128xf32>
    %1152 = arith.select %1149, %1151, %1147 : vector<128x128xi1>, vector<128x128xf32>
    %c2_i32_634 = arith.constant 2 : i32
    %1153 = vector.broadcast %c2_i32_634 : i32 to vector<128x128xi32>
    %1154 = arith.cmpi eq, %25, %1153 : vector<128x128xi32>
    %c2_635 = arith.constant 2 : index
    %c7_636 = arith.constant 7 : index
    %1155 = memref.load %arg1[%c2_635, %c7_636] : memref<32x8xf32, #tpu.memory_space<smem>>
    %1156 = vector.broadcast %1155 : f32 to vector<128x128xf32>
    %1157 = arith.select %1154, %1156, %1152 : vector<128x128xi1>, vector<128x128xf32>
    %c3_i32_637 = arith.constant 3 : i32
    %1158 = vector.broadcast %c3_i32_637 : i32 to vector<128x128xi32>
    %1159 = arith.cmpi eq, %25, %1158 : vector<128x128xi32>
    %c3_638 = arith.constant 3 : index
    %c7_639 = arith.constant 7 : index
    %1160 = memref.load %arg1[%c3_638, %c7_639] : memref<32x8xf32, #tpu.memory_space<smem>>
    %1161 = vector.broadcast %1160 : f32 to vector<128x128xf32>
    %1162 = arith.select %1159, %1161, %1157 : vector<128x128xi1>, vector<128x128xf32>
    %c4_i32_640 = arith.constant 4 : i32
    %1163 = vector.broadcast %c4_i32_640 : i32 to vector<128x128xi32>
    %1164 = arith.cmpi eq, %25, %1163 : vector<128x128xi32>
    %c4_641 = arith.constant 4 : index
    %c7_642 = arith.constant 7 : index
    %1165 = memref.load %arg1[%c4_641, %c7_642] : memref<32x8xf32, #tpu.memory_space<smem>>
    %1166 = vector.broadcast %1165 : f32 to vector<128x128xf32>
    %1167 = arith.select %1164, %1166, %1162 : vector<128x128xi1>, vector<128x128xf32>
    %c5_i32_643 = arith.constant 5 : i32
    %1168 = vector.broadcast %c5_i32_643 : i32 to vector<128x128xi32>
    %1169 = arith.cmpi eq, %25, %1168 : vector<128x128xi32>
    %c5_644 = arith.constant 5 : index
    %c7_645 = arith.constant 7 : index
    %1170 = memref.load %arg1[%c5_644, %c7_645] : memref<32x8xf32, #tpu.memory_space<smem>>
    %1171 = vector.broadcast %1170 : f32 to vector<128x128xf32>
    %1172 = arith.select %1169, %1171, %1167 : vector<128x128xi1>, vector<128x128xf32>
    %c6_i32_646 = arith.constant 6 : i32
    %1173 = vector.broadcast %c6_i32_646 : i32 to vector<128x128xi32>
    %1174 = arith.cmpi eq, %25, %1173 : vector<128x128xi32>
    %c6_647 = arith.constant 6 : index
    %c7_648 = arith.constant 7 : index
    %1175 = memref.load %arg1[%c6_647, %c7_648] : memref<32x8xf32, #tpu.memory_space<smem>>
    %1176 = vector.broadcast %1175 : f32 to vector<128x128xf32>
    %1177 = arith.select %1174, %1176, %1172 : vector<128x128xi1>, vector<128x128xf32>
    %c7_i32_649 = arith.constant 7 : i32
    %1178 = vector.broadcast %c7_i32_649 : i32 to vector<128x128xi32>
    %1179 = arith.cmpi eq, %25, %1178 : vector<128x128xi32>
    %c7_650 = arith.constant 7 : index
    %c7_651 = arith.constant 7 : index
    %1180 = memref.load %arg1[%c7_650, %c7_651] : memref<32x8xf32, #tpu.memory_space<smem>>
    %1181 = vector.broadcast %1180 : f32 to vector<128x128xf32>
    %1182 = arith.select %1179, %1181, %1177 : vector<128x128xi1>, vector<128x128xf32>
    %c8_i32_652 = arith.constant 8 : i32
    %1183 = vector.broadcast %c8_i32_652 : i32 to vector<128x128xi32>
    %1184 = arith.cmpi eq, %25, %1183 : vector<128x128xi32>
    %c8_653 = arith.constant 8 : index
    %c7_654 = arith.constant 7 : index
    %1185 = memref.load %arg1[%c8_653, %c7_654] : memref<32x8xf32, #tpu.memory_space<smem>>
    %1186 = vector.broadcast %1185 : f32 to vector<128x128xf32>
    %1187 = arith.select %1184, %1186, %1182 : vector<128x128xi1>, vector<128x128xf32>
    %c9_i32_655 = arith.constant 9 : i32
    %1188 = vector.broadcast %c9_i32_655 : i32 to vector<128x128xi32>
    %1189 = arith.cmpi eq, %25, %1188 : vector<128x128xi32>
    %c9_656 = arith.constant 9 : index
    %c7_657 = arith.constant 7 : index
    %1190 = memref.load %arg1[%c9_656, %c7_657] : memref<32x8xf32, #tpu.memory_space<smem>>
    %1191 = vector.broadcast %1190 : f32 to vector<128x128xf32>
    %1192 = arith.select %1189, %1191, %1187 : vector<128x128xi1>, vector<128x128xf32>
    %c10_i32_658 = arith.constant 10 : i32
    %1193 = vector.broadcast %c10_i32_658 : i32 to vector<128x128xi32>
    %1194 = arith.cmpi eq, %25, %1193 : vector<128x128xi32>
    %c10_659 = arith.constant 10 : index
    %c7_660 = arith.constant 7 : index
    %1195 = memref.load %arg1[%c10_659, %c7_660] : memref<32x8xf32, #tpu.memory_space<smem>>
    %1196 = vector.broadcast %1195 : f32 to vector<128x128xf32>
    %1197 = arith.select %1194, %1196, %1192 : vector<128x128xi1>, vector<128x128xf32>
    %c11_i32_661 = arith.constant 11 : i32
    %1198 = vector.broadcast %c11_i32_661 : i32 to vector<128x128xi32>
    %1199 = arith.cmpi eq, %25, %1198 : vector<128x128xi32>
    %c11_662 = arith.constant 11 : index
    %c7_663 = arith.constant 7 : index
    %1200 = memref.load %arg1[%c11_662, %c7_663] : memref<32x8xf32, #tpu.memory_space<smem>>
    %1201 = vector.broadcast %1200 : f32 to vector<128x128xf32>
    %1202 = arith.select %1199, %1201, %1197 : vector<128x128xi1>, vector<128x128xf32>
    %c12_i32_664 = arith.constant 12 : i32
    %1203 = vector.broadcast %c12_i32_664 : i32 to vector<128x128xi32>
    %1204 = arith.cmpi eq, %25, %1203 : vector<128x128xi32>
    %c12_665 = arith.constant 12 : index
    %c7_666 = arith.constant 7 : index
    %1205 = memref.load %arg1[%c12_665, %c7_666] : memref<32x8xf32, #tpu.memory_space<smem>>
    %1206 = vector.broadcast %1205 : f32 to vector<128x128xf32>
    %1207 = arith.select %1204, %1206, %1202 : vector<128x128xi1>, vector<128x128xf32>
    %c13_i32_667 = arith.constant 13 : i32
    %1208 = vector.broadcast %c13_i32_667 : i32 to vector<128x128xi32>
    %1209 = arith.cmpi eq, %25, %1208 : vector<128x128xi32>
    %c13_668 = arith.constant 13 : index
    %c7_669 = arith.constant 7 : index
    %1210 = memref.load %arg1[%c13_668, %c7_669] : memref<32x8xf32, #tpu.memory_space<smem>>
    %1211 = vector.broadcast %1210 : f32 to vector<128x128xf32>
    %1212 = arith.select %1209, %1211, %1207 : vector<128x128xi1>, vector<128x128xf32>
    %c14_i32_670 = arith.constant 14 : i32
    %1213 = vector.broadcast %c14_i32_670 : i32 to vector<128x128xi32>
    %1214 = arith.cmpi eq, %25, %1213 : vector<128x128xi32>
    %c14_671 = arith.constant 14 : index
    %c7_672 = arith.constant 7 : index
    %1215 = memref.load %arg1[%c14_671, %c7_672] : memref<32x8xf32, #tpu.memory_space<smem>>
    %1216 = vector.broadcast %1215 : f32 to vector<128x128xf32>
    %1217 = arith.select %1214, %1216, %1212 : vector<128x128xi1>, vector<128x128xf32>
    %c15_i32_673 = arith.constant 15 : i32
    %1218 = vector.broadcast %c15_i32_673 : i32 to vector<128x128xi32>
    %1219 = arith.cmpi eq, %25, %1218 : vector<128x128xi32>
    %c15_674 = arith.constant 15 : index
    %c7_675 = arith.constant 7 : index
    %1220 = memref.load %arg1[%c15_674, %c7_675] : memref<32x8xf32, #tpu.memory_space<smem>>
    %1221 = vector.broadcast %1220 : f32 to vector<128x128xf32>
    %1222 = arith.select %1219, %1221, %1217 : vector<128x128xi1>, vector<128x128xf32>
    %c16_i32_676 = arith.constant 16 : i32
    %1223 = vector.broadcast %c16_i32_676 : i32 to vector<128x128xi32>
    %1224 = arith.cmpi eq, %25, %1223 : vector<128x128xi32>
    %c16_677 = arith.constant 16 : index
    %c7_678 = arith.constant 7 : index
    %1225 = memref.load %arg1[%c16_677, %c7_678] : memref<32x8xf32, #tpu.memory_space<smem>>
    %1226 = vector.broadcast %1225 : f32 to vector<128x128xf32>
    %1227 = arith.select %1224, %1226, %1222 : vector<128x128xi1>, vector<128x128xf32>
    %c17_i32_679 = arith.constant 17 : i32
    %1228 = vector.broadcast %c17_i32_679 : i32 to vector<128x128xi32>
    %1229 = arith.cmpi eq, %25, %1228 : vector<128x128xi32>
    %c17_680 = arith.constant 17 : index
    %c7_681 = arith.constant 7 : index
    %1230 = memref.load %arg1[%c17_680, %c7_681] : memref<32x8xf32, #tpu.memory_space<smem>>
    %1231 = vector.broadcast %1230 : f32 to vector<128x128xf32>
    %1232 = arith.select %1229, %1231, %1227 : vector<128x128xi1>, vector<128x128xf32>
    %c18_i32_682 = arith.constant 18 : i32
    %1233 = vector.broadcast %c18_i32_682 : i32 to vector<128x128xi32>
    %1234 = arith.cmpi eq, %25, %1233 : vector<128x128xi32>
    %c18_683 = arith.constant 18 : index
    %c7_684 = arith.constant 7 : index
    %1235 = memref.load %arg1[%c18_683, %c7_684] : memref<32x8xf32, #tpu.memory_space<smem>>
    %1236 = vector.broadcast %1235 : f32 to vector<128x128xf32>
    %1237 = arith.select %1234, %1236, %1232 : vector<128x128xi1>, vector<128x128xf32>
    %c19_i32_685 = arith.constant 19 : i32
    %1238 = vector.broadcast %c19_i32_685 : i32 to vector<128x128xi32>
    %1239 = arith.cmpi eq, %25, %1238 : vector<128x128xi32>
    %c19_686 = arith.constant 19 : index
    %c7_687 = arith.constant 7 : index
    %1240 = memref.load %arg1[%c19_686, %c7_687] : memref<32x8xf32, #tpu.memory_space<smem>>
    %1241 = vector.broadcast %1240 : f32 to vector<128x128xf32>
    %1242 = arith.select %1239, %1241, %1237 : vector<128x128xi1>, vector<128x128xf32>
    %c20_i32_688 = arith.constant 20 : i32
    %1243 = vector.broadcast %c20_i32_688 : i32 to vector<128x128xi32>
    %1244 = arith.cmpi eq, %25, %1243 : vector<128x128xi32>
    %c20_689 = arith.constant 20 : index
    %c7_690 = arith.constant 7 : index
    %1245 = memref.load %arg1[%c20_689, %c7_690] : memref<32x8xf32, #tpu.memory_space<smem>>
    %1246 = vector.broadcast %1245 : f32 to vector<128x128xf32>
    %1247 = arith.select %1244, %1246, %1242 : vector<128x128xi1>, vector<128x128xf32>
    %c21_i32_691 = arith.constant 21 : i32
    %1248 = vector.broadcast %c21_i32_691 : i32 to vector<128x128xi32>
    %1249 = arith.cmpi eq, %25, %1248 : vector<128x128xi32>
    %c21_692 = arith.constant 21 : index
    %c7_693 = arith.constant 7 : index
    %1250 = memref.load %arg1[%c21_692, %c7_693] : memref<32x8xf32, #tpu.memory_space<smem>>
    %1251 = vector.broadcast %1250 : f32 to vector<128x128xf32>
    %1252 = arith.select %1249, %1251, %1247 : vector<128x128xi1>, vector<128x128xf32>
    %c22_i32_694 = arith.constant 22 : i32
    %1253 = vector.broadcast %c22_i32_694 : i32 to vector<128x128xi32>
    %1254 = arith.cmpi eq, %25, %1253 : vector<128x128xi32>
    %c22_695 = arith.constant 22 : index
    %c7_696 = arith.constant 7 : index
    %1255 = memref.load %arg1[%c22_695, %c7_696] : memref<32x8xf32, #tpu.memory_space<smem>>
    %1256 = vector.broadcast %1255 : f32 to vector<128x128xf32>
    %1257 = arith.select %1254, %1256, %1252 : vector<128x128xi1>, vector<128x128xf32>
    %c23_i32_697 = arith.constant 23 : i32
    %1258 = vector.broadcast %c23_i32_697 : i32 to vector<128x128xi32>
    %1259 = arith.cmpi eq, %25, %1258 : vector<128x128xi32>
    %c23_698 = arith.constant 23 : index
    %c7_699 = arith.constant 7 : index
    %1260 = memref.load %arg1[%c23_698, %c7_699] : memref<32x8xf32, #tpu.memory_space<smem>>
    %1261 = vector.broadcast %1260 : f32 to vector<128x128xf32>
    %1262 = arith.select %1259, %1261, %1257 : vector<128x128xi1>, vector<128x128xf32>
    %c24_i32_700 = arith.constant 24 : i32
    %1263 = vector.broadcast %c24_i32_700 : i32 to vector<128x128xi32>
    %1264 = arith.cmpi eq, %25, %1263 : vector<128x128xi32>
    %c24_701 = arith.constant 24 : index
    %c7_702 = arith.constant 7 : index
    %1265 = memref.load %arg1[%c24_701, %c7_702] : memref<32x8xf32, #tpu.memory_space<smem>>
    %1266 = vector.broadcast %1265 : f32 to vector<128x128xf32>
    %1267 = arith.select %1264, %1266, %1262 : vector<128x128xi1>, vector<128x128xf32>
    %c25_i32_703 = arith.constant 25 : i32
    %1268 = vector.broadcast %c25_i32_703 : i32 to vector<128x128xi32>
    %1269 = arith.cmpi eq, %25, %1268 : vector<128x128xi32>
    %c25_704 = arith.constant 25 : index
    %c7_705 = arith.constant 7 : index
    %1270 = memref.load %arg1[%c25_704, %c7_705] : memref<32x8xf32, #tpu.memory_space<smem>>
    %1271 = vector.broadcast %1270 : f32 to vector<128x128xf32>
    %1272 = arith.select %1269, %1271, %1267 : vector<128x128xi1>, vector<128x128xf32>
    %c26_i32_706 = arith.constant 26 : i32
    %1273 = vector.broadcast %c26_i32_706 : i32 to vector<128x128xi32>
    %1274 = arith.cmpi eq, %25, %1273 : vector<128x128xi32>
    %c26_707 = arith.constant 26 : index
    %c7_708 = arith.constant 7 : index
    %1275 = memref.load %arg1[%c26_707, %c7_708] : memref<32x8xf32, #tpu.memory_space<smem>>
    %1276 = vector.broadcast %1275 : f32 to vector<128x128xf32>
    %1277 = arith.select %1274, %1276, %1272 : vector<128x128xi1>, vector<128x128xf32>
    %c27_i32_709 = arith.constant 27 : i32
    %1278 = vector.broadcast %c27_i32_709 : i32 to vector<128x128xi32>
    %1279 = arith.cmpi eq, %25, %1278 : vector<128x128xi32>
    %c27_710 = arith.constant 27 : index
    %c7_711 = arith.constant 7 : index
    %1280 = memref.load %arg1[%c27_710, %c7_711] : memref<32x8xf32, #tpu.memory_space<smem>>
    %1281 = vector.broadcast %1280 : f32 to vector<128x128xf32>
    %1282 = arith.select %1279, %1281, %1277 : vector<128x128xi1>, vector<128x128xf32>
    %c28_i32_712 = arith.constant 28 : i32
    %1283 = vector.broadcast %c28_i32_712 : i32 to vector<128x128xi32>
    %1284 = arith.cmpi eq, %25, %1283 : vector<128x128xi32>
    %c28_713 = arith.constant 28 : index
    %c7_714 = arith.constant 7 : index
    %1285 = memref.load %arg1[%c28_713, %c7_714] : memref<32x8xf32, #tpu.memory_space<smem>>
    %1286 = vector.broadcast %1285 : f32 to vector<128x128xf32>
    %1287 = arith.select %1284, %1286, %1282 : vector<128x128xi1>, vector<128x128xf32>
    %c29_i32_715 = arith.constant 29 : i32
    %1288 = vector.broadcast %c29_i32_715 : i32 to vector<128x128xi32>
    %1289 = arith.cmpi eq, %25, %1288 : vector<128x128xi32>
    %c29_716 = arith.constant 29 : index
    %c7_717 = arith.constant 7 : index
    %1290 = memref.load %arg1[%c29_716, %c7_717] : memref<32x8xf32, #tpu.memory_space<smem>>
    %1291 = vector.broadcast %1290 : f32 to vector<128x128xf32>
    %1292 = arith.select %1289, %1291, %1287 : vector<128x128xi1>, vector<128x128xf32>
    %c30_i32_718 = arith.constant 30 : i32
    %1293 = vector.broadcast %c30_i32_718 : i32 to vector<128x128xi32>
    %1294 = arith.cmpi eq, %25, %1293 : vector<128x128xi32>
    %c30_719 = arith.constant 30 : index
    %c7_720 = arith.constant 7 : index
    %1295 = memref.load %arg1[%c30_719, %c7_720] : memref<32x8xf32, #tpu.memory_space<smem>>
    %1296 = vector.broadcast %1295 : f32 to vector<128x128xf32>
    %1297 = arith.select %1294, %1296, %1292 : vector<128x128xi1>, vector<128x128xf32>
    %c31_i32_721 = arith.constant 31 : i32
    %1298 = vector.broadcast %c31_i32_721 : i32 to vector<128x128xi32>
    %1299 = arith.cmpi eq, %25, %1298 : vector<128x128xi32>
    %c31_722 = arith.constant 31 : index
    %c7_723 = arith.constant 7 : index
    %1300 = memref.load %arg1[%c31_722, %c7_723] : memref<32x8xf32, #tpu.memory_space<smem>>
    %1301 = vector.broadcast %1300 : f32 to vector<128x128xf32>
    %1302 = arith.select %1299, %1301, %1297 : vector<128x128xi1>, vector<128x128xf32>
    %c7_724 = arith.constant 7 : index
    %c0_725 = arith.constant 0 : index
    %c0_726 = arith.constant 0 : index
    %1303 = vector.load %arg2[%c7_724, %c0_725, %c0_726] : memref<8x128x128xf32, #tpu.memory_space<vmem>>, vector<1x128x128xf32>
    %1304 = vector.shape_cast %1303 : vector<1x128x128xf32> to vector<128x128xf32>
    %1305 = vector.shape_cast %1302 : vector<128x128xf32> to vector<1x128x128xf32>
    tpu.vector_store %arg2[%c7_724, %c0_725, %c0_726], %1305 {strides = array<i32>} : memref<8x128x128xf32, #tpu.memory_space<vmem>>, vector<1x128x128xf32>,
    return
  }
  func.func @transform_0(%arg0: i32) -> (i32, i32) {
    %c0_i32 = arith.constant 0 : i32
    %c0_i32_0 = arith.constant 0 : i32
    %c0_i32_1 = arith.constant 0 : i32
    return %c0_i32, %c0_i32_0 : i32, i32
  }
  func.func @transform_1(%arg0: i32) -> (i32, i32, i32) {
    %c0_i32 = arith.constant 0 : i32
    %c0_i32_0 = arith.constant 0 : i32
    %c0_i32_1 = arith.constant 0 : i32
    return %c0_i32, %arg0, %c0_i32_0 : i32, i32, i32
  }
}

</mosaic_0001>

<llo_original>
// kernel: tpu_custom_call.1
$region0: #{tpu_custom_call.1}
  #allocation0 [shape = 'u32[]', space=smem, size = 0x4, offset = 0x4, fixed_abs, tag = 'smem constant byte address 0x4 - core index']
  #allocation1 [shape = 'u32[72,128]{1,0:T(1,128)}', space=vmem, size = 0x9000, scoped, tag = 'internal scratch']
  %s0 = inlined_call_operand.vmem [shape: f32[32,8], index: 0, kind: input, shape index: {}]
  %s1 = inlined_call_operand.hbm [shape: f32[8,128,128], index: 1, kind: output, shape index: {}]
  %s2 = sld [smem:[#allocation0]]
  $region18: #{tpu_custom_call.1} parent=0
    _
  %s4 = ssub.s32 1, %s2
  %s5 = scalar_select 0, %s4, %s2
  $region1: #{tpu_custom_call.1} parent=0
    #allocation2 [shape = 'u8[16384]{0}', space=smem, size = 0x4000, scoped, tag = 'input window, operand 0, single buffered']
    #allocation3 [shape = 's32[1]{0}', space=sflag, size = 0x4, scoped, tag = 'scoped memory for tpu_custom_call.1']
    #allocation4 [shape = 's32[1]{0}', space=sflag, size = 0x4, scoped, tag = 'scoped memory for tpu_custom_call.1']
    #allocation5 [shape = 'u8[524288]{0}', space=vmem, size = 0x80000, scoped, tag = 'output window, operand 0, single buffered']
    %6 = vsyncpa [#allocation4], 0
    %7 = vsyncpa [#allocation3], 0
    // Predicated region
    $region2: #{tpu_custom_call.1} parent=1 // pred_check
      _
    $region3: #{tpu_custom_call.1} parent=1 // pred_check_branch
      %9 = sbr.rel (0) target = $region5
    $region4: #{tpu_custom_call.1} parent=1 // pred_region
      %11 = vsyncadd [#allocation4], 0
      %s12 = sshll.u32 %s0, 4
      %s13 = int_to_ptr.vmem [resolvable:$true] %s12
      %18 = dma.vmem_to_smem %s13, 512, [#allocation2], [#allocation4], 128, 128, 8
    $region5: #{tpu_custom_call.1} parent=1 // pred_fallthru
      _
    // Predicated region
    $region6: #{tpu_custom_call.1} parent=1 // pred_check
      _
    $region7: #{tpu_custom_call.1} parent=1 // pred_check_branch
      %20 = sbr.rel (0) target = $region9
    $region8: #{tpu_custom_call.1} parent=1 // pred_region
      %22 = dma.done [#allocation4], 512
    $region9: #{tpu_custom_call.1} parent=1 // pred_fallthru
      _
    %23 = sfence
    %s24 = smul.u32 0, 128
    %v25 = vlaneseq
    %v26 = vshrl.u32 %v25, 7
    %v27 = vadd.s32 %v26, 8
    %v28 = vadd.s32 %v26, 16
    %v29 = vadd.s32 %v26, 24
    %v30 = vadd.s32 %v26, 32
    %v31 = vadd.s32 %v26, 40
    %v32 = vadd.s32 %v26, 48
    %v33 = vadd.s32 %v26, 56
    %v34 = vadd.s32 %v26, 64
    %v35 = vadd.s32 %v26, 72
    %v36 = vadd.s32 %v26, 80
    %v37 = vadd.s32 %v26, 88
    %v38 = vadd.s32 %v26, 96
    %v39 = vadd.s32 %v26, 104
    %v40 = vadd.s32 %v26, 112
    %v41 = vadd.s32 %v26, 120
    %v42 = vstv %s24
    %v43 = vadd.s32 %v42, %v26
    %v44 = vadd.s32 %v42, %v27
    %v45 = vadd.s32 %v42, %v28
    %v46 = vadd.s32 %v42, %v29
    %v47 = vadd.s32 %v42, %v30
    %v48 = vadd.s32 %v42, %v31
    %v49 = vadd.s32 %v42, %v32
    %v50 = vadd.s32 %v42, %v33
    %v51 = vadd.s32 %v42, %v34
    %v52 = vadd.s32 %v42, %v35
    %v53 = vadd.s32 %v42, %v36
    %v54 = vadd.s32 %v42, %v37
    %v55 = vadd.s32 %v42, %v38
    %v56 = vadd.s32 %v42, %v39
    %v57 = vadd.s32 %v42, %v40
    %v58 = vadd.s32 %v42, %v41
    %v59 = vlaneseq
    %v60 = vand.u32 %v59, 127
    %v61 = vsub.s32 %v43, %v60
    %v62 = vsub.s32 %v44, %v60
    %v63 = vsub.s32 %v45, %v60
    %v64 = vsub.s32 %v46, %v60
    %v65 = vsub.s32 %v47, %v60
    %v66 = vsub.s32 %v48, %v60
    %v67 = vsub.s32 %v49, %v60
    %v68 = vsub.s32 %v50, %v60
    %v69 = vsub.s32 %v51, %v60
    %v70 = vsub.s32 %v52, %v60
    %v71 = vsub.s32 %v53, %v60
    %v72 = vsub.s32 %v54, %v60
    %v73 = vsub.s32 %v55, %v60
    %v74 = vsub.s32 %v56, %v60
    %v75 = vsub.s32 %v57, %v60
    %v76 = vsub.s32 %v58, %v60
    %vm77 = vcmp.gt.s32.totalorder %v61, 0
    %v78 = vsel %vm77, %v61, 0
    %vm79 = vcmp.gt.s32.totalorder %v62, 0
    %v80 = vsel %vm79, %v62, 0
    %vm81 = vcmp.gt.s32.totalorder %v63, 0
    %v82 = vsel %vm81, %v63, 0
    %vm83 = vcmp.gt.s32.totalorder %v64, 0
    %v84 = vsel %vm83, %v64, 0
    %vm85 = vcmp.gt.s32.totalorder %v65, 0
    %v86 = vsel %vm85, %v65, 0
    %vm87 = vcmp.gt.s32.totalorder %v66, 0
    %v88 = vsel %vm87, %v66, 0
    %vm89 = vcmp.gt.s32.totalorder %v67, 0
    %v90 = vsel %vm89, %v67, 0
    %vm91 = vcmp.gt.s32.totalorder %v68, 0
    %v92 = vsel %vm91, %v68, 0
    %vm93 = vcmp.gt.s32.totalorder %v69, 0
    %v94 = vsel %vm93, %v69, 0
    %vm95 = vcmp.gt.s32.totalorder %v70, 0
    %v96 = vsel %vm95, %v70, 0
    %vm97 = vcmp.gt.s32.totalorder %v71, 0
    %v98 = vsel %vm97, %v71, 0
    %vm99 = vcmp.gt.s32.totalorder %v72, 0
    %v100 = vsel %vm99, %v72, 0
    %vm101 = vcmp.gt.s32.totalorder %v73, 0
    %v102 = vsel %vm101, %v73, 0
    %vm103 = vcmp.gt.s32.totalorder %v74, 0
    %v104 = vsel %vm103, %v74, 0
    %vm105 = vcmp.gt.s32.totalorder %v75, 0
    %v106 = vsel %vm105, %v75, 0
    %vm107 = vcmp.gt.s32.totalorder %v76, 0
    %v108 = vsel %vm107, %v76, 0
    %vm109 = vcmp.lt.s32.totalorder %v78, 16
    %vm110 = vcmp.lt.s32.totalorder %v80, 16
    %vm111 = vcmp.lt.s32.totalorder %v82, 16
    %vm112 = vcmp.lt.s32.totalorder %v84, 16
    %vm113 = vcmp.lt.s32.totalorder %v86, 16
    %vm114 = vcmp.lt.s32.totalorder %v88, 16
    %vm115 = vcmp.lt.s32.totalorder %v90, 16
    %vm116 = vcmp.lt.s32.totalorder %v92, 16
    %vm117 = vcmp.lt.s32.totalorder %v94, 16
    %vm118 = vcmp.lt.s32.totalorder %v96, 16
    %vm119 = vcmp.lt.s32.totalorder %v98, 16
    %vm120 = vcmp.lt.s32.totalorder %v100, 16
    %vm121 = vcmp.lt.s32.totalorder %v102, 16
    %vm122 = vcmp.lt.s32.totalorder %v104, 16
    %vm123 = vcmp.lt.s32.totalorder %v106, 16
    %vm124 = vcmp.lt.s32.totalorder %v108, 16
    %vm125 = vcmp.gt.s32.totalorder %v78, 1
    %v126 = vsel %vm125, %v78, 1
    %vm127 = vcmp.gt.s32.totalorder %v80, 1
    %v128 = vsel %vm127, %v80, 1
    %vm129 = vcmp.gt.s32.totalorder %v82, 1
    %v130 = vsel %vm129, %v82, 1
    %vm131 = vcmp.gt.s32.totalorder %v84, 1
    %v132 = vsel %vm131, %v84, 1
    %vm133 = vcmp.gt.s32.totalorder %v86, 1
    %v134 = vsel %vm133, %v86, 1
    %vm135 = vcmp.gt.s32.totalorder %v88, 1
    %v136 = vsel %vm135, %v88, 1
    %vm137 = vcmp.gt.s32.totalorder %v90, 1
    %v138 = vsel %vm137, %v90, 1
    %vm139 = vcmp.gt.s32.totalorder %v92, 1
    %v140 = vsel %vm139, %v92, 1
    %vm141 = vcmp.gt.s32.totalorder %v94, 1
    %v142 = vsel %vm141, %v94, 1
    %vm143 = vcmp.gt.s32.totalorder %v96, 1
    %v144 = vsel %vm143, %v96, 1
    %vm145 = vcmp.gt.s32.totalorder %v98, 1
    %v146 = vsel %vm145, %v98, 1
    %vm147 = vcmp.gt.s32.totalorder %v100, 1
    %v148 = vsel %vm147, %v100, 1
    %vm149 = vcmp.gt.s32.totalorder %v102, 1
    %v150 = vsel %vm149, %v102, 1
    %vm151 = vcmp.gt.s32.totalorder %v104, 1
    %v152 = vsel %vm151, %v104, 1
    %vm153 = vcmp.gt.s32.totalorder %v106, 1
    %v154 = vsel %vm153, %v106, 1
    %vm155 = vcmp.gt.s32.totalorder %v108, 1
    %v156 = vsel %vm155, %v108, 1
    %v157 = vcvt.s32.f32 %v126
    %v158 = vcvt.s32.f32 %v128
    %v159 = vcvt.s32.f32 %v130
    %v160 = vcvt.s32.f32 %v132
    %v161 = vcvt.s32.f32 %v134
    %v162 = vcvt.s32.f32 %v136
    %v163 = vcvt.s32.f32 %v138
    %v164 = vcvt.s32.f32 %v140
    %v165 = vcvt.s32.f32 %v142
    %v166 = vcvt.s32.f32 %v144
    %v167 = vcvt.s32.f32 %v146
    %v168 = vcvt.s32.f32 %v148
    %v169 = vcvt.s32.f32 %v150
    %v170 = vcvt.s32.f32 %v152
    %v171 = vcvt.s32.f32 %v154
    %v172 = vcvt.s32.f32 %v156
    %v173 = vrcp.pop 16.0
    %v174 = vmul.f32 16.0, %v173
    %v175 = vsub.f32 1.0, %v174
    %v176 = vmul.f32 %v173, %v175
    %v177 = vadd.f32 %v173, %v176
    %vm178 = vweird.f32 %v173
    %v179 = vsel %vm178, %v173, %v177
    %v180 = vmul.f32 %v157, %v179
    %v181 = vmul.f32 %v158, %v179
    %v182 = vmul.f32 %v159, %v179
    %v183 = vmul.f32 %v160, %v179
    %v184 = vmul.f32 %v161, %v179
    %v185 = vmul.f32 %v162, %v179
    %v186 = vmul.f32 %v163, %v179
    %v187 = vmul.f32 %v164, %v179
    %v188 = vmul.f32 %v165, %v179
    %v189 = vmul.f32 %v166, %v179
    %v190 = vmul.f32 %v167, %v179
    %v191 = vmul.f32 %v168, %v179
    %v192 = vmul.f32 %v169, %v179
    %v193 = vmul.f32 %v170, %v179
    %v194 = vmul.f32 %v171, %v179
    %v195 = vmul.f32 %v172, %v179
    %v196 = vlog2.pop %v180
    %v197 = vmul.f32 %v196, 0.6931472
    %v198 = vlog2.pop %v181
    %v199 = vmul.f32 %v198, 0.6931472
    %v200 = vlog2.pop %v182
    %v201 = vmul.f32 %v200, 0.6931472
    %v202 = vlog2.pop %v183
    %v203 = vmul.f32 %v202, 0.6931472
    %v204 = vlog2.pop %v184
    %v205 = vmul.f32 %v204, 0.6931472
    %v206 = vlog2.pop %v185
    %v207 = vmul.f32 %v206, 0.6931472
    %v208 = vlog2.pop %v186
    %v209 = vmul.f32 %v208, 0.6931472
    %v210 = vlog2.pop %v187
    %v211 = vmul.f32 %v210, 0.6931472
    %v212 = vlog2.pop %v188
    %v213 = vmul.f32 %v212, 0.6931472
    %v214 = vlog2.pop %v189
    %v215 = vmul.f32 %v214, 0.6931472
    %v216 = vlog2.pop %v190
    %v217 = vmul.f32 %v216, 0.6931472
    %v218 = vlog2.pop %v191
    %v219 = vmul.f32 %v218, 0.6931472
    %v220 = vlog2.pop %v192
    %v221 = vmul.f32 %v220, 0.6931472
    %v222 = vlog2.pop %v193
    %v223 = vmul.f32 %v222, 0.6931472
    %v224 = vlog2.pop %v194
    %v225 = vmul.f32 %v224, 0.6931472
    %v226 = vlog2.pop %v195
    %v227 = vmul.f32 %v226, 0.6931472
    %v228 = vrcp.pop 2.0794415
    %v229 = vmul.f32 2.0794415, %v228
    %v230 = vsub.f32 1.0, %v229
    %v231 = vmul.f32 %v228, %v230
    %v232 = vadd.f32 %v228, %v231
    %vm233 = vweird.f32 %v228
    %v234 = vsel %vm233, %v228, %v232
    %v235 = vmul.f32 %v197, %v234
    %v236 = vmul.f32 %v199, %v234
    %v237 = vmul.f32 %v201, %v234
    %v238 = vmul.f32 %v203, %v234
    %v239 = vmul.f32 %v205, %v234
    %v240 = vmul.f32 %v207, %v234
    %v241 = vmul.f32 %v209, %v234
    %v242 = vmul.f32 %v211, %v234
    %v243 = vmul.f32 %v213, %v234
    %v244 = vmul.f32 %v215, %v234
    %v245 = vmul.f32 %v217, %v234
    %v246 = vmul.f32 %v219, %v234
    %v247 = vmul.f32 %v221, %v234
    %v248 = vmul.f32 %v223, %v234
    %v249 = vmul.f32 %v225, %v234
    %v250 = vmul.f32 %v227, %v234
    %v251 = vmul.f32 %v235, 16.0
    %v252 = vmul.f32 %v236, 16.0
    %v253 = vmul.f32 %v237, 16.0
    %v254 = vmul.f32 %v238, 16.0
    %v255 = vmul.f32 %v239, 16.0
    %v256 = vmul.f32 %v240, 16.0
    %v257 = vmul.f32 %v241, 16.0
    %v258 = vmul.f32 %v242, 16.0
    %v259 = vmul.f32 %v243, 16.0
    %v260 = vmul.f32 %v244, 16.0
    %v261 = vmul.f32 %v245, 16.0
    %v262 = vmul.f32 %v246, 16.0
    %v263 = vmul.f32 %v247, 16.0
    %v264 = vmul.f32 %v248, 16.0
    %v265 = vmul.f32 %v249, 16.0
    %v266 = vmul.f32 %v250, 16.0
    %v267 = vcvt.f32.s32.to.zero.pseudo %v251
    %v268 = vcvt.f32.s32.to.zero.pseudo %v252
    %v269 = vcvt.f32.s32.to.zero.pseudo %v253
    %v270 = vcvt.f32.s32.to.zero.pseudo %v254
    %v271 = vcvt.f32.s32.to.zero.pseudo %v255
    %v272 = vcvt.f32.s32.to.zero.pseudo %v256
    %v273 = vcvt.f32.s32.to.zero.pseudo %v257
    %v274 = vcvt.f32.s32.to.zero.pseudo %v258
    %v275 = vcvt.f32.s32.to.zero.pseudo %v259
    %v276 = vcvt.f32.s32.to.zero.pseudo %v260
    %v277 = vcvt.f32.s32.to.zero.pseudo %v261
    %v278 = vcvt.f32.s32.to.zero.pseudo %v262
    %v279 = vcvt.f32.s32.to.zero.pseudo %v263
    %v280 = vcvt.f32.s32.to.zero.pseudo %v264
    %v281 = vcvt.f32.s32.to.zero.pseudo %v265
    %v282 = vcvt.f32.s32.to.zero.pseudo %v266
    %v283 = vadd.s32 %v267, 16
    %v284 = vadd.s32 %v268, 16
    %v285 = vadd.s32 %v269, 16
    %v286 = vadd.s32 %v270, 16
    %v287 = vadd.s32 %v271, 16
    %v288 = vadd.s32 %v272, 16
    %v289 = vadd.s32 %v273, 16
    %v290 = vadd.s32 %v274, 16
    %v291 = vadd.s32 %v275, 16
    %v292 = vadd.s32 %v276, 16
    %v293 = vadd.s32 %v277, 16
    %v294 = vadd.s32 %v278, 16
    %v295 = vadd.s32 %v279, 16
    %v296 = vadd.s32 %v280, 16
    %v297 = vadd.s32 %v281, 16
    %v298 = vadd.s32 %v282, 16
    %vm299 = vcmp.lt.s32.totalorder %v283, 31
    %v300 = vsel %vm299, %v283, 31
    %vm301 = vcmp.lt.s32.totalorder %v284, 31
    %v302 = vsel %vm301, %v284, 31
    %vm303 = vcmp.lt.s32.totalorder %v285, 31
    %v304 = vsel %vm303, %v285, 31
    %vm305 = vcmp.lt.s32.totalorder %v286, 31
    %v306 = vsel %vm305, %v286, 31
    %vm307 = vcmp.lt.s32.totalorder %v287, 31
    %v308 = vsel %vm307, %v287, 31
    %vm309 = vcmp.lt.s32.totalorder %v288, 31
    %v310 = vsel %vm309, %v288, 31
    %vm311 = vcmp.lt.s32.totalorder %v289, 31
    %v312 = vsel %vm311, %v289, 31
    %vm313 = vcmp.lt.s32.totalorder %v290, 31
    %v314 = vsel %vm313, %v290, 31
    %vm315 = vcmp.lt.s32.totalorder %v291, 31
    %v316 = vsel %vm315, %v291, 31
    %vm317 = vcmp.lt.s32.totalorder %v292, 31
    %v318 = vsel %vm317, %v292, 31
    %vm319 = vcmp.lt.s32.totalorder %v293, 31
    %v320 = vsel %vm319, %v293, 31
    %vm321 = vcmp.lt.s32.totalorder %v294, 31
    %v322 = vsel %vm321, %v294, 31
    %vm323 = vcmp.lt.s32.totalorder %v295, 31
    %v324 = vsel %vm323, %v295, 31
    %vm325 = vcmp.lt.s32.totalorder %v296, 31
    %v326 = vsel %vm325, %v296, 31
    %vm327 = vcmp.lt.s32.totalorder %v297, 31
    %v328 = vsel %vm327, %v297, 31
    %vm329 = vcmp.lt.s32.totalorder %v298, 31
    %v330 = vsel %vm329, %v298, 31
    %v331 = vsel %vm109, %v78, %v300
    %v332 = vsel %vm110, %v80, %v302
    %v333 = vsel %vm111, %v82, %v304
    %v334 = vsel %vm112, %v84, %v306
    %v335 = vsel %vm113, %v86, %v308
    %v336 = vsel %vm114, %v88, %v310
    %v337 = vsel %vm115, %v90, %v312
    %v338 = vsel %vm116, %v92, %v314
    %v339 = vsel %vm117, %v94, %v316
    %v340 = vsel %vm118, %v96, %v318
    %v341 = vsel %vm119, %v98, %v320
    %v342 = vsel %vm120, %v100, %v322
    %v343 = vsel %vm121, %v102, %v324
    %v344 = vsel %vm122, %v104, %v326
    %v345 = vsel %vm123, %v106, %v328
    %v346 = vsel %vm124, %v108, %v330
    %s347 = sld [smem:[#allocation2]]
    %v348 = vstv %s347
    %vm349 = vcmp.eq.s32.totalorder %v331, 1
    %vm350 = vcmp.eq.s32.totalorder %v332, 1
    %vm351 = vcmp.eq.s32.totalorder %v333, 1
    %vm352 = vcmp.eq.s32.totalorder %v334, 1
    %vm353 = vcmp.eq.s32.totalorder %v335, 1
    %vm354 = vcmp.eq.s32.totalorder %v336, 1
    %vm355 = vcmp.eq.s32.totalorder %v337, 1
    %vm356 = vcmp.eq.s32.totalorder %v338, 1
    %vm357 = vcmp.eq.s32.totalorder %v339, 1
    %vm358 = vcmp.eq.s32.totalorder %v340, 1
    %vm359 = vcmp.eq.s32.totalorder %v341, 1
    %vm360 = vcmp.eq.s32.totalorder %v342, 1
    %vm361 = vcmp.eq.s32.totalorder %v343, 1
    %vm362 = vcmp.eq.s32.totalorder %v344, 1
    %vm363 = vcmp.eq.s32.totalorder %v345, 1
    %vm364 = vcmp.eq.s32.totalorder %v346, 1
    %s365 = sld [smem:[#allocation2 + $0x80]]
    %v366 = vstv %s365
    %v367 = vsel %vm349, %v366, %v348
    %v368 = vsel %vm350, %v366, %v348
    %v369 = vsel %vm351, %v366, %v348
    %v370 = vsel %vm352, %v366, %v348
    %v371 = vsel %vm353, %v366, %v348
    %v372 = vsel %vm354, %v366, %v348
    %v373 = vsel %vm355, %v366, %v348
    %v374 = vsel %vm356, %v366, %v348
    %v375 = vsel %vm357, %v366, %v348
    %v376 = vsel %vm358, %v366, %v348
    %v377 = vsel %vm359, %v366, %v348
    %v378 = vsel %vm360, %v366, %v348
    %v379 = vsel %vm361, %v366, %v348
    %v380 = vsel %vm362, %v366, %v348
    %v381 = vsel %vm363, %v366, %v348
    %v382 = vsel %vm364, %v366, %v348
    %vm383 = vcmp.eq.s32.totalorder %v331, 2
    %vm384 = vcmp.eq.s32.totalorder %v332, 2
    %vm385 = vcmp.eq.s32.totalorder %v333, 2
    %vm386 = vcmp.eq.s32.totalorder %v334, 2
    %vm387 = vcmp.eq.s32.totalorder %v335, 2
    %vm388 = vcmp.eq.s32.totalorder %v336, 2
    %vm389 = vcmp.eq.s32.totalorder %v337, 2
    %vm390 = vcmp.eq.s32.totalorder %v338, 2
    %vm391 = vcmp.eq.s32.totalorder %v339, 2
    %vm392 = vcmp.eq.s32.totalorder %v340, 2
    %vm393 = vcmp.eq.s32.totalorder %v341, 2
    %vm394 = vcmp.eq.s32.totalorder %v342, 2
    %vm395 = vcmp.eq.s32.totalorder %v343, 2
    %vm396 = vcmp.eq.s32.totalorder %v344, 2
    %vm397 = vcmp.eq.s32.totalorder %v345, 2
    %vm398 = vcmp.eq.s32.totalorder %v346, 2
    %s399 = sld [smem:[#allocation2 + $0x100]]
    %v400 = vstv %s399
    %v401 = vsel %vm383, %v400, %v367
    %v402 = vsel %vm384, %v400, %v368
    %v403 = vsel %vm385, %v400, %v369
    %v404 = vsel %vm386, %v400, %v370
    %v405 = vsel %vm387, %v400, %v371
    %v406 = vsel %vm388, %v400, %v372
    %v407 = vsel %vm389, %v400, %v373
    %v408 = vsel %vm390, %v400, %v374
    %v409 = vsel %vm391, %v400, %v375
    %v410 = vsel %vm392, %v400, %v376
    %v411 = vsel %vm393, %v400, %v377
    %v412 = vsel %vm394, %v400, %v378
    %v413 = vsel %vm395, %v400, %v379
    %v414 = vsel %vm396, %v400, %v380
    %v415 = vsel %vm397, %v400, %v381
    %v416 = vsel %vm398, %v400, %v382
    %vm417 = vcmp.eq.s32.totalorder %v331, 3
    %vm418 = vcmp.eq.s32.totalorder %v332, 3
    %vm419 = vcmp.eq.s32.totalorder %v333, 3
    %vm420 = vcmp.eq.s32.totalorder %v334, 3
    %vm421 = vcmp.eq.s32.totalorder %v335, 3
    %vm422 = vcmp.eq.s32.totalorder %v336, 3
    %vm423 = vcmp.eq.s32.totalorder %v337, 3
    %vm424 = vcmp.eq.s32.totalorder %v338, 3
    %vm425 = vcmp.eq.s32.totalorder %v339, 3
    %vm426 = vcmp.eq.s32.totalorder %v340, 3
    %vm427 = vcmp.eq.s32.totalorder %v341, 3
    %vm428 = vcmp.eq.s32.totalorder %v342, 3
    %vm429 = vcmp.eq.s32.totalorder %v343, 3
    %vm430 = vcmp.eq.s32.totalorder %v344, 3
    %vm431 = vcmp.eq.s32.totalorder %v345, 3
    %vm432 = vcmp.eq.s32.totalorder %v346, 3
    %s433 = sld [smem:[#allocation2 + $0x180]]
    %v434 = vstv %s433
    %v435 = vsel %vm417, %v434, %v401
    %v436 = vsel %vm418, %v434, %v402
    %v437 = vsel %vm419, %v434, %v403
    %v438 = vsel %vm420, %v434, %v404
    %v439 = vsel %vm421, %v434, %v405
    %v440 = vsel %vm422, %v434, %v406
    %v441 = vsel %vm423, %v434, %v407
    %v442 = vsel %vm424, %v434, %v408
    %v443 = vsel %vm425, %v434, %v409
    %v444 = vsel %vm426, %v434, %v410
    %v445 = vsel %vm427, %v434, %v411
    %v446 = vsel %vm428, %v434, %v412
    %v447 = vsel %vm429, %v434, %v413
    %v448 = vsel %vm430, %v434, %v414
    %v449 = vsel %vm431, %v434, %v415
    %v450 = vsel %vm432, %v434, %v416
    %vm451 = vcmp.eq.s32.totalorder %v331, 4
    %vm452 = vcmp.eq.s32.totalorder %v332, 4
    %vm453 = vcmp.eq.s32.totalorder %v333, 4
    %vm454 = vcmp.eq.s32.totalorder %v334, 4
    %vm455 = vcmp.eq.s32.totalorder %v335, 4
    %vm456 = vcmp.eq.s32.totalorder %v336, 4
    %vm457 = vcmp.eq.s32.totalorder %v337, 4
    %vm458 = vcmp.eq.s32.totalorder %v338, 4
    %vm459 = vcmp.eq.s32.totalorder %v339, 4
    %vm460 = vcmp.eq.s32.totalorder %v340, 4
    %vm461 = vcmp.eq.s32.totalorder %v341, 4
    %vm462 = vcmp.eq.s32.totalorder %v342, 4
    %vm463 = vcmp.eq.s32.totalorder %v343, 4
    %vm464 = vcmp.eq.s32.totalorder %v344, 4
    %vm465 = vcmp.eq.s32.totalorder %v345, 4
    %vm466 = vcmp.eq.s32.totalorder %v346, 4
    %s467 = sld [smem:[#allocation2 + $0x200]]
    %v468 = vstv %s467
    %v469 = vsel %vm451, %v468, %v435
    %v470 = vsel %vm452, %v468, %v436
    %v471 = vsel %vm453, %v468, %v437
    %v472 = vsel %vm454, %v468, %v438
    %v473 = vsel %vm455, %v468, %v439
    %v474 = vsel %vm456, %v468, %v440
    %v475 = vsel %vm457, %v468, %v441
    %v476 = vsel %vm458, %v468, %v442
    %v477 = vsel %vm459, %v468, %v443
    %v478 = vsel %vm460, %v468, %v444
    %v479 = vsel %vm461, %v468, %v445
    %v480 = vsel %vm462, %v468, %v446
    %v481 = vsel %vm463, %v468, %v447
    %v482 = vsel %vm464, %v468, %v448
    %v483 = vsel %vm465, %v468, %v449
    %v484 = vsel %vm466, %v468, %v450
    %vm485 = vcmp.eq.s32.totalorder %v331, 5
    %vm486 = vcmp.eq.s32.totalorder %v332, 5
    %vm487 = vcmp.eq.s32.totalorder %v333, 5
    %vm488 = vcmp.eq.s32.totalorder %v334, 5
    %vm489 = vcmp.eq.s32.totalorder %v335, 5
    %vm490 = vcmp.eq.s32.totalorder %v336, 5
    %vm491 = vcmp.eq.s32.totalorder %v337, 5
    %vm492 = vcmp.eq.s32.totalorder %v338, 5
    %vm493 = vcmp.eq.s32.totalorder %v339, 5
    %vm494 = vcmp.eq.s32.totalorder %v340, 5
    %vm495 = vcmp.eq.s32.totalorder %v341, 5
    %vm496 = vcmp.eq.s32.totalorder %v342, 5
    %vm497 = vcmp.eq.s32.totalorder %v343, 5
    %vm498 = vcmp.eq.s32.totalorder %v344, 5
    %vm499 = vcmp.eq.s32.totalorder %v345, 5
    %vm500 = vcmp.eq.s32.totalorder %v346, 5
    %s501 = sld [smem:[#allocation2 + $0x280]]
    %v502 = vstv %s501
    %v503 = vsel %vm485, %v502, %v469
    %v504 = vsel %vm486, %v502, %v470
    %v505 = vsel %vm487, %v502, %v471
    %v506 = vsel %vm488, %v502, %v472
    %v507 = vsel %vm489, %v502, %v473
    %v508 = vsel %vm490, %v502, %v474
    %v509 = vsel %vm491, %v502, %v475
    %v510 = vsel %vm492, %v502, %v476
    %v511 = vsel %vm493, %v502, %v477
    %v512 = vsel %vm494, %v502, %v478
    %v513 = vsel %vm495, %v502, %v479
    %v514 = vsel %vm496, %v502, %v480
    %v515 = vsel %vm497, %v502, %v481
    %v516 = vsel %vm498, %v502, %v482
    %v517 = vsel %vm499, %v502, %v483
    %v518 = vsel %vm500, %v502, %v484
    %vm519 = vcmp.eq.s32.totalorder %v331, 6
    %vm520 = vcmp.eq.s32.totalorder %v332, 6
    %vm521 = vcmp.eq.s32.totalorder %v333, 6
    %vm522 = vcmp.eq.s32.totalorder %v334, 6
    %vm523 = vcmp.eq.s32.totalorder %v335, 6
    %vm524 = vcmp.eq.s32.totalorder %v336, 6
    %vm525 = vcmp.eq.s32.totalorder %v337, 6
    %vm526 = vcmp.eq.s32.totalorder %v338, 6
    %vm527 = vcmp.eq.s32.totalorder %v339, 6
    %vm528 = vcmp.eq.s32.totalorder %v340, 6
    %vm529 = vcmp.eq.s32.totalorder %v341, 6
    %vm530 = vcmp.eq.s32.totalorder %v342, 6
    %vm531 = vcmp.eq.s32.totalorder %v343, 6
    %vm532 = vcmp.eq.s32.totalorder %v344, 6
    %vm533 = vcmp.eq.s32.totalorder %v345, 6
    %vm534 = vcmp.eq.s32.totalorder %v346, 6
    %s535 = sld [smem:[#allocation2 + $0x300]]
    %v536 = vstv %s535
    %v537 = vsel %vm519, %v536, %v503
    %v538 = vsel %vm520, %v536, %v504
    %v539 = vsel %vm521, %v536, %v505
    %v540 = vsel %vm522, %v536, %v506
    %v541 = vsel %vm523, %v536, %v507
    %v542 = vsel %vm524, %v536, %v508
    %v543 = vsel %vm525, %v536, %v509
    %v544 = vsel %vm526, %v536, %v510
    %v545 = vsel %vm527, %v536, %v511
    %v546 = vsel %vm528, %v536, %v512
    %v547 = vsel %vm529, %v536, %v513
    %v548 = vsel %vm530, %v536, %v514
    %v549 = vsel %vm531, %v536, %v515
    %v550 = vsel %vm532, %v536, %v516
    %v551 = vsel %vm533, %v536, %v517
    %v552 = vsel %vm534, %v536, %v518
    %vm553 = vcmp.eq.s32.totalorder %v331, 7
    %vm554 = vcmp.eq.s32.totalorder %v332, 7
    %vm555 = vcmp.eq.s32.totalorder %v333, 7
    %vm556 = vcmp.eq.s32.totalorder %v334, 7
    %vm557 = vcmp.eq.s32.totalorder %v335, 7
    %vm558 = vcmp.eq.s32.totalorder %v336, 7
    %vm559 = vcmp.eq.s32.totalorder %v337, 7
    %vm560 = vcmp.eq.s32.totalorder %v338, 7
    %vm561 = vcmp.eq.s32.totalorder %v339, 7
    %vm562 = vcmp.eq.s32.totalorder %v340, 7
    %vm563 = vcmp.eq.s32.totalorder %v341, 7
    %vm564 = vcmp.eq.s32.totalorder %v342, 7
    %vm565 = vcmp.eq.s32.totalorder %v343, 7
    %vm566 = vcmp.eq.s32.totalorder %v344, 7
    %vm567 = vcmp.eq.s32.totalorder %v345, 7
    %vm568 = vcmp.eq.s32.totalorder %v346, 7
    %s569 = sld [smem:[#allocation2 + $0x380]]
    %v570 = vstv %s569
    %v571 = vsel %vm553, %v570, %v537
    %v572 = vsel %vm554, %v570, %v538
    %v573 = vsel %vm555, %v570, %v539
    %v574 = vsel %vm556, %v570, %v540
    %v575 = vsel %vm557, %v570, %v541
    %v576 = vsel %vm558, %v570, %v542
    %v577 = vsel %vm559, %v570, %v543
    %v578 = vsel %vm560, %v570, %v544
    %v579 = vsel %vm561, %v570, %v545
    %v580 = vsel %vm562, %v570, %v546
    %v581 = vsel %vm563, %v570, %v547
    %v582 = vsel %vm564, %v570, %v548
    %v583 = vsel %vm565, %v570, %v549
    %v584 = vsel %vm566, %v570, %v550
    %v585 = vsel %vm567, %v570, %v551
    %v586 = vsel %vm568, %v570, %v552
    %vm587 = vcmp.eq.s32.totalorder %v331, 8
    %vm588 = vcmp.eq.s32.totalorder %v332, 8
    %vm589 = vcmp.eq.s32.totalorder %v333, 8
    %vm590 = vcmp.eq.s32.totalorder %v334, 8
    %vm591 = vcmp.eq.s32.totalorder %v335, 8
    %vm592 = vcmp.eq.s32.totalorder %v336, 8
    %vm593 = vcmp.eq.s32.totalorder %v337, 8
    %vm594 = vcmp.eq.s32.totalorder %v338, 8
    %vm595 = vcmp.eq.s32.totalorder %v339, 8
    %vm596 = vcmp.eq.s32.totalorder %v340, 8
    %vm597 = vcmp.eq.s32.totalorder %v341, 8
    %vm598 = vcmp.eq.s32.totalorder %v342, 8
    %vm599 = vcmp.eq.s32.totalorder %v343, 8
    %vm600 = vcmp.eq.s32.totalorder %v344, 8
    %vm601 = vcmp.eq.s32.totalorder %v345, 8
    %vm602 = vcmp.eq.s32.totalorder %v346, 8
    %s603 = sld [smem:[#allocation2 + $0x400]]
    %v604 = vstv %s603
    %v605 = vsel %vm587, %v604, %v571
    %v606 = vsel %vm588, %v604, %v572
    %v607 = vsel %vm589, %v604, %v573
    %v608 = vsel %vm590, %v604, %v574
    %v609 = vsel %vm591, %v604, %v575
    %v610 = vsel %vm592, %v604, %v576
    %v611 = vsel %vm593, %v604, %v577
    %v612 = vsel %vm594, %v604, %v578
    %v613 = vsel %vm595, %v604, %v579
    %v614 = vsel %vm596, %v604, %v580
    %v615 = vsel %vm597, %v604, %v581
    %v616 = vsel %vm598, %v604, %v582
    %v617 = vsel %vm599, %v604, %v583
    %v618 = vsel %vm600, %v604, %v584
    %v619 = vsel %vm601, %v604, %v585
    %v620 = vsel %vm602, %v604, %v586
    %vm621 = vcmp.eq.s32.totalorder %v331, 9
    %vm622 = vcmp.eq.s32.totalorder %v332, 9
    %vm623 = vcmp.eq.s32.totalorder %v333, 9
    %vm624 = vcmp.eq.s32.totalorder %v334, 9
    %vm625 = vcmp.eq.s32.totalorder %v335, 9
    %vm626 = vcmp.eq.s32.totalorder %v336, 9
    %vm627 = vcmp.eq.s32.totalorder %v337, 9
    %vm628 = vcmp.eq.s32.totalorder %v338, 9
    %vm629 = vcmp.eq.s32.totalorder %v339, 9
    %vm630 = vcmp.eq.s32.totalorder %v340, 9
    %vm631 = vcmp.eq.s32.totalorder %v341, 9
    %vm632 = vcmp.eq.s32.totalorder %v342, 9
    %vm633 = vcmp.eq.s32.totalorder %v343, 9
    %vm634 = vcmp.eq.s32.totalorder %v344, 9
    %vm635 = vcmp.eq.s32.totalorder %v345, 9
    %vm636 = vcmp.eq.s32.totalorder %v346, 9
    %s637 = sld [smem:[#allocation2 + $0x480]]
    %v638 = vstv %s637
    %v639 = vsel %vm621, %v638, %v605
    %v640 = vsel %vm622, %v638, %v606
    %v641 = vsel %vm623, %v638, %v607
    %v642 = vsel %vm624, %v638, %v608
    %v643 = vsel %vm625, %v638, %v609
    %v644 = vsel %vm626, %v638, %v610
    %v645 = vsel %vm627, %v638, %v611
    %v646 = vsel %vm628, %v638, %v612
    %v647 = vsel %vm629, %v638, %v613
    %v648 = vsel %vm630, %v638, %v614
    %v649 = vsel %vm631, %v638, %v615
    %v650 = vsel %vm632, %v638, %v616
    %v651 = vsel %vm633, %v638, %v617
    %v652 = vsel %vm634, %v638, %v618
    %v653 = vsel %vm635, %v638, %v619
    %v654 = vsel %vm636, %v638, %v620
    %vm655 = vcmp.eq.s32.totalorder %v331, 10
    %vm656 = vcmp.eq.s32.totalorder %v332, 10
    %vm657 = vcmp.eq.s32.totalorder %v333, 10
    %vm658 = vcmp.eq.s32.totalorder %v334, 10
    %vm659 = vcmp.eq.s32.totalorder %v335, 10
    %vm660 = vcmp.eq.s32.totalorder %v336, 10
    %vm661 = vcmp.eq.s32.totalorder %v337, 10
    %vm662 = vcmp.eq.s32.totalorder %v338, 10
    %vm663 = vcmp.eq.s32.totalorder %v339, 10
    %vm664 = vcmp.eq.s32.totalorder %v340, 10
    %vm665 = vcmp.eq.s32.totalorder %v341, 10
    %vm666 = vcmp.eq.s32.totalorder %v342, 10
    %vm667 = vcmp.eq.s32.totalorder %v343, 10
    %vm668 = vcmp.eq.s32.totalorder %v344, 10
    %vm669 = vcmp.eq.s32.totalorder %v345, 10
    %vm670 = vcmp.eq.s32.totalorder %v346, 10
    %s671 = sld [smem:[#allocation2 + $0x500]]
    %v672 = vstv %s671
    %v673 = vsel %vm655, %v672, %v639
    %v674 = vsel %vm656, %v672, %v640
    %v675 = vsel %vm657, %v672, %v641
    %v676 = vsel %vm658, %v672, %v642
    %v677 = vsel %vm659, %v672, %v643
    %v678 = vsel %vm660, %v672, %v644
    %v679 = vsel %vm661, %v672, %v645
    %v680 = vsel %vm662, %v672, %v646
    %v681 = vsel %vm663, %v672, %v647
    %v682 = vsel %vm664, %v672, %v648
    %v683 = vsel %vm665, %v672, %v649
    %v684 = vsel %vm666, %v672, %v650
    %v685 = vsel %vm667, %v672, %v651
    %v686 = vsel %vm668, %v672, %v652
    %v687 = vsel %vm669, %v672, %v653
    %v688 = vsel %vm670, %v672, %v654
    %vm689 = vcmp.eq.s32.totalorder %v331, 11
    %vm690 = vcmp.eq.s32.totalorder %v332, 11
    %vm691 = vcmp.eq.s32.totalorder %v333, 11
    %vm692 = vcmp.eq.s32.totalorder %v334, 11
    %vm693 = vcmp.eq.s32.totalorder %v335, 11
    %vm694 = vcmp.eq.s32.totalorder %v336, 11
    %vm695 = vcmp.eq.s32.totalorder %v337, 11
    %vm696 = vcmp.eq.s32.totalorder %v338, 11
    %vm697 = vcmp.eq.s32.totalorder %v339, 11
    %vm698 = vcmp.eq.s32.totalorder %v340, 11
    %vm699 = vcmp.eq.s32.totalorder %v341, 11
    %vm700 = vcmp.eq.s32.totalorder %v342, 11
    %vm701 = vcmp.eq.s32.totalorder %v343, 11
    %vm702 = vcmp.eq.s32.totalorder %v344, 11
    %vm703 = vcmp.eq.s32.totalorder %v345, 11
    %vm704 = vcmp.eq.s32.totalorder %v346, 11
    %s705 = sld [smem:[#allocation2 + $0x580]]
    %v706 = vstv %s705
    %v707 = vsel %vm689, %v706, %v673
    %v708 = vsel %vm690, %v706, %v674
    %v709 = vsel %vm691, %v706, %v675
    %v710 = vsel %vm692, %v706, %v676
    %v711 = vsel %vm693, %v706, %v677
    %v712 = vsel %vm694, %v706, %v678
    %v713 = vsel %vm695, %v706, %v679
    %v714 = vsel %vm696, %v706, %v680
    %v715 = vsel %vm697, %v706, %v681
    %v716 = vsel %vm698, %v706, %v682
    %v717 = vsel %vm699, %v706, %v683
    %v718 = vsel %vm700, %v706, %v684
    %v719 = vsel %vm701, %v706, %v685
    %v720 = vsel %vm702, %v706, %v686
    %v721 = vsel %vm703, %v706, %v687
    %v722 = vsel %vm704, %v706, %v688
    %vm723 = vcmp.eq.s32.totalorder %v331, 12
    %vm724 = vcmp.eq.s32.totalorder %v332, 12
    %vm725 = vcmp.eq.s32.totalorder %v333, 12
    %vm726 = vcmp.eq.s32.totalorder %v334, 12
    %vm727 = vcmp.eq.s32.totalorder %v335, 12
    %vm728 = vcmp.eq.s32.totalorder %v336, 12
    %vm729 = vcmp.eq.s32.totalorder %v337, 12
    %vm730 = vcmp.eq.s32.totalorder %v338, 12
    %vm731 = vcmp.eq.s32.totalorder %v339, 12
    %vm732 = vcmp.eq.s32.totalorder %v340, 12
    %vm733 = vcmp.eq.s32.totalorder %v341, 12
    %vm734 = vcmp.eq.s32.totalorder %v342, 12
    %vm735 = vcmp.eq.s32.totalorder %v343, 12
    %vm736 = vcmp.eq.s32.totalorder %v344, 12
    %vm737 = vcmp.eq.s32.totalorder %v345, 12
    %vm738 = vcmp.eq.s32.totalorder %v346, 12
    %s739 = sld [smem:[#allocation2 + $0x600]]
    %v740 = vstv %s739
    %v741 = vsel %vm723, %v740, %v707
    %v742 = vsel %vm724, %v740, %v708
    %v743 = vsel %vm725, %v740, %v709
    %v744 = vsel %vm726, %v740, %v710
    %v745 = vsel %vm727, %v740, %v711
    %v746 = vsel %vm728, %v740, %v712
    %v747 = vsel %vm729, %v740, %v713
    %v748 = vsel %vm730, %v740, %v714
    %v749 = vsel %vm731, %v740, %v715
    %v750 = vsel %vm732, %v740, %v716
    %v751 = vsel %vm733, %v740, %v717
    %v752 = vsel %vm734, %v740, %v718
    %v753 = vsel %vm735, %v740, %v719
    %v754 = vsel %vm736, %v740, %v720
    %v755 = vsel %vm737, %v740, %v721
    %v756 = vsel %vm738, %v740, %v722
    %vm757 = vcmp.eq.s32.totalorder %v331, 13
    %vm758 = vcmp.eq.s32.totalorder %v332, 13
    %vm759 = vcmp.eq.s32.totalorder %v333, 13
    %vm760 = vcmp.eq.s32.totalorder %v334, 13
    %vm761 = vcmp.eq.s32.totalorder %v335, 13
    %vm762 = vcmp.eq.s32.totalorder %v336, 13
    %vm763 = vcmp.eq.s32.totalorder %v337, 13
    %vm764 = vcmp.eq.s32.totalorder %v338, 13
    %vm765 = vcmp.eq.s32.totalorder %v339, 13
    %vm766 = vcmp.eq.s32.totalorder %v340, 13
    %vm767 = vcmp.eq.s32.totalorder %v341, 13
    %vm768 = vcmp.eq.s32.totalorder %v342, 13
    %vm769 = vcmp.eq.s32.totalorder %v343, 13
    %vm770 = vcmp.eq.s32.totalorder %v344, 13
    %vm771 = vcmp.eq.s32.totalorder %v345, 13
    %vm772 = vcmp.eq.s32.totalorder %v346, 13
    %s773 = sld [smem:[#allocation2 + $0x680]]
    %v774 = vstv %s773
    %v775 = vsel %vm757, %v774, %v741
    %v776 = vsel %vm758, %v774, %v742
    %v777 = vsel %vm759, %v774, %v743
    %v778 = vsel %vm760, %v774, %v744
    %v779 = vsel %vm761, %v774, %v745
    %v780 = vsel %vm762, %v774, %v746
    %v781 = vsel %vm763, %v774, %v747
    %v782 = vsel %vm764, %v774, %v748
    %v783 = vsel %vm765, %v774, %v749
    %v784 = vsel %vm766, %v774, %v750
    %v785 = vsel %vm767, %v774, %v751
    %v786 = vsel %vm768, %v774, %v752
    %v787 = vsel %vm769, %v774, %v753
    %v788 = vsel %vm770, %v774, %v754
    %v789 = vsel %vm771, %v774, %v755
    %v790 = vsel %vm772, %v774, %v756
    %vm791 = vcmp.eq.s32.totalorder %v331, 14
    %vm792 = vcmp.eq.s32.totalorder %v332, 14
    %vm793 = vcmp.eq.s32.totalorder %v333, 14
    %vm794 = vcmp.eq.s32.totalorder %v334, 14
    %vm795 = vcmp.eq.s32.totalorder %v335, 14
    %vm796 = vcmp.eq.s32.totalorder %v336, 14
    %vm797 = vcmp.eq.s32.totalorder %v337, 14
    %vm798 = vcmp.eq.s32.totalorder %v338, 14
    %vm799 = vcmp.eq.s32.totalorder %v339, 14
    %vm800 = vcmp.eq.s32.totalorder %v340, 14
    %vm801 = vcmp.eq.s32.totalorder %v341, 14
    %vm802 = vcmp.eq.s32.totalorder %v342, 14
    %vm803 = vcmp.eq.s32.totalorder %v343, 14
    %vm804 = vcmp.eq.s32.totalorder %v344, 14
    %vm805 = vcmp.eq.s32.totalorder %v345, 14
    %vm806 = vcmp.eq.s32.totalorder %v346, 14
    %s807 = sld [smem:[#allocation2 + $0x700]]
    %v808 = vstv %s807
    %v809 = vsel %vm791, %v808, %v775
    %v810 = vsel %vm792, %v808, %v776
    %v811 = vsel %vm793, %v808, %v777
    %v812 = vsel %vm794, %v808, %v778
    %v813 = vsel %vm795, %v808, %v779
    %v814 = vsel %vm796, %v808, %v780
    %v815 = vsel %vm797, %v808, %v781
    %v816 = vsel %vm798, %v808, %v782
    %v817 = vsel %vm799, %v808, %v783
    %v818 = vsel %vm800, %v808, %v784
    %v819 = vsel %vm801, %v808, %v785
    %v820 = vsel %vm802, %v808, %v786
    %v821 = vsel %vm803, %v808, %v787
    %v822 = vsel %vm804, %v808, %v788
    %v823 = vsel %vm805, %v808, %v789
    %v824 = vsel %vm806, %v808, %v790
    %vm825 = vcmp.eq.s32.totalorder %v331, 15
    %vm826 = vcmp.eq.s32.totalorder %v332, 15
    %vm827 = vcmp.eq.s32.totalorder %v333, 15
    %vm828 = vcmp.eq.s32.totalorder %v334, 15
    %vm829 = vcmp.eq.s32.totalorder %v335, 15
    %vm830 = vcmp.eq.s32.totalorder %v336, 15
    %vm831 = vcmp.eq.s32.totalorder %v337, 15
    %vm832 = vcmp.eq.s32.totalorder %v338, 15
    %vm833 = vcmp.eq.s32.totalorder %v339, 15
    %vm834 = vcmp.eq.s32.totalorder %v340, 15
    %vm835 = vcmp.eq.s32.totalorder %v341, 15
    %vm836 = vcmp.eq.s32.totalorder %v342, 15
    %vm837 = vcmp.eq.s32.totalorder %v343, 15
    %vm838 = vcmp.eq.s32.totalorder %v344, 15
    %vm839 = vcmp.eq.s32.totalorder %v345, 15
    %vm840 = vcmp.eq.s32.totalorder %v346, 15
    %s841 = sld [smem:[#allocation2 + $0x780]]
    %v842 = vstv %s841
    %v843 = vsel %vm825, %v842, %v809
    %v844 = vsel %vm826, %v842, %v810
    %v845 = vsel %vm827, %v842, %v811
    %v846 = vsel %vm828, %v842, %v812
    %v847 = vsel %vm829, %v842, %v813
    %v848 = vsel %vm830, %v842, %v814
    %v849 = vsel %vm831, %v842, %v815
    %v850 = vsel %vm832, %v842, %v816
    %v851 = vsel %vm833, %v842, %v817
    %v852 = vsel %vm834, %v842, %v818
    %v853 = vsel %vm835, %v842, %v819
    %v854 = vsel %vm836, %v842, %v820
    %v855 = vsel %vm837, %v842, %v821
    %v856 = vsel %vm838, %v842, %v822
    %v857 = vsel %vm839, %v842, %v823
    %v858 = vsel %vm840, %v842, %v824
    %vm859 = vcmp.eq.s32.totalorder %v331, 16
    %vm860 = vcmp.eq.s32.totalorder %v332, 16
    %vm861 = vcmp.eq.s32.totalorder %v333, 16
    %vm862 = vcmp.eq.s32.totalorder %v334, 16
    %vm863 = vcmp.eq.s32.totalorder %v335, 16
    %vm864 = vcmp.eq.s32.totalorder %v336, 16
    %vm865 = vcmp.eq.s32.totalorder %v337, 16
    %vm866 = vcmp.eq.s32.totalorder %v338, 16
    %vm867 = vcmp.eq.s32.totalorder %v339, 16
    %vm868 = vcmp.eq.s32.totalorder %v340, 16
    %vm869 = vcmp.eq.s32.totalorder %v341, 16
    %vm870 = vcmp.eq.s32.totalorder %v342, 16
    %vm871 = vcmp.eq.s32.totalorder %v343, 16
    %vm872 = vcmp.eq.s32.totalorder %v344, 16
    %vm873 = vcmp.eq.s32.totalorder %v345, 16
    %vm874 = vcmp.eq.s32.totalorder %v346, 16
    %s875 = sld [smem:[#allocation2 + $0x800]]
    %v876 = vstv %s875
    %v877 = vsel %vm859, %v876, %v843
    %v878 = vsel %vm860, %v876, %v844
    %v879 = vsel %vm861, %v876, %v845
    %v880 = vsel %vm862, %v876, %v846
    %v881 = vsel %vm863, %v876, %v847
    %v882 = vsel %vm864, %v876, %v848
    %v883 = vsel %vm865, %v876, %v849
    %v884 = vsel %vm866, %v876, %v850
    %v885 = vsel %vm867, %v876, %v851
    %v886 = vsel %vm868, %v876, %v852
    %v887 = vsel %vm869, %v876, %v853
    %v888 = vsel %vm870, %v876, %v854
    %v889 = vsel %vm871, %v876, %v855
    %v890 = vsel %vm872, %v876, %v856
    %v891 = vsel %vm873, %v876, %v857
    %v892 = vsel %vm874, %v876, %v858
    %vm893 = vcmp.eq.s32.totalorder %v331, 17
    %vm894 = vcmp.eq.s32.totalorder %v332, 17
    %vm895 = vcmp.eq.s32.totalorder %v333, 17
    %vm896 = vcmp.eq.s32.totalorder %v334, 17
    %vm897 = vcmp.eq.s32.totalorder %v335, 17
    %vm898 = vcmp.eq.s32.totalorder %v336, 17
    %vm899 = vcmp.eq.s32.totalorder %v337, 17
    %vm900 = vcmp.eq.s32.totalorder %v338, 17
    %vm901 = vcmp.eq.s32.totalorder %v339, 17
    %vm902 = vcmp.eq.s32.totalorder %v340, 17
    %vm903 = vcmp.eq.s32.totalorder %v341, 17
    %vm904 = vcmp.eq.s32.totalorder %v342, 17
    %vm905 = vcmp.eq.s32.totalorder %v343, 17
    %vm906 = vcmp.eq.s32.totalorder %v344, 17
    %vm907 = vcmp.eq.s32.totalorder %v345, 17
    %vm908 = vcmp.eq.s32.totalorder %v346, 17
    %s909 = sld [smem:[#allocation2 + $0x880]]
    %v910 = vstv %s909
    %v911 = vsel %vm893, %v910, %v877
    %v912 = vsel %vm894, %v910, %v878
    %v913 = vsel %vm895, %v910, %v879
    %v914 = vsel %vm896, %v910, %v880
    %v915 = vsel %vm897, %v910, %v881
    %v916 = vsel %vm898, %v910, %v882
    %v917 = vsel %vm899, %v910, %v883
    %v918 = vsel %vm900, %v910, %v884
    %v919 = vsel %vm901, %v910, %v885
    %v920 = vsel %vm902, %v910, %v886
    %v921 = vsel %vm903, %v910, %v887
    %v922 = vsel %vm904, %v910, %v888
    %v923 = vsel %vm905, %v910, %v889
    %v924 = vsel %vm906, %v910, %v890
    %v925 = vsel %vm907, %v910, %v891
    %v926 = vsel %vm908, %v910, %v892
    %vm927 = vcmp.eq.s32.totalorder %v331, 18
    %vm928 = vcmp.eq.s32.totalorder %v332, 18
    %vm929 = vcmp.eq.s32.totalorder %v333, 18
    %vm930 = vcmp.eq.s32.totalorder %v334, 18
    %vm931 = vcmp.eq.s32.totalorder %v335, 18
    %vm932 = vcmp.eq.s32.totalorder %v336, 18
    %vm933 = vcmp.eq.s32.totalorder %v337, 18
    %vm934 = vcmp.eq.s32.totalorder %v338, 18
    %vm935 = vcmp.eq.s32.totalorder %v339, 18
    %vm936 = vcmp.eq.s32.totalorder %v340, 18
    %vm937 = vcmp.eq.s32.totalorder %v341, 18
    %vm938 = vcmp.eq.s32.totalorder %v342, 18
    %vm939 = vcmp.eq.s32.totalorder %v343, 18
    %vm940 = vcmp.eq.s32.totalorder %v344, 18
    %vm941 = vcmp.eq.s32.totalorder %v345, 18
    %vm942 = vcmp.eq.s32.totalorder %v346, 18
    %s943 = sld [smem:[#allocation2 + $0x900]]
    %v944 = vstv %s943
    %v945 = vsel %vm927, %v944, %v911
    %v946 = vsel %vm928, %v944, %v912
    %v947 = vsel %vm929, %v944, %v913
    %v948 = vsel %vm930, %v944, %v914
    %v949 = vsel %vm931, %v944, %v915
    %v950 = vsel %vm932, %v944, %v916
    %v951 = vsel %vm933, %v944, %v917
    %v952 = vsel %vm934, %v944, %v918
    %v953 = vsel %vm935, %v944, %v919
    %v954 = vsel %vm936, %v944, %v920
    %v955 = vsel %vm937, %v944, %v921
    %v956 = vsel %vm938, %v944, %v922
    %v957 = vsel %vm939, %v944, %v923
    %v958 = vsel %vm940, %v944, %v924
    %v959 = vsel %vm941, %v944, %v925
    %v960 = vsel %vm942, %v944, %v926
    %vm961 = vcmp.eq.s32.totalorder %v331, 19
    %vm962 = vcmp.eq.s32.totalorder %v332, 19
    %vm963 = vcmp.eq.s32.totalorder %v333, 19
    %vm964 = vcmp.eq.s32.totalorder %v334, 19
    %vm965 = vcmp.eq.s32.totalorder %v335, 19
    %vm966 = vcmp.eq.s32.totalorder %v336, 19
    %vm967 = vcmp.eq.s32.totalorder %v337, 19
    %vm968 = vcmp.eq.s32.totalorder %v338, 19
    %vm969 = vcmp.eq.s32.totalorder %v339, 19
    %vm970 = vcmp.eq.s32.totalorder %v340, 19
    %vm971 = vcmp.eq.s32.totalorder %v341, 19
    %vm972 = vcmp.eq.s32.totalorder %v342, 19
    %vm973 = vcmp.eq.s32.totalorder %v343, 19
    %vm974 = vcmp.eq.s32.totalorder %v344, 19
    %vm975 = vcmp.eq.s32.totalorder %v345, 19
    %vm976 = vcmp.eq.s32.totalorder %v346, 19
    %s977 = sld [smem:[#allocation2 + $0x980]]
    %v978 = vstv %s977
    %v979 = vsel %vm961, %v978, %v945
    %v980 = vsel %vm962, %v978, %v946
    %v981 = vsel %vm963, %v978, %v947
    %v982 = vsel %vm964, %v978, %v948
    %v983 = vsel %vm965, %v978, %v949
    %v984 = vsel %vm966, %v978, %v950
    %v985 = vsel %vm967, %v978, %v951
    %v986 = vsel %vm968, %v978, %v952
    %v987 = vsel %vm969, %v978, %v953
    %v988 = vsel %vm970, %v978, %v954
    %v989 = vsel %vm971, %v978, %v955
    %v990 = vsel %vm972, %v978, %v956
    %v991 = vsel %vm973, %v978, %v957
    %v992 = vsel %vm974, %v978, %v958
    %v993 = vsel %vm975, %v978, %v959
    %v994 = vsel %vm976, %v978, %v960
    %vm995 = vcmp.eq.s32.totalorder %v331, 20
    %vm996 = vcmp.eq.s32.totalorder %v332, 20
    %vm997 = vcmp.eq.s32.totalorder %v333, 20
    %vm998 = vcmp.eq.s32.totalorder %v334, 20
    %vm999 = vcmp.eq.s32.totalorder %v335, 20
    %vm1000 = vcmp.eq.s32.totalorder %v336, 20
    %vm1001 = vcmp.eq.s32.totalorder %v337, 20
    %vm1002 = vcmp.eq.s32.totalorder %v338, 20
    %vm1003 = vcmp.eq.s32.totalorder %v339, 20
    %vm1004 = vcmp.eq.s32.totalorder %v340, 20
    %vm1005 = vcmp.eq.s32.totalorder %v341, 20
    %vm1006 = vcmp.eq.s32.totalorder %v342, 20
    %vm1007 = vcmp.eq.s32.totalorder %v343, 20
    %vm1008 = vcmp.eq.s32.totalorder %v344, 20
    %vm1009 = vcmp.eq.s32.totalorder %v345, 20
    %vm1010 = vcmp.eq.s32.totalorder %v346, 20
    %s1011 = sld [smem:[#allocation2 + $0xa00]]
    %v1012 = vstv %s1011
    %v1013 = vsel %vm995, %v1012, %v979
    %v1014 = vsel %vm996, %v1012, %v980
    %v1015 = vsel %vm997, %v1012, %v981
    %v1016 = vsel %vm998, %v1012, %v982
    %v1017 = vsel %vm999, %v1012, %v983
    %v1018 = vsel %vm1000, %v1012, %v984
    %v1019 = vsel %vm1001, %v1012, %v985
    %v1020 = vsel %vm1002, %v1012, %v986
    %v1021 = vsel %vm1003, %v1012, %v987
    %v1022 = vsel %vm1004, %v1012, %v988
    %v1023 = vsel %vm1005, %v1012, %v989
    %v1024 = vsel %vm1006, %v1012, %v990
    %v1025 = vsel %vm1007, %v1012, %v991
    %v1026 = vsel %vm1008, %v1012, %v992
    %v1027 = vsel %vm1009, %v1012, %v993
    %v1028 = vsel %vm1010, %v1012, %v994
    %vm1029 = vcmp.eq.s32.totalorder %v331, 21
    %vm1030 = vcmp.eq.s32.totalorder %v332, 21
    %vm1031 = vcmp.eq.s32.totalorder %v333, 21
    %vm1032 = vcmp.eq.s32.totalorder %v334, 21
    %vm1033 = vcmp.eq.s32.totalorder %v335, 21
    %vm1034 = vcmp.eq.s32.totalorder %v336, 21
    %vm1035 = vcmp.eq.s32.totalorder %v337, 21
    %vm1036 = vcmp.eq.s32.totalorder %v338, 21
    %vm1037 = vcmp.eq.s32.totalorder %v339, 21
    %vm1038 = vcmp.eq.s32.totalorder %v340, 21
    %vm1039 = vcmp.eq.s32.totalorder %v341, 21
    %vm1040 = vcmp.eq.s32.totalorder %v342, 21
    %vm1041 = vcmp.eq.s32.totalorder %v343, 21
    %vm1042 = vcmp.eq.s32.totalorder %v344, 21
    %vm1043 = vcmp.eq.s32.totalorder %v345, 21
    %vm1044 = vcmp.eq.s32.totalorder %v346, 21
    %s1045 = sld [smem:[#allocation2 + $0xa80]]
    %v1046 = vstv %s1045
    %v1047 = vsel %vm1029, %v1046, %v1013
    %v1048 = vsel %vm1030, %v1046, %v1014
    %v1049 = vsel %vm1031, %v1046, %v1015
    %v1050 = vsel %vm1032, %v1046, %v1016
    %v1051 = vsel %vm1033, %v1046, %v1017
    %v1052 = vsel %vm1034, %v1046, %v1018
    %v1053 = vsel %vm1035, %v1046, %v1019
    %v1054 = vsel %vm1036, %v1046, %v1020
    %v1055 = vsel %vm1037, %v1046, %v1021
    %v1056 = vsel %vm1038, %v1046, %v1022
    %v1057 = vsel %vm1039, %v1046, %v1023
    %v1058 = vsel %vm1040, %v1046, %v1024
    %v1059 = vsel %vm1041, %v1046, %v1025
    %v1060 = vsel %vm1042, %v1046, %v1026
    %v1061 = vsel %vm1043, %v1046, %v1027
    %v1062 = vsel %vm1044, %v1046, %v1028
    %vm1063 = vcmp.eq.s32.totalorder %v331, 22
    %vm1064 = vcmp.eq.s32.totalorder %v332, 22
    %vm1065 = vcmp.eq.s32.totalorder %v333, 22
    %vm1066 = vcmp.eq.s32.totalorder %v334, 22
    %vm1067 = vcmp.eq.s32.totalorder %v335, 22
    %vm1068 = vcmp.eq.s32.totalorder %v336, 22
    %vm1069 = vcmp.eq.s32.totalorder %v337, 22
    %vm1070 = vcmp.eq.s32.totalorder %v338, 22
    %vm1071 = vcmp.eq.s32.totalorder %v339, 22
    %vm1072 = vcmp.eq.s32.totalorder %v340, 22
    %vm1073 = vcmp.eq.s32.totalorder %v341, 22
    %vm1074 = vcmp.eq.s32.totalorder %v342, 22
    %vm1075 = vcmp.eq.s32.totalorder %v343, 22
    %vm1076 = vcmp.eq.s32.totalorder %v344, 22
    %vm1077 = vcmp.eq.s32.totalorder %v345, 22
    %vm1078 = vcmp.eq.s32.totalorder %v346, 22
    %s1079 = sld [smem:[#allocation2 + $0xb00]]
    %v1080 = vstv %s1079
    %v1081 = vsel %vm1063, %v1080, %v1047
    %v1082 = vsel %vm1064, %v1080, %v1048
    %v1083 = vsel %vm1065, %v1080, %v1049
    %v1084 = vsel %vm1066, %v1080, %v1050
    %v1085 = vsel %vm1067, %v1080, %v1051
    %v1086 = vsel %vm1068, %v1080, %v1052
    %v1087 = vsel %vm1069, %v1080, %v1053
    %v1088 = vsel %vm1070, %v1080, %v1054
    %v1089 = vsel %vm1071, %v1080, %v1055
    %v1090 = vsel %vm1072, %v1080, %v1056
    %v1091 = vsel %vm1073, %v1080, %v1057
    %v1092 = vsel %vm1074, %v1080, %v1058
    %v1093 = vsel %vm1075, %v1080, %v1059
    %v1094 = vsel %vm1076, %v1080, %v1060
    %v1095 = vsel %vm1077, %v1080, %v1061
    %v1096 = vsel %vm1078, %v1080, %v1062
    %vm1097 = vcmp.eq.s32.totalorder %v331, 23
    %vm1098 = vcmp.eq.s32.totalorder %v332, 23
    %vm1099 = vcmp.eq.s32.totalorder %v333, 23
    %vm1100 = vcmp.eq.s32.totalorder %v334, 23
    %vm1101 = vcmp.eq.s32.totalorder %v335, 23
    %vm1102 = vcmp.eq.s32.totalorder %v336, 23
    %vm1103 = vcmp.eq.s32.totalorder %v337, 23
    %vm1104 = vcmp.eq.s32.totalorder %v338, 23
    %vm1105 = vcmp.eq.s32.totalorder %v339, 23
    %vm1106 = vcmp.eq.s32.totalorder %v340, 23
    %vm1107 = vcmp.eq.s32.totalorder %v341, 23
    %vm1108 = vcmp.eq.s32.totalorder %v342, 23
    %vm1109 = vcmp.eq.s32.totalorder %v343, 23
    %vm1110 = vcmp.eq.s32.totalorder %v344, 23
    %vm1111 = vcmp.eq.s32.totalorder %v345, 23
    %vm1112 = vcmp.eq.s32.totalorder %v346, 23
    %s1113 = sld [smem:[#allocation2 + $0xb80]]
    %v1114 = vstv %s1113
    %v1115 = vsel %vm1097, %v1114, %v1081
    %v1116 = vsel %vm1098, %v1114, %v1082
    %v1117 = vsel %vm1099, %v1114, %v1083
    %v1118 = vsel %vm1100, %v1114, %v1084
    %v1119 = vsel %vm1101, %v1114, %v1085
    %v1120 = vsel %vm1102, %v1114, %v1086
    %v1121 = vsel %vm1103, %v1114, %v1087
    %v1122 = vsel %vm1104, %v1114, %v1088
    %v1123 = vsel %vm1105, %v1114, %v1089
    %v1124 = vsel %vm1106, %v1114, %v1090
    %v1125 = vsel %vm1107, %v1114, %v1091
    %v1126 = vsel %vm1108, %v1114, %v1092
    %v1127 = vsel %vm1109, %v1114, %v1093
    %v1128 = vsel %vm1110, %v1114, %v1094
    %v1129 = vsel %vm1111, %v1114, %v1095
    %v1130 = vsel %vm1112, %v1114, %v1096
    %vm1131 = vcmp.eq.s32.totalorder %v331, 24
    %vm1132 = vcmp.eq.s32.totalorder %v332, 24
    %vm1133 = vcmp.eq.s32.totalorder %v333, 24
    %vm1134 = vcmp.eq.s32.totalorder %v334, 24
    %vm1135 = vcmp.eq.s32.totalorder %v335, 24
    %vm1136 = vcmp.eq.s32.totalorder %v336, 24
    %vm1137 = vcmp.eq.s32.totalorder %v337, 24
    %vm1138 = vcmp.eq.s32.totalorder %v338, 24
    %vm1139 = vcmp.eq.s32.totalorder %v339, 24
    %vm1140 = vcmp.eq.s32.totalorder %v340, 24
    %vm1141 = vcmp.eq.s32.totalorder %v341, 24
    %vm1142 = vcmp.eq.s32.totalorder %v342, 24
    %vm1143 = vcmp.eq.s32.totalorder %v343, 24
    %vm1144 = vcmp.eq.s32.totalorder %v344, 24
    %vm1145 = vcmp.eq.s32.totalorder %v345, 24
    %vm1146 = vcmp.eq.s32.totalorder %v346, 24
    %s1147 = sld [smem:[#allocation2 + $0xc00]]
    %v1148 = vstv %s1147
    %v1149 = vsel %vm1131, %v1148, %v1115
    %v1150 = vsel %vm1132, %v1148, %v1116
    %v1151 = vsel %vm1133, %v1148, %v1117
    %v1152 = vsel %vm1134, %v1148, %v1118
    %v1153 = vsel %vm1135, %v1148, %v1119
    %v1154 = vsel %vm1136, %v1148, %v1120
    %v1155 = vsel %vm1137, %v1148, %v1121
    %v1156 = vsel %vm1138, %v1148, %v1122
    %v1157 = vsel %vm1139, %v1148, %v1123
    %v1158 = vsel %vm1140, %v1148, %v1124
    %v1159 = vsel %vm1141, %v1148, %v1125
    %v1160 = vsel %vm1142, %v1148, %v1126
    %v1161 = vsel %vm1143, %v1148, %v1127
    %v1162 = vsel %vm1144, %v1148, %v1128
    %v1163 = vsel %vm1145, %v1148, %v1129
    %v1164 = vsel %vm1146, %v1148, %v1130
    %vm1165 = vcmp.eq.s32.totalorder %v331, 25
    %vm1166 = vcmp.eq.s32.totalorder %v332, 25
    %vm1167 = vcmp.eq.s32.totalorder %v333, 25
    %vm1168 = vcmp.eq.s32.totalorder %v334, 25
    %vm1169 = vcmp.eq.s32.totalorder %v335, 25
    %vm1170 = vcmp.eq.s32.totalorder %v336, 25
    %vm1171 = vcmp.eq.s32.totalorder %v337, 25
    %vm1172 = vcmp.eq.s32.totalorder %v338, 25
    %vm1173 = vcmp.eq.s32.totalorder %v339, 25
    %vm1174 = vcmp.eq.s32.totalorder %v340, 25
    %vm1175 = vcmp.eq.s32.totalorder %v341, 25
    %vm1176 = vcmp.eq.s32.totalorder %v342, 25
    %vm1177 = vcmp.eq.s32.totalorder %v343, 25
    %vm1178 = vcmp.eq.s32.totalorder %v344, 25
    %vm1179 = vcmp.eq.s32.totalorder %v345, 25
    %vm1180 = vcmp.eq.s32.totalorder %v346, 25
    %s1181 = sld [smem:[#allocation2 + $0xc80]]
    %v1182 = vstv %s1181
    %v1183 = vsel %vm1165, %v1182, %v1149
    %v1184 = vsel %vm1166, %v1182, %v1150
    %v1185 = vsel %vm1167, %v1182, %v1151
    %v1186 = vsel %vm1168, %v1182, %v1152
    %v1187 = vsel %vm1169, %v1182, %v1153
    %v1188 = vsel %vm1170, %v1182, %v1154
    %v1189 = vsel %vm1171, %v1182, %v1155
    %v1190 = vsel %vm1172, %v1182, %v1156
    %v1191 = vsel %vm1173, %v1182, %v1157
    %v1192 = vsel %vm1174, %v1182, %v1158
    %v1193 = vsel %vm1175, %v1182, %v1159
    %v1194 = vsel %vm1176, %v1182, %v1160
    %v1195 = vsel %vm1177, %v1182, %v1161
    %v1196 = vsel %vm1178, %v1182, %v1162
    %v1197 = vsel %vm1179, %v1182, %v1163
    %v1198 = vsel %vm1180, %v1182, %v1164
    %vm1199 = vcmp.eq.s32.totalorder %v331, 26
    %vm1200 = vcmp.eq.s32.totalorder %v332, 26
    %vm1201 = vcmp.eq.s32.totalorder %v333, 26
    %vm1202 = vcmp.eq.s32.totalorder %v334, 26
    %vm1203 = vcmp.eq.s32.totalorder %v335, 26
    %vm1204 = vcmp.eq.s32.totalorder %v336, 26
    %vm1205 = vcmp.eq.s32.totalorder %v337, 26
    %vm1206 = vcmp.eq.s32.totalorder %v338, 26
    %vm1207 = vcmp.eq.s32.totalorder %v339, 26
    %vm1208 = vcmp.eq.s32.totalorder %v340, 26
    %vm1209 = vcmp.eq.s32.totalorder %v341, 26
    %vm1210 = vcmp.eq.s32.totalorder %v342, 26
    %vm1211 = vcmp.eq.s32.totalorder %v343, 26
    %vm1212 = vcmp.eq.s32.totalorder %v344, 26
    %vm1213 = vcmp.eq.s32.totalorder %v345, 26
    %vm1214 = vcmp.eq.s32.totalorder %v346, 26
    %s1215 = sld [smem:[#allocation2 + $0xd00]]
    %v1216 = vstv %s1215
    %v1217 = vsel %vm1199, %v1216, %v1183
    %v1218 = vsel %vm1200, %v1216, %v1184
    %v1219 = vsel %vm1201, %v1216, %v1185
    %v1220 = vsel %vm1202, %v1216, %v1186
    %v1221 = vsel %vm1203, %v1216, %v1187
    %v1222 = vsel %vm1204, %v1216, %v1188
    %v1223 = vsel %vm1205, %v1216, %v1189
    %v1224 = vsel %vm1206, %v1216, %v1190
    %v1225 = vsel %vm1207, %v1216, %v1191
    %v1226 = vsel %vm1208, %v1216, %v1192
    %v1227 = vsel %vm1209, %v1216, %v1193
    %v1228 = vsel %vm1210, %v1216, %v1194
    %v1229 = vsel %vm1211, %v1216, %v1195
    %v1230 = vsel %vm1212, %v1216, %v1196
    %v1231 = vsel %vm1213, %v1216, %v1197
    %v1232 = vsel %vm1214, %v1216, %v1198
    %vm1233 = vcmp.eq.s32.totalorder %v331, 27
    %vm1234 = vcmp.eq.s32.totalorder %v332, 27
    %vm1235 = vcmp.eq.s32.totalorder %v333, 27
    %vm1236 = vcmp.eq.s32.totalorder %v334, 27
    %vm1237 = vcmp.eq.s32.totalorder %v335, 27
    %vm1238 = vcmp.eq.s32.totalorder %v336, 27
    %vm1239 = vcmp.eq.s32.totalorder %v337, 27
    %vm1240 = vcmp.eq.s32.totalorder %v338, 27
    %vm1241 = vcmp.eq.s32.totalorder %v339, 27
    %vm1242 = vcmp.eq.s32.totalorder %v340, 27
    %vm1243 = vcmp.eq.s32.totalorder %v341, 27
    %vm1244 = vcmp.eq.s32.totalorder %v342, 27
    %vm1245 = vcmp.eq.s32.totalorder %v343, 27
    %vm1246 = vcmp.eq.s32.totalorder %v344, 27
    %vm1247 = vcmp.eq.s32.totalorder %v345, 27
    %vm1248 = vcmp.eq.s32.totalorder %v346, 27
    %s1249 = sld [smem:[#allocation2 + $0xd80]]
    %v1250 = vstv %s1249
    %v1251 = vsel %vm1233, %v1250, %v1217
    %v1252 = vsel %vm1234, %v1250, %v1218
    %v1253 = vsel %vm1235, %v1250, %v1219
    %v1254 = vsel %vm1236, %v1250, %v1220
    %v1255 = vsel %vm1237, %v1250, %v1221
    %v1256 = vsel %vm1238, %v1250, %v1222
    %v1257 = vsel %vm1239, %v1250, %v1223
    %v1258 = vsel %vm1240, %v1250, %v1224
    %v1259 = vsel %vm1241, %v1250, %v1225
    %v1260 = vsel %vm1242, %v1250, %v1226
    %v1261 = vsel %vm1243, %v1250, %v1227
    %v1262 = vsel %vm1244, %v1250, %v1228
    %v1263 = vsel %vm1245, %v1250, %v1229
    %v1264 = vsel %vm1246, %v1250, %v1230
    %v1265 = vsel %vm1247, %v1250, %v1231
    %v1266 = vsel %vm1248, %v1250, %v1232
    %vm1267 = vcmp.eq.s32.totalorder %v331, 28
    %vm1268 = vcmp.eq.s32.totalorder %v332, 28
    %vm1269 = vcmp.eq.s32.totalorder %v333, 28
    %vm1270 = vcmp.eq.s32.totalorder %v334, 28
    %vm1271 = vcmp.eq.s32.totalorder %v335, 28
    %vm1272 = vcmp.eq.s32.totalorder %v336, 28
    %vm1273 = vcmp.eq.s32.totalorder %v337, 28
    %vm1274 = vcmp.eq.s32.totalorder %v338, 28
    %vm1275 = vcmp.eq.s32.totalorder %v339, 28
    %vm1276 = vcmp.eq.s32.totalorder %v340, 28
    %vm1277 = vcmp.eq.s32.totalorder %v341, 28
    %vm1278 = vcmp.eq.s32.totalorder %v342, 28
    %vm1279 = vcmp.eq.s32.totalorder %v343, 28
    %vm1280 = vcmp.eq.s32.totalorder %v344, 28
    %vm1281 = vcmp.eq.s32.totalorder %v345, 28
    %vm1282 = vcmp.eq.s32.totalorder %v346, 28
    %s1283 = sld [smem:[#allocation2 + $0xe00]]
    %v1284 = vstv %s1283
    %v1285 = vsel %vm1267, %v1284, %v1251
    %v1286 = vsel %vm1268, %v1284, %v1252
    %v1287 = vsel %vm1269, %v1284, %v1253
    %v1288 = vsel %vm1270, %v1284, %v1254
    %v1289 = vsel %vm1271, %v1284, %v1255
    %v1290 = vsel %vm1272, %v1284, %v1256
    %v1291 = vsel %vm1273, %v1284, %v1257
    %v1292 = vsel %vm1274, %v1284, %v1258
    %v1293 = vsel %vm1275, %v1284, %v1259
    %v1294 = vsel %vm1276, %v1284, %v1260
    %v1295 = vsel %vm1277, %v1284, %v1261
    %v1296 = vsel %vm1278, %v1284, %v1262
    %v1297 = vsel %vm1279, %v1284, %v1263
    %v1298 = vsel %vm1280, %v1284, %v1264
    %v1299 = vsel %vm1281, %v1284, %v1265
    %v1300 = vsel %vm1282, %v1284, %v1266
    %vm1301 = vcmp.eq.s32.totalorder %v331, 29
    %vm1302 = vcmp.eq.s32.totalorder %v332, 29
    %vm1303 = vcmp.eq.s32.totalorder %v333, 29
    %vm1304 = vcmp.eq.s32.totalorder %v334, 29
    %vm1305 = vcmp.eq.s32.totalorder %v335, 29
    %vm1306 = vcmp.eq.s32.totalorder %v336, 29
    %vm1307 = vcmp.eq.s32.totalorder %v337, 29
    %vm1308 = vcmp.eq.s32.totalorder %v338, 29
    %vm1309 = vcmp.eq.s32.totalorder %v339, 29
    %vm1310 = vcmp.eq.s32.totalorder %v340, 29
    %vm1311 = vcmp.eq.s32.totalorder %v341, 29
    %vm1312 = vcmp.eq.s32.totalorder %v342, 29
    %vm1313 = vcmp.eq.s32.totalorder %v343, 29
    %vm1314 = vcmp.eq.s32.totalorder %v344, 29
    %vm1315 = vcmp.eq.s32.totalorder %v345, 29
    %vm1316 = vcmp.eq.s32.totalorder %v346, 29
    %s1317 = sld [smem:[#allocation2 + $0xe80]]
    %v1318 = vstv %s1317
    %v1319 = vsel %vm1301, %v1318, %v1285
    %v1320 = vsel %vm1302, %v1318, %v1286
    %v1321 = vsel %vm1303, %v1318, %v1287
    %v1322 = vsel %vm1304, %v1318, %v1288
    %v1323 = vsel %vm1305, %v1318, %v1289
    %v1324 = vsel %vm1306, %v1318, %v1290
    %v1325 = vsel %vm1307, %v1318, %v1291
    %v1326 = vsel %vm1308, %v1318, %v1292
    %v1327 = vsel %vm1309, %v1318, %v1293
    %v1328 = vsel %vm1310, %v1318, %v1294
    %v1329 = vsel %vm1311, %v1318, %v1295
    %v1330 = vsel %vm1312, %v1318, %v1296
    %v1331 = vsel %vm1313, %v1318, %v1297
    %v1332 = vsel %vm1314, %v1318, %v1298
    %v1333 = vsel %vm1315, %v1318, %v1299
    %v1334 = vsel %vm1316, %v1318, %v1300
    %vm1335 = vcmp.eq.s32.totalorder %v331, 30
    %vm1336 = vcmp.eq.s32.totalorder %v332, 30
    %vm1337 = vcmp.eq.s32.totalorder %v333, 30
    %vm1338 = vcmp.eq.s32.totalorder %v334, 30
    %vm1339 = vcmp.eq.s32.totalorder %v335, 30
    %vm1340 = vcmp.eq.s32.totalorder %v336, 30
    %vm1341 = vcmp.eq.s32.totalorder %v337, 30
    %vm1342 = vcmp.eq.s32.totalorder %v338, 30
    %vm1343 = vcmp.eq.s32.totalorder %v339, 30
    %vm1344 = vcmp.eq.s32.totalorder %v340, 30
    %vm1345 = vcmp.eq.s32.totalorder %v341, 30
    %vm1346 = vcmp.eq.s32.totalorder %v342, 30
    %vm1347 = vcmp.eq.s32.totalorder %v343, 30
    %vm1348 = vcmp.eq.s32.totalorder %v344, 30
    %vm1349 = vcmp.eq.s32.totalorder %v345, 30
    %vm1350 = vcmp.eq.s32.totalorder %v346, 30
    %s1351 = sld [smem:[#allocation2 + $0xf00]]
    %v1352 = vstv %s1351
    %v1353 = vsel %vm1335, %v1352, %v1319
    %v1354 = vsel %vm1336, %v1352, %v1320
    %v1355 = vsel %vm1337, %v1352, %v1321
    %v1356 = vsel %vm1338, %v1352, %v1322
    %v1357 = vsel %vm1339, %v1352, %v1323
    %v1358 = vsel %vm1340, %v1352, %v1324
    %v1359 = vsel %vm1341, %v1352, %v1325
    %v1360 = vsel %vm1342, %v1352, %v1326
    %v1361 = vsel %vm1343, %v1352, %v1327
    %v1362 = vsel %vm1344, %v1352, %v1328
    %v1363 = vsel %vm1345, %v1352, %v1329
    %v1364 = vsel %vm1346, %v1352, %v1330
    %v1365 = vsel %vm1347, %v1352, %v1331
    %v1366 = vsel %vm1348, %v1352, %v1332
    %v1367 = vsel %vm1349, %v1352, %v1333
    %v1368 = vsel %vm1350, %v1352, %v1334
    %vm1369 = vcmp.eq.s32.totalorder %v331, 31
    %vm1370 = vcmp.eq.s32.totalorder %v332, 31
    %vm1371 = vcmp.eq.s32.totalorder %v333, 31
    %vm1372 = vcmp.eq.s32.totalorder %v334, 31
    %vm1373 = vcmp.eq.s32.totalorder %v335, 31
    %vm1374 = vcmp.eq.s32.totalorder %v336, 31
    %vm1375 = vcmp.eq.s32.totalorder %v337, 31
    %vm1376 = vcmp.eq.s32.totalorder %v338, 31
    %vm1377 = vcmp.eq.s32.totalorder %v339, 31
    %vm1378 = vcmp.eq.s32.totalorder %v340, 31
    %vm1379 = vcmp.eq.s32.totalorder %v341, 31
    %vm1380 = vcmp.eq.s32.totalorder %v342, 31
    %vm1381 = vcmp.eq.s32.totalorder %v343, 31
    %vm1382 = vcmp.eq.s32.totalorder %v344, 31
    %vm1383 = vcmp.eq.s32.totalorder %v345, 31
    %vm1384 = vcmp.eq.s32.totalorder %v346, 31
    %s1385 = sld [smem:[#allocation2 + $0xf80]]
    %v1386 = vstv %s1385
    %v1387 = vsel %vm1369, %v1386, %v1353
    %v1388 = vsel %vm1370, %v1386, %v1354
    %v1389 = vsel %vm1371, %v1386, %v1355
    %v1390 = vsel %vm1372, %v1386, %v1356
    %v1391 = vsel %vm1373, %v1386, %v1357
    %v1392 = vsel %vm1374, %v1386, %v1358
    %v1393 = vsel %vm1375, %v1386, %v1359
    %v1394 = vsel %vm1376, %v1386, %v1360
    %v1395 = vsel %vm1377, %v1386, %v1361
    %v1396 = vsel %vm1378, %v1386, %v1362
    %v1397 = vsel %vm1379, %v1386, %v1363
    %v1398 = vsel %vm1380, %v1386, %v1364
    %v1399 = vsel %vm1381, %v1386, %v1365
    %v1400 = vsel %vm1382, %v1386, %v1366
    %v1401 = vsel %vm1383, %v1386, %v1367
    %v1402 = vsel %vm1384, %v1386, %v1368
    %1403 = vst [vmem:[#allocation5] sm:$0xff] %v1387
    %1404 = vst [vmem:[#allocation5 + $0x8] sm:$0xff] %v1388
    %1405 = vst [vmem:[#allocation5 + $0x10] sm:$0xff] %v1389
    %1406 = vst [vmem:[#allocation5 + $0x18] sm:$0xff] %v1390
    %1407 = vst [vmem:[#allocation5 + $0x20] sm:$0xff] %v1391
    %1408 = vst [vmem:[#allocation5 + $0x28] sm:$0xff] %v1392
    %1409 = vst [vmem:[#allocation5 + $0x30] sm:$0xff] %v1393
    %1410 = vst [vmem:[#allocation5 + $0x38] sm:$0xff] %v1394
    %1411 = vst [vmem:[#allocation5 + $0x40] sm:$0xff] %v1395
    %1412 = vst [vmem:[#allocation5 + $0x48] sm:$0xff] %v1396
    %1413 = vst [vmem:[#allocation5 + $0x50] sm:$0xff] %v1397
    %1414 = vst [vmem:[#allocation5 + $0x58] sm:$0xff] %v1398
    %1415 = vst [vmem:[#allocation5 + $0x60] sm:$0xff] %v1399
    %1416 = vst [vmem:[#allocation5 + $0x68] sm:$0xff] %v1400
    %1417 = vst [vmem:[#allocation5 + $0x70] sm:$0xff] %v1401
    %1418 = vst [vmem:[#allocation5 + $0x78] sm:$0xff] %v1402
    %s1419 = sld [smem:[#allocation2 + $0x1]]
    %v1420 = vstv %s1419
    %s1421 = sld [smem:[#allocation2 + $0x81]]
    %v1422 = vstv %s1421
    %v1423 = vsel %vm349, %v1422, %v1420
    %v1424 = vsel %vm350, %v1422, %v1420
    %v1425 = vsel %vm351, %v1422, %v1420
    %v1426 = vsel %vm352, %v1422, %v1420
    %v1427 = vsel %vm353, %v1422, %v1420
    %v1428 = vsel %vm354, %v1422, %v1420
    %v1429 = vsel %vm355, %v1422, %v1420
    %v1430 = vsel %vm356, %v1422, %v1420
    %v1431 = vsel %vm357, %v1422, %v1420
    %v1432 = vsel %vm358, %v1422, %v1420
    %v1433 = vsel %vm359, %v1422, %v1420
    %v1434 = vsel %vm360, %v1422, %v1420
    %v1435 = vsel %vm361, %v1422, %v1420
    %v1436 = vsel %vm362, %v1422, %v1420
    %v1437 = vsel %vm363, %v1422, %v1420
    %v1438 = vsel %vm364, %v1422, %v1420
    %s1439 = sld [smem:[#allocation2 + $0x101]]
    %v1440 = vstv %s1439
    %v1441 = vsel %vm383, %v1440, %v1423
    %v1442 = vsel %vm384, %v1440, %v1424
    %v1443 = vsel %vm385, %v1440, %v1425
    %v1444 = vsel %vm386, %v1440, %v1426
    %v1445 = vsel %vm387, %v1440, %v1427
    %v1446 = vsel %vm388, %v1440, %v1428
    %v1447 = vsel %vm389, %v1440, %v1429
    %v1448 = vsel %vm390, %v1440, %v1430
    %v1449 = vsel %vm391, %v1440, %v1431
    %v1450 = vsel %vm392, %v1440, %v1432
    %v1451 = vsel %vm393, %v1440, %v1433
    %v1452 = vsel %vm394, %v1440, %v1434
    %v1453 = vsel %vm395, %v1440, %v1435
    %v1454 = vsel %vm396, %v1440, %v1436
    %v1455 = vsel %vm397, %v1440, %v1437
    %v1456 = vsel %vm398, %v1440, %v1438
    %s1457 = sld [smem:[#allocation2 + $0x181]]
    %v1458 = vstv %s1457
    %v1459 = vsel %vm417, %v1458, %v1441
    %v1460 = vsel %vm418, %v1458, %v1442
    %v1461 = vsel %vm419, %v1458, %v1443
    %v1462 = vsel %vm420, %v1458, %v1444
    %v1463 = vsel %vm421, %v1458, %v1445
    %v1464 = vsel %vm422, %v1458, %v1446
    %v1465 = vsel %vm423, %v1458, %v1447
    %v1466 = vsel %vm424, %v1458, %v1448
    %v1467 = vsel %vm425, %v1458, %v1449
    %v1468 = vsel %vm426, %v1458, %v1450
    %v1469 = vsel %vm427, %v1458, %v1451
    %v1470 = vsel %vm428, %v1458, %v1452
    %v1471 = vsel %vm429, %v1458, %v1453
    %v1472 = vsel %vm430, %v1458, %v1454
    %v1473 = vsel %vm431, %v1458, %v1455
    %v1474 = vsel %vm432, %v1458, %v1456
    %s1475 = sld [smem:[#allocation2 + $0x201]]
    %v1476 = vstv %s1475
    %v1477 = vsel %vm451, %v1476, %v1459
    %v1478 = vsel %vm452, %v1476, %v1460
    %v1479 = vsel %vm453, %v1476, %v1461
    %v1480 = vsel %vm454, %v1476, %v1462
    %v1481 = vsel %vm455, %v1476, %v1463
    %v1482 = vsel %vm456, %v1476, %v1464
    %v1483 = vsel %vm457, %v1476, %v1465
    %v1484 = vsel %vm458, %v1476, %v1466
    %v1485 = vsel %vm459, %v1476, %v1467
    %v1486 = vsel %vm460, %v1476, %v1468
    %v1487 = vsel %vm461, %v1476, %v1469
    %v1488 = vsel %vm462, %v1476, %v1470
    %v1489 = vsel %vm463, %v1476, %v1471
    %v1490 = vsel %vm464, %v1476, %v1472
    %v1491 = vsel %vm465, %v1476, %v1473
    %v1492 = vsel %vm466, %v1476, %v1474
    %s1493 = sld [smem:[#allocation2 + $0x281]]
    %v1494 = vstv %s1493
    %v1495 = vsel %vm485, %v1494, %v1477
    %v1496 = vsel %vm486, %v1494, %v1478
    %v1497 = vsel %vm487, %v1494, %v1479
    %v1498 = vsel %vm488, %v1494, %v1480
    %v1499 = vsel %vm489, %v1494, %v1481
    %v1500 = vsel %vm490, %v1494, %v1482
    %v1501 = vsel %vm491, %v1494, %v1483
    %v1502 = vsel %vm492, %v1494, %v1484
    %v1503 = vsel %vm493, %v1494, %v1485
    %v1504 = vsel %vm494, %v1494, %v1486
    %v1505 = vsel %vm495, %v1494, %v1487
    %v1506 = vsel %vm496, %v1494, %v1488
    %v1507 = vsel %vm497, %v1494, %v1489
    %v1508 = vsel %vm498, %v1494, %v1490
    %v1509 = vsel %vm499, %v1494, %v1491
    %v1510 = vsel %vm500, %v1494, %v1492
    %s1511 = sld [smem:[#allocation2 + $0x301]]
    %v1512 = vstv %s1511
    %v1513 = vsel %vm519, %v1512, %v1495
    %v1514 = vsel %vm520, %v1512, %v1496
    %v1515 = vsel %vm521, %v1512, %v1497
    %v1516 = vsel %vm522, %v1512, %v1498
    %v1517 = vsel %vm523, %v1512, %v1499
    %v1518 = vsel %vm524, %v1512, %v1500
    %v1519 = vsel %vm525, %v1512, %v1501
    %v1520 = vsel %vm526, %v1512, %v1502
    %v1521 = vsel %vm527, %v1512, %v1503
    %v1522 = vsel %vm528, %v1512, %v1504
    %v1523 = vsel %vm529, %v1512, %v1505
    %v1524 = vsel %vm530, %v1512, %v1506
    %v1525 = vsel %vm531, %v1512, %v1507
    %v1526 = vsel %vm532, %v1512, %v1508
    %v1527 = vsel %vm533, %v1512, %v1509
    %v1528 = vsel %vm534, %v1512, %v1510
    %s1529 = sld [smem:[#allocation2 + $0x381]]
    %v1530 = vstv %s1529
    %v1531 = vsel %vm553, %v1530, %v1513
    %v1532 = vsel %vm554, %v1530, %v1514
    %v1533 = vsel %vm555, %v1530, %v1515
    %v1534 = vsel %vm556, %v1530, %v1516
    %v1535 = vsel %vm557, %v1530, %v1517
    %v1536 = vsel %vm558, %v1530, %v1518
    %v1537 = vsel %vm559, %v1530, %v1519
    %v1538 = vsel %vm560, %v1530, %v1520
    %v1539 = vsel %vm561, %v1530, %v1521
    %v1540 = vsel %vm562, %v1530, %v1522
    %v1541 = vsel %vm563, %v1530, %v1523
    %v1542 = vsel %vm564, %v1530, %v1524
    %v1543 = vsel %vm565, %v1530, %v1525
    %v1544 = vsel %vm566, %v1530, %v1526
    %v1545 = vsel %vm567, %v1530, %v1527
    %v1546 = vsel %vm568, %v1530, %v1528
    %s1547 = sld [smem:[#allocation2 + $0x401]]
    %v1548 = vstv %s1547
    %v1549 = vsel %vm587, %v1548, %v1531
    %v1550 = vsel %vm588, %v1548, %v1532
    %v1551 = vsel %vm589, %v1548, %v1533
    %v1552 = vsel %vm590, %v1548, %v1534
    %v1553 = vsel %vm591, %v1548, %v1535
    %v1554 = vsel %vm592, %v1548, %v1536
    %v1555 = vsel %vm593, %v1548, %v1537
    %v1556 = vsel %vm594, %v1548, %v1538
    %v1557 = vsel %vm595, %v1548, %v1539
    %v1558 = vsel %vm596, %v1548, %v1540
    %v1559 = vsel %vm597, %v1548, %v1541
    %v1560 = vsel %vm598, %v1548, %v1542
    %v1561 = vsel %vm599, %v1548, %v1543
    %v1562 = vsel %vm600, %v1548, %v1544
    %v1563 = vsel %vm601, %v1548, %v1545
    %v1564 = vsel %vm602, %v1548, %v1546
    %s1565 = sld [smem:[#allocation2 + $0x481]]
    %v1566 = vstv %s1565
    %v1567 = vsel %vm621, %v1566, %v1549
    %v1568 = vsel %vm622, %v1566, %v1550
    %v1569 = vsel %vm623, %v1566, %v1551
    %v1570 = vsel %vm624, %v1566, %v1552
    %v1571 = vsel %vm625, %v1566, %v1553
    %v1572 = vsel %vm626, %v1566, %v1554
    %v1573 = vsel %vm627, %v1566, %v1555
    %v1574 = vsel %vm628, %v1566, %v1556
    %v1575 = vsel %vm629, %v1566, %v1557
    %v1576 = vsel %vm630, %v1566, %v1558
    %v1577 = vsel %vm631, %v1566, %v1559
    %v1578 = vsel %vm632, %v1566, %v1560
    %v1579 = vsel %vm633, %v1566, %v1561
    %v1580 = vsel %vm634, %v1566, %v1562
    %v1581 = vsel %vm635, %v1566, %v1563
    %v1582 = vsel %vm636, %v1566, %v1564
    %s1583 = sld [smem:[#allocation2 + $0x501]]
    %v1584 = vstv %s1583
    %v1585 = vsel %vm655, %v1584, %v1567
    %v1586 = vsel %vm656, %v1584, %v1568
    %v1587 = vsel %vm657, %v1584, %v1569
    %v1588 = vsel %vm658, %v1584, %v1570
    %v1589 = vsel %vm659, %v1584, %v1571
    %v1590 = vsel %vm660, %v1584, %v1572
    %v1591 = vsel %vm661, %v1584, %v1573
    %v1592 = vsel %vm662, %v1584, %v1574
    %v1593 = vsel %vm663, %v1584, %v1575
    %v1594 = vsel %vm664, %v1584, %v1576
    %v1595 = vsel %vm665, %v1584, %v1577
    %v1596 = vsel %vm666, %v1584, %v1578
    %v1597 = vsel %vm667, %v1584, %v1579
    %v1598 = vsel %vm668, %v1584, %v1580
    %v1599 = vsel %vm669, %v1584, %v1581
    %v1600 = vsel %vm670, %v1584, %v1582
    %s1601 = sld [smem:[#allocation2 + $0x581]]
    %v1602 = vstv %s1601
    %v1603 = vsel %vm689, %v1602, %v1585
    %v1604 = vsel %vm690, %v1602, %v1586
    %v1605 = vsel %vm691, %v1602, %v1587
    %v1606 = vsel %vm692, %v1602, %v1588
    %v1607 = vsel %vm693, %v1602, %v1589
    %v1608 = vsel %vm694, %v1602, %v1590
    %v1609 = vsel %vm695, %v1602, %v1591
    %v1610 = vsel %vm696, %v1602, %v1592
    %v1611 = vsel %vm697, %v1602, %v1593
    %v1612 = vsel %vm698, %v1602, %v1594
    %v1613 = vsel %vm699, %v1602, %v1595
    %v1614 = vsel %vm700, %v1602, %v1596
    %v1615 = vsel %vm701, %v1602, %v1597
    %v1616 = vsel %vm702, %v1602, %v1598
    %v1617 = vsel %vm703, %v1602, %v1599
    %v1618 = vsel %vm704, %v1602, %v1600
    %s1619 = sld [smem:[#allocation2 + $0x601]]
    %v1620 = vstv %s1619
    %v1621 = vsel %vm723, %v1620, %v1603
    %v1622 = vsel %vm724, %v1620, %v1604
    %v1623 = vsel %vm725, %v1620, %v1605
    %v1624 = vsel %vm726, %v1620, %v1606
    %v1625 = vsel %vm727, %v1620, %v1607
    %v1626 = vsel %vm728, %v1620, %v1608
    %v1627 = vsel %vm729, %v1620, %v1609
    %v1628 = vsel %vm730, %v1620, %v1610
    %v1629 = vsel %vm731, %v1620, %v1611
    %v1630 = vsel %vm732, %v1620, %v1612
    %v1631 = vsel %vm733, %v1620, %v1613
    %v1632 = vsel %vm734, %v1620, %v1614
    %v1633 = vsel %vm735, %v1620, %v1615
    %v1634 = vsel %vm736, %v1620, %v1616
    %v1635 = vsel %vm737, %v1620, %v1617
    %v1636 = vsel %vm738, %v1620, %v1618
    %s1637 = sld [smem:[#allocation2 + $0x681]]
    %v1638 = vstv %s1637
    %v1639 = vsel %vm757, %v1638, %v1621
    %v1640 = vsel %vm758, %v1638, %v1622
    %v1641 = vsel %vm759, %v1638, %v1623
    %v1642 = vsel %vm760, %v1638, %v1624
    %v1643 = vsel %vm761, %v1638, %v1625
    %v1644 = vsel %vm762, %v1638, %v1626
    %v1645 = vsel %vm763, %v1638, %v1627
    %v1646 = vsel %vm764, %v1638, %v1628
    %v1647 = vsel %vm765, %v1638, %v1629
    %v1648 = vsel %vm766, %v1638, %v1630
    %v1649 = vsel %vm767, %v1638, %v1631
    %v1650 = vsel %vm768, %v1638, %v1632
    %v1651 = vsel %vm769, %v1638, %v1633
    %v1652 = vsel %vm770, %v1638, %v1634
    %v1653 = vsel %vm771, %v1638, %v1635
    %v1654 = vsel %vm772, %v1638, %v1636
    %s1655 = sld [smem:[#allocation2 + $0x701]]
    %v1656 = vstv %s1655
    %v1657 = vsel %vm791, %v1656, %v1639
    %v1658 = vsel %vm792, %v1656, %v1640
    %v1659 = vsel %vm793, %v1656, %v1641
    %v1660 = vsel %vm794, %v1656, %v1642
    %v1661 = vsel %vm795, %v1656, %v1643
    %v1662 = vsel %vm796, %v1656, %v1644
    %v1663 = vsel %vm797, %v1656, %v1645
    %v1664 = vsel %vm798, %v1656, %v1646
    %v1665 = vsel %vm799, %v1656, %v1647
    %v1666 = vsel %vm800, %v1656, %v1648
    %v1667 = vsel %vm801, %v1656, %v1649
    %v1668 = vsel %vm802, %v1656, %v1650
    %v1669 = vsel %vm803, %v1656, %v1651
    %v1670 = vsel %vm804, %v1656, %v1652
    %v1671 = vsel %vm805, %v1656, %v1653
    %v1672 = vsel %vm806, %v1656, %v1654
    %s1673 = sld [smem:[#allocation2 + $0x781]]
    %v1674 = vstv %s1673
    %v1675 = vsel %vm825, %v1674, %v1657
    %v1676 = vsel %vm826, %v1674, %v1658
    %v1677 = vsel %vm827, %v1674, %v1659
    %v1678 = vsel %vm828, %v1674, %v1660
    %v1679 = vsel %vm829, %v1674, %v1661
    %v1680 = vsel %vm830, %v1674, %v1662
    %v1681 = vsel %vm831, %v1674, %v1663
    %v1682 = vsel %vm832, %v1674, %v1664
    %v1683 = vsel %vm833, %v1674, %v1665
    %v1684 = vsel %vm834, %v1674, %v1666
    %v1685 = vsel %vm835, %v1674, %v1667
    %v1686 = vsel %vm836, %v1674, %v1668
    %v1687 = vsel %vm837, %v1674, %v1669
    %v1688 = vsel %vm838, %v1674, %v1670
    %v1689 = vsel %vm839, %v1674, %v1671
    %v1690 = vsel %vm840, %v1674, %v1672
    %s1691 = sld [smem:[#allocation2 + $0x801]]
    %v1692 = vstv %s1691
    %v1693 = vsel %vm859, %v1692, %v1675
    %v1694 = vsel %vm860, %v1692, %v1676
    %v1695 = vsel %vm861, %v1692, %v1677
    %v1696 = vsel %vm862, %v1692, %v1678
    %v1697 = vsel %vm863, %v1692, %v1679
    %v1698 = vsel %vm864, %v1692, %v1680
    %v1699 = vsel %vm865, %v1692, %v1681
    %v1700 = vsel %vm866, %v1692, %v1682
    %v1701 = vsel %vm867, %v1692, %v1683
    %v1702 = vsel %vm868, %v1692, %v1684
    %v1703 = vsel %vm869, %v1692, %v1685
    %v1704 = vsel %vm870, %v1692, %v1686
    %v1705 = vsel %vm871, %v1692, %v1687
    %v1706 = vsel %vm872, %v1692, %v1688
    %v1707 = vsel %vm873, %v1692, %v1689
    %v1708 = vsel %vm874, %v1692, %v1690
    %s1709 = sld [smem:[#allocation2 + $0x881]]
    %v1710 = vstv %s1709
    %v1711 = vsel %vm893, %v1710, %v1693
    %v1712 = vsel %vm894, %v1710, %v1694
    %v1713 = vsel %vm895, %v1710, %v1695
    %v1714 = vsel %vm896, %v1710, %v1696
    %v1715 = vsel %vm897, %v1710, %v1697
    %v1716 = vsel %vm898, %v1710, %v1698
    %v1717 = vsel %vm899, %v1710, %v1699
    %v1718 = vsel %vm900, %v1710, %v1700
    %v1719 = vsel %vm901, %v1710, %v1701
    %v1720 = vsel %vm902, %v1710, %v1702
    %v1721 = vsel %vm903, %v1710, %v1703
    %v1722 = vsel %vm904, %v1710, %v1704
    %v1723 = vsel %vm905, %v1710, %v1705
    %v1724 = vsel %vm906, %v1710, %v1706
    %v1725 = vsel %vm907, %v1710, %v1707
    %v1726 = vsel %vm908, %v1710, %v1708
    %s1727 = sld [smem:[#allocation2 + $0x901]]
    %v1728 = vstv %s1727
    %v1729 = vsel %vm927, %v1728, %v1711
    %v1730 = vsel %vm928, %v1728, %v1712
    %v1731 = vsel %vm929, %v1728, %v1713
    %v1732 = vsel %vm930, %v1728, %v1714
    %v1733 = vsel %vm931, %v1728, %v1715
    %v1734 = vsel %vm932, %v1728, %v1716
    %v1735 = vsel %vm933, %v1728, %v1717
    %v1736 = vsel %vm934, %v1728, %v1718
    %v1737 = vsel %vm935, %v1728, %v1719
    %v1738 = vsel %vm936, %v1728, %v1720
    %v1739 = vsel %vm937, %v1728, %v1721
    %v1740 = vsel %vm938, %v1728, %v1722
    %v1741 = vsel %vm939, %v1728, %v1723
    %v1742 = vsel %vm940, %v1728, %v1724
    %v1743 = vsel %vm941, %v1728, %v1725
    %v1744 = vsel %vm942, %v1728, %v1726
    %s1745 = sld [smem:[#allocation2 + $0x981]]
    %v1746 = vstv %s1745
    %v1747 = vsel %vm961, %v1746, %v1729
    %v1748 = vsel %vm962, %v1746, %v1730
    %v1749 = vsel %vm963, %v1746, %v1731
    %v1750 = vsel %vm964, %v1746, %v1732
    %v1751 = vsel %vm965, %v1746, %v1733
    %v1752 = vsel %vm966, %v1746, %v1734
    %v1753 = vsel %vm967, %v1746, %v1735
    %v1754 = vsel %vm968, %v1746, %v1736
    %v1755 = vsel %vm969, %v1746, %v1737
    %v1756 = vsel %vm970, %v1746, %v1738
    %v1757 = vsel %vm971, %v1746, %v1739
    %v1758 = vsel %vm972, %v1746, %v1740
    %v1759 = vsel %vm973, %v1746, %v1741
    %v1760 = vsel %vm974, %v1746, %v1742
    %v1761 = vsel %vm975, %v1746, %v1743
    %v1762 = vsel %vm976, %v1746, %v1744
    %s1763 = sld [smem:[#allocation2 + $0xa01]]
    %v1764 = vstv %s1763
    %v1765 = vsel %vm995, %v1764, %v1747
    %v1766 = vsel %vm996, %v1764, %v1748
    %v1767 = vsel %vm997, %v1764, %v1749
    %v1768 = vsel %vm998, %v1764, %v1750
    %v1769 = vsel %vm999, %v1764, %v1751
    %v1770 = vsel %vm1000, %v1764, %v1752
    %v1771 = vsel %vm1001, %v1764, %v1753
    %v1772 = vsel %vm1002, %v1764, %v1754
    %v1773 = vsel %vm1003, %v1764, %v1755
    %v1774 = vsel %vm1004, %v1764, %v1756
    %v1775 = vsel %vm1005, %v1764, %v1757
    %v1776 = vsel %vm1006, %v1764, %v1758
    %v1777 = vsel %vm1007, %v1764, %v1759
    %v1778 = vsel %vm1008, %v1764, %v1760
    %v1779 = vsel %vm1009, %v1764, %v1761
    %v1780 = vsel %vm1010, %v1764, %v1762
    %s1781 = sld [smem:[#allocation2 + $0xa81]]
    %v1782 = vstv %s1781
    %v1783 = vsel %vm1029, %v1782, %v1765
    %v1784 = vsel %vm1030, %v1782, %v1766
    %v1785 = vsel %vm1031, %v1782, %v1767
    %v1786 = vsel %vm1032, %v1782, %v1768
    %v1787 = vsel %vm1033, %v1782, %v1769
    %v1788 = vsel %vm1034, %v1782, %v1770
    %v1789 = vsel %vm1035, %v1782, %v1771
    %v1790 = vsel %vm1036, %v1782, %v1772
    %v1791 = vsel %vm1037, %v1782, %v1773
    %v1792 = vsel %vm1038, %v1782, %v1774
    %v1793 = vsel %vm1039, %v1782, %v1775
    %v1794 = vsel %vm1040, %v1782, %v1776
    %v1795 = vsel %vm1041, %v1782, %v1777
    %v1796 = vsel %vm1042, %v1782, %v1778
    %v1797 = vsel %vm1043, %v1782, %v1779
    %v1798 = vsel %vm1044, %v1782, %v1780
    %s1799 = sld [smem:[#allocation2 + $0xb01]]
    %v1800 = vstv %s1799
    %v1801 = vsel %vm1063, %v1800, %v1783
    %v1802 = vsel %vm1064, %v1800, %v1784
    %v1803 = vsel %vm1065, %v1800, %v1785
    %v1804 = vsel %vm1066, %v1800, %v1786
    %v1805 = vsel %vm1067, %v1800, %v1787
    %v1806 = vsel %vm1068, %v1800, %v1788
    %v1807 = vsel %vm1069, %v1800, %v1789
    %v1808 = vsel %vm1070, %v1800, %v1790
    %v1809 = vsel %vm1071, %v1800, %v1791
    %v1810 = vsel %vm1072, %v1800, %v1792
    %v1811 = vsel %vm1073, %v1800, %v1793
    %v1812 = vsel %vm1074, %v1800, %v1794
    %v1813 = vsel %vm1075, %v1800, %v1795
    %v1814 = vsel %vm1076, %v1800, %v1796
    %v1815 = vsel %vm1077, %v1800, %v1797
    %v1816 = vsel %vm1078, %v1800, %v1798
    %s1817 = sld [smem:[#allocation2 + $0xb81]]
    %v1818 = vstv %s1817
    %v1819 = vsel %vm1097, %v1818, %v1801
    %v1820 = vsel %vm1098, %v1818, %v1802
    %v1821 = vsel %vm1099, %v1818, %v1803
    %v1822 = vsel %vm1100, %v1818, %v1804
    %v1823 = vsel %vm1101, %v1818, %v1805
    %v1824 = vsel %vm1102, %v1818, %v1806
    %v1825 = vsel %vm1103, %v1818, %v1807
    %v1826 = vsel %vm1104, %v1818, %v1808
    %v1827 = vsel %vm1105, %v1818, %v1809
    %v1828 = vsel %vm1106, %v1818, %v1810
    %v1829 = vsel %vm1107, %v1818, %v1811
    %v1830 = vsel %vm1108, %v1818, %v1812
    %v1831 = vsel %vm1109, %v1818, %v1813
    %v1832 = vsel %vm1110, %v1818, %v1814
    %v1833 = vsel %vm1111, %v1818, %v1815
    %v1834 = vsel %vm1112, %v1818, %v1816
    %s1835 = sld [smem:[#allocation2 + $0xc01]]
    %v1836 = vstv %s1835
    %v1837 = vsel %vm1131, %v1836, %v1819
    %v1838 = vsel %vm1132, %v1836, %v1820
    %v1839 = vsel %vm1133, %v1836, %v1821
    %v1840 = vsel %vm1134, %v1836, %v1822
    %v1841 = vsel %vm1135, %v1836, %v1823
    %v1842 = vsel %vm1136, %v1836, %v1824
    %v1843 = vsel %vm1137, %v1836, %v1825
    %v1844 = vsel %vm1138, %v1836, %v1826
    %v1845 = vsel %vm1139, %v1836, %v1827
    %v1846 = vsel %vm1140, %v1836, %v1828
    %v1847 = vsel %vm1141, %v1836, %v1829
    %v1848 = vsel %vm1142, %v1836, %v1830
    %v1849 = vsel %vm1143, %v1836, %v1831
    %v1850 = vsel %vm1144, %v1836, %v1832
    %v1851 = vsel %vm1145, %v1836, %v1833
    %v1852 = vsel %vm1146, %v1836, %v1834
    %s1853 = sld [smem:[#allocation2 + $0xc81]]
    %v1854 = vstv %s1853
    %v1855 = vsel %vm1165, %v1854, %v1837
    %v1856 = vsel %vm1166, %v1854, %v1838
    %v1857 = vsel %vm1167, %v1854, %v1839
    %v1858 = vsel %vm1168, %v1854, %v1840
    %v1859 = vsel %vm1169, %v1854, %v1841
    %v1860 = vsel %vm1170, %v1854, %v1842
    %v1861 = vsel %vm1171, %v1854, %v1843
    %v1862 = vsel %vm1172, %v1854, %v1844
    %v1863 = vsel %vm1173, %v1854, %v1845
    %v1864 = vsel %vm1174, %v1854, %v1846
    %v1865 = vsel %vm1175, %v1854, %v1847
    %v1866 = vsel %vm1176, %v1854, %v1848
    %v1867 = vsel %vm1177, %v1854, %v1849
    %v1868 = vsel %vm1178, %v1854, %v1850
    %v1869 = vsel %vm1179, %v1854, %v1851
    %v1870 = vsel %vm1180, %v1854, %v1852
    %s1871 = sld [smem:[#allocation2 + $0xd01]]
    %v1872 = vstv %s1871
    %v1873 = vsel %vm1199, %v1872, %v1855
    %v1874 = vsel %vm1200, %v1872, %v1856
    %v1875 = vsel %vm1201, %v1872, %v1857
    %v1876 = vsel %vm1202, %v1872, %v1858
    %v1877 = vsel %vm1203, %v1872, %v1859
    %v1878 = vsel %vm1204, %v1872, %v1860
    %v1879 = vsel %vm1205, %v1872, %v1861
    %v1880 = vsel %vm1206, %v1872, %v1862
    %v1881 = vsel %vm1207, %v1872, %v1863
    %v1882 = vsel %vm1208, %v1872, %v1864
    %v1883 = vsel %vm1209, %v1872, %v1865
    %v1884 = vsel %vm1210, %v1872, %v1866
    %v1885 = vsel %vm1211, %v1872, %v1867
    %v1886 = vsel %vm1212, %v1872, %v1868
    %v1887 = vsel %vm1213, %v1872, %v1869
    %v1888 = vsel %vm1214, %v1872, %v1870
    %s1889 = sld [smem:[#allocation2 + $0xd81]]
    %v1890 = vstv %s1889
    %v1891 = vsel %vm1233, %v1890, %v1873
    %v1892 = vsel %vm1234, %v1890, %v1874
    %v1893 = vsel %vm1235, %v1890, %v1875
    %v1894 = vsel %vm1236, %v1890, %v1876
    %v1895 = vsel %vm1237, %v1890, %v1877
    %v1896 = vsel %vm1238, %v1890, %v1878
    %v1897 = vsel %vm1239, %v1890, %v1879
    %v1898 = vsel %vm1240, %v1890, %v1880
    %v1899 = vsel %vm1241, %v1890, %v1881
    %v1900 = vsel %vm1242, %v1890, %v1882
    %v1901 = vsel %vm1243, %v1890, %v1883
    %v1902 = vsel %vm1244, %v1890, %v1884
    %v1903 = vsel %vm1245, %v1890, %v1885
    %v1904 = vsel %vm1246, %v1890, %v1886
    %v1905 = vsel %vm1247, %v1890, %v1887
    %v1906 = vsel %vm1248, %v1890, %v1888
    %s1907 = sld [smem:[#allocation2 + $0xe01]]
    %v1908 = vstv %s1907
    %v1909 = vsel %vm1267, %v1908, %v1891
    %v1910 = vsel %vm1268, %v1908, %v1892
    %v1911 = vsel %vm1269, %v1908, %v1893
    %v1912 = vsel %vm1270, %v1908, %v1894
    %v1913 = vsel %vm1271, %v1908, %v1895
    %v1914 = vsel %vm1272, %v1908, %v1896
    %v1915 = vsel %vm1273, %v1908, %v1897
    %v1916 = vsel %vm1274, %v1908, %v1898
    %v1917 = vsel %vm1275, %v1908, %v1899
    %v1918 = vsel %vm1276, %v1908, %v1900
    %v1919 = vsel %vm1277, %v1908, %v1901
    %v1920 = vsel %vm1278, %v1908, %v1902
    %v1921 = vsel %vm1279, %v1908, %v1903
    %v1922 = vsel %vm1280, %v1908, %v1904
    %v1923 = vsel %vm1281, %v1908, %v1905
    %v1924 = vsel %vm1282, %v1908, %v1906
    %s1925 = sld [smem:[#allocation2 + $0xe81]]
    %v1926 = vstv %s1925
    %v1927 = vsel %vm1301, %v1926, %v1909
    %v1928 = vsel %vm1302, %v1926, %v1910
    %v1929 = vsel %vm1303, %v1926, %v1911
    %v1930 = vsel %vm1304, %v1926, %v1912
    %v1931 = vsel %vm1305, %v1926, %v1913
    %v1932 = vsel %vm1306, %v1926, %v1914
    %v1933 = vsel %vm1307, %v1926, %v1915
    %v1934 = vsel %vm1308, %v1926, %v1916
    %v1935 = vsel %vm1309, %v1926, %v1917
    %v1936 = vsel %vm1310, %v1926, %v1918
    %v1937 = vsel %vm1311, %v1926, %v1919
    %v1938 = vsel %vm1312, %v1926, %v1920
    %v1939 = vsel %vm1313, %v1926, %v1921
    %v1940 = vsel %vm1314, %v1926, %v1922
    %v1941 = vsel %vm1315, %v1926, %v1923
    %v1942 = vsel %vm1316, %v1926, %v1924
    %s1943 = sld [smem:[#allocation2 + $0xf01]]
    %v1944 = vstv %s1943
    %v1945 = vsel %vm1335, %v1944, %v1927
    %v1946 = vsel %vm1336, %v1944, %v1928
    %v1947 = vsel %vm1337, %v1944, %v1929
    %v1948 = vsel %vm1338, %v1944, %v1930
    %v1949 = vsel %vm1339, %v1944, %v1931
    %v1950 = vsel %vm1340, %v1944, %v1932
    %v1951 = vsel %vm1341, %v1944, %v1933
    %v1952 = vsel %vm1342, %v1944, %v1934
    %v1953 = vsel %vm1343, %v1944, %v1935
    %v1954 = vsel %vm1344, %v1944, %v1936
    %v1955 = vsel %vm1345, %v1944, %v1937
    %v1956 = vsel %vm1346, %v1944, %v1938
    %v1957 = vsel %vm1347, %v1944, %v1939
    %v1958 = vsel %vm1348, %v1944, %v1940
    %v1959 = vsel %vm1349, %v1944, %v1941
    %v1960 = vsel %vm1350, %v1944, %v1942
    %s1961 = sld [smem:[#allocation2 + $0xf81]]
    %v1962 = vstv %s1961
    %v1963 = vsel %vm1369, %v1962, %v1945
    %v1964 = vsel %vm1370, %v1962, %v1946
    %v1965 = vsel %vm1371, %v1962, %v1947
    %v1966 = vsel %vm1372, %v1962, %v1948
    %v1967 = vsel %vm1373, %v1962, %v1949
    %v1968 = vsel %vm1374, %v1962, %v1950
    %v1969 = vsel %vm1375, %v1962, %v1951
    %v1970 = vsel %vm1376, %v1962, %v1952
    %v1971 = vsel %vm1377, %v1962, %v1953
    %v1972 = vsel %vm1378, %v1962, %v1954
    %v1973 = vsel %vm1379, %v1962, %v1955
    %v1974 = vsel %vm1380, %v1962, %v1956
    %v1975 = vsel %vm1381, %v1962, %v1957
    %v1976 = vsel %vm1382, %v1962, %v1958
    %v1977 = vsel %vm1383, %v1962, %v1959
    %v1978 = vsel %vm1384, %v1962, %v1960
    %s1979 = scalar_lea.vmem [#allocation5], 128
    %1980 = vst [vmem:[%s1979] sm:$0xff] %v1963
    %1981 = vst [vmem:[%s1979 + $0x8] sm:$0xff] %v1964
    %1982 = vst [vmem:[%s1979 + $0x10] sm:$0xff] %v1965
    %1983 = vst [vmem:[%s1979 + $0x18] sm:$0xff] %v1966
    %1984 = vst [vmem:[%s1979 + $0x20] sm:$0xff] %v1967
    %1985 = vst [vmem:[%s1979 + $0x28] sm:$0xff] %v1968
    %1986 = vst [vmem:[%s1979 + $0x30] sm:$0xff] %v1969
    %1987 = vst [vmem:[%s1979 + $0x38] sm:$0xff] %v1970
    %1988 = vst [vmem:[%s1979 + $0x40] sm:$0xff] %v1971
    %1989 = vst [vmem:[%s1979 + $0x48] sm:$0xff] %v1972
    %1990 = vst [vmem:[%s1979 + $0x50] sm:$0xff] %v1973
    %1991 = vst [vmem:[%s1979 + $0x58] sm:$0xff] %v1974
    %1992 = vst [vmem:[%s1979 + $0x60] sm:$0xff] %v1975
    %1993 = vst [vmem:[%s1979 + $0x68] sm:$0xff] %v1976
    %1994 = vst [vmem:[%s1979 + $0x70] sm:$0xff] %v1977
    %1995 = vst [vmem:[%s1979 + $0x78] sm:$0xff] %v1978
    %s1996 = sld [smem:[#allocation2 + $0x2]]
    %v1997 = vstv %s1996
    %s1998 = sld [smem:[#allocation2 + $0x82]]
    %v1999 = vstv %s1998
    %v2000 = vsel %vm349, %v1999, %v1997
    %v2001 = vsel %vm350, %v1999, %v1997
    %v2002 = vsel %vm351, %v1999, %v1997
    %v2003 = vsel %vm352, %v1999, %v1997
    %v2004 = vsel %vm353, %v1999, %v1997
    %v2005 = vsel %vm354, %v1999, %v1997
    %v2006 = vsel %vm355, %v1999, %v1997
    %v2007 = vsel %vm356, %v1999, %v1997
    %v2008 = vsel %vm357, %v1999, %v1997
    %v2009 = vsel %vm358, %v1999, %v1997
    %v2010 = vsel %vm359, %v1999, %v1997
    %v2011 = vsel %vm360, %v1999, %v1997
    %v2012 = vsel %vm361, %v1999, %v1997
    %v2013 = vsel %vm362, %v1999, %v1997
    %v2014 = vsel %vm363, %v1999, %v1997
    %v2015 = vsel %vm364, %v1999, %v1997
    %s2016 = sld [smem:[#allocation2 + $0x102]]
    %v2017 = vstv %s2016
    %v2018 = vsel %vm383, %v2017, %v2000
    %v2019 = vsel %vm384, %v2017, %v2001
    %v2020 = vsel %vm385, %v2017, %v2002
    %v2021 = vsel %vm386, %v2017, %v2003
    %v2022 = vsel %vm387, %v2017, %v2004
    %v2023 = vsel %vm388, %v2017, %v2005
    %v2024 = vsel %vm389, %v2017, %v2006
    %v2025 = vsel %vm390, %v2017, %v2007
    %v2026 = vsel %vm391, %v2017, %v2008
    %v2027 = vsel %vm392, %v2017, %v2009
    %v2028 = vsel %vm393, %v2017, %v2010
    %v2029 = vsel %vm394, %v2017, %v2011
    %v2030 = vsel %vm395, %v2017, %v2012
    %v2031 = vsel %vm396, %v2017, %v2013
    %v2032 = vsel %vm397, %v2017, %v2014
    %v2033 = vsel %vm398, %v2017, %v2015
    %s2034 = sld [smem:[#allocation2 + $0x182]]
    %v2035 = vstv %s2034
    %v2036 = vsel %vm417, %v2035, %v2018
    %v2037 = vsel %vm418, %v2035, %v2019
    %v2038 = vsel %vm419, %v2035, %v2020
    %v2039 = vsel %vm420, %v2035, %v2021
    %v2040 = vsel %vm421, %v2035, %v2022
    %v2041 = vsel %vm422, %v2035, %v2023
    %v2042 = vsel %vm423, %v2035, %v2024
    %v2043 = vsel %vm424, %v2035, %v2025
    %v2044 = vsel %vm425, %v2035, %v2026
    %v2045 = vsel %vm426, %v2035, %v2027
    %v2046 = vsel %vm427, %v2035, %v2028
    %v2047 = vsel %vm428, %v2035, %v2029
    %v2048 = vsel %vm429, %v2035, %v2030
    %v2049 = vsel %vm430, %v2035, %v2031
    %v2050 = vsel %vm431, %v2035, %v2032
    %v2051 = vsel %vm432, %v2035, %v2033
    %s2052 = sld [smem:[#allocation2 + $0x202]]
    %v2053 = vstv %s2052
    %v2054 = vsel %vm451, %v2053, %v2036
    %v2055 = vsel %vm452, %v2053, %v2037
    %v2056 = vsel %vm453, %v2053, %v2038
    %v2057 = vsel %vm454, %v2053, %v2039
    %v2058 = vsel %vm455, %v2053, %v2040
    %v2059 = vsel %vm456, %v2053, %v2041
    %v2060 = vsel %vm457, %v2053, %v2042
    %v2061 = vsel %vm458, %v2053, %v2043
    %v2062 = vsel %vm459, %v2053, %v2044
    %v2063 = vsel %vm460, %v2053, %v2045
    %v2064 = vsel %vm461, %v2053, %v2046
    %v2065 = vsel %vm462, %v2053, %v2047
    %v2066 = vsel %vm463, %v2053, %v2048
    %v2067 = vsel %vm464, %v2053, %v2049
    %v2068 = vsel %vm465, %v2053, %v2050
    %v2069 = vsel %vm466, %v2053, %v2051
    %s2070 = sld [smem:[#allocation2 + $0x282]]
    %v2071 = vstv %s2070
    %v2072 = vsel %vm485, %v2071, %v2054
    %v2073 = vsel %vm486, %v2071, %v2055
    %v2074 = vsel %vm487, %v2071, %v2056
    %v2075 = vsel %vm488, %v2071, %v2057
    %v2076 = vsel %vm489, %v2071, %v2058
    %v2077 = vsel %vm490, %v2071, %v2059
    %v2078 = vsel %vm491, %v2071, %v2060
    %v2079 = vsel %vm492, %v2071, %v2061
    %v2080 = vsel %vm493, %v2071, %v2062
    %v2081 = vsel %vm494, %v2071, %v2063
    %v2082 = vsel %vm495, %v2071, %v2064
    %v2083 = vsel %vm496, %v2071, %v2065
    %v2084 = vsel %vm497, %v2071, %v2066
    %v2085 = vsel %vm498, %v2071, %v2067
    %v2086 = vsel %vm499, %v2071, %v2068
    %v2087 = vsel %vm500, %v2071, %v2069
    %s2088 = sld [smem:[#allocation2 + $0x302]]
    %v2089 = vstv %s2088
    %v2090 = vsel %vm519, %v2089, %v2072
    %v2091 = vsel %vm520, %v2089, %v2073
    %v2092 = vsel %vm521, %v2089, %v2074
    %v2093 = vsel %vm522, %v2089, %v2075
    %v2094 = vsel %vm523, %v2089, %v2076
    %v2095 = vsel %vm524, %v2089, %v2077
    %v2096 = vsel %vm525, %v2089, %v2078
    %v2097 = vsel %vm526, %v2089, %v2079
    %v2098 = vsel %vm527, %v2089, %v2080
    %v2099 = vsel %vm528, %v2089, %v2081
    %v2100 = vsel %vm529, %v2089, %v2082
    %v2101 = vsel %vm530, %v2089, %v2083
    %v2102 = vsel %vm531, %v2089, %v2084
    %v2103 = vsel %vm532, %v2089, %v2085
    %v2104 = vsel %vm533, %v2089, %v2086
    %v2105 = vsel %vm534, %v2089, %v2087
    %s2106 = sld [smem:[#allocation2 + $0x382]]
    %v2107 = vstv %s2106
    %v2108 = vsel %vm553, %v2107, %v2090
    %v2109 = vsel %vm554, %v2107, %v2091
    %v2110 = vsel %vm555, %v2107, %v2092
    %v2111 = vsel %vm556, %v2107, %v2093
    %v2112 = vsel %vm557, %v2107, %v2094
    %v2113 = vsel %vm558, %v2107, %v2095
    %v2114 = vsel %vm559, %v2107, %v2096
    %v2115 = vsel %vm560, %v2107, %v2097
    %v2116 = vsel %vm561, %v2107, %v2098
    %v2117 = vsel %vm562, %v2107, %v2099
    %v2118 = vsel %vm563, %v2107, %v2100
    %v2119 = vsel %vm564, %v2107, %v2101
    %v2120 = vsel %vm565, %v2107, %v2102
    %v2121 = vsel %vm566, %v2107, %v2103
    %v2122 = vsel %vm567, %v2107, %v2104
    %v2123 = vsel %vm568, %v2107, %v2105
    %s2124 = sld [smem:[#allocation2 + $0x402]]
    %v2125 = vstv %s2124
    %v2126 = vsel %vm587, %v2125, %v2108
    %v2127 = vsel %vm588, %v2125, %v2109
    %v2128 = vsel %vm589, %v2125, %v2110
    %v2129 = vsel %vm590, %v2125, %v2111
    %v2130 = vsel %vm591, %v2125, %v2112
    %v2131 = vsel %vm592, %v2125, %v2113
    %v2132 = vsel %vm593, %v2125, %v2114
    %v2133 = vsel %vm594, %v2125, %v2115
    %v2134 = vsel %vm595, %v2125, %v2116
    %v2135 = vsel %vm596, %v2125, %v2117
    %v2136 = vsel %vm597, %v2125, %v2118
    %v2137 = vsel %vm598, %v2125, %v2119
    %v2138 = vsel %vm599, %v2125, %v2120
    %v2139 = vsel %vm600, %v2125, %v2121
    %v2140 = vsel %vm601, %v2125, %v2122
    %v2141 = vsel %vm602, %v2125, %v2123
    %s2142 = sld [smem:[#allocation2 + $0x482]]
    %v2143 = vstv %s2142
    %v2144 = vsel %vm621, %v2143, %v2126
    %v2145 = vsel %vm622, %v2143, %v2127
    %v2146 = vsel %vm623, %v2143, %v2128
    %v2147 = vsel %vm624, %v2143, %v2129
    %v2148 = vsel %vm625, %v2143, %v2130
    %v2149 = vsel %vm626, %v2143, %v2131
    %v2150 = vsel %vm627, %v2143, %v2132
    %v2151 = vsel %vm628, %v2143, %v2133
    %v2152 = vsel %vm629, %v2143, %v2134
    %v2153 = vsel %vm630, %v2143, %v2135
    %v2154 = vsel %vm631, %v2143, %v2136
    %v2155 = vsel %vm632, %v2143, %v2137
    %v2156 = vsel %vm633, %v2143, %v2138
    %v2157 = vsel %vm634, %v2143, %v2139
    %v2158 = vsel %vm635, %v2143, %v2140
    %v2159 = vsel %vm636, %v2143, %v2141
    %s2160 = sld [smem:[#allocation2 + $0x502]]
    %v2161 = vstv %s2160
    %v2162 = vsel %vm655, %v2161, %v2144
    %v2163 = vsel %vm656, %v2161, %v2145
    %v2164 = vsel %vm657, %v2161, %v2146
    %v2165 = vsel %vm658, %v2161, %v2147
    %v2166 = vsel %vm659, %v2161, %v2148
    %v2167 = vsel %vm660, %v2161, %v2149
    %v2168 = vsel %vm661, %v2161, %v2150
    %v2169 = vsel %vm662, %v2161, %v2151
    %v2170 = vsel %vm663, %v2161, %v2152
    %v2171 = vsel %vm664, %v2161, %v2153
    %v2172 = vsel %vm665, %v2161, %v2154
    %v2173 = vsel %vm666, %v2161, %v2155
    %v2174 = vsel %vm667, %v2161, %v2156
    %v2175 = vsel %vm668, %v2161, %v2157
    %v2176 = vsel %vm669, %v2161, %v2158
    %v2177 = vsel %vm670, %v2161, %v2159
    %s2178 = sld [smem:[#allocation2 + $0x582]]
    %v2179 = vstv %s2178
    %v2180 = vsel %vm689, %v2179, %v2162
    %v2181 = vsel %vm690, %v2179, %v2163
    %v2182 = vsel %vm691, %v2179, %v2164
    %v2183 = vsel %vm692, %v2179, %v2165
    %v2184 = vsel %vm693, %v2179, %v2166
    %v2185 = vsel %vm694, %v2179, %v2167
    %v2186 = vsel %vm695, %v2179, %v2168
    %v2187 = vsel %vm696, %v2179, %v2169
    %v2188 = vsel %vm697, %v2179, %v2170
    %v2189 = vsel %vm698, %v2179, %v2171
    %v2190 = vsel %vm699, %v2179, %v2172
    %v2191 = vsel %vm700, %v2179, %v2173
    %v2192 = vsel %vm701, %v2179, %v2174
    %v2193 = vsel %vm702, %v2179, %v2175
    %v2194 = vsel %vm703, %v2179, %v2176
    %v2195 = vsel %vm704, %v2179, %v2177
    %s2196 = sld [smem:[#allocation2 + $0x602]]
    %v2197 = vstv %s2196
    %v2198 = vsel %vm723, %v2197, %v2180
    %v2199 = vsel %vm724, %v2197, %v2181
    %v2200 = vsel %vm725, %v2197, %v2182
    %v2201 = vsel %vm726, %v2197, %v2183
    %v2202 = vsel %vm727, %v2197, %v2184
    %v2203 = vsel %vm728, %v2197, %v2185
    %v2204 = vsel %vm729, %v2197, %v2186
    %v2205 = vsel %vm730, %v2197, %v2187
    %v2206 = vsel %vm731, %v2197, %v2188
    %v2207 = vsel %vm732, %v2197, %v2189
    %v2208 = vsel %vm733, %v2197, %v2190
    %v2209 = vsel %vm734, %v2197, %v2191
    %v2210 = vsel %vm735, %v2197, %v2192
    %v2211 = vsel %vm736, %v2197, %v2193
    %v2212 = vsel %vm737, %v2197, %v2194
    %v2213 = vsel %vm738, %v2197, %v2195
    %s2214 = sld [smem:[#allocation2 + $0x682]]
    %v2215 = vstv %s2214
    %v2216 = vsel %vm757, %v2215, %v2198
    %v2217 = vsel %vm758, %v2215, %v2199
    %v2218 = vsel %vm759, %v2215, %v2200
    %v2219 = vsel %vm760, %v2215, %v2201
    %v2220 = vsel %vm761, %v2215, %v2202
    %v2221 = vsel %vm762, %v2215, %v2203
    %v2222 = vsel %vm763, %v2215, %v2204
    %v2223 = vsel %vm764, %v2215, %v2205
    %v2224 = vsel %vm765, %v2215, %v2206
    %v2225 = vsel %vm766, %v2215, %v2207
    %v2226 = vsel %vm767, %v2215, %v2208
    %v2227 = vsel %vm768, %v2215, %v2209
    %v2228 = vsel %vm769, %v2215, %v2210
    %v2229 = vsel %vm770, %v2215, %v2211
    %v2230 = vsel %vm771, %v2215, %v2212
    %v2231 = vsel %vm772, %v2215, %v2213
    %s2232 = sld [smem:[#allocation2 + $0x702]]
    %v2233 = vstv %s2232
    %v2234 = vsel %vm791, %v2233, %v2216
    %v2235 = vsel %vm792, %v2233, %v2217
    %v2236 = vsel %vm793, %v2233, %v2218
    %v2237 = vsel %vm794, %v2233, %v2219
    %v2238 = vsel %vm795, %v2233, %v2220
    %v2239 = vsel %vm796, %v2233, %v2221
    %v2240 = vsel %vm797, %v2233, %v2222
    %v2241 = vsel %vm798, %v2233, %v2223
    %v2242 = vsel %vm799, %v2233, %v2224
    %v2243 = vsel %vm800, %v2233, %v2225
    %v2244 = vsel %vm801, %v2233, %v2226
    %v2245 = vsel %vm802, %v2233, %v2227
    %v2246 = vsel %vm803, %v2233, %v2228
    %v2247 = vsel %vm804, %v2233, %v2229
    %v2248 = vsel %vm805, %v2233, %v2230
    %v2249 = vsel %vm806, %v2233, %v2231
    %s2250 = sld [smem:[#allocation2 + $0x782]]
    %v2251 = vstv %s2250
    %v2252 = vsel %vm825, %v2251, %v2234
    %v2253 = vsel %vm826, %v2251, %v2235
    %v2254 = vsel %vm827, %v2251, %v2236
    %v2255 = vsel %vm828, %v2251, %v2237
    %v2256 = vsel %vm829, %v2251, %v2238
    %v2257 = vsel %vm830, %v2251, %v2239
    %v2258 = vsel %vm831, %v2251, %v2240
    %v2259 = vsel %vm832, %v2251, %v2241
    %v2260 = vsel %vm833, %v2251, %v2242
    %v2261 = vsel %vm834, %v2251, %v2243
    %v2262 = vsel %vm835, %v2251, %v2244
    %v2263 = vsel %vm836, %v2251, %v2245
    %v2264 = vsel %vm837, %v2251, %v2246
    %v2265 = vsel %vm838, %v2251, %v2247
    %v2266 = vsel %vm839, %v2251, %v2248
    %v2267 = vsel %vm840, %v2251, %v2249
    %s2268 = sld [smem:[#allocation2 + $0x802]]
    %v2269 = vstv %s2268
    %v2270 = vsel %vm859, %v2269, %v2252
    %v2271 = vsel %vm860, %v2269, %v2253
    %v2272 = vsel %vm861, %v2269, %v2254
    %v2273 = vsel %vm862, %v2269, %v2255
    %v2274 = vsel %vm863, %v2269, %v2256
    %v2275 = vsel %vm864, %v2269, %v2257
    %v2276 = vsel %vm865, %v2269, %v2258
    %v2277 = vsel %vm866, %v2269, %v2259
    %v2278 = vsel %vm867, %v2269, %v2260
    %v2279 = vsel %vm868, %v2269, %v2261
    %v2280 = vsel %vm869, %v2269, %v2262
    %v2281 = vsel %vm870, %v2269, %v2263
    %v2282 = vsel %vm871, %v2269, %v2264
    %v2283 = vsel %vm872, %v2269, %v2265
    %v2284 = vsel %vm873, %v2269, %v2266
    %v2285 = vsel %vm874, %v2269, %v2267
    %s2286 = sld [smem:[#allocation2 + $0x882]]
    %v2287 = vstv %s2286
    %v2288 = vsel %vm893, %v2287, %v2270
    %v2289 = vsel %vm894, %v2287, %v2271
    %v2290 = vsel %vm895, %v2287, %v2272
    %v2291 = vsel %vm896, %v2287, %v2273
    %v2292 = vsel %vm897, %v2287, %v2274
    %v2293 = vsel %vm898, %v2287, %v2275
    %v2294 = vsel %vm899, %v2287, %v2276
    %v2295 = vsel %vm900, %v2287, %v2277
    %v2296 = vsel %vm901, %v2287, %v2278
    %v2297 = vsel %vm902, %v2287, %v2279
    %v2298 = vsel %vm903, %v2287, %v2280
    %v2299 = vsel %vm904, %v2287, %v2281
    %v2300 = vsel %vm905, %v2287, %v2282
    %v2301 = vsel %vm906, %v2287, %v2283
    %v2302 = vsel %vm907, %v2287, %v2284
    %v2303 = vsel %vm908, %v2287, %v2285
    %s2304 = sld [smem:[#allocation2 + $0x902]]
    %v2305 = vstv %s2304
    %v2306 = vsel %vm927, %v2305, %v2288
    %v2307 = vsel %vm928, %v2305, %v2289
    %v2308 = vsel %vm929, %v2305, %v2290
    %v2309 = vsel %vm930, %v2305, %v2291
    %v2310 = vsel %vm931, %v2305, %v2292
    %v2311 = vsel %vm932, %v2305, %v2293
    %v2312 = vsel %vm933, %v2305, %v2294
    %v2313 = vsel %vm934, %v2305, %v2295
    %v2314 = vsel %vm935, %v2305, %v2296
    %v2315 = vsel %vm936, %v2305, %v2297
    %v2316 = vsel %vm937, %v2305, %v2298
    %v2317 = vsel %vm938, %v2305, %v2299
    %v2318 = vsel %vm939, %v2305, %v2300
    %v2319 = vsel %vm940, %v2305, %v2301
    %v2320 = vsel %vm941, %v2305, %v2302
    %v2321 = vsel %vm942, %v2305, %v2303
    %s2322 = sld [smem:[#allocation2 + $0x982]]
    %v2323 = vstv %s2322
    %v2324 = vsel %vm961, %v2323, %v2306
    %v2325 = vsel %vm962, %v2323, %v2307
    %v2326 = vsel %vm963, %v2323, %v2308
    %v2327 = vsel %vm964, %v2323, %v2309
    %v2328 = vsel %vm965, %v2323, %v2310
    %v2329 = vsel %vm966, %v2323, %v2311
    %v2330 = vsel %vm967, %v2323, %v2312
    %v2331 = vsel %vm968, %v2323, %v2313
    %v2332 = vsel %vm969, %v2323, %v2314
    %v2333 = vsel %vm970, %v2323, %v2315
    %v2334 = vsel %vm971, %v2323, %v2316
    %v2335 = vsel %vm972, %v2323, %v2317
    %v2336 = vsel %vm973, %v2323, %v2318
    %v2337 = vsel %vm974, %v2323, %v2319
    %v2338 = vsel %vm975, %v2323, %v2320
    %v2339 = vsel %vm976, %v2323, %v2321
    %s2340 = sld [smem:[#allocation2 + $0xa02]]
    %v2341 = vstv %s2340
    %v2342 = vsel %vm995, %v2341, %v2324
    %v2343 = vsel %vm996, %v2341, %v2325
    %v2344 = vsel %vm997, %v2341, %v2326
    %v2345 = vsel %vm998, %v2341, %v2327
    %v2346 = vsel %vm999, %v2341, %v2328
    %v2347 = vsel %vm1000, %v2341, %v2329
    %v2348 = vsel %vm1001, %v2341, %v2330
    %v2349 = vsel %vm1002, %v2341, %v2331
    %v2350 = vsel %vm1003, %v2341, %v2332
    %v2351 = vsel %vm1004, %v2341, %v2333
    %v2352 = vsel %vm1005, %v2341, %v2334
    %v2353 = vsel %vm1006, %v2341, %v2335
    %v2354 = vsel %vm1007, %v2341, %v2336
    %v2355 = vsel %vm1008, %v2341, %v2337
    %v2356 = vsel %vm1009, %v2341, %v2338
    %v2357 = vsel %vm1010, %v2341, %v2339
    %s2358 = sld [smem:[#allocation2 + $0xa82]]
    %v2359 = vstv %s2358
    %v2360 = vsel %vm1029, %v2359, %v2342
    %v2361 = vsel %vm1030, %v2359, %v2343
    %v2362 = vsel %vm1031, %v2359, %v2344
    %v2363 = vsel %vm1032, %v2359, %v2345
    %v2364 = vsel %vm1033, %v2359, %v2346
    %v2365 = vsel %vm1034, %v2359, %v2347
    %v2366 = vsel %vm1035, %v2359, %v2348
    %v2367 = vsel %vm1036, %v2359, %v2349
    %v2368 = vsel %vm1037, %v2359, %v2350
    %v2369 = vsel %vm1038, %v2359, %v2351
    %v2370 = vsel %vm1039, %v2359, %v2352
    %v2371 = vsel %vm1040, %v2359, %v2353
    %v2372 = vsel %vm1041, %v2359, %v2354
    %v2373 = vsel %vm1042, %v2359, %v2355
    %v2374 = vsel %vm1043, %v2359, %v2356
    %v2375 = vsel %vm1044, %v2359, %v2357
    %s2376 = sld [smem:[#allocation2 + $0xb02]]
    %v2377 = vstv %s2376
    %v2378 = vsel %vm1063, %v2377, %v2360
    %v2379 = vsel %vm1064, %v2377, %v2361
    %v2380 = vsel %vm1065, %v2377, %v2362
    %v2381 = vsel %vm1066, %v2377, %v2363
    %v2382 = vsel %vm1067, %v2377, %v2364
    %v2383 = vsel %vm1068, %v2377, %v2365
    %v2384 = vsel %vm1069, %v2377, %v2366
    %v2385 = vsel %vm1070, %v2377, %v2367
    %v2386 = vsel %vm1071, %v2377, %v2368
    %v2387 = vsel %vm1072, %v2377, %v2369
    %v2388 = vsel %vm1073, %v2377, %v2370
    %v2389 = vsel %vm1074, %v2377, %v2371
    %v2390 = vsel %vm1075, %v2377, %v2372
    %v2391 = vsel %vm1076, %v2377, %v2373
    %v2392 = vsel %vm1077, %v2377, %v2374
    %v2393 = vsel %vm1078, %v2377, %v2375
    %s2394 = sld [smem:[#allocation2 + $0xb82]]
    %v2395 = vstv %s2394
    %v2396 = vsel %vm1097, %v2395, %v2378
    %v2397 = vsel %vm1098, %v2395, %v2379
    %v2398 = vsel %vm1099, %v2395, %v2380
    %v2399 = vsel %vm1100, %v2395, %v2381
    %v2400 = vsel %vm1101, %v2395, %v2382
    %v2401 = vsel %vm1102, %v2395, %v2383
    %v2402 = vsel %vm1103, %v2395, %v2384
    %v2403 = vsel %vm1104, %v2395, %v2385
    %v2404 = vsel %vm1105, %v2395, %v2386
    %v2405 = vsel %vm1106, %v2395, %v2387
    %v2406 = vsel %vm1107, %v2395, %v2388
    %v2407 = vsel %vm1108, %v2395, %v2389
    %v2408 = vsel %vm1109, %v2395, %v2390
    %v2409 = vsel %vm1110, %v2395, %v2391
    %v2410 = vsel %vm1111, %v2395, %v2392
    %v2411 = vsel %vm1112, %v2395, %v2393
    %s2412 = sld [smem:[#allocation2 + $0xc02]]
    %v2413 = vstv %s2412
    %v2414 = vsel %vm1131, %v2413, %v2396
    %v2415 = vsel %vm1132, %v2413, %v2397
    %v2416 = vsel %vm1133, %v2413, %v2398
    %v2417 = vsel %vm1134, %v2413, %v2399
    %v2418 = vsel %vm1135, %v2413, %v2400
    %v2419 = vsel %vm1136, %v2413, %v2401
    %v2420 = vsel %vm1137, %v2413, %v2402
    %v2421 = vsel %vm1138, %v2413, %v2403
    %v2422 = vsel %vm1139, %v2413, %v2404
    %v2423 = vsel %vm1140, %v2413, %v2405
    %v2424 = vsel %vm1141, %v2413, %v2406
    %v2425 = vsel %vm1142, %v2413, %v2407
    %v2426 = vsel %vm1143, %v2413, %v2408
    %v2427 = vsel %vm1144, %v2413, %v2409
    %v2428 = vsel %vm1145, %v2413, %v2410
    %v2429 = vsel %vm1146, %v2413, %v2411
    %s2430 = sld [smem:[#allocation2 + $0xc82]]
    %v2431 = vstv %s2430
    %v2432 = vsel %vm1165, %v2431, %v2414
    %v2433 = vsel %vm1166, %v2431, %v2415
    %v2434 = vsel %vm1167, %v2431, %v2416
    %v2435 = vsel %vm1168, %v2431, %v2417
    %v2436 = vsel %vm1169, %v2431, %v2418
    %v2437 = vsel %vm1170, %v2431, %v2419
    %v2438 = vsel %vm1171, %v2431, %v2420
    %v2439 = vsel %vm1172, %v2431, %v2421
    %v2440 = vsel %vm1173, %v2431, %v2422
    %v2441 = vsel %vm1174, %v2431, %v2423
    %v2442 = vsel %vm1175, %v2431, %v2424
    %v2443 = vsel %vm1176, %v2431, %v2425
    %v2444 = vsel %vm1177, %v2431, %v2426
    %v2445 = vsel %vm1178, %v2431, %v2427
    %v2446 = vsel %vm1179, %v2431, %v2428
    %v2447 = vsel %vm1180, %v2431, %v2429
    %s2448 = sld [smem:[#allocation2 + $0xd02]]
    %v2449 = vstv %s2448
    %v2450 = vsel %vm1199, %v2449, %v2432
    %v2451 = vsel %vm1200, %v2449, %v2433
    %v2452 = vsel %vm1201, %v2449, %v2434
    %v2453 = vsel %vm1202, %v2449, %v2435
    %v2454 = vsel %vm1203, %v2449, %v2436
    %v2455 = vsel %vm1204, %v2449, %v2437
    %v2456 = vsel %vm1205, %v2449, %v2438
    %v2457 = vsel %vm1206, %v2449, %v2439
    %v2458 = vsel %vm1207, %v2449, %v2440
    %v2459 = vsel %vm1208, %v2449, %v2441
    %v2460 = vsel %vm1209, %v2449, %v2442
    %v2461 = vsel %vm1210, %v2449, %v2443
    %v2462 = vsel %vm1211, %v2449, %v2444
    %v2463 = vsel %vm1212, %v2449, %v2445
    %v2464 = vsel %vm1213, %v2449, %v2446
    %v2465 = vsel %vm1214, %v2449, %v2447
    %s2466 = sld [smem:[#allocation2 + $0xd82]]
    %v2467 = vstv %s2466
    %v2468 = vsel %vm1233, %v2467, %v2450
    %v2469 = vsel %vm1234, %v2467, %v2451
    %v2470 = vsel %vm1235, %v2467, %v2452
    %v2471 = vsel %vm1236, %v2467, %v2453
    %v2472 = vsel %vm1237, %v2467, %v2454
    %v2473 = vsel %vm1238, %v2467, %v2455
    %v2474 = vsel %vm1239, %v2467, %v2456
    %v2475 = vsel %vm1240, %v2467, %v2457
    %v2476 = vsel %vm1241, %v2467, %v2458
    %v2477 = vsel %vm1242, %v2467, %v2459
    %v2478 = vsel %vm1243, %v2467, %v2460
    %v2479 = vsel %vm1244, %v2467, %v2461
    %v2480 = vsel %vm1245, %v2467, %v2462
    %v2481 = vsel %vm1246, %v2467, %v2463
    %v2482 = vsel %vm1247, %v2467, %v2464
    %v2483 = vsel %vm1248, %v2467, %v2465
    %s2484 = sld [smem:[#allocation2 + $0xe02]]
    %v2485 = vstv %s2484
    %v2486 = vsel %vm1267, %v2485, %v2468
    %v2487 = vsel %vm1268, %v2485, %v2469
    %v2488 = vsel %vm1269, %v2485, %v2470
    %v2489 = vsel %vm1270, %v2485, %v2471
    %v2490 = vsel %vm1271, %v2485, %v2472
    %v2491 = vsel %vm1272, %v2485, %v2473
    %v2492 = vsel %vm1273, %v2485, %v2474
    %v2493 = vsel %vm1274, %v2485, %v2475
    %v2494 = vsel %vm1275, %v2485, %v2476
    %v2495 = vsel %vm1276, %v2485, %v2477
    %v2496 = vsel %vm1277, %v2485, %v2478
    %v2497 = vsel %vm1278, %v2485, %v2479
    %v2498 = vsel %vm1279, %v2485, %v2480
    %v2499 = vsel %vm1280, %v2485, %v2481
    %v2500 = vsel %vm1281, %v2485, %v2482
    %v2501 = vsel %vm1282, %v2485, %v2483
    %s2502 = sld [smem:[#allocation2 + $0xe82]]
    %v2503 = vstv %s2502
    %v2504 = vsel %vm1301, %v2503, %v2486
    %v2505 = vsel %vm1302, %v2503, %v2487
    %v2506 = vsel %vm1303, %v2503, %v2488
    %v2507 = vsel %vm1304, %v2503, %v2489
    %v2508 = vsel %vm1305, %v2503, %v2490
    %v2509 = vsel %vm1306, %v2503, %v2491
    %v2510 = vsel %vm1307, %v2503, %v2492
    %v2511 = vsel %vm1308, %v2503, %v2493
    %v2512 = vsel %vm1309, %v2503, %v2494
    %v2513 = vsel %vm1310, %v2503, %v2495
    %v2514 = vsel %vm1311, %v2503, %v2496
    %v2515 = vsel %vm1312, %v2503, %v2497
    %v2516 = vsel %vm1313, %v2503, %v2498
    %v2517 = vsel %vm1314, %v2503, %v2499
    %v2518 = vsel %vm1315, %v2503, %v2500
    %v2519 = vsel %vm1316, %v2503, %v2501
    %s2520 = sld [smem:[#allocation2 + $0xf02]]
    %v2521 = vstv %s2520
    %v2522 = vsel %vm1335, %v2521, %v2504
    %v2523 = vsel %vm1336, %v2521, %v2505
    %v2524 = vsel %vm1337, %v2521, %v2506
    %v2525 = vsel %vm1338, %v2521, %v2507
    %v2526 = vsel %vm1339, %v2521, %v2508
    %v2527 = vsel %vm1340, %v2521, %v2509
    %v2528 = vsel %vm1341, %v2521, %v2510
    %v2529 = vsel %vm1342, %v2521, %v2511
    %v2530 = vsel %vm1343, %v2521, %v2512
    %v2531 = vsel %vm1344, %v2521, %v2513
    %v2532 = vsel %vm1345, %v2521, %v2514
    %v2533 = vsel %vm1346, %v2521, %v2515
    %v2534 = vsel %vm1347, %v2521, %v2516
    %v2535 = vsel %vm1348, %v2521, %v2517
    %v2536 = vsel %vm1349, %v2521, %v2518
    %v2537 = vsel %vm1350, %v2521, %v2519
    %s2538 = sld [smem:[#allocation2 + $0xf82]]
    %v2539 = vstv %s2538
    %v2540 = vsel %vm1369, %v2539, %v2522
    %v2541 = vsel %vm1370, %v2539, %v2523
    %v2542 = vsel %vm1371, %v2539, %v2524
    %v2543 = vsel %vm1372, %v2539, %v2525
    %v2544 = vsel %vm1373, %v2539, %v2526
    %v2545 = vsel %vm1374, %v2539, %v2527
    %v2546 = vsel %vm1375, %v2539, %v2528
    %v2547 = vsel %vm1376, %v2539, %v2529
    %v2548 = vsel %vm1377, %v2539, %v2530
    %v2549 = vsel %vm1378, %v2539, %v2531
    %v2550 = vsel %vm1379, %v2539, %v2532
    %v2551 = vsel %vm1380, %v2539, %v2533
    %v2552 = vsel %vm1381, %v2539, %v2534
    %v2553 = vsel %vm1382, %v2539, %v2535
    %v2554 = vsel %vm1383, %v2539, %v2536
    %v2555 = vsel %vm1384, %v2539, %v2537
    %s2556 = scalar_lea.vmem [#allocation5], 256
    %2557 = vst [vmem:[%s2556] sm:$0xff] %v2540
    %2558 = vst [vmem:[%s2556 + $0x8] sm:$0xff] %v2541
    %2559 = vst [vmem:[%s2556 + $0x10] sm:$0xff] %v2542
    %2560 = vst [vmem:[%s2556 + $0x18] sm:$0xff] %v2543
    %2561 = vst [vmem:[%s2556 + $0x20] sm:$0xff] %v2544
    %2562 = vst [vmem:[%s2556 + $0x28] sm:$0xff] %v2545
    %2563 = vst [vmem:[%s2556 + $0x30] sm:$0xff] %v2546
    %2564 = vst [vmem:[%s2556 + $0x38] sm:$0xff] %v2547
    %2565 = vst [vmem:[%s2556 + $0x40] sm:$0xff] %v2548
    %2566 = vst [vmem:[%s2556 + $0x48] sm:$0xff] %v2549
    %2567 = vst [vmem:[%s2556 + $0x50] sm:$0xff] %v2550
    %2568 = vst [vmem:[%s2556 + $0x58] sm:$0xff] %v2551
    %2569 = vst [vmem:[%s2556 + $0x60] sm:$0xff] %v2552
    %2570 = vst [vmem:[%s2556 + $0x68] sm:$0xff] %v2553
    %2571 = vst [vmem:[%s2556 + $0x70] sm:$0xff] %v2554
    %2572 = vst [vmem:[%s2556 + $0x78] sm:$0xff] %v2555
    %s2573 = sld [smem:[#allocation2 + $0x3]]
    %v2574 = vstv %s2573
    %s2575 = sld [smem:[#allocation2 + $0x83]]
    %v2576 = vstv %s2575
    %v2577 = vsel %vm349, %v2576, %v2574
    %v2578 = vsel %vm350, %v2576, %v2574
    %v2579 = vsel %vm351, %v2576, %v2574
    %v2580 = vsel %vm352, %v2576, %v2574
    %v2581 = vsel %vm353, %v2576, %v2574
    %v2582 = vsel %vm354, %v2576, %v2574
    %v2583 = vsel %vm355, %v2576, %v2574
    %v2584 = vsel %vm356, %v2576, %v2574
    %v2585 = vsel %vm357, %v2576, %v2574
    %v2586 = vsel %vm358, %v2576, %v2574
    %v2587 = vsel %vm359, %v2576, %v2574
    %v2588 = vsel %vm360, %v2576, %v2574
    %v2589 = vsel %vm361, %v2576, %v2574
    %v2590 = vsel %vm362, %v2576, %v2574
    %v2591 = vsel %vm363, %v2576, %v2574
    %v2592 = vsel %vm364, %v2576, %v2574
    %s2593 = sld [smem:[#allocation2 + $0x103]]
    %v2594 = vstv %s2593
    %v2595 = vsel %vm383, %v2594, %v2577
    %v2596 = vsel %vm384, %v2594, %v2578
    %v2597 = vsel %vm385, %v2594, %v2579
    %v2598 = vsel %vm386, %v2594, %v2580
    %v2599 = vsel %vm387, %v2594, %v2581
    %v2600 = vsel %vm388, %v2594, %v2582
    %v2601 = vsel %vm389, %v2594, %v2583
    %v2602 = vsel %vm390, %v2594, %v2584
    %v2603 = vsel %vm391, %v2594, %v2585
    %v2604 = vsel %vm392, %v2594, %v2586
    %v2605 = vsel %vm393, %v2594, %v2587
    %v2606 = vsel %vm394, %v2594, %v2588
    %v2607 = vsel %vm395, %v2594, %v2589
    %v2608 = vsel %vm396, %v2594, %v2590
    %v2609 = vsel %vm397, %v2594, %v2591
    %v2610 = vsel %vm398, %v2594, %v2592
    %s2611 = sld [smem:[#allocation2 + $0x183]]
    %v2612 = vstv %s2611
    %v2613 = vsel %vm417, %v2612, %v2595
    %v2614 = vsel %vm418, %v2612, %v2596
    %v2615 = vsel %vm419, %v2612, %v2597
    %v2616 = vsel %vm420, %v2612, %v2598
    %v2617 = vsel %vm421, %v2612, %v2599
    %v2618 = vsel %vm422, %v2612, %v2600
    %v2619 = vsel %vm423, %v2612, %v2601
    %v2620 = vsel %vm424, %v2612, %v2602
    %v2621 = vsel %vm425, %v2612, %v2603
    %v2622 = vsel %vm426, %v2612, %v2604
    %v2623 = vsel %vm427, %v2612, %v2605
    %v2624 = vsel %vm428, %v2612, %v2606
    %v2625 = vsel %vm429, %v2612, %v2607
    %v2626 = vsel %vm430, %v2612, %v2608
    %v2627 = vsel %vm431, %v2612, %v2609
    %v2628 = vsel %vm432, %v2612, %v2610
    %s2629 = sld [smem:[#allocation2 + $0x203]]
    %v2630 = vstv %s2629
    %v2631 = vsel %vm451, %v2630, %v2613
    %v2632 = vsel %vm452, %v2630, %v2614
    %v2633 = vsel %vm453, %v2630, %v2615
    %v2634 = vsel %vm454, %v2630, %v2616
    %v2635 = vsel %vm455, %v2630, %v2617
    %v2636 = vsel %vm456, %v2630, %v2618
    %v2637 = vsel %vm457, %v2630, %v2619
    %v2638 = vsel %vm458, %v2630, %v2620
    %v2639 = vsel %vm459, %v2630, %v2621
    %v2640 = vsel %vm460, %v2630, %v2622
    %v2641 = vsel %vm461, %v2630, %v2623
    %v2642 = vsel %vm462, %v2630, %v2624
    %v2643 = vsel %vm463, %v2630, %v2625
    %v2644 = vsel %vm464, %v2630, %v2626
    %v2645 = vsel %vm465, %v2630, %v2627
    %v2646 = vsel %vm466, %v2630, %v2628
    %s2647 = sld [smem:[#allocation2 + $0x283]]
    %v2648 = vstv %s2647
    %v2649 = vsel %vm485, %v2648, %v2631
    %v2650 = vsel %vm486, %v2648, %v2632
    %v2651 = vsel %vm487, %v2648, %v2633
    %v2652 = vsel %vm488, %v2648, %v2634
    %v2653 = vsel %vm489, %v2648, %v2635
    %v2654 = vsel %vm490, %v2648, %v2636
    %v2655 = vsel %vm491, %v2648, %v2637
    %v2656 = vsel %vm492, %v2648, %v2638
    %v2657 = vsel %vm493, %v2648, %v2639
    %v2658 = vsel %vm494, %v2648, %v2640
    %v2659 = vsel %vm495, %v2648, %v2641
    %v2660 = vsel %vm496, %v2648, %v2642
    %v2661 = vsel %vm497, %v2648, %v2643
    %v2662 = vsel %vm498, %v2648, %v2644
    %v2663 = vsel %vm499, %v2648, %v2645
    %v2664 = vsel %vm500, %v2648, %v2646
    %s2665 = sld [smem:[#allocation2 + $0x303]]
    %v2666 = vstv %s2665
    %v2667 = vsel %vm519, %v2666, %v2649
    %v2668 = vsel %vm520, %v2666, %v2650
    %v2669 = vsel %vm521, %v2666, %v2651
    %v2670 = vsel %vm522, %v2666, %v2652
    %v2671 = vsel %vm523, %v2666, %v2653
    %v2672 = vsel %vm524, %v2666, %v2654
    %v2673 = vsel %vm525, %v2666, %v2655
    %v2674 = vsel %vm526, %v2666, %v2656
    %v2675 = vsel %vm527, %v2666, %v2657
    %v2676 = vsel %vm528, %v2666, %v2658
    %v2677 = vsel %vm529, %v2666, %v2659
    %v2678 = vsel %vm530, %v2666, %v2660
    %v2679 = vsel %vm531, %v2666, %v2661
    %v2680 = vsel %vm532, %v2666, %v2662
    %v2681 = vsel %vm533, %v2666, %v2663
    %v2682 = vsel %vm534, %v2666, %v2664
    %s2683 = sld [smem:[#allocation2 + $0x383]]
    %v2684 = vstv %s2683
    %v2685 = vsel %vm553, %v2684, %v2667
    %v2686 = vsel %vm554, %v2684, %v2668
    %v2687 = vsel %vm555, %v2684, %v2669
    %v2688 = vsel %vm556, %v2684, %v2670
    %v2689 = vsel %vm557, %v2684, %v2671
    %v2690 = vsel %vm558, %v2684, %v2672
    %v2691 = vsel %vm559, %v2684, %v2673
    %v2692 = vsel %vm560, %v2684, %v2674
    %v2693 = vsel %vm561, %v2684, %v2675
    %v2694 = vsel %vm562, %v2684, %v2676
    %v2695 = vsel %vm563, %v2684, %v2677
    %v2696 = vsel %vm564, %v2684, %v2678
    %v2697 = vsel %vm565, %v2684, %v2679
    %v2698 = vsel %vm566, %v2684, %v2680
    %v2699 = vsel %vm567, %v2684, %v2681
    %v2700 = vsel %vm568, %v2684, %v2682
    %s2701 = sld [smem:[#allocation2 + $0x403]]
    %v2702 = vstv %s2701
    %v2703 = vsel %vm587, %v2702, %v2685
    %v2704 = vsel %vm588, %v2702, %v2686
    %v2705 = vsel %vm589, %v2702, %v2687
    %v2706 = vsel %vm590, %v2702, %v2688
    %v2707 = vsel %vm591, %v2702, %v2689
    %v2708 = vsel %vm592, %v2702, %v2690
    %v2709 = vsel %vm593, %v2702, %v2691
    %v2710 = vsel %vm594, %v2702, %v2692
    %v2711 = vsel %vm595, %v2702, %v2693
    %v2712 = vsel %vm596, %v2702, %v2694
    %v2713 = vsel %vm597, %v2702, %v2695
    %v2714 = vsel %vm598, %v2702, %v2696
    %v2715 = vsel %vm599, %v2702, %v2697
    %v2716 = vsel %vm600, %v2702, %v2698
    %v2717 = vsel %vm601, %v2702, %v2699
    %v2718 = vsel %vm602, %v2702, %v2700
    %s2719 = sld [smem:[#allocation2 + $0x483]]
    %v2720 = vstv %s2719
    %v2721 = vsel %vm621, %v2720, %v2703
    %v2722 = vsel %vm622, %v2720, %v2704
    %v2723 = vsel %vm623, %v2720, %v2705
    %v2724 = vsel %vm624, %v2720, %v2706
    %v2725 = vsel %vm625, %v2720, %v2707
    %v2726 = vsel %vm626, %v2720, %v2708
    %v2727 = vsel %vm627, %v2720, %v2709
    %v2728 = vsel %vm628, %v2720, %v2710
    %v2729 = vsel %vm629, %v2720, %v2711
    %v2730 = vsel %vm630, %v2720, %v2712
    %v2731 = vsel %vm631, %v2720, %v2713
    %v2732 = vsel %vm632, %v2720, %v2714
    %v2733 = vsel %vm633, %v2720, %v2715
    %v2734 = vsel %vm634, %v2720, %v2716
    %v2735 = vsel %vm635, %v2720, %v2717
    %v2736 = vsel %vm636, %v2720, %v2718
    %s2737 = sld [smem:[#allocation2 + $0x503]]
    %v2738 = vstv %s2737
    %v2739 = vsel %vm655, %v2738, %v2721
    %v2740 = vsel %vm656, %v2738, %v2722
    %v2741 = vsel %vm657, %v2738, %v2723
    %v2742 = vsel %vm658, %v2738, %v2724
    %v2743 = vsel %vm659, %v2738, %v2725
    %v2744 = vsel %vm660, %v2738, %v2726
    %v2745 = vsel %vm661, %v2738, %v2727
    %v2746 = vsel %vm662, %v2738, %v2728
    %v2747 = vsel %vm663, %v2738, %v2729
    %v2748 = vsel %vm664, %v2738, %v2730
    %v2749 = vsel %vm665, %v2738, %v2731
    %v2750 = vsel %vm666, %v2738, %v2732
    %v2751 = vsel %vm667, %v2738, %v2733
    %v2752 = vsel %vm668, %v2738, %v2734
    %v2753 = vsel %vm669, %v2738, %v2735
    %v2754 = vsel %vm670, %v2738, %v2736
    %s2755 = sld [smem:[#allocation2 + $0x583]]
    %v2756 = vstv %s2755
    %v2757 = vsel %vm689, %v2756, %v2739
    %v2758 = vsel %vm690, %v2756, %v2740
    %v2759 = vsel %vm691, %v2756, %v2741
    %v2760 = vsel %vm692, %v2756, %v2742
    %v2761 = vsel %vm693, %v2756, %v2743
    %v2762 = vsel %vm694, %v2756, %v2744
    %v2763 = vsel %vm695, %v2756, %v2745
    %v2764 = vsel %vm696, %v2756, %v2746
    %v2765 = vsel %vm697, %v2756, %v2747
    %v2766 = vsel %vm698, %v2756, %v2748
    %v2767 = vsel %vm699, %v2756, %v2749
    %v2768 = vsel %vm700, %v2756, %v2750
    %v2769 = vsel %vm701, %v2756, %v2751
    %v2770 = vsel %vm702, %v2756, %v2752
    %v2771 = vsel %vm703, %v2756, %v2753
    %v2772 = vsel %vm704, %v2756, %v2754
    %s2773 = sld [smem:[#allocation2 + $0x603]]
    %v2774 = vstv %s2773
    %v2775 = vsel %vm723, %v2774, %v2757
    %v2776 = vsel %vm724, %v2774, %v2758
    %v2777 = vsel %vm725, %v2774, %v2759
    %v2778 = vsel %vm726, %v2774, %v2760
    %v2779 = vsel %vm727, %v2774, %v2761
    %v2780 = vsel %vm728, %v2774, %v2762
    %v2781 = vsel %vm729, %v2774, %v2763
    %v2782 = vsel %vm730, %v2774, %v2764
    %v2783 = vsel %vm731, %v2774, %v2765
    %v2784 = vsel %vm732, %v2774, %v2766
    %v2785 = vsel %vm733, %v2774, %v2767
    %v2786 = vsel %vm734, %v2774, %v2768
    %v2787 = vsel %vm735, %v2774, %v2769
    %v2788 = vsel %vm736, %v2774, %v2770
    %v2789 = vsel %vm737, %v2774, %v2771
    %v2790 = vsel %vm738, %v2774, %v2772
    %s2791 = sld [smem:[#allocation2 + $0x683]]
    %v2792 = vstv %s2791
    %v2793 = vsel %vm757, %v2792, %v2775
    %v2794 = vsel %vm758, %v2792, %v2776
    %v2795 = vsel %vm759, %v2792, %v2777
    %v2796 = vsel %vm760, %v2792, %v2778
    %v2797 = vsel %vm761, %v2792, %v2779
    %v2798 = vsel %vm762, %v2792, %v2780
    %v2799 = vsel %vm763, %v2792, %v2781
    %v2800 = vsel %vm764, %v2792, %v2782
    %v2801 = vsel %vm765, %v2792, %v2783
    %v2802 = vsel %vm766, %v2792, %v2784
    %v2803 = vsel %vm767, %v2792, %v2785
    %v2804 = vsel %vm768, %v2792, %v2786
    %v2805 = vsel %vm769, %v2792, %v2787
    %v2806 = vsel %vm770, %v2792, %v2788
    %v2807 = vsel %vm771, %v2792, %v2789
    %v2808 = vsel %vm772, %v2792, %v2790
    %s2809 = sld [smem:[#allocation2 + $0x703]]
    %v2810 = vstv %s2809
    %v2811 = vsel %vm791, %v2810, %v2793
    %v2812 = vsel %vm792, %v2810, %v2794
    %v2813 = vsel %vm793, %v2810, %v2795
    %v2814 = vsel %vm794, %v2810, %v2796
    %v2815 = vsel %vm795, %v2810, %v2797
    %v2816 = vsel %vm796, %v2810, %v2798
    %v2817 = vsel %vm797, %v2810, %v2799
    %v2818 = vsel %vm798, %v2810, %v2800
    %v2819 = vsel %vm799, %v2810, %v2801
    %v2820 = vsel %vm800, %v2810, %v2802
    %v2821 = vsel %vm801, %v2810, %v2803
    %v2822 = vsel %vm802, %v2810, %v2804
    %v2823 = vsel %vm803, %v2810, %v2805
    %v2824 = vsel %vm804, %v2810, %v2806
    %v2825 = vsel %vm805, %v2810, %v2807
    %v2826 = vsel %vm806, %v2810, %v2808
    %s2827 = sld [smem:[#allocation2 + $0x783]]
    %v2828 = vstv %s2827
    %v2829 = vsel %vm825, %v2828, %v2811
    %v2830 = vsel %vm826, %v2828, %v2812
    %v2831 = vsel %vm827, %v2828, %v2813
    %v2832 = vsel %vm828, %v2828, %v2814
    %v2833 = vsel %vm829, %v2828, %v2815
    %v2834 = vsel %vm830, %v2828, %v2816
    %v2835 = vsel %vm831, %v2828, %v2817
    %v2836 = vsel %vm832, %v2828, %v2818
    %v2837 = vsel %vm833, %v2828, %v2819
    %v2838 = vsel %vm834, %v2828, %v2820
    %v2839 = vsel %vm835, %v2828, %v2821
    %v2840 = vsel %vm836, %v2828, %v2822
    %v2841 = vsel %vm837, %v2828, %v2823
    %v2842 = vsel %vm838, %v2828, %v2824
    %v2843 = vsel %vm839, %v2828, %v2825
    %v2844 = vsel %vm840, %v2828, %v2826
    %s2845 = sld [smem:[#allocation2 + $0x803]]
    %v2846 = vstv %s2845
    %v2847 = vsel %vm859, %v2846, %v2829
    %v2848 = vsel %vm860, %v2846, %v2830
    %v2849 = vsel %vm861, %v2846, %v2831
    %v2850 = vsel %vm862, %v2846, %v2832
    %v2851 = vsel %vm863, %v2846, %v2833
    %v2852 = vsel %vm864, %v2846, %v2834
    %v2853 = vsel %vm865, %v2846, %v2835
    %v2854 = vsel %vm866, %v2846, %v2836
    %v2855 = vsel %vm867, %v2846, %v2837
    %v2856 = vsel %vm868, %v2846, %v2838
    %v2857 = vsel %vm869, %v2846, %v2839
    %v2858 = vsel %vm870, %v2846, %v2840
    %v2859 = vsel %vm871, %v2846, %v2841
    %v2860 = vsel %vm872, %v2846, %v2842
    %v2861 = vsel %vm873, %v2846, %v2843
    %v2862 = vsel %vm874, %v2846, %v2844
    %s2863 = sld [smem:[#allocation2 + $0x883]]
    %v2864 = vstv %s2863
    %v2865 = vsel %vm893, %v2864, %v2847
    %v2866 = vsel %vm894, %v2864, %v2848
    %v2867 = vsel %vm895, %v2864, %v2849
    %v2868 = vsel %vm896, %v2864, %v2850
    %v2869 = vsel %vm897, %v2864, %v2851
    %v2870 = vsel %vm898, %v2864, %v2852
    %v2871 = vsel %vm899, %v2864, %v2853
    %v2872 = vsel %vm900, %v2864, %v2854
    %v2873 = vsel %vm901, %v2864, %v2855
    %v2874 = vsel %vm902, %v2864, %v2856
    %v2875 = vsel %vm903, %v2864, %v2857
    %v2876 = vsel %vm904, %v2864, %v2858
    %v2877 = vsel %vm905, %v2864, %v2859
    %v2878 = vsel %vm906, %v2864, %v2860
    %v2879 = vsel %vm907, %v2864, %v2861
    %v2880 = vsel %vm908, %v2864, %v2862
    %s2881 = sld [smem:[#allocation2 + $0x903]]
    %v2882 = vstv %s2881
    %v2883 = vsel %vm927, %v2882, %v2865
    %v2884 = vsel %vm928, %v2882, %v2866
    %v2885 = vsel %vm929, %v2882, %v2867
    %v2886 = vsel %vm930, %v2882, %v2868
    %v2887 = vsel %vm931, %v2882, %v2869
    %v2888 = vsel %vm932, %v2882, %v2870
    %v2889 = vsel %vm933, %v2882, %v2871
    %v2890 = vsel %vm934, %v2882, %v2872
    %v2891 = vsel %vm935, %v2882, %v2873
    %v2892 = vsel %vm936, %v2882, %v2874
    %v2893 = vsel %vm937, %v2882, %v2875
    %v2894 = vsel %vm938, %v2882, %v2876
    %v2895 = vsel %vm939, %v2882, %v2877
    %v2896 = vsel %vm940, %v2882, %v2878
    %v2897 = vsel %vm941, %v2882, %v2879
    %v2898 = vsel %vm942, %v2882, %v2880
    %s2899 = sld [smem:[#allocation2 + $0x983]]
    %v2900 = vstv %s2899
    %v2901 = vsel %vm961, %v2900, %v2883
    %v2902 = vsel %vm962, %v2900, %v2884
    %v2903 = vsel %vm963, %v2900, %v2885
    %v2904 = vsel %vm964, %v2900, %v2886
    %v2905 = vsel %vm965, %v2900, %v2887
    %v2906 = vsel %vm966, %v2900, %v2888
    %v2907 = vsel %vm967, %v2900, %v2889
    %v2908 = vsel %vm968, %v2900, %v2890
    %v2909 = vsel %vm969, %v2900, %v2891
    %v2910 = vsel %vm970, %v2900, %v2892
    %v2911 = vsel %vm971, %v2900, %v2893
    %v2912 = vsel %vm972, %v2900, %v2894
    %v2913 = vsel %vm973, %v2900, %v2895
    %v2914 = vsel %vm974, %v2900, %v2896
    %v2915 = vsel %vm975, %v2900, %v2897
    %v2916 = vsel %vm976, %v2900, %v2898
    %s2917 = sld [smem:[#allocation2 + $0xa03]]
    %v2918 = vstv %s2917
    %v2919 = vsel %vm995, %v2918, %v2901
    %v2920 = vsel %vm996, %v2918, %v2902
    %v2921 = vsel %vm997, %v2918, %v2903
    %v2922 = vsel %vm998, %v2918, %v2904
    %v2923 = vsel %vm999, %v2918, %v2905
    %v2924 = vsel %vm1000, %v2918, %v2906
    %v2925 = vsel %vm1001, %v2918, %v2907
    %v2926 = vsel %vm1002, %v2918, %v2908
    %v2927 = vsel %vm1003, %v2918, %v2909
    %v2928 = vsel %vm1004, %v2918, %v2910
    %v2929 = vsel %vm1005, %v2918, %v2911
    %v2930 = vsel %vm1006, %v2918, %v2912
    %v2931 = vsel %vm1007, %v2918, %v2913
    %v2932 = vsel %vm1008, %v2918, %v2914
    %v2933 = vsel %vm1009, %v2918, %v2915
    %v2934 = vsel %vm1010, %v2918, %v2916
    %s2935 = sld [smem:[#allocation2 + $0xa83]]
    %v2936 = vstv %s2935
    %v2937 = vsel %vm1029, %v2936, %v2919
    %v2938 = vsel %vm1030, %v2936, %v2920
    %v2939 = vsel %vm1031, %v2936, %v2921
    %v2940 = vsel %vm1032, %v2936, %v2922
    %v2941 = vsel %vm1033, %v2936, %v2923
    %v2942 = vsel %vm1034, %v2936, %v2924
    %v2943 = vsel %vm1035, %v2936, %v2925
    %v2944 = vsel %vm1036, %v2936, %v2926
    %v2945 = vsel %vm1037, %v2936, %v2927
    %v2946 = vsel %vm1038, %v2936, %v2928
    %v2947 = vsel %vm1039, %v2936, %v2929
    %v2948 = vsel %vm1040, %v2936, %v2930
    %v2949 = vsel %vm1041, %v2936, %v2931
    %v2950 = vsel %vm1042, %v2936, %v2932
    %v2951 = vsel %vm1043, %v2936, %v2933
    %v2952 = vsel %vm1044, %v2936, %v2934
    %s2953 = sld [smem:[#allocation2 + $0xb03]]
    %v2954 = vstv %s2953
    %v2955 = vsel %vm1063, %v2954, %v2937
    %v2956 = vsel %vm1064, %v2954, %v2938
    %v2957 = vsel %vm1065, %v2954, %v2939
    %v2958 = vsel %vm1066, %v2954, %v2940
    %v2959 = vsel %vm1067, %v2954, %v2941
    %v2960 = vsel %vm1068, %v2954, %v2942
    %v2961 = vsel %vm1069, %v2954, %v2943
    %v2962 = vsel %vm1070, %v2954, %v2944
    %v2963 = vsel %vm1071, %v2954, %v2945
    %v2964 = vsel %vm1072, %v2954, %v2946
    %v2965 = vsel %vm1073, %v2954, %v2947
    %v2966 = vsel %vm1074, %v2954, %v2948
    %v2967 = vsel %vm1075, %v2954, %v2949
    %v2968 = vsel %vm1076, %v2954, %v2950
    %v2969 = vsel %vm1077, %v2954, %v2951
    %v2970 = vsel %vm1078, %v2954, %v2952
    %s2971 = sld [smem:[#allocation2 + $0xb83]]
    %v2972 = vstv %s2971
    %v2973 = vsel %vm1097, %v2972, %v2955
    %v2974 = vsel %vm1098, %v2972, %v2956
    %v2975 = vsel %vm1099, %v2972, %v2957
    %v2976 = vsel %vm1100, %v2972, %v2958
    %v2977 = vsel %vm1101, %v2972, %v2959
    %v2978 = vsel %vm1102, %v2972, %v2960
    %v2979 = vsel %vm1103, %v2972, %v2961
    %v2980 = vsel %vm1104, %v2972, %v2962
    %v2981 = vsel %vm1105, %v2972, %v2963
    %v2982 = vsel %vm1106, %v2972, %v2964
    %v2983 = vsel %vm1107, %v2972, %v2965
    %v2984 = vsel %vm1108, %v2972, %v2966
    %v2985 = vsel %vm1109, %v2972, %v2967
    %v2986 = vsel %vm1110, %v2972, %v2968
    %v2987 = vsel %vm1111, %v2972, %v2969
    %v2988 = vsel %vm1112, %v2972, %v2970
    %s2989 = sld [smem:[#allocation2 + $0xc03]]
    %v2990 = vstv %s2989
    %v2991 = vsel %vm1131, %v2990, %v2973
    %v2992 = vsel %vm1132, %v2990, %v2974
    %v2993 = vsel %vm1133, %v2990, %v2975
    %v2994 = vsel %vm1134, %v2990, %v2976
    %v2995 = vsel %vm1135, %v2990, %v2977
    %v2996 = vsel %vm1136, %v2990, %v2978
    %v2997 = vsel %vm1137, %v2990, %v2979
    %v2998 = vsel %vm1138, %v2990, %v2980
    %v2999 = vsel %vm1139, %v2990, %v2981
    %v3000 = vsel %vm1140, %v2990, %v2982
    %v3001 = vsel %vm1141, %v2990, %v2983
    %v3002 = vsel %vm1142, %v2990, %v2984
    %v3003 = vsel %vm1143, %v2990, %v2985
    %v3004 = vsel %vm1144, %v2990, %v2986
    %v3005 = vsel %vm1145, %v2990, %v2987
    %v3006 = vsel %vm1146, %v2990, %v2988
    %s3007 = sld [smem:[#allocation2 + $0xc83]]
    %v3008 = vstv %s3007
    %v3009 = vsel %vm1165, %v3008, %v2991
    %v3010 = vsel %vm1166, %v3008, %v2992
    %v3011 = vsel %vm1167, %v3008, %v2993
    %v3012 = vsel %vm1168, %v3008, %v2994
    %v3013 = vsel %vm1169, %v3008, %v2995
    %v3014 = vsel %vm1170, %v3008, %v2996
    %v3015 = vsel %vm1171, %v3008, %v2997
    %v3016 = vsel %vm1172, %v3008, %v2998
    %v3017 = vsel %vm1173, %v3008, %v2999
    %v3018 = vsel %vm1174, %v3008, %v3000
    %v3019 = vsel %vm1175, %v3008, %v3001
    %v3020 = vsel %vm1176, %v3008, %v3002
    %v3021 = vsel %vm1177, %v3008, %v3003
    %v3022 = vsel %vm1178, %v3008, %v3004
    %v3023 = vsel %vm1179, %v3008, %v3005
    %v3024 = vsel %vm1180, %v3008, %v3006
    %s3025 = sld [smem:[#allocation2 + $0xd03]]
    %v3026 = vstv %s3025
    %v3027 = vsel %vm1199, %v3026, %v3009
    %v3028 = vsel %vm1200, %v3026, %v3010
    %v3029 = vsel %vm1201, %v3026, %v3011
    %v3030 = vsel %vm1202, %v3026, %v3012
    %v3031 = vsel %vm1203, %v3026, %v3013
    %v3032 = vsel %vm1204, %v3026, %v3014
    %v3033 = vsel %vm1205, %v3026, %v3015
    %v3034 = vsel %vm1206, %v3026, %v3016
    %v3035 = vsel %vm1207, %v3026, %v3017
    %v3036 = vsel %vm1208, %v3026, %v3018
    %v3037 = vsel %vm1209, %v3026, %v3019
    %v3038 = vsel %vm1210, %v3026, %v3020
    %v3039 = vsel %vm1211, %v3026, %v3021
    %v3040 = vsel %vm1212, %v3026, %v3022
    %v3041 = vsel %vm1213, %v3026, %v3023
    %v3042 = vsel %vm1214, %v3026, %v3024
    %s3043 = sld [smem:[#allocation2 + $0xd83]]
    %v3044 = vstv %s3043
    %v3045 = vsel %vm1233, %v3044, %v3027
    %v3046 = vsel %vm1234, %v3044, %v3028
    %v3047 = vsel %vm1235, %v3044, %v3029
    %v3048 = vsel %vm1236, %v3044, %v3030
    %v3049 = vsel %vm1237, %v3044, %v3031
    %v3050 = vsel %vm1238, %v3044, %v3032
    %v3051 = vsel %vm1239, %v3044, %v3033
    %v3052 = vsel %vm1240, %v3044, %v3034
    %v3053 = vsel %vm1241, %v3044, %v3035
    %v3054 = vsel %vm1242, %v3044, %v3036
    %v3055 = vsel %vm1243, %v3044, %v3037
    %v3056 = vsel %vm1244, %v3044, %v3038
    %v3057 = vsel %vm1245, %v3044, %v3039
    %v3058 = vsel %vm1246, %v3044, %v3040
    %v3059 = vsel %vm1247, %v3044, %v3041
    %v3060 = vsel %vm1248, %v3044, %v3042
    %s3061 = sld [smem:[#allocation2 + $0xe03]]
    %v3062 = vstv %s3061
    %v3063 = vsel %vm1267, %v3062, %v3045
    %v3064 = vsel %vm1268, %v3062, %v3046
    %v3065 = vsel %vm1269, %v3062, %v3047
    %v3066 = vsel %vm1270, %v3062, %v3048
    %v3067 = vsel %vm1271, %v3062, %v3049
    %v3068 = vsel %vm1272, %v3062, %v3050
    %v3069 = vsel %vm1273, %v3062, %v3051
    %v3070 = vsel %vm1274, %v3062, %v3052
    %v3071 = vsel %vm1275, %v3062, %v3053
    %v3072 = vsel %vm1276, %v3062, %v3054
    %v3073 = vsel %vm1277, %v3062, %v3055
    %v3074 = vsel %vm1278, %v3062, %v3056
    %v3075 = vsel %vm1279, %v3062, %v3057
    %v3076 = vsel %vm1280, %v3062, %v3058
    %v3077 = vsel %vm1281, %v3062, %v3059
    %v3078 = vsel %vm1282, %v3062, %v3060
    %s3079 = sld [smem:[#allocation2 + $0xe83]]
    %v3080 = vstv %s3079
    %v3081 = vsel %vm1301, %v3080, %v3063
    %v3082 = vsel %vm1302, %v3080, %v3064
    %v3083 = vsel %vm1303, %v3080, %v3065
    %v3084 = vsel %vm1304, %v3080, %v3066
    %v3085 = vsel %vm1305, %v3080, %v3067
    %v3086 = vsel %vm1306, %v3080, %v3068
    %v3087 = vsel %vm1307, %v3080, %v3069
    %v3088 = vsel %vm1308, %v3080, %v3070
    %v3089 = vsel %vm1309, %v3080, %v3071
    %v3090 = vsel %vm1310, %v3080, %v3072
    %v3091 = vsel %vm1311, %v3080, %v3073
    %v3092 = vsel %vm1312, %v3080, %v3074
    %v3093 = vsel %vm1313, %v3080, %v3075
    %v3094 = vsel %vm1314, %v3080, %v3076
    %v3095 = vsel %vm1315, %v3080, %v3077
    %v3096 = vsel %vm1316, %v3080, %v3078
    %s3097 = sld [smem:[#allocation2 + $0xf03]]
    %v3098 = vstv %s3097
    %v3099 = vsel %vm1335, %v3098, %v3081
    %v3100 = vsel %vm1336, %v3098, %v3082
    %v3101 = vsel %vm1337, %v3098, %v3083
    %v3102 = vsel %vm1338, %v3098, %v3084
    %v3103 = vsel %vm1339, %v3098, %v3085
    %v3104 = vsel %vm1340, %v3098, %v3086
    %v3105 = vsel %vm1341, %v3098, %v3087
    %v3106 = vsel %vm1342, %v3098, %v3088
    %v3107 = vsel %vm1343, %v3098, %v3089
    %v3108 = vsel %vm1344, %v3098, %v3090
    %v3109 = vsel %vm1345, %v3098, %v3091
    %v3110 = vsel %vm1346, %v3098, %v3092
    %v3111 = vsel %vm1347, %v3098, %v3093
    %v3112 = vsel %vm1348, %v3098, %v3094
    %v3113 = vsel %vm1349, %v3098, %v3095
    %v3114 = vsel %vm1350, %v3098, %v3096
    %s3115 = sld [smem:[#allocation2 + $0xf83]]
    %v3116 = vstv %s3115
    %v3117 = vsel %vm1369, %v3116, %v3099
    %v3118 = vsel %vm1370, %v3116, %v3100
    %v3119 = vsel %vm1371, %v3116, %v3101
    %v3120 = vsel %vm1372, %v3116, %v3102
    %v3121 = vsel %vm1373, %v3116, %v3103
    %v3122 = vsel %vm1374, %v3116, %v3104
    %v3123 = vsel %vm1375, %v3116, %v3105
    %v3124 = vsel %vm1376, %v3116, %v3106
    %v3125 = vsel %vm1377, %v3116, %v3107
    %v3126 = vsel %vm1378, %v3116, %v3108
    %v3127 = vsel %vm1379, %v3116, %v3109
    %v3128 = vsel %vm1380, %v3116, %v3110
    %v3129 = vsel %vm1381, %v3116, %v3111
    %v3130 = vsel %vm1382, %v3116, %v3112
    %v3131 = vsel %vm1383, %v3116, %v3113
    %v3132 = vsel %vm1384, %v3116, %v3114
    %s3133 = scalar_lea.vmem [#allocation5], 384
    %3134 = vst [vmem:[%s3133] sm:$0xff] %v3117
    %3135 = vst [vmem:[%s3133 + $0x8] sm:$0xff] %v3118
    %3136 = vst [vmem:[%s3133 + $0x10] sm:$0xff] %v3119
    %3137 = vst [vmem:[%s3133 + $0x18] sm:$0xff] %v3120
    %3138 = vst [vmem:[%s3133 + $0x20] sm:$0xff] %v3121
    %3139 = vst [vmem:[%s3133 + $0x28] sm:$0xff] %v3122
    %3140 = vst [vmem:[%s3133 + $0x30] sm:$0xff] %v3123
    %3141 = vst [vmem:[%s3133 + $0x38] sm:$0xff] %v3124
    %3142 = vst [vmem:[%s3133 + $0x40] sm:$0xff] %v3125
    %3143 = vst [vmem:[%s3133 + $0x48] sm:$0xff] %v3126
    %3144 = vst [vmem:[%s3133 + $0x50] sm:$0xff] %v3127
    %3145 = vst [vmem:[%s3133 + $0x58] sm:$0xff] %v3128
    %3146 = vst [vmem:[%s3133 + $0x60] sm:$0xff] %v3129
    %3147 = vst [vmem:[%s3133 + $0x68] sm:$0xff] %v3130
    %3148 = vst [vmem:[%s3133 + $0x70] sm:$0xff] %v3131
    %3149 = vst [vmem:[%s3133 + $0x78] sm:$0xff] %v3132
    %s3150 = sld [smem:[#allocation2 + $0x4]]
    %v3151 = vstv %s3150
    %s3152 = sld [smem:[#allocation2 + $0x84]]
    %v3153 = vstv %s3152
    %v3154 = vsel %vm349, %v3153, %v3151
    %v3155 = vsel %vm350, %v3153, %v3151
    %v3156 = vsel %vm351, %v3153, %v3151
    %v3157 = vsel %vm352, %v3153, %v3151
    %v3158 = vsel %vm353, %v3153, %v3151
    %v3159 = vsel %vm354, %v3153, %v3151
    %v3160 = vsel %vm355, %v3153, %v3151
    %v3161 = vsel %vm356, %v3153, %v3151
    %v3162 = vsel %vm357, %v3153, %v3151
    %v3163 = vsel %vm358, %v3153, %v3151
    %v3164 = vsel %vm359, %v3153, %v3151
    %v3165 = vsel %vm360, %v3153, %v3151
    %v3166 = vsel %vm361, %v3153, %v3151
    %v3167 = vsel %vm362, %v3153, %v3151
    %v3168 = vsel %vm363, %v3153, %v3151
    %v3169 = vsel %vm364, %v3153, %v3151
    %s3170 = sld [smem:[#allocation2 + $0x104]]
    %v3171 = vstv %s3170
    %v3172 = vsel %vm383, %v3171, %v3154
    %v3173 = vsel %vm384, %v3171, %v3155
    %v3174 = vsel %vm385, %v3171, %v3156
    %v3175 = vsel %vm386, %v3171, %v3157
    %v3176 = vsel %vm387, %v3171, %v3158
    %v3177 = vsel %vm388, %v3171, %v3159
    %v3178 = vsel %vm389, %v3171, %v3160
    %v3179 = vsel %vm390, %v3171, %v3161
    %v3180 = vsel %vm391, %v3171, %v3162
    %v3181 = vsel %vm392, %v3171, %v3163
    %v3182 = vsel %vm393, %v3171, %v3164
    %v3183 = vsel %vm394, %v3171, %v3165
    %v3184 = vsel %vm395, %v3171, %v3166
    %v3185 = vsel %vm396, %v3171, %v3167
    %v3186 = vsel %vm397, %v3171, %v3168
    %v3187 = vsel %vm398, %v3171, %v3169
    %s3188 = sld [smem:[#allocation2 + $0x184]]
    %v3189 = vstv %s3188
    %v3190 = vsel %vm417, %v3189, %v3172
    %v3191 = vsel %vm418, %v3189, %v3173
    %v3192 = vsel %vm419, %v3189, %v3174
    %v3193 = vsel %vm420, %v3189, %v3175
    %v3194 = vsel %vm421, %v3189, %v3176
    %v3195 = vsel %vm422, %v3189, %v3177
    %v3196 = vsel %vm423, %v3189, %v3178
    %v3197 = vsel %vm424, %v3189, %v3179
    %v3198 = vsel %vm425, %v3189, %v3180
    %v3199 = vsel %vm426, %v3189, %v3181
    %v3200 = vsel %vm427, %v3189, %v3182
    %v3201 = vsel %vm428, %v3189, %v3183
    %v3202 = vsel %vm429, %v3189, %v3184
    %v3203 = vsel %vm430, %v3189, %v3185
    %v3204 = vsel %vm431, %v3189, %v3186
    %v3205 = vsel %vm432, %v3189, %v3187
    %s3206 = sld [smem:[#allocation2 + $0x204]]
    %v3207 = vstv %s3206
    %v3208 = vsel %vm451, %v3207, %v3190
    %v3209 = vsel %vm452, %v3207, %v3191
    %v3210 = vsel %vm453, %v3207, %v3192
    %v3211 = vsel %vm454, %v3207, %v3193
    %v3212 = vsel %vm455, %v3207, %v3194
    %v3213 = vsel %vm456, %v3207, %v3195
    %v3214 = vsel %vm457, %v3207, %v3196
    %v3215 = vsel %vm458, %v3207, %v3197
    %v3216 = vsel %vm459, %v3207, %v3198
    %v3217 = vsel %vm460, %v3207, %v3199
    %v3218 = vsel %vm461, %v3207, %v3200
    %v3219 = vsel %vm462, %v3207, %v3201
    %v3220 = vsel %vm463, %v3207, %v3202
    %v3221 = vsel %vm464, %v3207, %v3203
    %v3222 = vsel %vm465, %v3207, %v3204
    %v3223 = vsel %vm466, %v3207, %v3205
    %s3224 = sld [smem:[#allocation2 + $0x284]]
    %v3225 = vstv %s3224
    %v3226 = vsel %vm485, %v3225, %v3208
    %v3227 = vsel %vm486, %v3225, %v3209
    %v3228 = vsel %vm487, %v3225, %v3210
    %v3229 = vsel %vm488, %v3225, %v3211
    %v3230 = vsel %vm489, %v3225, %v3212
    %v3231 = vsel %vm490, %v3225, %v3213
    %v3232 = vsel %vm491, %v3225, %v3214
    %v3233 = vsel %vm492, %v3225, %v3215
    %v3234 = vsel %vm493, %v3225, %v3216
    %v3235 = vsel %vm494, %v3225, %v3217
    %v3236 = vsel %vm495, %v3225, %v3218
    %v3237 = vsel %vm496, %v3225, %v3219
    %v3238 = vsel %vm497, %v3225, %v3220
    %v3239 = vsel %vm498, %v3225, %v3221
    %v3240 = vsel %vm499, %v3225, %v3222
    %v3241 = vsel %vm500, %v3225, %v3223
    %s3242 = sld [smem:[#allocation2 + $0x304]]
    %v3243 = vstv %s3242
    %v3244 = vsel %vm519, %v3243, %v3226
    %v3245 = vsel %vm520, %v3243, %v3227
    %v3246 = vsel %vm521, %v3243, %v3228
    %v3247 = vsel %vm522, %v3243, %v3229
    %v3248 = vsel %vm523, %v3243, %v3230
    %v3249 = vsel %vm524, %v3243, %v3231
    %v3250 = vsel %vm525, %v3243, %v3232
    %v3251 = vsel %vm526, %v3243, %v3233
    %v3252 = vsel %vm527, %v3243, %v3234
    %v3253 = vsel %vm528, %v3243, %v3235
    %v3254 = vsel %vm529, %v3243, %v3236
    %v3255 = vsel %vm530, %v3243, %v3237
    %v3256 = vsel %vm531, %v3243, %v3238
    %v3257 = vsel %vm532, %v3243, %v3239
    %v3258 = vsel %vm533, %v3243, %v3240
    %v3259 = vsel %vm534, %v3243, %v3241
    %s3260 = sld [smem:[#allocation2 + $0x384]]
    %v3261 = vstv %s3260
    %v3262 = vsel %vm553, %v3261, %v3244
    %v3263 = vsel %vm554, %v3261, %v3245
    %v3264 = vsel %vm555, %v3261, %v3246
    %v3265 = vsel %vm556, %v3261, %v3247
    %v3266 = vsel %vm557, %v3261, %v3248
    %v3267 = vsel %vm558, %v3261, %v3249
    %v3268 = vsel %vm559, %v3261, %v3250
    %v3269 = vsel %vm560, %v3261, %v3251
    %v3270 = vsel %vm561, %v3261, %v3252
    %v3271 = vsel %vm562, %v3261, %v3253
    %v3272 = vsel %vm563, %v3261, %v3254
    %v3273 = vsel %vm564, %v3261, %v3255
    %v3274 = vsel %vm565, %v3261, %v3256
    %v3275 = vsel %vm566, %v3261, %v3257
    %v3276 = vsel %vm567, %v3261, %v3258
    %v3277 = vsel %vm568, %v3261, %v3259
    %s3278 = sld [smem:[#allocation2 + $0x404]]
    %v3279 = vstv %s3278
    %v3280 = vsel %vm587, %v3279, %v3262
    %v3281 = vsel %vm588, %v3279, %v3263
    %v3282 = vsel %vm589, %v3279, %v3264
    %v3283 = vsel %vm590, %v3279, %v3265
    %v3284 = vsel %vm591, %v3279, %v3266
    %v3285 = vsel %vm592, %v3279, %v3267
    %v3286 = vsel %vm593, %v3279, %v3268
    %v3287 = vsel %vm594, %v3279, %v3269
    %v3288 = vsel %vm595, %v3279, %v3270
    %v3289 = vsel %vm596, %v3279, %v3271
    %v3290 = vsel %vm597, %v3279, %v3272
    %v3291 = vsel %vm598, %v3279, %v3273
    %v3292 = vsel %vm599, %v3279, %v3274
    %v3293 = vsel %vm600, %v3279, %v3275
    %v3294 = vsel %vm601, %v3279, %v3276
    %v3295 = vsel %vm602, %v3279, %v3277
    %s3296 = sld [smem:[#allocation2 + $0x484]]
    %v3297 = vstv %s3296
    %v3298 = vsel %vm621, %v3297, %v3280
    %v3299 = vsel %vm622, %v3297, %v3281
    %v3300 = vsel %vm623, %v3297, %v3282
    %v3301 = vsel %vm624, %v3297, %v3283
    %v3302 = vsel %vm625, %v3297, %v3284
    %v3303 = vsel %vm626, %v3297, %v3285
    %v3304 = vsel %vm627, %v3297, %v3286
    %v3305 = vsel %vm628, %v3297, %v3287
    %v3306 = vsel %vm629, %v3297, %v3288
    %v3307 = vsel %vm630, %v3297, %v3289
    %v3308 = vsel %vm631, %v3297, %v3290
    %v3309 = vsel %vm632, %v3297, %v3291
    %v3310 = vsel %vm633, %v3297, %v3292
    %v3311 = vsel %vm634, %v3297, %v3293
    %v3312 = vsel %vm635, %v3297, %v3294
    %v3313 = vsel %vm636, %v3297, %v3295
    %s3314 = sld [smem:[#allocation2 + $0x504]]
    %v3315 = vstv %s3314
    %v3316 = vsel %vm655, %v3315, %v3298
    %v3317 = vsel %vm656, %v3315, %v3299
    %v3318 = vsel %vm657, %v3315, %v3300
    %v3319 = vsel %vm658, %v3315, %v3301
    %v3320 = vsel %vm659, %v3315, %v3302
    %v3321 = vsel %vm660, %v3315, %v3303
    %v3322 = vsel %vm661, %v3315, %v3304
    %v3323 = vsel %vm662, %v3315, %v3305
    %v3324 = vsel %vm663, %v3315, %v3306
    %v3325 = vsel %vm664, %v3315, %v3307
    %v3326 = vsel %vm665, %v3315, %v3308
    %v3327 = vsel %vm666, %v3315, %v3309
    %v3328 = vsel %vm667, %v3315, %v3310
    %v3329 = vsel %vm668, %v3315, %v3311
    %v3330 = vsel %vm669, %v3315, %v3312
    %v3331 = vsel %vm670, %v3315, %v3313
    %s3332 = sld [smem:[#allocation2 + $0x584]]
    %v3333 = vstv %s3332
    %v3334 = vsel %vm689, %v3333, %v3316
    %v3335 = vsel %vm690, %v3333, %v3317
    %v3336 = vsel %vm691, %v3333, %v3318
    %v3337 = vsel %vm692, %v3333, %v3319
    %v3338 = vsel %vm693, %v3333, %v3320
    %v3339 = vsel %vm694, %v3333, %v3321
    %v3340 = vsel %vm695, %v3333, %v3322
    %v3341 = vsel %vm696, %v3333, %v3323
    %v3342 = vsel %vm697, %v3333, %v3324
    %v3343 = vsel %vm698, %v3333, %v3325
    %v3344 = vsel %vm699, %v3333, %v3326
    %v3345 = vsel %vm700, %v3333, %v3327
    %v3346 = vsel %vm701, %v3333, %v3328
    %v3347 = vsel %vm702, %v3333, %v3329
    %v3348 = vsel %vm703, %v3333, %v3330
    %v3349 = vsel %vm704, %v3333, %v3331
    %s3350 = sld [smem:[#allocation2 + $0x604]]
    %v3351 = vstv %s3350
    %v3352 = vsel %vm723, %v3351, %v3334
    %v3353 = vsel %vm724, %v3351, %v3335
    %v3354 = vsel %vm725, %v3351, %v3336
    %v3355 = vsel %vm726, %v3351, %v3337
    %v3356 = vsel %vm727, %v3351, %v3338
    %v3357 = vsel %vm728, %v3351, %v3339
    %v3358 = vsel %vm729, %v3351, %v3340
    %v3359 = vsel %vm730, %v3351, %v3341
    %v3360 = vsel %vm731, %v3351, %v3342
    %v3361 = vsel %vm732, %v3351, %v3343
    %v3362 = vsel %vm733, %v3351, %v3344
    %v3363 = vsel %vm734, %v3351, %v3345
    %v3364 = vsel %vm735, %v3351, %v3346
    %v3365 = vsel %vm736, %v3351, %v3347
    %v3366 = vsel %vm737, %v3351, %v3348
    %v3367 = vsel %vm738, %v3351, %v3349
    %s3368 = sld [smem:[#allocation2 + $0x684]]
    %v3369 = vstv %s3368
    %v3370 = vsel %vm757, %v3369, %v3352
    %v3371 = vsel %vm758, %v3369, %v3353
    %v3372 = vsel %vm759, %v3369, %v3354
    %v3373 = vsel %vm760, %v3369, %v3355
    %v3374 = vsel %vm761, %v3369, %v3356
    %v3375 = vsel %vm762, %v3369, %v3357
    %v3376 = vsel %vm763, %v3369, %v3358
    %v3377 = vsel %vm764, %v3369, %v3359
    %v3378 = vsel %vm765, %v3369, %v3360
    %v3379 = vsel %vm766, %v3369, %v3361
    %v3380 = vsel %vm767, %v3369, %v3362
    %v3381 = vsel %vm768, %v3369, %v3363
    %v3382 = vsel %vm769, %v3369, %v3364
    %v3383 = vsel %vm770, %v3369, %v3365
    %v3384 = vsel %vm771, %v3369, %v3366
    %v3385 = vsel %vm772, %v3369, %v3367
    %s3386 = sld [smem:[#allocation2 + $0x704]]
    %v3387 = vstv %s3386
    %v3388 = vsel %vm791, %v3387, %v3370
    %v3389 = vsel %vm792, %v3387, %v3371
    %v3390 = vsel %vm793, %v3387, %v3372
    %v3391 = vsel %vm794, %v3387, %v3373
    %v3392 = vsel %vm795, %v3387, %v3374
    %v3393 = vsel %vm796, %v3387, %v3375
    %v3394 = vsel %vm797, %v3387, %v3376
    %v3395 = vsel %vm798, %v3387, %v3377
    %v3396 = vsel %vm799, %v3387, %v3378
    %v3397 = vsel %vm800, %v3387, %v3379
    %v3398 = vsel %vm801, %v3387, %v3380
    %v3399 = vsel %vm802, %v3387, %v3381
    %v3400 = vsel %vm803, %v3387, %v3382
    %v3401 = vsel %vm804, %v3387, %v3383
    %v3402 = vsel %vm805, %v3387, %v3384
    %v3403 = vsel %vm806, %v3387, %v3385
    %s3404 = sld [smem:[#allocation2 + $0x784]]
    %v3405 = vstv %s3404
    %v3406 = vsel %vm825, %v3405, %v3388
    %v3407 = vsel %vm826, %v3405, %v3389
    %v3408 = vsel %vm827, %v3405, %v3390
    %v3409 = vsel %vm828, %v3405, %v3391
    %v3410 = vsel %vm829, %v3405, %v3392
    %v3411 = vsel %vm830, %v3405, %v3393
    %v3412 = vsel %vm831, %v3405, %v3394
    %v3413 = vsel %vm832, %v3405, %v3395
    %v3414 = vsel %vm833, %v3405, %v3396
    %v3415 = vsel %vm834, %v3405, %v3397
    %v3416 = vsel %vm835, %v3405, %v3398
    %v3417 = vsel %vm836, %v3405, %v3399
    %v3418 = vsel %vm837, %v3405, %v3400
    %v3419 = vsel %vm838, %v3405, %v3401
    %v3420 = vsel %vm839, %v3405, %v3402
    %v3421 = vsel %vm840, %v3405, %v3403
    %s3422 = sld [smem:[#allocation2 + $0x804]]
    %v3423 = vstv %s3422
    %v3424 = vsel %vm859, %v3423, %v3406
    %v3425 = vsel %vm860, %v3423, %v3407
    %v3426 = vsel %vm861, %v3423, %v3408
    %v3427 = vsel %vm862, %v3423, %v3409
    %v3428 = vsel %vm863, %v3423, %v3410
    %v3429 = vsel %vm864, %v3423, %v3411
    %v3430 = vsel %vm865, %v3423, %v3412
    %v3431 = vsel %vm866, %v3423, %v3413
    %v3432 = vsel %vm867, %v3423, %v3414
    %v3433 = vsel %vm868, %v3423, %v3415
    %v3434 = vsel %vm869, %v3423, %v3416
    %v3435 = vsel %vm870, %v3423, %v3417
    %v3436 = vsel %vm871, %v3423, %v3418
    %v3437 = vsel %vm872, %v3423, %v3419
    %v3438 = vsel %vm873, %v3423, %v3420
    %v3439 = vsel %vm874, %v3423, %v3421
    %s3440 = sld [smem:[#allocation2 + $0x884]]
    %v3441 = vstv %s3440
    %v3442 = vsel %vm893, %v3441, %v3424
    %v3443 = vsel %vm894, %v3441, %v3425
    %v3444 = vsel %vm895, %v3441, %v3426
    %v3445 = vsel %vm896, %v3441, %v3427
    %v3446 = vsel %vm897, %v3441, %v3428
    %v3447 = vsel %vm898, %v3441, %v3429
    %v3448 = vsel %vm899, %v3441, %v3430
    %v3449 = vsel %vm900, %v3441, %v3431
    %v3450 = vsel %vm901, %v3441, %v3432
    %v3451 = vsel %vm902, %v3441, %v3433
    %v3452 = vsel %vm903, %v3441, %v3434
    %v3453 = vsel %vm904, %v3441, %v3435
    %v3454 = vsel %vm905, %v3441, %v3436
    %v3455 = vsel %vm906, %v3441, %v3437
    %v3456 = vsel %vm907, %v3441, %v3438
    %v3457 = vsel %vm908, %v3441, %v3439
    %s3458 = sld [smem:[#allocation2 + $0x904]]
    %v3459 = vstv %s3458
    %v3460 = vsel %vm927, %v3459, %v3442
    %v3461 = vsel %vm928, %v3459, %v3443
    %v3462 = vsel %vm929, %v3459, %v3444
    %v3463 = vsel %vm930, %v3459, %v3445
    %v3464 = vsel %vm931, %v3459, %v3446
    %v3465 = vsel %vm932, %v3459, %v3447
    %v3466 = vsel %vm933, %v3459, %v3448
    %v3467 = vsel %vm934, %v3459, %v3449
    %v3468 = vsel %vm935, %v3459, %v3450
    %v3469 = vsel %vm936, %v3459, %v3451
    %v3470 = vsel %vm937, %v3459, %v3452
    %v3471 = vsel %vm938, %v3459, %v3453
    %v3472 = vsel %vm939, %v3459, %v3454
    %v3473 = vsel %vm940, %v3459, %v3455
    %v3474 = vsel %vm941, %v3459, %v3456
    %v3475 = vsel %vm942, %v3459, %v3457
    %s3476 = sld [smem:[#allocation2 + $0x984]]
    %v3477 = vstv %s3476
    %v3478 = vsel %vm961, %v3477, %v3460
    %v3479 = vsel %vm962, %v3477, %v3461
    %v3480 = vsel %vm963, %v3477, %v3462
    %v3481 = vsel %vm964, %v3477, %v3463
    %v3482 = vsel %vm965, %v3477, %v3464
    %v3483 = vsel %vm966, %v3477, %v3465
    %v3484 = vsel %vm967, %v3477, %v3466
    %v3485 = vsel %vm968, %v3477, %v3467
    %v3486 = vsel %vm969, %v3477, %v3468
    %v3487 = vsel %vm970, %v3477, %v3469
    %v3488 = vsel %vm971, %v3477, %v3470
    %v3489 = vsel %vm972, %v3477, %v3471
    %v3490 = vsel %vm973, %v3477, %v3472
    %v3491 = vsel %vm974, %v3477, %v3473
    %v3492 = vsel %vm975, %v3477, %v3474
    %v3493 = vsel %vm976, %v3477, %v3475
    %s3494 = sld [smem:[#allocation2 + $0xa04]]
    %v3495 = vstv %s3494
    %v3496 = vsel %vm995, %v3495, %v3478
    %v3497 = vsel %vm996, %v3495, %v3479
    %v3498 = vsel %vm997, %v3495, %v3480
    %v3499 = vsel %vm998, %v3495, %v3481
    %v3500 = vsel %vm999, %v3495, %v3482
    %v3501 = vsel %vm1000, %v3495, %v3483
    %v3502 = vsel %vm1001, %v3495, %v3484
    %v3503 = vsel %vm1002, %v3495, %v3485
    %v3504 = vsel %vm1003, %v3495, %v3486
    %v3505 = vsel %vm1004, %v3495, %v3487
    %v3506 = vsel %vm1005, %v3495, %v3488
    %v3507 = vsel %vm1006, %v3495, %v3489
    %v3508 = vsel %vm1007, %v3495, %v3490
    %v3509 = vsel %vm1008, %v3495, %v3491
    %v3510 = vsel %vm1009, %v3495, %v3492
    %v3511 = vsel %vm1010, %v3495, %v3493
    %s3512 = sld [smem:[#allocation2 + $0xa84]]
    %v3513 = vstv %s3512
    %v3514 = vsel %vm1029, %v3513, %v3496
    %v3515 = vsel %vm1030, %v3513, %v3497
    %v3516 = vsel %vm1031, %v3513, %v3498
    %v3517 = vsel %vm1032, %v3513, %v3499
    %v3518 = vsel %vm1033, %v3513, %v3500
    %v3519 = vsel %vm1034, %v3513, %v3501
    %v3520 = vsel %vm1035, %v3513, %v3502
    %v3521 = vsel %vm1036, %v3513, %v3503
    %v3522 = vsel %vm1037, %v3513, %v3504
    %v3523 = vsel %vm1038, %v3513, %v3505
    %v3524 = vsel %vm1039, %v3513, %v3506
    %v3525 = vsel %vm1040, %v3513, %v3507
    %v3526 = vsel %vm1041, %v3513, %v3508
    %v3527 = vsel %vm1042, %v3513, %v3509
    %v3528 = vsel %vm1043, %v3513, %v3510
    %v3529 = vsel %vm1044, %v3513, %v3511
    %s3530 = sld [smem:[#allocation2 + $0xb04]]
    %v3531 = vstv %s3530
    %v3532 = vsel %vm1063, %v3531, %v3514
    %v3533 = vsel %vm1064, %v3531, %v3515
    %v3534 = vsel %vm1065, %v3531, %v3516
    %v3535 = vsel %vm1066, %v3531, %v3517
    %v3536 = vsel %vm1067, %v3531, %v3518
    %v3537 = vsel %vm1068, %v3531, %v3519
    %v3538 = vsel %vm1069, %v3531, %v3520
    %v3539 = vsel %vm1070, %v3531, %v3521
    %v3540 = vsel %vm1071, %v3531, %v3522
    %v3541 = vsel %vm1072, %v3531, %v3523
    %v3542 = vsel %vm1073, %v3531, %v3524
    %v3543 = vsel %vm1074, %v3531, %v3525
    %v3544 = vsel %vm1075, %v3531, %v3526
    %v3545 = vsel %vm1076, %v3531, %v3527
    %v3546 = vsel %vm1077, %v3531, %v3528
    %v3547 = vsel %vm1078, %v3531, %v3529
    %s3548 = sld [smem:[#allocation2 + $0xb84]]
    %v3549 = vstv %s3548
    %v3550 = vsel %vm1097, %v3549, %v3532
    %v3551 = vsel %vm1098, %v3549, %v3533
    %v3552 = vsel %vm1099, %v3549, %v3534
    %v3553 = vsel %vm1100, %v3549, %v3535
    %v3554 = vsel %vm1101, %v3549, %v3536
    %v3555 = vsel %vm1102, %v3549, %v3537
    %v3556 = vsel %vm1103, %v3549, %v3538
    %v3557 = vsel %vm1104, %v3549, %v3539
    %v3558 = vsel %vm1105, %v3549, %v3540
    %v3559 = vsel %vm1106, %v3549, %v3541
    %v3560 = vsel %vm1107, %v3549, %v3542
    %v3561 = vsel %vm1108, %v3549, %v3543
    %v3562 = vsel %vm1109, %v3549, %v3544
    %v3563 = vsel %vm1110, %v3549, %v3545
    %v3564 = vsel %vm1111, %v3549, %v3546
    %v3565 = vsel %vm1112, %v3549, %v3547
    %s3566 = sld [smem:[#allocation2 + $0xc04]]
    %v3567 = vstv %s3566
    %v3568 = vsel %vm1131, %v3567, %v3550
    %v3569 = vsel %vm1132, %v3567, %v3551
    %v3570 = vsel %vm1133, %v3567, %v3552
    %v3571 = vsel %vm1134, %v3567, %v3553
    %v3572 = vsel %vm1135, %v3567, %v3554
    %v3573 = vsel %vm1136, %v3567, %v3555
    %v3574 = vsel %vm1137, %v3567, %v3556
    %v3575 = vsel %vm1138, %v3567, %v3557
    %v3576 = vsel %vm1139, %v3567, %v3558
    %v3577 = vsel %vm1140, %v3567, %v3559
    %v3578 = vsel %vm1141, %v3567, %v3560
    %v3579 = vsel %vm1142, %v3567, %v3561
    %v3580 = vsel %vm1143, %v3567, %v3562
    %v3581 = vsel %vm1144, %v3567, %v3563
    %v3582 = vsel %vm1145, %v3567, %v3564
    %v3583 = vsel %vm1146, %v3567, %v3565
    %s3584 = sld [smem:[#allocation2 + $0xc84]]
    %v3585 = vstv %s3584
    %v3586 = vsel %vm1165, %v3585, %v3568
    %v3587 = vsel %vm1166, %v3585, %v3569
    %v3588 = vsel %vm1167, %v3585, %v3570
    %v3589 = vsel %vm1168, %v3585, %v3571
    %v3590 = vsel %vm1169, %v3585, %v3572
    %v3591 = vsel %vm1170, %v3585, %v3573
    %v3592 = vsel %vm1171, %v3585, %v3574
    %v3593 = vsel %vm1172, %v3585, %v3575
    %v3594 = vsel %vm1173, %v3585, %v3576
    %v3595 = vsel %vm1174, %v3585, %v3577
    %v3596 = vsel %vm1175, %v3585, %v3578
    %v3597 = vsel %vm1176, %v3585, %v3579
    %v3598 = vsel %vm1177, %v3585, %v3580
    %v3599 = vsel %vm1178, %v3585, %v3581
    %v3600 = vsel %vm1179, %v3585, %v3582
    %v3601 = vsel %vm1180, %v3585, %v3583
    %s3602 = sld [smem:[#allocation2 + $0xd04]]
    %v3603 = vstv %s3602
    %v3604 = vsel %vm1199, %v3603, %v3586
    %v3605 = vsel %vm1200, %v3603, %v3587
    %v3606 = vsel %vm1201, %v3603, %v3588
    %v3607 = vsel %vm1202, %v3603, %v3589
    %v3608 = vsel %vm1203, %v3603, %v3590
    %v3609 = vsel %vm1204, %v3603, %v3591
    %v3610 = vsel %vm1205, %v3603, %v3592
    %v3611 = vsel %vm1206, %v3603, %v3593
    %v3612 = vsel %vm1207, %v3603, %v3594
    %v3613 = vsel %vm1208, %v3603, %v3595
    %v3614 = vsel %vm1209, %v3603, %v3596
    %v3615 = vsel %vm1210, %v3603, %v3597
    %v3616 = vsel %vm1211, %v3603, %v3598
    %v3617 = vsel %vm1212, %v3603, %v3599
    %v3618 = vsel %vm1213, %v3603, %v3600
    %v3619 = vsel %vm1214, %v3603, %v3601
    %s3620 = sld [smem:[#allocation2 + $0xd84]]
    %v3621 = vstv %s3620
    %v3622 = vsel %vm1233, %v3621, %v3604
    %v3623 = vsel %vm1234, %v3621, %v3605
    %v3624 = vsel %vm1235, %v3621, %v3606
    %v3625 = vsel %vm1236, %v3621, %v3607
    %v3626 = vsel %vm1237, %v3621, %v3608
    %v3627 = vsel %vm1238, %v3621, %v3609
    %v3628 = vsel %vm1239, %v3621, %v3610
    %v3629 = vsel %vm1240, %v3621, %v3611
    %v3630 = vsel %vm1241, %v3621, %v3612
    %v3631 = vsel %vm1242, %v3621, %v3613
    %v3632 = vsel %vm1243, %v3621, %v3614
    %v3633 = vsel %vm1244, %v3621, %v3615
    %v3634 = vsel %vm1245, %v3621, %v3616
    %v3635 = vsel %vm1246, %v3621, %v3617
    %v3636 = vsel %vm1247, %v3621, %v3618
    %v3637 = vsel %vm1248, %v3621, %v3619
    %s3638 = sld [smem:[#allocation2 + $0xe04]]
    %v3639 = vstv %s3638
    %v3640 = vsel %vm1267, %v3639, %v3622
    %v3641 = vsel %vm1268, %v3639, %v3623
    %v3642 = vsel %vm1269, %v3639, %v3624
    %v3643 = vsel %vm1270, %v3639, %v3625
    %v3644 = vsel %vm1271, %v3639, %v3626
    %v3645 = vsel %vm1272, %v3639, %v3627
    %v3646 = vsel %vm1273, %v3639, %v3628
    %v3647 = vsel %vm1274, %v3639, %v3629
    %v3648 = vsel %vm1275, %v3639, %v3630
    %v3649 = vsel %vm1276, %v3639, %v3631
    %v3650 = vsel %vm1277, %v3639, %v3632
    %v3651 = vsel %vm1278, %v3639, %v3633
    %v3652 = vsel %vm1279, %v3639, %v3634
    %v3653 = vsel %vm1280, %v3639, %v3635
    %v3654 = vsel %vm1281, %v3639, %v3636
    %v3655 = vsel %vm1282, %v3639, %v3637
    %s3656 = sld [smem:[#allocation2 + $0xe84]]
    %v3657 = vstv %s3656
    %v3658 = vsel %vm1301, %v3657, %v3640
    %v3659 = vsel %vm1302, %v3657, %v3641
    %v3660 = vsel %vm1303, %v3657, %v3642
    %v3661 = vsel %vm1304, %v3657, %v3643
    %v3662 = vsel %vm1305, %v3657, %v3644
    %v3663 = vsel %vm1306, %v3657, %v3645
    %v3664 = vsel %vm1307, %v3657, %v3646
    %v3665 = vsel %vm1308, %v3657, %v3647
    %v3666 = vsel %vm1309, %v3657, %v3648
    %v3667 = vsel %vm1310, %v3657, %v3649
    %v3668 = vsel %vm1311, %v3657, %v3650
    %v3669 = vsel %vm1312, %v3657, %v3651
    %v3670 = vsel %vm1313, %v3657, %v3652
    %v3671 = vsel %vm1314, %v3657, %v3653
    %v3672 = vsel %vm1315, %v3657, %v3654
    %v3673 = vsel %vm1316, %v3657, %v3655
    %s3674 = sld [smem:[#allocation2 + $0xf04]]
    %v3675 = vstv %s3674
    %v3676 = vsel %vm1335, %v3675, %v3658
    %v3677 = vsel %vm1336, %v3675, %v3659
    %v3678 = vsel %vm1337, %v3675, %v3660
    %v3679 = vsel %vm1338, %v3675, %v3661
    %v3680 = vsel %vm1339, %v3675, %v3662
    %v3681 = vsel %vm1340, %v3675, %v3663
    %v3682 = vsel %vm1341, %v3675, %v3664
    %v3683 = vsel %vm1342, %v3675, %v3665
    %v3684 = vsel %vm1343, %v3675, %v3666
    %v3685 = vsel %vm1344, %v3675, %v3667
    %v3686 = vsel %vm1345, %v3675, %v3668
    %v3687 = vsel %vm1346, %v3675, %v3669
    %v3688 = vsel %vm1347, %v3675, %v3670
    %v3689 = vsel %vm1348, %v3675, %v3671
    %v3690 = vsel %vm1349, %v3675, %v3672
    %v3691 = vsel %vm1350, %v3675, %v3673
    %s3692 = sld [smem:[#allocation2 + $0xf84]]
    %v3693 = vstv %s3692
    %v3694 = vsel %vm1369, %v3693, %v3676
    %v3695 = vsel %vm1370, %v3693, %v3677
    %v3696 = vsel %vm1371, %v3693, %v3678
    %v3697 = vsel %vm1372, %v3693, %v3679
    %v3698 = vsel %vm1373, %v3693, %v3680
    %v3699 = vsel %vm1374, %v3693, %v3681
    %v3700 = vsel %vm1375, %v3693, %v3682
    %v3701 = vsel %vm1376, %v3693, %v3683
    %v3702 = vsel %vm1377, %v3693, %v3684
    %v3703 = vsel %vm1378, %v3693, %v3685
    %v3704 = vsel %vm1379, %v3693, %v3686
    %v3705 = vsel %vm1380, %v3693, %v3687
    %v3706 = vsel %vm1381, %v3693, %v3688
    %v3707 = vsel %vm1382, %v3693, %v3689
    %v3708 = vsel %vm1383, %v3693, %v3690
    %v3709 = vsel %vm1384, %v3693, %v3691
    %s3710 = scalar_lea.vmem [#allocation5], 512
    %3711 = vst [vmem:[%s3710] sm:$0xff] %v3694
    %3712 = vst [vmem:[%s3710 + $0x8] sm:$0xff] %v3695
    %3713 = vst [vmem:[%s3710 + $0x10] sm:$0xff] %v3696
    %3714 = vst [vmem:[%s3710 + $0x18] sm:$0xff] %v3697
    %3715 = vst [vmem:[%s3710 + $0x20] sm:$0xff] %v3698
    %3716 = vst [vmem:[%s3710 + $0x28] sm:$0xff] %v3699
    %3717 = vst [vmem:[%s3710 + $0x30] sm:$0xff] %v3700
    %3718 = vst [vmem:[%s3710 + $0x38] sm:$0xff] %v3701
    %3719 = vst [vmem:[%s3710 + $0x40] sm:$0xff] %v3702
    %3720 = vst [vmem:[%s3710 + $0x48] sm:$0xff] %v3703
    %3721 = vst [vmem:[%s3710 + $0x50] sm:$0xff] %v3704
    %3722 = vst [vmem:[%s3710 + $0x58] sm:$0xff] %v3705
    %3723 = vst [vmem:[%s3710 + $0x60] sm:$0xff] %v3706
    %3724 = vst [vmem:[%s3710 + $0x68] sm:$0xff] %v3707
    %3725 = vst [vmem:[%s3710 + $0x70] sm:$0xff] %v3708
    %3726 = vst [vmem:[%s3710 + $0x78] sm:$0xff] %v3709
    %s3727 = sld [smem:[#allocation2 + $0x5]]
    %v3728 = vstv %s3727
    %s3729 = sld [smem:[#allocation2 + $0x85]]
    %v3730 = vstv %s3729
    %v3731 = vsel %vm349, %v3730, %v3728
    %v3732 = vsel %vm350, %v3730, %v3728
    %v3733 = vsel %vm351, %v3730, %v3728
    %v3734 = vsel %vm352, %v3730, %v3728
    %v3735 = vsel %vm353, %v3730, %v3728
    %v3736 = vsel %vm354, %v3730, %v3728
    %v3737 = vsel %vm355, %v3730, %v3728
    %v3738 = vsel %vm356, %v3730, %v3728
    %v3739 = vsel %vm357, %v3730, %v3728
    %v3740 = vsel %vm358, %v3730, %v3728
    %v3741 = vsel %vm359, %v3730, %v3728
    %v3742 = vsel %vm360, %v3730, %v3728
    %v3743 = vsel %vm361, %v3730, %v3728
    %v3744 = vsel %vm362, %v3730, %v3728
    %v3745 = vsel %vm363, %v3730, %v3728
    %v3746 = vsel %vm364, %v3730, %v3728
    %s3747 = sld [smem:[#allocation2 + $0x105]]
    %v3748 = vstv %s3747
    %v3749 = vsel %vm383, %v3748, %v3731
    %v3750 = vsel %vm384, %v3748, %v3732
    %v3751 = vsel %vm385, %v3748, %v3733
    %v3752 = vsel %vm386, %v3748, %v3734
    %v3753 = vsel %vm387, %v3748, %v3735
    %v3754 = vsel %vm388, %v3748, %v3736
    %v3755 = vsel %vm389, %v3748, %v3737
    %v3756 = vsel %vm390, %v3748, %v3738
    %v3757 = vsel %vm391, %v3748, %v3739
    %v3758 = vsel %vm392, %v3748, %v3740
    %v3759 = vsel %vm393, %v3748, %v3741
    %v3760 = vsel %vm394, %v3748, %v3742
    %v3761 = vsel %vm395, %v3748, %v3743
    %v3762 = vsel %vm396, %v3748, %v3744
    %v3763 = vsel %vm397, %v3748, %v3745
    %v3764 = vsel %vm398, %v3748, %v3746
    %s3765 = sld [smem:[#allocation2 + $0x185]]
    %v3766 = vstv %s3765
    %v3767 = vsel %vm417, %v3766, %v3749
    %v3768 = vsel %vm418, %v3766, %v3750
    %v3769 = vsel %vm419, %v3766, %v3751
    %v3770 = vsel %vm420, %v3766, %v3752
    %v3771 = vsel %vm421, %v3766, %v3753
    %v3772 = vsel %vm422, %v3766, %v3754
    %v3773 = vsel %vm423, %v3766, %v3755
    %v3774 = vsel %vm424, %v3766, %v3756
    %v3775 = vsel %vm425, %v3766, %v3757
    %v3776 = vsel %vm426, %v3766, %v3758
    %v3777 = vsel %vm427, %v3766, %v3759
    %v3778 = vsel %vm428, %v3766, %v3760
    %v3779 = vsel %vm429, %v3766, %v3761
    %v3780 = vsel %vm430, %v3766, %v3762
    %v3781 = vsel %vm431, %v3766, %v3763
    %v3782 = vsel %vm432, %v3766, %v3764
    %s3783 = sld [smem:[#allocation2 + $0x205]]
    %v3784 = vstv %s3783
    %v3785 = vsel %vm451, %v3784, %v3767
    %v3786 = vsel %vm452, %v3784, %v3768
    %v3787 = vsel %vm453, %v3784, %v3769
    %v3788 = vsel %vm454, %v3784, %v3770
    %v3789 = vsel %vm455, %v3784, %v3771
    %v3790 = vsel %vm456, %v3784, %v3772
    %v3791 = vsel %vm457, %v3784, %v3773
    %v3792 = vsel %vm458, %v3784, %v3774
    %v3793 = vsel %vm459, %v3784, %v3775
    %v3794 = vsel %vm460, %v3784, %v3776
    %v3795 = vsel %vm461, %v3784, %v3777
    %v3796 = vsel %vm462, %v3784, %v3778
    %v3797 = vsel %vm463, %v3784, %v3779
    %v3798 = vsel %vm464, %v3784, %v3780
    %v3799 = vsel %vm465, %v3784, %v3781
    %v3800 = vsel %vm466, %v3784, %v3782
    %s3801 = sld [smem:[#allocation2 + $0x285]]
    %v3802 = vstv %s3801
    %v3803 = vsel %vm485, %v3802, %v3785
    %v3804 = vsel %vm486, %v3802, %v3786
    %v3805 = vsel %vm487, %v3802, %v3787
    %v3806 = vsel %vm488, %v3802, %v3788
    %v3807 = vsel %vm489, %v3802, %v3789
    %v3808 = vsel %vm490, %v3802, %v3790
    %v3809 = vsel %vm491, %v3802, %v3791
    %v3810 = vsel %vm492, %v3802, %v3792
    %v3811 = vsel %vm493, %v3802, %v3793
    %v3812 = vsel %vm494, %v3802, %v3794
    %v3813 = vsel %vm495, %v3802, %v3795
    %v3814 = vsel %vm496, %v3802, %v3796
    %v3815 = vsel %vm497, %v3802, %v3797
    %v3816 = vsel %vm498, %v3802, %v3798
    %v3817 = vsel %vm499, %v3802, %v3799
    %v3818 = vsel %vm500, %v3802, %v3800
    %s3819 = sld [smem:[#allocation2 + $0x305]]
    %v3820 = vstv %s3819
    %v3821 = vsel %vm519, %v3820, %v3803
    %v3822 = vsel %vm520, %v3820, %v3804
    %v3823 = vsel %vm521, %v3820, %v3805
    %v3824 = vsel %vm522, %v3820, %v3806
    %v3825 = vsel %vm523, %v3820, %v3807
    %v3826 = vsel %vm524, %v3820, %v3808
    %v3827 = vsel %vm525, %v3820, %v3809
    %v3828 = vsel %vm526, %v3820, %v3810
    %v3829 = vsel %vm527, %v3820, %v3811
    %v3830 = vsel %vm528, %v3820, %v3812
    %v3831 = vsel %vm529, %v3820, %v3813
    %v3832 = vsel %vm530, %v3820, %v3814
    %v3833 = vsel %vm531, %v3820, %v3815
    %v3834 = vsel %vm532, %v3820, %v3816
    %v3835 = vsel %vm533, %v3820, %v3817
    %v3836 = vsel %vm534, %v3820, %v3818
    %s3837 = sld [smem:[#allocation2 + $0x385]]
    %v3838 = vstv %s3837
    %v3839 = vsel %vm553, %v3838, %v3821
    %v3840 = vsel %vm554, %v3838, %v3822
    %v3841 = vsel %vm555, %v3838, %v3823
    %v3842 = vsel %vm556, %v3838, %v3824
    %v3843 = vsel %vm557, %v3838, %v3825
    %v3844 = vsel %vm558, %v3838, %v3826
    %v3845 = vsel %vm559, %v3838, %v3827
    %v3846 = vsel %vm560, %v3838, %v3828
    %v3847 = vsel %vm561, %v3838, %v3829
    %v3848 = vsel %vm562, %v3838, %v3830
    %v3849 = vsel %vm563, %v3838, %v3831
    %v3850 = vsel %vm564, %v3838, %v3832
    %v3851 = vsel %vm565, %v3838, %v3833
    %v3852 = vsel %vm566, %v3838, %v3834
    %v3853 = vsel %vm567, %v3838, %v3835
    %v3854 = vsel %vm568, %v3838, %v3836
    %s3855 = sld [smem:[#allocation2 + $0x405]]
    %v3856 = vstv %s3855
    %v3857 = vsel %vm587, %v3856, %v3839
    %v3858 = vsel %vm588, %v3856, %v3840
    %v3859 = vsel %vm589, %v3856, %v3841
    %v3860 = vsel %vm590, %v3856, %v3842
    %v3861 = vsel %vm591, %v3856, %v3843
    %v3862 = vsel %vm592, %v3856, %v3844
    %v3863 = vsel %vm593, %v3856, %v3845
    %v3864 = vsel %vm594, %v3856, %v3846
    %v3865 = vsel %vm595, %v3856, %v3847
    %v3866 = vsel %vm596, %v3856, %v3848
    %v3867 = vsel %vm597, %v3856, %v3849
    %v3868 = vsel %vm598, %v3856, %v3850
    %v3869 = vsel %vm599, %v3856, %v3851
    %v3870 = vsel %vm600, %v3856, %v3852
    %v3871 = vsel %vm601, %v3856, %v3853
    %v3872 = vsel %vm602, %v3856, %v3854
    %s3873 = sld [smem:[#allocation2 + $0x485]]
    %v3874 = vstv %s3873
    %v3875 = vsel %vm621, %v3874, %v3857
    %v3876 = vsel %vm622, %v3874, %v3858
    %v3877 = vsel %vm623, %v3874, %v3859
    %v3878 = vsel %vm624, %v3874, %v3860
    %v3879 = vsel %vm625, %v3874, %v3861
    %v3880 = vsel %vm626, %v3874, %v3862
    %v3881 = vsel %vm627, %v3874, %v3863
    %v3882 = vsel %vm628, %v3874, %v3864
    %v3883 = vsel %vm629, %v3874, %v3865
    %v3884 = vsel %vm630, %v3874, %v3866
    %v3885 = vsel %vm631, %v3874, %v3867
    %v3886 = vsel %vm632, %v3874, %v3868
    %v3887 = vsel %vm633, %v3874, %v3869
    %v3888 = vsel %vm634, %v3874, %v3870
    %v3889 = vsel %vm635, %v3874, %v3871
    %v3890 = vsel %vm636, %v3874, %v3872
    %s3891 = sld [smem:[#allocation2 + $0x505]]
    %v3892 = vstv %s3891
    %v3893 = vsel %vm655, %v3892, %v3875
    %v3894 = vsel %vm656, %v3892, %v3876
    %v3895 = vsel %vm657, %v3892, %v3877
    %v3896 = vsel %vm658, %v3892, %v3878
    %v3897 = vsel %vm659, %v3892, %v3879
    %v3898 = vsel %vm660, %v3892, %v3880
    %v3899 = vsel %vm661, %v3892, %v3881
    %v3900 = vsel %vm662, %v3892, %v3882
    %v3901 = vsel %vm663, %v3892, %v3883
    %v3902 = vsel %vm664, %v3892, %v3884
    %v3903 = vsel %vm665, %v3892, %v3885
    %v3904 = vsel %vm666, %v3892, %v3886
    %v3905 = vsel %vm667, %v3892, %v3887
    %v3906 = vsel %vm668, %v3892, %v3888
    %v3907 = vsel %vm669, %v3892, %v3889
    %v3908 = vsel %vm670, %v3892, %v3890
    %s3909 = sld [smem:[#allocation2 + $0x585]]
    %v3910 = vstv %s3909
    %v3911 = vsel %vm689, %v3910, %v3893
    %v3912 = vsel %vm690, %v3910, %v3894
    %v3913 = vsel %vm691, %v3910, %v3895
    %v3914 = vsel %vm692, %v3910, %v3896
    %v3915 = vsel %vm693, %v3910, %v3897
    %v3916 = vsel %vm694, %v3910, %v3898
    %v3917 = vsel %vm695, %v3910, %v3899
    %v3918 = vsel %vm696, %v3910, %v3900
    %v3919 = vsel %vm697, %v3910, %v3901
    %v3920 = vsel %vm698, %v3910, %v3902
    %v3921 = vsel %vm699, %v3910, %v3903
    %v3922 = vsel %vm700, %v3910, %v3904
    %v3923 = vsel %vm701, %v3910, %v3905
    %v3924 = vsel %vm702, %v3910, %v3906
    %v3925 = vsel %vm703, %v3910, %v3907
    %v3926 = vsel %vm704, %v3910, %v3908
    %s3927 = sld [smem:[#allocation2 + $0x605]]
    %v3928 = vstv %s3927
    %v3929 = vsel %vm723, %v3928, %v3911
    %v3930 = vsel %vm724, %v3928, %v3912
    %v3931 = vsel %vm725, %v3928, %v3913
    %v3932 = vsel %vm726, %v3928, %v3914
    %v3933 = vsel %vm727, %v3928, %v3915
    %v3934 = vsel %vm728, %v3928, %v3916
    %v3935 = vsel %vm729, %v3928, %v3917
    %v3936 = vsel %vm730, %v3928, %v3918
    %v3937 = vsel %vm731, %v3928, %v3919
    %v3938 = vsel %vm732, %v3928, %v3920
    %v3939 = vsel %vm733, %v3928, %v3921
    %v3940 = vsel %vm734, %v3928, %v3922
    %v3941 = vsel %vm735, %v3928, %v3923
    %v3942 = vsel %vm736, %v3928, %v3924
    %v3943 = vsel %vm737, %v3928, %v3925
    %v3944 = vsel %vm738, %v3928, %v3926
    %s3945 = sld [smem:[#allocation2 + $0x685]]
    %v3946 = vstv %s3945
    %v3947 = vsel %vm757, %v3946, %v3929
    %v3948 = vsel %vm758, %v3946, %v3930
    %v3949 = vsel %vm759, %v3946, %v3931
    %v3950 = vsel %vm760, %v3946, %v3932
    %v3951 = vsel %vm761, %v3946, %v3933
    %v3952 = vsel %vm762, %v3946, %v3934
    %v3953 = vsel %vm763, %v3946, %v3935
    %v3954 = vsel %vm764, %v3946, %v3936
    %v3955 = vsel %vm765, %v3946, %v3937
    %v3956 = vsel %vm766, %v3946, %v3938
    %v3957 = vsel %vm767, %v3946, %v3939
    %v3958 = vsel %vm768, %v3946, %v3940
    %v3959 = vsel %vm769, %v3946, %v3941
    %v3960 = vsel %vm770, %v3946, %v3942
    %v3961 = vsel %vm771, %v3946, %v3943
    %v3962 = vsel %vm772, %v3946, %v3944
    %s3963 = sld [smem:[#allocation2 + $0x705]]
    %v3964 = vstv %s3963
    %v3965 = vsel %vm791, %v3964, %v3947
    %v3966 = vsel %vm792, %v3964, %v3948
    %v3967 = vsel %vm793, %v3964, %v3949
    %v3968 = vsel %vm794, %v3964, %v3950
    %v3969 = vsel %vm795, %v3964, %v3951
    %v3970 = vsel %vm796, %v3964, %v3952
    %v3971 = vsel %vm797, %v3964, %v3953
    %v3972 = vsel %vm798, %v3964, %v3954
    %v3973 = vsel %vm799, %v3964, %v3955
    %v3974 = vsel %vm800, %v3964, %v3956
    %v3975 = vsel %vm801, %v3964, %v3957
    %v3976 = vsel %vm802, %v3964, %v3958
    %v3977 = vsel %vm803, %v3964, %v3959
    %v3978 = vsel %vm804, %v3964, %v3960
    %v3979 = vsel %vm805, %v3964, %v3961
    %v3980 = vsel %vm806, %v3964, %v3962
    %s3981 = sld [smem:[#allocation2 + $0x785]]
    %v3982 = vstv %s3981
    %v3983 = vsel %vm825, %v3982, %v3965
    %v3984 = vsel %vm826, %v3982, %v3966
    %v3985 = vsel %vm827, %v3982, %v3967
    %v3986 = vsel %vm828, %v3982, %v3968
    %v3987 = vsel %vm829, %v3982, %v3969
    %v3988 = vsel %vm830, %v3982, %v3970
    %v3989 = vsel %vm831, %v3982, %v3971
    %v3990 = vsel %vm832, %v3982, %v3972
    %v3991 = vsel %vm833, %v3982, %v3973
    %v3992 = vsel %vm834, %v3982, %v3974
    %v3993 = vsel %vm835, %v3982, %v3975
    %v3994 = vsel %vm836, %v3982, %v3976
    %v3995 = vsel %vm837, %v3982, %v3977
    %v3996 = vsel %vm838, %v3982, %v3978
    %v3997 = vsel %vm839, %v3982, %v3979
    %v3998 = vsel %vm840, %v3982, %v3980
    %s3999 = sld [smem:[#allocation2 + $0x805]]
    %v4000 = vstv %s3999
    %v4001 = vsel %vm859, %v4000, %v3983
    %v4002 = vsel %vm860, %v4000, %v3984
    %v4003 = vsel %vm861, %v4000, %v3985
    %v4004 = vsel %vm862, %v4000, %v3986
    %v4005 = vsel %vm863, %v4000, %v3987
    %v4006 = vsel %vm864, %v4000, %v3988
    %v4007 = vsel %vm865, %v4000, %v3989
    %v4008 = vsel %vm866, %v4000, %v3990
    %v4009 = vsel %vm867, %v4000, %v3991
    %v4010 = vsel %vm868, %v4000, %v3992
    %v4011 = vsel %vm869, %v4000, %v3993
    %v4012 = vsel %vm870, %v4000, %v3994
    %v4013 = vsel %vm871, %v4000, %v3995
    %v4014 = vsel %vm872, %v4000, %v3996
    %v4015 = vsel %vm873, %v4000, %v3997
    %v4016 = vsel %vm874, %v4000, %v3998
    %s4017 = sld [smem:[#allocation2 + $0x885]]
    %v4018 = vstv %s4017
    %v4019 = vsel %vm893, %v4018, %v4001
    %v4020 = vsel %vm894, %v4018, %v4002
    %v4021 = vsel %vm895, %v4018, %v4003
    %v4022 = vsel %vm896, %v4018, %v4004
    %v4023 = vsel %vm897, %v4018, %v4005
    %v4024 = vsel %vm898, %v4018, %v4006
    %v4025 = vsel %vm899, %v4018, %v4007
    %v4026 = vsel %vm900, %v4018, %v4008
    %v4027 = vsel %vm901, %v4018, %v4009
    %v4028 = vsel %vm902, %v4018, %v4010
    %v4029 = vsel %vm903, %v4018, %v4011
    %v4030 = vsel %vm904, %v4018, %v4012
    %v4031 = vsel %vm905, %v4018, %v4013
    %v4032 = vsel %vm906, %v4018, %v4014
    %v4033 = vsel %vm907, %v4018, %v4015
    %v4034 = vsel %vm908, %v4018, %v4016
    %s4035 = sld [smem:[#allocation2 + $0x905]]
    %v4036 = vstv %s4035
    %v4037 = vsel %vm927, %v4036, %v4019
    %v4038 = vsel %vm928, %v4036, %v4020
    %v4039 = vsel %vm929, %v4036, %v4021
    %v4040 = vsel %vm930, %v4036, %v4022
    %v4041 = vsel %vm931, %v4036, %v4023
    %v4042 = vsel %vm932, %v4036, %v4024
    %v4043 = vsel %vm933, %v4036, %v4025
    %v4044 = vsel %vm934, %v4036, %v4026
    %v4045 = vsel %vm935, %v4036, %v4027
    %v4046 = vsel %vm936, %v4036, %v4028
    %v4047 = vsel %vm937, %v4036, %v4029
    %v4048 = vsel %vm938, %v4036, %v4030
    %v4049 = vsel %vm939, %v4036, %v4031
    %v4050 = vsel %vm940, %v4036, %v4032
    %v4051 = vsel %vm941, %v4036, %v4033
    %v4052 = vsel %vm942, %v4036, %v4034
    %s4053 = sld [smem:[#allocation2 + $0x985]]
    %v4054 = vstv %s4053
    %v4055 = vsel %vm961, %v4054, %v4037
    %v4056 = vsel %vm962, %v4054, %v4038
    %v4057 = vsel %vm963, %v4054, %v4039
    %v4058 = vsel %vm964, %v4054, %v4040
    %v4059 = vsel %vm965, %v4054, %v4041
    %v4060 = vsel %vm966, %v4054, %v4042
    %v4061 = vsel %vm967, %v4054, %v4043
    %v4062 = vsel %vm968, %v4054, %v4044
    %v4063 = vsel %vm969, %v4054, %v4045
    %v4064 = vsel %vm970, %v4054, %v4046
    %v4065 = vsel %vm971, %v4054, %v4047
    %v4066 = vsel %vm972, %v4054, %v4048
    %v4067 = vsel %vm973, %v4054, %v4049
    %v4068 = vsel %vm974, %v4054, %v4050
    %v4069 = vsel %vm975, %v4054, %v4051
    %v4070 = vsel %vm976, %v4054, %v4052
    %s4071 = sld [smem:[#allocation2 + $0xa05]]
    %v4072 = vstv %s4071
    %v4073 = vsel %vm995, %v4072, %v4055
    %v4074 = vsel %vm996, %v4072, %v4056
    %v4075 = vsel %vm997, %v4072, %v4057
    %v4076 = vsel %vm998, %v4072, %v4058
    %v4077 = vsel %vm999, %v4072, %v4059
    %v4078 = vsel %vm1000, %v4072, %v4060
    %v4079 = vsel %vm1001, %v4072, %v4061
    %v4080 = vsel %vm1002, %v4072, %v4062
    %v4081 = vsel %vm1003, %v4072, %v4063
    %v4082 = vsel %vm1004, %v4072, %v4064
    %v4083 = vsel %vm1005, %v4072, %v4065
    %v4084 = vsel %vm1006, %v4072, %v4066
    %v4085 = vsel %vm1007, %v4072, %v4067
    %v4086 = vsel %vm1008, %v4072, %v4068
    %v4087 = vsel %vm1009, %v4072, %v4069
    %v4088 = vsel %vm1010, %v4072, %v4070
    %s4089 = sld [smem:[#allocation2 + $0xa85]]
    %v4090 = vstv %s4089
    %v4091 = vsel %vm1029, %v4090, %v4073
    %v4092 = vsel %vm1030, %v4090, %v4074
    %v4093 = vsel %vm1031, %v4090, %v4075
    %v4094 = vsel %vm1032, %v4090, %v4076
    %v4095 = vsel %vm1033, %v4090, %v4077
    %v4096 = vsel %vm1034, %v4090, %v4078
    %v4097 = vsel %vm1035, %v4090, %v4079
    %v4098 = vsel %vm1036, %v4090, %v4080
    %v4099 = vsel %vm1037, %v4090, %v4081
    %v4100 = vsel %vm1038, %v4090, %v4082
    %v4101 = vsel %vm1039, %v4090, %v4083
    %v4102 = vsel %vm1040, %v4090, %v4084
    %v4103 = vsel %vm1041, %v4090, %v4085
    %v4104 = vsel %vm1042, %v4090, %v4086
    %v4105 = vsel %vm1043, %v4090, %v4087
    %v4106 = vsel %vm1044, %v4090, %v4088
    %s4107 = sld [smem:[#allocation2 + $0xb05]]
    %v4108 = vstv %s4107
    %v4109 = vsel %vm1063, %v4108, %v4091
    %v4110 = vsel %vm1064, %v4108, %v4092
    %v4111 = vsel %vm1065, %v4108, %v4093
    %v4112 = vsel %vm1066, %v4108, %v4094
    %v4113 = vsel %vm1067, %v4108, %v4095
    %v4114 = vsel %vm1068, %v4108, %v4096
    %v4115 = vsel %vm1069, %v4108, %v4097
    %v4116 = vsel %vm1070, %v4108, %v4098
    %v4117 = vsel %vm1071, %v4108, %v4099
    %v4118 = vsel %vm1072, %v4108, %v4100
    %v4119 = vsel %vm1073, %v4108, %v4101
    %v4120 = vsel %vm1074, %v4108, %v4102
    %v4121 = vsel %vm1075, %v4108, %v4103
    %v4122 = vsel %vm1076, %v4108, %v4104
    %v4123 = vsel %vm1077, %v4108, %v4105
    %v4124 = vsel %vm1078, %v4108, %v4106
    %s4125 = sld [smem:[#allocation2 + $0xb85]]
    %v4126 = vstv %s4125
    %v4127 = vsel %vm1097, %v4126, %v4109
    %v4128 = vsel %vm1098, %v4126, %v4110
    %v4129 = vsel %vm1099, %v4126, %v4111
    %v4130 = vsel %vm1100, %v4126, %v4112
    %v4131 = vsel %vm1101, %v4126, %v4113
    %v4132 = vsel %vm1102, %v4126, %v4114
    %v4133 = vsel %vm1103, %v4126, %v4115
    %v4134 = vsel %vm1104, %v4126, %v4116
    %v4135 = vsel %vm1105, %v4126, %v4117
    %v4136 = vsel %vm1106, %v4126, %v4118
    %v4137 = vsel %vm1107, %v4126, %v4119
    %v4138 = vsel %vm1108, %v4126, %v4120
    %v4139 = vsel %vm1109, %v4126, %v4121
    %v4140 = vsel %vm1110, %v4126, %v4122
    %v4141 = vsel %vm1111, %v4126, %v4123
    %v4142 = vsel %vm1112, %v4126, %v4124
    %s4143 = sld [smem:[#allocation2 + $0xc05]]
    %v4144 = vstv %s4143
    %v4145 = vsel %vm1131, %v4144, %v4127
    %v4146 = vsel %vm1132, %v4144, %v4128
    %v4147 = vsel %vm1133, %v4144, %v4129
    %v4148 = vsel %vm1134, %v4144, %v4130
    %v4149 = vsel %vm1135, %v4144, %v4131
    %v4150 = vsel %vm1136, %v4144, %v4132
    %v4151 = vsel %vm1137, %v4144, %v4133
    %v4152 = vsel %vm1138, %v4144, %v4134
    %v4153 = vsel %vm1139, %v4144, %v4135
    %v4154 = vsel %vm1140, %v4144, %v4136
    %v4155 = vsel %vm1141, %v4144, %v4137
    %v4156 = vsel %vm1142, %v4144, %v4138
    %v4157 = vsel %vm1143, %v4144, %v4139
    %v4158 = vsel %vm1144, %v4144, %v4140
    %v4159 = vsel %vm1145, %v4144, %v4141
    %v4160 = vsel %vm1146, %v4144, %v4142
    %s4161 = sld [smem:[#allocation2 + $0xc85]]
    %v4162 = vstv %s4161
    %v4163 = vsel %vm1165, %v4162, %v4145
    %v4164 = vsel %vm1166, %v4162, %v4146
    %v4165 = vsel %vm1167, %v4162, %v4147
    %v4166 = vsel %vm1168, %v4162, %v4148
    %v4167 = vsel %vm1169, %v4162, %v4149
    %v4168 = vsel %vm1170, %v4162, %v4150
    %v4169 = vsel %vm1171, %v4162, %v4151
    %v4170 = vsel %vm1172, %v4162, %v4152
    %v4171 = vsel %vm1173, %v4162, %v4153
    %v4172 = vsel %vm1174, %v4162, %v4154
    %v4173 = vsel %vm1175, %v4162, %v4155
    %v4174 = vsel %vm1176, %v4162, %v4156
    %v4175 = vsel %vm1177, %v4162, %v4157
    %v4176 = vsel %vm1178, %v4162, %v4158
    %v4177 = vsel %vm1179, %v4162, %v4159
    %v4178 = vsel %vm1180, %v4162, %v4160
    %s4179 = sld [smem:[#allocation2 + $0xd05]]
    %v4180 = vstv %s4179
    %v4181 = vsel %vm1199, %v4180, %v4163
    %v4182 = vsel %vm1200, %v4180, %v4164
    %v4183 = vsel %vm1201, %v4180, %v4165
    %v4184 = vsel %vm1202, %v4180, %v4166
    %v4185 = vsel %vm1203, %v4180, %v4167
    %v4186 = vsel %vm1204, %v4180, %v4168
    %v4187 = vsel %vm1205, %v4180, %v4169
    %v4188 = vsel %vm1206, %v4180, %v4170
    %v4189 = vsel %vm1207, %v4180, %v4171
    %v4190 = vsel %vm1208, %v4180, %v4172
    %v4191 = vsel %vm1209, %v4180, %v4173
    %v4192 = vsel %vm1210, %v4180, %v4174
    %v4193 = vsel %vm1211, %v4180, %v4175
    %v4194 = vsel %vm1212, %v4180, %v4176
    %v4195 = vsel %vm1213, %v4180, %v4177
    %v4196 = vsel %vm1214, %v4180, %v4178
    %s4197 = sld [smem:[#allocation2 + $0xd85]]
    %v4198 = vstv %s4197
    %v4199 = vsel %vm1233, %v4198, %v4181
    %v4200 = vsel %vm1234, %v4198, %v4182
    %v4201 = vsel %vm1235, %v4198, %v4183
    %v4202 = vsel %vm1236, %v4198, %v4184
    %v4203 = vsel %vm1237, %v4198, %v4185
    %v4204 = vsel %vm1238, %v4198, %v4186
    %v4205 = vsel %vm1239, %v4198, %v4187
    %v4206 = vsel %vm1240, %v4198, %v4188
    %v4207 = vsel %vm1241, %v4198, %v4189
    %v4208 = vsel %vm1242, %v4198, %v4190
    %v4209 = vsel %vm1243, %v4198, %v4191
    %v4210 = vsel %vm1244, %v4198, %v4192
    %v4211 = vsel %vm1245, %v4198, %v4193
    %v4212 = vsel %vm1246, %v4198, %v4194
    %v4213 = vsel %vm1247, %v4198, %v4195
    %v4214 = vsel %vm1248, %v4198, %v4196
    %s4215 = sld [smem:[#allocation2 + $0xe05]]
    %v4216 = vstv %s4215
    %v4217 = vsel %vm1267, %v4216, %v4199
    %v4218 = vsel %vm1268, %v4216, %v4200
    %v4219 = vsel %vm1269, %v4216, %v4201
    %v4220 = vsel %vm1270, %v4216, %v4202
    %v4221 = vsel %vm1271, %v4216, %v4203
    %v4222 = vsel %vm1272, %v4216, %v4204
    %v4223 = vsel %vm1273, %v4216, %v4205
    %v4224 = vsel %vm1274, %v4216, %v4206
    %v4225 = vsel %vm1275, %v4216, %v4207
    %v4226 = vsel %vm1276, %v4216, %v4208
    %v4227 = vsel %vm1277, %v4216, %v4209
    %v4228 = vsel %vm1278, %v4216, %v4210
    %v4229 = vsel %vm1279, %v4216, %v4211
    %v4230 = vsel %vm1280, %v4216, %v4212
    %v4231 = vsel %vm1281, %v4216, %v4213
    %v4232 = vsel %vm1282, %v4216, %v4214
    %s4233 = sld [smem:[#allocation2 + $0xe85]]
    %v4234 = vstv %s4233
    %v4235 = vsel %vm1301, %v4234, %v4217
    %v4236 = vsel %vm1302, %v4234, %v4218
    %v4237 = vsel %vm1303, %v4234, %v4219
    %v4238 = vsel %vm1304, %v4234, %v4220
    %v4239 = vsel %vm1305, %v4234, %v4221
    %v4240 = vsel %vm1306, %v4234, %v4222
    %v4241 = vsel %vm1307, %v4234, %v4223
    %v4242 = vsel %vm1308, %v4234, %v4224
    %v4243 = vsel %vm1309, %v4234, %v4225
    %v4244 = vsel %vm1310, %v4234, %v4226
    %v4245 = vsel %vm1311, %v4234, %v4227
    %v4246 = vsel %vm1312, %v4234, %v4228
    %v4247 = vsel %vm1313, %v4234, %v4229
    %v4248 = vsel %vm1314, %v4234, %v4230
    %v4249 = vsel %vm1315, %v4234, %v4231
    %v4250 = vsel %vm1316, %v4234, %v4232
    %s4251 = sld [smem:[#allocation2 + $0xf05]]
    %v4252 = vstv %s4251
    %v4253 = vsel %vm1335, %v4252, %v4235
    %v4254 = vsel %vm1336, %v4252, %v4236
    %v4255 = vsel %vm1337, %v4252, %v4237
    %v4256 = vsel %vm1338, %v4252, %v4238
    %v4257 = vsel %vm1339, %v4252, %v4239
    %v4258 = vsel %vm1340, %v4252, %v4240
    %v4259 = vsel %vm1341, %v4252, %v4241
    %v4260 = vsel %vm1342, %v4252, %v4242
    %v4261 = vsel %vm1343, %v4252, %v4243
    %v4262 = vsel %vm1344, %v4252, %v4244
    %v4263 = vsel %vm1345, %v4252, %v4245
    %v4264 = vsel %vm1346, %v4252, %v4246
    %v4265 = vsel %vm1347, %v4252, %v4247
    %v4266 = vsel %vm1348, %v4252, %v4248
    %v4267 = vsel %vm1349, %v4252, %v4249
    %v4268 = vsel %vm1350, %v4252, %v4250
    %s4269 = sld [smem:[#allocation2 + $0xf85]]
    %v4270 = vstv %s4269
    %v4271 = vsel %vm1369, %v4270, %v4253
    %v4272 = vsel %vm1370, %v4270, %v4254
    %v4273 = vsel %vm1371, %v4270, %v4255
    %v4274 = vsel %vm1372, %v4270, %v4256
    %v4275 = vsel %vm1373, %v4270, %v4257
    %v4276 = vsel %vm1374, %v4270, %v4258
    %v4277 = vsel %vm1375, %v4270, %v4259
    %v4278 = vsel %vm1376, %v4270, %v4260
    %v4279 = vsel %vm1377, %v4270, %v4261
    %v4280 = vsel %vm1378, %v4270, %v4262
    %v4281 = vsel %vm1379, %v4270, %v4263
    %v4282 = vsel %vm1380, %v4270, %v4264
    %v4283 = vsel %vm1381, %v4270, %v4265
    %v4284 = vsel %vm1382, %v4270, %v4266
    %v4285 = vsel %vm1383, %v4270, %v4267
    %v4286 = vsel %vm1384, %v4270, %v4268
    %s4287 = scalar_lea.vmem [#allocation5], 640
    %4288 = vst [vmem:[%s4287] sm:$0xff] %v4271
    %4289 = vst [vmem:[%s4287 + $0x8] sm:$0xff] %v4272
    %4290 = vst [vmem:[%s4287 + $0x10] sm:$0xff] %v4273
    %4291 = vst [vmem:[%s4287 + $0x18] sm:$0xff] %v4274
    %4292 = vst [vmem:[%s4287 + $0x20] sm:$0xff] %v4275
    %4293 = vst [vmem:[%s4287 + $0x28] sm:$0xff] %v4276
    %4294 = vst [vmem:[%s4287 + $0x30] sm:$0xff] %v4277
    %4295 = vst [vmem:[%s4287 + $0x38] sm:$0xff] %v4278
    %4296 = vst [vmem:[%s4287 + $0x40] sm:$0xff] %v4279
    %4297 = vst [vmem:[%s4287 + $0x48] sm:$0xff] %v4280
    %4298 = vst [vmem:[%s4287 + $0x50] sm:$0xff] %v4281
    %4299 = vst [vmem:[%s4287 + $0x58] sm:$0xff] %v4282
    %4300 = vst [vmem:[%s4287 + $0x60] sm:$0xff] %v4283
    %4301 = vst [vmem:[%s4287 + $0x68] sm:$0xff] %v4284
    %4302 = vst [vmem:[%s4287 + $0x70] sm:$0xff] %v4285
    %4303 = vst [vmem:[%s4287 + $0x78] sm:$0xff] %v4286
    %s4304 = sld [smem:[#allocation2 + $0x6]]
    %v4305 = vstv %s4304
    %s4306 = sld [smem:[#allocation2 + $0x86]]
    %v4307 = vstv %s4306
    %v4308 = vsel %vm349, %v4307, %v4305
    %v4309 = vsel %vm350, %v4307, %v4305
    %v4310 = vsel %vm351, %v4307, %v4305
    %v4311 = vsel %vm352, %v4307, %v4305
    %v4312 = vsel %vm353, %v4307, %v4305
    %v4313 = vsel %vm354, %v4307, %v4305
    %v4314 = vsel %vm355, %v4307, %v4305
    %v4315 = vsel %vm356, %v4307, %v4305
    %v4316 = vsel %vm357, %v4307, %v4305
    %v4317 = vsel %vm358, %v4307, %v4305
    %v4318 = vsel %vm359, %v4307, %v4305
    %v4319 = vsel %vm360, %v4307, %v4305
    %v4320 = vsel %vm361, %v4307, %v4305
    %v4321 = vsel %vm362, %v4307, %v4305
    %v4322 = vsel %vm363, %v4307, %v4305
    %v4323 = vsel %vm364, %v4307, %v4305
    %s4324 = sld [smem:[#allocation2 + $0x106]]
    %v4325 = vstv %s4324
    %v4326 = vsel %vm383, %v4325, %v4308
    %v4327 = vsel %vm384, %v4325, %v4309
    %v4328 = vsel %vm385, %v4325, %v4310
    %v4329 = vsel %vm386, %v4325, %v4311
    %v4330 = vsel %vm387, %v4325, %v4312
    %v4331 = vsel %vm388, %v4325, %v4313
    %v4332 = vsel %vm389, %v4325, %v4314
    %v4333 = vsel %vm390, %v4325, %v4315
    %v4334 = vsel %vm391, %v4325, %v4316
    %v4335 = vsel %vm392, %v4325, %v4317
    %v4336 = vsel %vm393, %v4325, %v4318
    %v4337 = vsel %vm394, %v4325, %v4319
    %v4338 = vsel %vm395, %v4325, %v4320
    %v4339 = vsel %vm396, %v4325, %v4321
    %v4340 = vsel %vm397, %v4325, %v4322
    %v4341 = vsel %vm398, %v4325, %v4323
    %s4342 = sld [smem:[#allocation2 + $0x186]]
    %v4343 = vstv %s4342
    %v4344 = vsel %vm417, %v4343, %v4326
    %v4345 = vsel %vm418, %v4343, %v4327
    %v4346 = vsel %vm419, %v4343, %v4328
    %v4347 = vsel %vm420, %v4343, %v4329
    %v4348 = vsel %vm421, %v4343, %v4330
    %v4349 = vsel %vm422, %v4343, %v4331
    %v4350 = vsel %vm423, %v4343, %v4332
    %v4351 = vsel %vm424, %v4343, %v4333
    %v4352 = vsel %vm425, %v4343, %v4334
    %v4353 = vsel %vm426, %v4343, %v4335
    %v4354 = vsel %vm427, %v4343, %v4336
    %v4355 = vsel %vm428, %v4343, %v4337
    %v4356 = vsel %vm429, %v4343, %v4338
    %v4357 = vsel %vm430, %v4343, %v4339
    %v4358 = vsel %vm431, %v4343, %v4340
    %v4359 = vsel %vm432, %v4343, %v4341
    %s4360 = sld [smem:[#allocation2 + $0x206]]
    %v4361 = vstv %s4360
    %v4362 = vsel %vm451, %v4361, %v4344
    %v4363 = vsel %vm452, %v4361, %v4345
    %v4364 = vsel %vm453, %v4361, %v4346
    %v4365 = vsel %vm454, %v4361, %v4347
    %v4366 = vsel %vm455, %v4361, %v4348
    %v4367 = vsel %vm456, %v4361, %v4349
    %v4368 = vsel %vm457, %v4361, %v4350
    %v4369 = vsel %vm458, %v4361, %v4351
    %v4370 = vsel %vm459, %v4361, %v4352
    %v4371 = vsel %vm460, %v4361, %v4353
    %v4372 = vsel %vm461, %v4361, %v4354
    %v4373 = vsel %vm462, %v4361, %v4355
    %v4374 = vsel %vm463, %v4361, %v4356
    %v4375 = vsel %vm464, %v4361, %v4357
    %v4376 = vsel %vm465, %v4361, %v4358
    %v4377 = vsel %vm466, %v4361, %v4359
    %s4378 = sld [smem:[#allocation2 + $0x286]]
    %v4379 = vstv %s4378
    %v4380 = vsel %vm485, %v4379, %v4362
    %v4381 = vsel %vm486, %v4379, %v4363
    %v4382 = vsel %vm487, %v4379, %v4364
    %v4383 = vsel %vm488, %v4379, %v4365
    %v4384 = vsel %vm489, %v4379, %v4366
    %v4385 = vsel %vm490, %v4379, %v4367
    %v4386 = vsel %vm491, %v4379, %v4368
    %v4387 = vsel %vm492, %v4379, %v4369
    %v4388 = vsel %vm493, %v4379, %v4370
    %v4389 = vsel %vm494, %v4379, %v4371
    %v4390 = vsel %vm495, %v4379, %v4372
    %v4391 = vsel %vm496, %v4379, %v4373
    %v4392 = vsel %vm497, %v4379, %v4374
    %v4393 = vsel %vm498, %v4379, %v4375
    %v4394 = vsel %vm499, %v4379, %v4376
    %v4395 = vsel %vm500, %v4379, %v4377
    %s4396 = sld [smem:[#allocation2 + $0x306]]
    %v4397 = vstv %s4396
    %v4398 = vsel %vm519, %v4397, %v4380
    %v4399 = vsel %vm520, %v4397, %v4381
    %v4400 = vsel %vm521, %v4397, %v4382
    %v4401 = vsel %vm522, %v4397, %v4383
    %v4402 = vsel %vm523, %v4397, %v4384
    %v4403 = vsel %vm524, %v4397, %v4385
    %v4404 = vsel %vm525, %v4397, %v4386
    %v4405 = vsel %vm526, %v4397, %v4387
    %v4406 = vsel %vm527, %v4397, %v4388
    %v4407 = vsel %vm528, %v4397, %v4389
    %v4408 = vsel %vm529, %v4397, %v4390
    %v4409 = vsel %vm530, %v4397, %v4391
    %v4410 = vsel %vm531, %v4397, %v4392
    %v4411 = vsel %vm532, %v4397, %v4393
    %v4412 = vsel %vm533, %v4397, %v4394
    %v4413 = vsel %vm534, %v4397, %v4395
    %s4414 = sld [smem:[#allocation2 + $0x386]]
    %v4415 = vstv %s4414
    %v4416 = vsel %vm553, %v4415, %v4398
    %v4417 = vsel %vm554, %v4415, %v4399
    %v4418 = vsel %vm555, %v4415, %v4400
    %v4419 = vsel %vm556, %v4415, %v4401
    %v4420 = vsel %vm557, %v4415, %v4402
    %v4421 = vsel %vm558, %v4415, %v4403
    %v4422 = vsel %vm559, %v4415, %v4404
    %v4423 = vsel %vm560, %v4415, %v4405
    %v4424 = vsel %vm561, %v4415, %v4406
    %v4425 = vsel %vm562, %v4415, %v4407
    %v4426 = vsel %vm563, %v4415, %v4408
    %v4427 = vsel %vm564, %v4415, %v4409
    %v4428 = vsel %vm565, %v4415, %v4410
    %v4429 = vsel %vm566, %v4415, %v4411
    %v4430 = vsel %vm567, %v4415, %v4412
    %v4431 = vsel %vm568, %v4415, %v4413
    %s4432 = sld [smem:[#allocation2 + $0x406]]
    %v4433 = vstv %s4432
    %v4434 = vsel %vm587, %v4433, %v4416
    %v4435 = vsel %vm588, %v4433, %v4417
    %v4436 = vsel %vm589, %v4433, %v4418
    %v4437 = vsel %vm590, %v4433, %v4419
    %v4438 = vsel %vm591, %v4433, %v4420
    %v4439 = vsel %vm592, %v4433, %v4421
    %v4440 = vsel %vm593, %v4433, %v4422
    %v4441 = vsel %vm594, %v4433, %v4423
    %v4442 = vsel %vm595, %v4433, %v4424
    %v4443 = vsel %vm596, %v4433, %v4425
    %v4444 = vsel %vm597, %v4433, %v4426
    %v4445 = vsel %vm598, %v4433, %v4427
    %v4446 = vsel %vm599, %v4433, %v4428
    %v4447 = vsel %vm600, %v4433, %v4429
    %v4448 = vsel %vm601, %v4433, %v4430
    %v4449 = vsel %vm602, %v4433, %v4431
    %s4450 = sld [smem:[#allocation2 + $0x486]]
    %v4451 = vstv %s4450
    %v4452 = vsel %vm621, %v4451, %v4434
    %v4453 = vsel %vm622, %v4451, %v4435
    %v4454 = vsel %vm623, %v4451, %v4436
    %v4455 = vsel %vm624, %v4451, %v4437
    %v4456 = vsel %vm625, %v4451, %v4438
    %v4457 = vsel %vm626, %v4451, %v4439
    %v4458 = vsel %vm627, %v4451, %v4440
    %v4459 = vsel %vm628, %v4451, %v4441
    %v4460 = vsel %vm629, %v4451, %v4442
    %v4461 = vsel %vm630, %v4451, %v4443
    %v4462 = vsel %vm631, %v4451, %v4444
    %v4463 = vsel %vm632, %v4451, %v4445
    %v4464 = vsel %vm633, %v4451, %v4446
    %v4465 = vsel %vm634, %v4451, %v4447
    %v4466 = vsel %vm635, %v4451, %v4448
    %v4467 = vsel %vm636, %v4451, %v4449
    %s4468 = sld [smem:[#allocation2 + $0x506]]
    %v4469 = vstv %s4468
    %v4470 = vsel %vm655, %v4469, %v4452
    %v4471 = vsel %vm656, %v4469, %v4453
    %v4472 = vsel %vm657, %v4469, %v4454
    %v4473 = vsel %vm658, %v4469, %v4455
    %v4474 = vsel %vm659, %v4469, %v4456
    %v4475 = vsel %vm660, %v4469, %v4457
    %v4476 = vsel %vm661, %v4469, %v4458
    %v4477 = vsel %vm662, %v4469, %v4459
    %v4478 = vsel %vm663, %v4469, %v4460
    %v4479 = vsel %vm664, %v4469, %v4461
    %v4480 = vsel %vm665, %v4469, %v4462
    %v4481 = vsel %vm666, %v4469, %v4463
    %v4482 = vsel %vm667, %v4469, %v4464
    %v4483 = vsel %vm668, %v4469, %v4465
    %v4484 = vsel %vm669, %v4469, %v4466
    %v4485 = vsel %vm670, %v4469, %v4467
    %s4486 = sld [smem:[#allocation2 + $0x586]]
    %v4487 = vstv %s4486
    %v4488 = vsel %vm689, %v4487, %v4470
    %v4489 = vsel %vm690, %v4487, %v4471
    %v4490 = vsel %vm691, %v4487, %v4472
    %v4491 = vsel %vm692, %v4487, %v4473
    %v4492 = vsel %vm693, %v4487, %v4474
    %v4493 = vsel %vm694, %v4487, %v4475
    %v4494 = vsel %vm695, %v4487, %v4476
    %v4495 = vsel %vm696, %v4487, %v4477
    %v4496 = vsel %vm697, %v4487, %v4478
    %v4497 = vsel %vm698, %v4487, %v4479
    %v4498 = vsel %vm699, %v4487, %v4480
    %v4499 = vsel %vm700, %v4487, %v4481
    %v4500 = vsel %vm701, %v4487, %v4482
    %v4501 = vsel %vm702, %v4487, %v4483
    %v4502 = vsel %vm703, %v4487, %v4484
    %v4503 = vsel %vm704, %v4487, %v4485
    %s4504 = sld [smem:[#allocation2 + $0x606]]
    %v4505 = vstv %s4504
    %v4506 = vsel %vm723, %v4505, %v4488
    %v4507 = vsel %vm724, %v4505, %v4489
    %v4508 = vsel %vm725, %v4505, %v4490
    %v4509 = vsel %vm726, %v4505, %v4491
    %v4510 = vsel %vm727, %v4505, %v4492
    %v4511 = vsel %vm728, %v4505, %v4493
    %v4512 = vsel %vm729, %v4505, %v4494
    %v4513 = vsel %vm730, %v4505, %v4495
    %v4514 = vsel %vm731, %v4505, %v4496
    %v4515 = vsel %vm732, %v4505, %v4497
    %v4516 = vsel %vm733, %v4505, %v4498
    %v4517 = vsel %vm734, %v4505, %v4499
    %v4518 = vsel %vm735, %v4505, %v4500
    %v4519 = vsel %vm736, %v4505, %v4501
    %v4520 = vsel %vm737, %v4505, %v4502
    %v4521 = vsel %vm738, %v4505, %v4503
    %s4522 = sld [smem:[#allocation2 + $0x686]]
    %v4523 = vstv %s4522
    %v4524 = vsel %vm757, %v4523, %v4506
    %v4525 = vsel %vm758, %v4523, %v4507
    %v4526 = vsel %vm759, %v4523, %v4508
    %v4527 = vsel %vm760, %v4523, %v4509
    %v4528 = vsel %vm761, %v4523, %v4510
    %v4529 = vsel %vm762, %v4523, %v4511
    %v4530 = vsel %vm763, %v4523, %v4512
    %v4531 = vsel %vm764, %v4523, %v4513
    %v4532 = vsel %vm765, %v4523, %v4514
    %v4533 = vsel %vm766, %v4523, %v4515
    %v4534 = vsel %vm767, %v4523, %v4516
    %v4535 = vsel %vm768, %v4523, %v4517
    %v4536 = vsel %vm769, %v4523, %v4518
    %v4537 = vsel %vm770, %v4523, %v4519
    %v4538 = vsel %vm771, %v4523, %v4520
    %v4539 = vsel %vm772, %v4523, %v4521
    %s4540 = sld [smem:[#allocation2 + $0x706]]
    %v4541 = vstv %s4540
    %v4542 = vsel %vm791, %v4541, %v4524
    %v4543 = vsel %vm792, %v4541, %v4525
    %v4544 = vsel %vm793, %v4541, %v4526
    %v4545 = vsel %vm794, %v4541, %v4527
    %v4546 = vsel %vm795, %v4541, %v4528
    %v4547 = vsel %vm796, %v4541, %v4529
    %v4548 = vsel %vm797, %v4541, %v4530
    %v4549 = vsel %vm798, %v4541, %v4531
    %v4550 = vsel %vm799, %v4541, %v4532
    %v4551 = vsel %vm800, %v4541, %v4533
    %v4552 = vsel %vm801, %v4541, %v4534
    %v4553 = vsel %vm802, %v4541, %v4535
    %v4554 = vsel %vm803, %v4541, %v4536
    %v4555 = vsel %vm804, %v4541, %v4537
    %v4556 = vsel %vm805, %v4541, %v4538
    %v4557 = vsel %vm806, %v4541, %v4539
    %s4558 = sld [smem:[#allocation2 + $0x786]]
    %v4559 = vstv %s4558
    %v4560 = vsel %vm825, %v4559, %v4542
    %v4561 = vsel %vm826, %v4559, %v4543
    %v4562 = vsel %vm827, %v4559, %v4544
    %v4563 = vsel %vm828, %v4559, %v4545
    %v4564 = vsel %vm829, %v4559, %v4546
    %v4565 = vsel %vm830, %v4559, %v4547
    %v4566 = vsel %vm831, %v4559, %v4548
    %v4567 = vsel %vm832, %v4559, %v4549
    %v4568 = vsel %vm833, %v4559, %v4550
    %v4569 = vsel %vm834, %v4559, %v4551
    %v4570 = vsel %vm835, %v4559, %v4552
    %v4571 = vsel %vm836, %v4559, %v4553
    %v4572 = vsel %vm837, %v4559, %v4554
    %v4573 = vsel %vm838, %v4559, %v4555
    %v4574 = vsel %vm839, %v4559, %v4556
    %v4575 = vsel %vm840, %v4559, %v4557
    %s4576 = sld [smem:[#allocation2 + $0x806]]
    %v4577 = vstv %s4576
    %v4578 = vsel %vm859, %v4577, %v4560
    %v4579 = vsel %vm860, %v4577, %v4561
    %v4580 = vsel %vm861, %v4577, %v4562
    %v4581 = vsel %vm862, %v4577, %v4563
    %v4582 = vsel %vm863, %v4577, %v4564
    %v4583 = vsel %vm864, %v4577, %v4565
    %v4584 = vsel %vm865, %v4577, %v4566
    %v4585 = vsel %vm866, %v4577, %v4567
    %v4586 = vsel %vm867, %v4577, %v4568
    %v4587 = vsel %vm868, %v4577, %v4569
    %v4588 = vsel %vm869, %v4577, %v4570
    %v4589 = vsel %vm870, %v4577, %v4571
    %v4590 = vsel %vm871, %v4577, %v4572
    %v4591 = vsel %vm872, %v4577, %v4573
    %v4592 = vsel %vm873, %v4577, %v4574
    %v4593 = vsel %vm874, %v4577, %v4575
    %s4594 = sld [smem:[#allocation2 + $0x886]]
    %v4595 = vstv %s4594
    %v4596 = vsel %vm893, %v4595, %v4578
    %v4597 = vsel %vm894, %v4595, %v4579
    %v4598 = vsel %vm895, %v4595, %v4580
    %v4599 = vsel %vm896, %v4595, %v4581
    %v4600 = vsel %vm897, %v4595, %v4582
    %v4601 = vsel %vm898, %v4595, %v4583
    %v4602 = vsel %vm899, %v4595, %v4584
    %v4603 = vsel %vm900, %v4595, %v4585
    %v4604 = vsel %vm901, %v4595, %v4586
    %v4605 = vsel %vm902, %v4595, %v4587
    %v4606 = vsel %vm903, %v4595, %v4588
    %v4607 = vsel %vm904, %v4595, %v4589
    %v4608 = vsel %vm905, %v4595, %v4590
    %v4609 = vsel %vm906, %v4595, %v4591
    %v4610 = vsel %vm907, %v4595, %v4592
    %v4611 = vsel %vm908, %v4595, %v4593
    %s4612 = sld [smem:[#allocation2 + $0x906]]
    %v4613 = vstv %s4612
    %v4614 = vsel %vm927, %v4613, %v4596
    %v4615 = vsel %vm928, %v4613, %v4597
    %v4616 = vsel %vm929, %v4613, %v4598
    %v4617 = vsel %vm930, %v4613, %v4599
    %v4618 = vsel %vm931, %v4613, %v4600
    %v4619 = vsel %vm932, %v4613, %v4601
    %v4620 = vsel %vm933, %v4613, %v4602
    %v4621 = vsel %vm934, %v4613, %v4603
    %v4622 = vsel %vm935, %v4613, %v4604
    %v4623 = vsel %vm936, %v4613, %v4605
    %v4624 = vsel %vm937, %v4613, %v4606
    %v4625 = vsel %vm938, %v4613, %v4607
    %v4626 = vsel %vm939, %v4613, %v4608
    %v4627 = vsel %vm940, %v4613, %v4609
    %v4628 = vsel %vm941, %v4613, %v4610
    %v4629 = vsel %vm942, %v4613, %v4611
    %s4630 = sld [smem:[#allocation2 + $0x986]]
    %v4631 = vstv %s4630
    %v4632 = vsel %vm961, %v4631, %v4614
    %v4633 = vsel %vm962, %v4631, %v4615
    %v4634 = vsel %vm963, %v4631, %v4616
    %v4635 = vsel %vm964, %v4631, %v4617
    %v4636 = vsel %vm965, %v4631, %v4618
    %v4637 = vsel %vm966, %v4631, %v4619
    %v4638 = vsel %vm967, %v4631, %v4620
    %v4639 = vsel %vm968, %v4631, %v4621
    %v4640 = vsel %vm969, %v4631, %v4622
    %v4641 = vsel %vm970, %v4631, %v4623
    %v4642 = vsel %vm971, %v4631, %v4624
    %v4643 = vsel %vm972, %v4631, %v4625
    %v4644 = vsel %vm973, %v4631, %v4626
    %v4645 = vsel %vm974, %v4631, %v4627
    %v4646 = vsel %vm975, %v4631, %v4628
    %v4647 = vsel %vm976, %v4631, %v4629
    %s4648 = sld [smem:[#allocation2 + $0xa06]]
    %v4649 = vstv %s4648
    %v4650 = vsel %vm995, %v4649, %v4632
    %v4651 = vsel %vm996, %v4649, %v4633
    %v4652 = vsel %vm997, %v4649, %v4634
    %v4653 = vsel %vm998, %v4649, %v4635
    %v4654 = vsel %vm999, %v4649, %v4636
    %v4655 = vsel %vm1000, %v4649, %v4637
    %v4656 = vsel %vm1001, %v4649, %v4638
    %v4657 = vsel %vm1002, %v4649, %v4639
    %v4658 = vsel %vm1003, %v4649, %v4640
    %v4659 = vsel %vm1004, %v4649, %v4641
    %v4660 = vsel %vm1005, %v4649, %v4642
    %v4661 = vsel %vm1006, %v4649, %v4643
    %v4662 = vsel %vm1007, %v4649, %v4644
    %v4663 = vsel %vm1008, %v4649, %v4645
    %v4664 = vsel %vm1009, %v4649, %v4646
    %v4665 = vsel %vm1010, %v4649, %v4647
    %s4666 = sld [smem:[#allocation2 + $0xa86]]
    %v4667 = vstv %s4666
    %v4668 = vsel %vm1029, %v4667, %v4650
    %v4669 = vsel %vm1030, %v4667, %v4651
    %v4670 = vsel %vm1031, %v4667, %v4652
    %v4671 = vsel %vm1032, %v4667, %v4653
    %v4672 = vsel %vm1033, %v4667, %v4654
    %v4673 = vsel %vm1034, %v4667, %v4655
    %v4674 = vsel %vm1035, %v4667, %v4656
    %v4675 = vsel %vm1036, %v4667, %v4657
    %v4676 = vsel %vm1037, %v4667, %v4658
    %v4677 = vsel %vm1038, %v4667, %v4659
    %v4678 = vsel %vm1039, %v4667, %v4660
    %v4679 = vsel %vm1040, %v4667, %v4661
    %v4680 = vsel %vm1041, %v4667, %v4662
    %v4681 = vsel %vm1042, %v4667, %v4663
    %v4682 = vsel %vm1043, %v4667, %v4664
    %v4683 = vsel %vm1044, %v4667, %v4665
    %s4684 = sld [smem:[#allocation2 + $0xb06]]
    %v4685 = vstv %s4684
    %v4686 = vsel %vm1063, %v4685, %v4668
    %v4687 = vsel %vm1064, %v4685, %v4669
    %v4688 = vsel %vm1065, %v4685, %v4670
    %v4689 = vsel %vm1066, %v4685, %v4671
    %v4690 = vsel %vm1067, %v4685, %v4672
    %v4691 = vsel %vm1068, %v4685, %v4673
    %v4692 = vsel %vm1069, %v4685, %v4674
    %v4693 = vsel %vm1070, %v4685, %v4675
    %v4694 = vsel %vm1071, %v4685, %v4676
    %v4695 = vsel %vm1072, %v4685, %v4677
    %v4696 = vsel %vm1073, %v4685, %v4678
    %v4697 = vsel %vm1074, %v4685, %v4679
    %v4698 = vsel %vm1075, %v4685, %v4680
    %v4699 = vsel %vm1076, %v4685, %v4681
    %v4700 = vsel %vm1077, %v4685, %v4682
    %v4701 = vsel %vm1078, %v4685, %v4683
    %s4702 = sld [smem:[#allocation2 + $0xb86]]
    %v4703 = vstv %s4702
    %v4704 = vsel %vm1097, %v4703, %v4686
    %v4705 = vsel %vm1098, %v4703, %v4687
    %v4706 = vsel %vm1099, %v4703, %v4688
    %v4707 = vsel %vm1100, %v4703, %v4689
    %v4708 = vsel %vm1101, %v4703, %v4690
    %v4709 = vsel %vm1102, %v4703, %v4691
    %v4710 = vsel %vm1103, %v4703, %v4692
    %v4711 = vsel %vm1104, %v4703, %v4693
    %v4712 = vsel %vm1105, %v4703, %v4694
    %v4713 = vsel %vm1106, %v4703, %v4695
    %v4714 = vsel %vm1107, %v4703, %v4696
    %v4715 = vsel %vm1108, %v4703, %v4697
    %v4716 = vsel %vm1109, %v4703, %v4698
    %v4717 = vsel %vm1110, %v4703, %v4699
    %v4718 = vsel %vm1111, %v4703, %v4700
    %v4719 = vsel %vm1112, %v4703, %v4701
    %s4720 = sld [smem:[#allocation2 + $0xc06]]
    %v4721 = vstv %s4720
    %v4722 = vsel %vm1131, %v4721, %v4704
    %v4723 = vsel %vm1132, %v4721, %v4705
    %v4724 = vsel %vm1133, %v4721, %v4706
    %v4725 = vsel %vm1134, %v4721, %v4707
    %v4726 = vsel %vm1135, %v4721, %v4708
    %v4727 = vsel %vm1136, %v4721, %v4709
    %v4728 = vsel %vm1137, %v4721, %v4710
    %v4729 = vsel %vm1138, %v4721, %v4711
    %v4730 = vsel %vm1139, %v4721, %v4712
    %v4731 = vsel %vm1140, %v4721, %v4713
    %v4732 = vsel %vm1141, %v4721, %v4714
    %v4733 = vsel %vm1142, %v4721, %v4715
    %v4734 = vsel %vm1143, %v4721, %v4716
    %v4735 = vsel %vm1144, %v4721, %v4717
    %v4736 = vsel %vm1145, %v4721, %v4718
    %v4737 = vsel %vm1146, %v4721, %v4719
    %s4738 = sld [smem:[#allocation2 + $0xc86]]
    %v4739 = vstv %s4738
    %v4740 = vsel %vm1165, %v4739, %v4722
    %v4741 = vsel %vm1166, %v4739, %v4723
    %v4742 = vsel %vm1167, %v4739, %v4724
    %v4743 = vsel %vm1168, %v4739, %v4725
    %v4744 = vsel %vm1169, %v4739, %v4726
    %v4745 = vsel %vm1170, %v4739, %v4727
    %v4746 = vsel %vm1171, %v4739, %v4728
    %v4747 = vsel %vm1172, %v4739, %v4729
    %v4748 = vsel %vm1173, %v4739, %v4730
    %v4749 = vsel %vm1174, %v4739, %v4731
    %v4750 = vsel %vm1175, %v4739, %v4732
    %v4751 = vsel %vm1176, %v4739, %v4733
    %v4752 = vsel %vm1177, %v4739, %v4734
    %v4753 = vsel %vm1178, %v4739, %v4735
    %v4754 = vsel %vm1179, %v4739, %v4736
    %v4755 = vsel %vm1180, %v4739, %v4737
    %s4756 = sld [smem:[#allocation2 + $0xd06]]
    %v4757 = vstv %s4756
    %v4758 = vsel %vm1199, %v4757, %v4740
    %v4759 = vsel %vm1200, %v4757, %v4741
    %v4760 = vsel %vm1201, %v4757, %v4742
    %v4761 = vsel %vm1202, %v4757, %v4743
    %v4762 = vsel %vm1203, %v4757, %v4744
    %v4763 = vsel %vm1204, %v4757, %v4745
    %v4764 = vsel %vm1205, %v4757, %v4746
    %v4765 = vsel %vm1206, %v4757, %v4747
    %v4766 = vsel %vm1207, %v4757, %v4748
    %v4767 = vsel %vm1208, %v4757, %v4749
    %v4768 = vsel %vm1209, %v4757, %v4750
    %v4769 = vsel %vm1210, %v4757, %v4751
    %v4770 = vsel %vm1211, %v4757, %v4752
    %v4771 = vsel %vm1212, %v4757, %v4753
    %v4772 = vsel %vm1213, %v4757, %v4754
    %v4773 = vsel %vm1214, %v4757, %v4755
    %s4774 = sld [smem:[#allocation2 + $0xd86]]
    %v4775 = vstv %s4774
    %v4776 = vsel %vm1233, %v4775, %v4758
    %v4777 = vsel %vm1234, %v4775, %v4759
    %v4778 = vsel %vm1235, %v4775, %v4760
    %v4779 = vsel %vm1236, %v4775, %v4761
    %v4780 = vsel %vm1237, %v4775, %v4762
    %v4781 = vsel %vm1238, %v4775, %v4763
    %v4782 = vsel %vm1239, %v4775, %v4764
    %v4783 = vsel %vm1240, %v4775, %v4765
    %v4784 = vsel %vm1241, %v4775, %v4766
    %v4785 = vsel %vm1242, %v4775, %v4767
    %v4786 = vsel %vm1243, %v4775, %v4768
    %v4787 = vsel %vm1244, %v4775, %v4769
    %v4788 = vsel %vm1245, %v4775, %v4770
    %v4789 = vsel %vm1246, %v4775, %v4771
    %v4790 = vsel %vm1247, %v4775, %v4772
    %v4791 = vsel %vm1248, %v4775, %v4773
    %s4792 = sld [smem:[#allocation2 + $0xe06]]
    %v4793 = vstv %s4792
    %v4794 = vsel %vm1267, %v4793, %v4776
    %v4795 = vsel %vm1268, %v4793, %v4777
    %v4796 = vsel %vm1269, %v4793, %v4778
    %v4797 = vsel %vm1270, %v4793, %v4779
    %v4798 = vsel %vm1271, %v4793, %v4780
    %v4799 = vsel %vm1272, %v4793, %v4781
    %v4800 = vsel %vm1273, %v4793, %v4782
    %v4801 = vsel %vm1274, %v4793, %v4783
    %v4802 = vsel %vm1275, %v4793, %v4784
    %v4803 = vsel %vm1276, %v4793, %v4785
    %v4804 = vsel %vm1277, %v4793, %v4786
    %v4805 = vsel %vm1278, %v4793, %v4787
    %v4806 = vsel %vm1279, %v4793, %v4788
    %v4807 = vsel %vm1280, %v4793, %v4789
    %v4808 = vsel %vm1281, %v4793, %v4790
    %v4809 = vsel %vm1282, %v4793, %v4791
    %s4810 = sld [smem:[#allocation2 + $0xe86]]
    %v4811 = vstv %s4810
    %v4812 = vsel %vm1301, %v4811, %v4794
    %v4813 = vsel %vm1302, %v4811, %v4795
    %v4814 = vsel %vm1303, %v4811, %v4796
    %v4815 = vsel %vm1304, %v4811, %v4797
    %v4816 = vsel %vm1305, %v4811, %v4798
    %v4817 = vsel %vm1306, %v4811, %v4799
    %v4818 = vsel %vm1307, %v4811, %v4800
    %v4819 = vsel %vm1308, %v4811, %v4801
    %v4820 = vsel %vm1309, %v4811, %v4802
    %v4821 = vsel %vm1310, %v4811, %v4803
    %v4822 = vsel %vm1311, %v4811, %v4804
    %v4823 = vsel %vm1312, %v4811, %v4805
    %v4824 = vsel %vm1313, %v4811, %v4806
    %v4825 = vsel %vm1314, %v4811, %v4807
    %v4826 = vsel %vm1315, %v4811, %v4808
    %v4827 = vsel %vm1316, %v4811, %v4809
    %s4828 = sld [smem:[#allocation2 + $0xf06]]
    %v4829 = vstv %s4828
    %v4830 = vsel %vm1335, %v4829, %v4812
    %v4831 = vsel %vm1336, %v4829, %v4813
    %v4832 = vsel %vm1337, %v4829, %v4814
    %v4833 = vsel %vm1338, %v4829, %v4815
    %v4834 = vsel %vm1339, %v4829, %v4816
    %v4835 = vsel %vm1340, %v4829, %v4817
    %v4836 = vsel %vm1341, %v4829, %v4818
    %v4837 = vsel %vm1342, %v4829, %v4819
    %v4838 = vsel %vm1343, %v4829, %v4820
    %v4839 = vsel %vm1344, %v4829, %v4821
    %v4840 = vsel %vm1345, %v4829, %v4822
    %v4841 = vsel %vm1346, %v4829, %v4823
    %v4842 = vsel %vm1347, %v4829, %v4824
    %v4843 = vsel %vm1348, %v4829, %v4825
    %v4844 = vsel %vm1349, %v4829, %v4826
    %v4845 = vsel %vm1350, %v4829, %v4827
    %s4846 = sld [smem:[#allocation2 + $0xf86]]
    %v4847 = vstv %s4846
    %v4848 = vsel %vm1369, %v4847, %v4830
    %v4849 = vsel %vm1370, %v4847, %v4831
    %v4850 = vsel %vm1371, %v4847, %v4832
    %v4851 = vsel %vm1372, %v4847, %v4833
    %v4852 = vsel %vm1373, %v4847, %v4834
    %v4853 = vsel %vm1374, %v4847, %v4835
    %v4854 = vsel %vm1375, %v4847, %v4836
    %v4855 = vsel %vm1376, %v4847, %v4837
    %v4856 = vsel %vm1377, %v4847, %v4838
    %v4857 = vsel %vm1378, %v4847, %v4839
    %v4858 = vsel %vm1379, %v4847, %v4840
    %v4859 = vsel %vm1380, %v4847, %v4841
    %v4860 = vsel %vm1381, %v4847, %v4842
    %v4861 = vsel %vm1382, %v4847, %v4843
    %v4862 = vsel %vm1383, %v4847, %v4844
    %v4863 = vsel %vm1384, %v4847, %v4845
    %s4864 = scalar_lea.vmem [#allocation5], 768
    %4865 = vst [vmem:[%s4864] sm:$0xff] %v4848
    %4866 = vst [vmem:[%s4864 + $0x8] sm:$0xff] %v4849
    %4867 = vst [vmem:[%s4864 + $0x10] sm:$0xff] %v4850
    %4868 = vst [vmem:[%s4864 + $0x18] sm:$0xff] %v4851
    %4869 = vst [vmem:[%s4864 + $0x20] sm:$0xff] %v4852
    %4870 = vst [vmem:[%s4864 + $0x28] sm:$0xff] %v4853
    %4871 = vst [vmem:[%s4864 + $0x30] sm:$0xff] %v4854
    %4872 = vst [vmem:[%s4864 + $0x38] sm:$0xff] %v4855
    %4873 = vst [vmem:[%s4864 + $0x40] sm:$0xff] %v4856
    %4874 = vst [vmem:[%s4864 + $0x48] sm:$0xff] %v4857
    %4875 = vst [vmem:[%s4864 + $0x50] sm:$0xff] %v4858
    %4876 = vst [vmem:[%s4864 + $0x58] sm:$0xff] %v4859
    %4877 = vst [vmem:[%s4864 + $0x60] sm:$0xff] %v4860
    %4878 = vst [vmem:[%s4864 + $0x68] sm:$0xff] %v4861
    %4879 = vst [vmem:[%s4864 + $0x70] sm:$0xff] %v4862
    %4880 = vst [vmem:[%s4864 + $0x78] sm:$0xff] %v4863
    %s4881 = sld [smem:[#allocation2 + $0x7]]
    %v4882 = vstv %s4881
    %s4883 = sld [smem:[#allocation2 + $0x87]]
    %v4884 = vstv %s4883
    %v4885 = vsel %vm349, %v4884, %v4882
    %v4886 = vsel %vm350, %v4884, %v4882
    %v4887 = vsel %vm351, %v4884, %v4882
    %v4888 = vsel %vm352, %v4884, %v4882
    %v4889 = vsel %vm353, %v4884, %v4882
    %v4890 = vsel %vm354, %v4884, %v4882
    %v4891 = vsel %vm355, %v4884, %v4882
    %v4892 = vsel %vm356, %v4884, %v4882
    %v4893 = vsel %vm357, %v4884, %v4882
    %v4894 = vsel %vm358, %v4884, %v4882
    %v4895 = vsel %vm359, %v4884, %v4882
    %v4896 = vsel %vm360, %v4884, %v4882
    %v4897 = vsel %vm361, %v4884, %v4882
    %v4898 = vsel %vm362, %v4884, %v4882
    %v4899 = vsel %vm363, %v4884, %v4882
    %v4900 = vsel %vm364, %v4884, %v4882
    %s4901 = sld [smem:[#allocation2 + $0x107]]
    %v4902 = vstv %s4901
    %v4903 = vsel %vm383, %v4902, %v4885
    %v4904 = vsel %vm384, %v4902, %v4886
    %v4905 = vsel %vm385, %v4902, %v4887
    %v4906 = vsel %vm386, %v4902, %v4888
    %v4907 = vsel %vm387, %v4902, %v4889
    %v4908 = vsel %vm388, %v4902, %v4890
    %v4909 = vsel %vm389, %v4902, %v4891
    %v4910 = vsel %vm390, %v4902, %v4892
    %v4911 = vsel %vm391, %v4902, %v4893
    %v4912 = vsel %vm392, %v4902, %v4894
    %v4913 = vsel %vm393, %v4902, %v4895
    %v4914 = vsel %vm394, %v4902, %v4896
    %v4915 = vsel %vm395, %v4902, %v4897
    %v4916 = vsel %vm396, %v4902, %v4898
    %v4917 = vsel %vm397, %v4902, %v4899
    %v4918 = vsel %vm398, %v4902, %v4900
    %s4919 = sld [smem:[#allocation2 + $0x187]]
    %v4920 = vstv %s4919
    %v4921 = vsel %vm417, %v4920, %v4903
    %v4922 = vsel %vm418, %v4920, %v4904
    %v4923 = vsel %vm419, %v4920, %v4905
    %v4924 = vsel %vm420, %v4920, %v4906
    %v4925 = vsel %vm421, %v4920, %v4907
    %v4926 = vsel %vm422, %v4920, %v4908
    %v4927 = vsel %vm423, %v4920, %v4909
    %v4928 = vsel %vm424, %v4920, %v4910
    %v4929 = vsel %vm425, %v4920, %v4911
    %v4930 = vsel %vm426, %v4920, %v4912
    %v4931 = vsel %vm427, %v4920, %v4913
    %v4932 = vsel %vm428, %v4920, %v4914
    %v4933 = vsel %vm429, %v4920, %v4915
    %v4934 = vsel %vm430, %v4920, %v4916
    %v4935 = vsel %vm431, %v4920, %v4917
    %v4936 = vsel %vm432, %v4920, %v4918
    %s4937 = sld [smem:[#allocation2 + $0x207]]
    %v4938 = vstv %s4937
    %v4939 = vsel %vm451, %v4938, %v4921
    %v4940 = vsel %vm452, %v4938, %v4922
    %v4941 = vsel %vm453, %v4938, %v4923
    %v4942 = vsel %vm454, %v4938, %v4924
    %v4943 = vsel %vm455, %v4938, %v4925
    %v4944 = vsel %vm456, %v4938, %v4926
    %v4945 = vsel %vm457, %v4938, %v4927
    %v4946 = vsel %vm458, %v4938, %v4928
    %v4947 = vsel %vm459, %v4938, %v4929
    %v4948 = vsel %vm460, %v4938, %v4930
    %v4949 = vsel %vm461, %v4938, %v4931
    %v4950 = vsel %vm462, %v4938, %v4932
    %v4951 = vsel %vm463, %v4938, %v4933
    %v4952 = vsel %vm464, %v4938, %v4934
    %v4953 = vsel %vm465, %v4938, %v4935
    %v4954 = vsel %vm466, %v4938, %v4936
    %s4955 = sld [smem:[#allocation2 + $0x287]]
    %v4956 = vstv %s4955
    %v4957 = vsel %vm485, %v4956, %v4939
    %v4958 = vsel %vm486, %v4956, %v4940
    %v4959 = vsel %vm487, %v4956, %v4941
    %v4960 = vsel %vm488, %v4956, %v4942
    %v4961 = vsel %vm489, %v4956, %v4943
    %v4962 = vsel %vm490, %v4956, %v4944
    %v4963 = vsel %vm491, %v4956, %v4945
    %v4964 = vsel %vm492, %v4956, %v4946
    %v4965 = vsel %vm493, %v4956, %v4947
    %v4966 = vsel %vm494, %v4956, %v4948
    %v4967 = vsel %vm495, %v4956, %v4949
    %v4968 = vsel %vm496, %v4956, %v4950
    %v4969 = vsel %vm497, %v4956, %v4951
    %v4970 = vsel %vm498, %v4956, %v4952
    %v4971 = vsel %vm499, %v4956, %v4953
    %v4972 = vsel %vm500, %v4956, %v4954
    %s4973 = sld [smem:[#allocation2 + $0x307]]
    %v4974 = vstv %s4973
    %v4975 = vsel %vm519, %v4974, %v4957
    %v4976 = vsel %vm520, %v4974, %v4958
    %v4977 = vsel %vm521, %v4974, %v4959
    %v4978 = vsel %vm522, %v4974, %v4960
    %v4979 = vsel %vm523, %v4974, %v4961
    %v4980 = vsel %vm524, %v4974, %v4962
    %v4981 = vsel %vm525, %v4974, %v4963
    %v4982 = vsel %vm526, %v4974, %v4964
    %v4983 = vsel %vm527, %v4974, %v4965
    %v4984 = vsel %vm528, %v4974, %v4966
    %v4985 = vsel %vm529, %v4974, %v4967
    %v4986 = vsel %vm530, %v4974, %v4968
    %v4987 = vsel %vm531, %v4974, %v4969
    %v4988 = vsel %vm532, %v4974, %v4970
    %v4989 = vsel %vm533, %v4974, %v4971
    %v4990 = vsel %vm534, %v4974, %v4972
    %s4991 = sld [smem:[#allocation2 + $0x387]]
    %v4992 = vstv %s4991
    %v4993 = vsel %vm553, %v4992, %v4975
    %v4994 = vsel %vm554, %v4992, %v4976
    %v4995 = vsel %vm555, %v4992, %v4977
    %v4996 = vsel %vm556, %v4992, %v4978
    %v4997 = vsel %vm557, %v4992, %v4979
    %v4998 = vsel %vm558, %v4992, %v4980
    %v4999 = vsel %vm559, %v4992, %v4981
    %v5000 = vsel %vm560, %v4992, %v4982
    %v5001 = vsel %vm561, %v4992, %v4983
    %v5002 = vsel %vm562, %v4992, %v4984
    %v5003 = vsel %vm563, %v4992, %v4985
    %v5004 = vsel %vm564, %v4992, %v4986
    %v5005 = vsel %vm565, %v4992, %v4987
    %v5006 = vsel %vm566, %v4992, %v4988
    %v5007 = vsel %vm567, %v4992, %v4989
    %v5008 = vsel %vm568, %v4992, %v4990
    %s5009 = sld [smem:[#allocation2 + $0x407]]
    %v5010 = vstv %s5009
    %v5011 = vsel %vm587, %v5010, %v4993
    %v5012 = vsel %vm588, %v5010, %v4994
    %v5013 = vsel %vm589, %v5010, %v4995
    %v5014 = vsel %vm590, %v5010, %v4996
    %v5015 = vsel %vm591, %v5010, %v4997
    %v5016 = vsel %vm592, %v5010, %v4998
    %v5017 = vsel %vm593, %v5010, %v4999
    %v5018 = vsel %vm594, %v5010, %v5000
    %v5019 = vsel %vm595, %v5010, %v5001
    %v5020 = vsel %vm596, %v5010, %v5002
    %v5021 = vsel %vm597, %v5010, %v5003
    %v5022 = vsel %vm598, %v5010, %v5004
    %v5023 = vsel %vm599, %v5010, %v5005
    %v5024 = vsel %vm600, %v5010, %v5006
    %v5025 = vsel %vm601, %v5010, %v5007
    %v5026 = vsel %vm602, %v5010, %v5008
    %s5027 = sld [smem:[#allocation2 + $0x487]]
    %v5028 = vstv %s5027
    %v5029 = vsel %vm621, %v5028, %v5011
    %v5030 = vsel %vm622, %v5028, %v5012
    %v5031 = vsel %vm623, %v5028, %v5013
    %v5032 = vsel %vm624, %v5028, %v5014
    %v5033 = vsel %vm625, %v5028, %v5015
    %v5034 = vsel %vm626, %v5028, %v5016
    %v5035 = vsel %vm627, %v5028, %v5017
    %v5036 = vsel %vm628, %v5028, %v5018
    %v5037 = vsel %vm629, %v5028, %v5019
    %v5038 = vsel %vm630, %v5028, %v5020
    %v5039 = vsel %vm631, %v5028, %v5021
    %v5040 = vsel %vm632, %v5028, %v5022
    %v5041 = vsel %vm633, %v5028, %v5023
    %v5042 = vsel %vm634, %v5028, %v5024
    %v5043 = vsel %vm635, %v5028, %v5025
    %v5044 = vsel %vm636, %v5028, %v5026
    %s5045 = sld [smem:[#allocation2 + $0x507]]
    %v5046 = vstv %s5045
    %v5047 = vsel %vm655, %v5046, %v5029
    %v5048 = vsel %vm656, %v5046, %v5030
    %v5049 = vsel %vm657, %v5046, %v5031
    %v5050 = vsel %vm658, %v5046, %v5032
    %v5051 = vsel %vm659, %v5046, %v5033
    %v5052 = vsel %vm660, %v5046, %v5034
    %v5053 = vsel %vm661, %v5046, %v5035
    %v5054 = vsel %vm662, %v5046, %v5036
    %v5055 = vsel %vm663, %v5046, %v5037
    %v5056 = vsel %vm664, %v5046, %v5038
    %v5057 = vsel %vm665, %v5046, %v5039
    %v5058 = vsel %vm666, %v5046, %v5040
    %v5059 = vsel %vm667, %v5046, %v5041
    %v5060 = vsel %vm668, %v5046, %v5042
    %v5061 = vsel %vm669, %v5046, %v5043
    %v5062 = vsel %vm670, %v5046, %v5044
    %s5063 = sld [smem:[#allocation2 + $0x587]]
    %v5064 = vstv %s5063
    %v5065 = vsel %vm689, %v5064, %v5047
    %v5066 = vsel %vm690, %v5064, %v5048
    %v5067 = vsel %vm691, %v5064, %v5049
    %v5068 = vsel %vm692, %v5064, %v5050
    %v5069 = vsel %vm693, %v5064, %v5051
    %v5070 = vsel %vm694, %v5064, %v5052
    %v5071 = vsel %vm695, %v5064, %v5053
    %v5072 = vsel %vm696, %v5064, %v5054
    %v5073 = vsel %vm697, %v5064, %v5055
    %v5074 = vsel %vm698, %v5064, %v5056
    %v5075 = vsel %vm699, %v5064, %v5057
    %v5076 = vsel %vm700, %v5064, %v5058
    %v5077 = vsel %vm701, %v5064, %v5059
    %v5078 = vsel %vm702, %v5064, %v5060
    %v5079 = vsel %vm703, %v5064, %v5061
    %v5080 = vsel %vm704, %v5064, %v5062
    %s5081 = sld [smem:[#allocation2 + $0x607]]
    %v5082 = vstv %s5081
    %v5083 = vsel %vm723, %v5082, %v5065
    %v5084 = vsel %vm724, %v5082, %v5066
    %v5085 = vsel %vm725, %v5082, %v5067
    %v5086 = vsel %vm726, %v5082, %v5068
    %v5087 = vsel %vm727, %v5082, %v5069
    %v5088 = vsel %vm728, %v5082, %v5070
    %v5089 = vsel %vm729, %v5082, %v5071
    %v5090 = vsel %vm730, %v5082, %v5072
    %v5091 = vsel %vm731, %v5082, %v5073
    %v5092 = vsel %vm732, %v5082, %v5074
    %v5093 = vsel %vm733, %v5082, %v5075
    %v5094 = vsel %vm734, %v5082, %v5076
    %v5095 = vsel %vm735, %v5082, %v5077
    %v5096 = vsel %vm736, %v5082, %v5078
    %v5097 = vsel %vm737, %v5082, %v5079
    %v5098 = vsel %vm738, %v5082, %v5080
    %s5099 = sld [smem:[#allocation2 + $0x687]]
    %v5100 = vstv %s5099
    %v5101 = vsel %vm757, %v5100, %v5083
    %v5102 = vsel %vm758, %v5100, %v5084
    %v5103 = vsel %vm759, %v5100, %v5085
    %v5104 = vsel %vm760, %v5100, %v5086
    %v5105 = vsel %vm761, %v5100, %v5087
    %v5106 = vsel %vm762, %v5100, %v5088
    %v5107 = vsel %vm763, %v5100, %v5089
    %v5108 = vsel %vm764, %v5100, %v5090
    %v5109 = vsel %vm765, %v5100, %v5091
    %v5110 = vsel %vm766, %v5100, %v5092
    %v5111 = vsel %vm767, %v5100, %v5093
    %v5112 = vsel %vm768, %v5100, %v5094
    %v5113 = vsel %vm769, %v5100, %v5095
    %v5114 = vsel %vm770, %v5100, %v5096
    %v5115 = vsel %vm771, %v5100, %v5097
    %v5116 = vsel %vm772, %v5100, %v5098
    %s5117 = sld [smem:[#allocation2 + $0x707]]
    %v5118 = vstv %s5117
    %v5119 = vsel %vm791, %v5118, %v5101
    %v5120 = vsel %vm792, %v5118, %v5102
    %v5121 = vsel %vm793, %v5118, %v5103
    %v5122 = vsel %vm794, %v5118, %v5104
    %v5123 = vsel %vm795, %v5118, %v5105
    %v5124 = vsel %vm796, %v5118, %v5106
    %v5125 = vsel %vm797, %v5118, %v5107
    %v5126 = vsel %vm798, %v5118, %v5108
    %v5127 = vsel %vm799, %v5118, %v5109
    %v5128 = vsel %vm800, %v5118, %v5110
    %v5129 = vsel %vm801, %v5118, %v5111
    %v5130 = vsel %vm802, %v5118, %v5112
    %v5131 = vsel %vm803, %v5118, %v5113
    %v5132 = vsel %vm804, %v5118, %v5114
    %v5133 = vsel %vm805, %v5118, %v5115
    %v5134 = vsel %vm806, %v5118, %v5116
    %s5135 = sld [smem:[#allocation2 + $0x787]]
    %v5136 = vstv %s5135
    %v5137 = vsel %vm825, %v5136, %v5119
    %v5138 = vsel %vm826, %v5136, %v5120
    %v5139 = vsel %vm827, %v5136, %v5121
    %v5140 = vsel %vm828, %v5136, %v5122
    %v5141 = vsel %vm829, %v5136, %v5123
    %v5142 = vsel %vm830, %v5136, %v5124
    %v5143 = vsel %vm831, %v5136, %v5125
    %v5144 = vsel %vm832, %v5136, %v5126
    %v5145 = vsel %vm833, %v5136, %v5127
    %v5146 = vsel %vm834, %v5136, %v5128
    %v5147 = vsel %vm835, %v5136, %v5129
    %v5148 = vsel %vm836, %v5136, %v5130
    %v5149 = vsel %vm837, %v5136, %v5131
    %v5150 = vsel %vm838, %v5136, %v5132
    %v5151 = vsel %vm839, %v5136, %v5133
    %v5152 = vsel %vm840, %v5136, %v5134
    %s5153 = sld [smem:[#allocation2 + $0x807]]
    %v5154 = vstv %s5153
    %v5155 = vsel %vm859, %v5154, %v5137
    %v5156 = vsel %vm860, %v5154, %v5138
    %v5157 = vsel %vm861, %v5154, %v5139
    %v5158 = vsel %vm862, %v5154, %v5140
    %v5159 = vsel %vm863, %v5154, %v5141
    %v5160 = vsel %vm864, %v5154, %v5142
    %v5161 = vsel %vm865, %v5154, %v5143
    %v5162 = vsel %vm866, %v5154, %v5144
    %v5163 = vsel %vm867, %v5154, %v5145
    %v5164 = vsel %vm868, %v5154, %v5146
    %v5165 = vsel %vm869, %v5154, %v5147
    %v5166 = vsel %vm870, %v5154, %v5148
    %v5167 = vsel %vm871, %v5154, %v5149
    %v5168 = vsel %vm872, %v5154, %v5150
    %v5169 = vsel %vm873, %v5154, %v5151
    %v5170 = vsel %vm874, %v5154, %v5152
    %s5171 = sld [smem:[#allocation2 + $0x887]]
    %v5172 = vstv %s5171
    %v5173 = vsel %vm893, %v5172, %v5155
    %v5174 = vsel %vm894, %v5172, %v5156
    %v5175 = vsel %vm895, %v5172, %v5157
    %v5176 = vsel %vm896, %v5172, %v5158
    %v5177 = vsel %vm897, %v5172, %v5159
    %v5178 = vsel %vm898, %v5172, %v5160
    %v5179 = vsel %vm899, %v5172, %v5161
    %v5180 = vsel %vm900, %v5172, %v5162
    %v5181 = vsel %vm901, %v5172, %v5163
    %v5182 = vsel %vm902, %v5172, %v5164
    %v5183 = vsel %vm903, %v5172, %v5165
    %v5184 = vsel %vm904, %v5172, %v5166
    %v5185 = vsel %vm905, %v5172, %v5167
    %v5186 = vsel %vm906, %v5172, %v5168
    %v5187 = vsel %vm907, %v5172, %v5169
    %v5188 = vsel %vm908, %v5172, %v5170
    %s5189 = sld [smem:[#allocation2 + $0x907]]
    %v5190 = vstv %s5189
    %v5191 = vsel %vm927, %v5190, %v5173
    %v5192 = vsel %vm928, %v5190, %v5174
    %v5193 = vsel %vm929, %v5190, %v5175
    %v5194 = vsel %vm930, %v5190, %v5176
    %v5195 = vsel %vm931, %v5190, %v5177
    %v5196 = vsel %vm932, %v5190, %v5178
    %v5197 = vsel %vm933, %v5190, %v5179
    %v5198 = vsel %vm934, %v5190, %v5180
    %v5199 = vsel %vm935, %v5190, %v5181
    %v5200 = vsel %vm936, %v5190, %v5182
    %v5201 = vsel %vm937, %v5190, %v5183
    %v5202 = vsel %vm938, %v5190, %v5184
    %v5203 = vsel %vm939, %v5190, %v5185
    %v5204 = vsel %vm940, %v5190, %v5186
    %v5205 = vsel %vm941, %v5190, %v5187
    %v5206 = vsel %vm942, %v5190, %v5188
    %s5207 = sld [smem:[#allocation2 + $0x987]]
    %v5208 = vstv %s5207
    %v5209 = vsel %vm961, %v5208, %v5191
    %v5210 = vsel %vm962, %v5208, %v5192
    %v5211 = vsel %vm963, %v5208, %v5193
    %v5212 = vsel %vm964, %v5208, %v5194
    %v5213 = vsel %vm965, %v5208, %v5195
    %v5214 = vsel %vm966, %v5208, %v5196
    %v5215 = vsel %vm967, %v5208, %v5197
    %v5216 = vsel %vm968, %v5208, %v5198
    %v5217 = vsel %vm969, %v5208, %v5199
    %v5218 = vsel %vm970, %v5208, %v5200
    %v5219 = vsel %vm971, %v5208, %v5201
    %v5220 = vsel %vm972, %v5208, %v5202
    %v5221 = vsel %vm973, %v5208, %v5203
    %v5222 = vsel %vm974, %v5208, %v5204
    %v5223 = vsel %vm975, %v5208, %v5205
    %v5224 = vsel %vm976, %v5208, %v5206
    %s5225 = sld [smem:[#allocation2 + $0xa07]]
    %v5226 = vstv %s5225
    %v5227 = vsel %vm995, %v5226, %v5209
    %v5228 = vsel %vm996, %v5226, %v5210
    %v5229 = vsel %vm997, %v5226, %v5211
    %v5230 = vsel %vm998, %v5226, %v5212
    %v5231 = vsel %vm999, %v5226, %v5213
    %v5232 = vsel %vm1000, %v5226, %v5214
    %v5233 = vsel %vm1001, %v5226, %v5215
    %v5234 = vsel %vm1002, %v5226, %v5216
    %v5235 = vsel %vm1003, %v5226, %v5217
    %v5236 = vsel %vm1004, %v5226, %v5218
    %v5237 = vsel %vm1005, %v5226, %v5219
    %v5238 = vsel %vm1006, %v5226, %v5220
    %v5239 = vsel %vm1007, %v5226, %v5221
    %v5240 = vsel %vm1008, %v5226, %v5222
    %v5241 = vsel %vm1009, %v5226, %v5223
    %v5242 = vsel %vm1010, %v5226, %v5224
    %s5243 = sld [smem:[#allocation2 + $0xa87]]
    %v5244 = vstv %s5243
    %v5245 = vsel %vm1029, %v5244, %v5227
    %v5246 = vsel %vm1030, %v5244, %v5228
    %v5247 = vsel %vm1031, %v5244, %v5229
    %v5248 = vsel %vm1032, %v5244, %v5230
    %v5249 = vsel %vm1033, %v5244, %v5231
    %v5250 = vsel %vm1034, %v5244, %v5232
    %v5251 = vsel %vm1035, %v5244, %v5233
    %v5252 = vsel %vm1036, %v5244, %v5234
    %v5253 = vsel %vm1037, %v5244, %v5235
    %v5254 = vsel %vm1038, %v5244, %v5236
    %v5255 = vsel %vm1039, %v5244, %v5237
    %v5256 = vsel %vm1040, %v5244, %v5238
    %v5257 = vsel %vm1041, %v5244, %v5239
    %v5258 = vsel %vm1042, %v5244, %v5240
    %v5259 = vsel %vm1043, %v5244, %v5241
    %v5260 = vsel %vm1044, %v5244, %v5242
    %s5261 = sld [smem:[#allocation2 + $0xb07]]
    %v5262 = vstv %s5261
    %v5263 = vsel %vm1063, %v5262, %v5245
    %v5264 = vsel %vm1064, %v5262, %v5246
    %v5265 = vsel %vm1065, %v5262, %v5247
    %v5266 = vsel %vm1066, %v5262, %v5248
    %v5267 = vsel %vm1067, %v5262, %v5249
    %v5268 = vsel %vm1068, %v5262, %v5250
    %v5269 = vsel %vm1069, %v5262, %v5251
    %v5270 = vsel %vm1070, %v5262, %v5252
    %v5271 = vsel %vm1071, %v5262, %v5253
    %v5272 = vsel %vm1072, %v5262, %v5254
    %v5273 = vsel %vm1073, %v5262, %v5255
    %v5274 = vsel %vm1074, %v5262, %v5256
    %v5275 = vsel %vm1075, %v5262, %v5257
    %v5276 = vsel %vm1076, %v5262, %v5258
    %v5277 = vsel %vm1077, %v5262, %v5259
    %v5278 = vsel %vm1078, %v5262, %v5260
    %s5279 = sld [smem:[#allocation2 + $0xb87]]
    %v5280 = vstv %s5279
    %v5281 = vsel %vm1097, %v5280, %v5263
    %v5282 = vsel %vm1098, %v5280, %v5264
    %v5283 = vsel %vm1099, %v5280, %v5265
    %v5284 = vsel %vm1100, %v5280, %v5266
    %v5285 = vsel %vm1101, %v5280, %v5267
    %v5286 = vsel %vm1102, %v5280, %v5268
    %v5287 = vsel %vm1103, %v5280, %v5269
    %v5288 = vsel %vm1104, %v5280, %v5270
    %v5289 = vsel %vm1105, %v5280, %v5271
    %v5290 = vsel %vm1106, %v5280, %v5272
    %v5291 = vsel %vm1107, %v5280, %v5273
    %v5292 = vsel %vm1108, %v5280, %v5274
    %v5293 = vsel %vm1109, %v5280, %v5275
    %v5294 = vsel %vm1110, %v5280, %v5276
    %v5295 = vsel %vm1111, %v5280, %v5277
    %v5296 = vsel %vm1112, %v5280, %v5278
    %s5297 = sld [smem:[#allocation2 + $0xc07]]
    %v5298 = vstv %s5297
    %v5299 = vsel %vm1131, %v5298, %v5281
    %v5300 = vsel %vm1132, %v5298, %v5282
    %v5301 = vsel %vm1133, %v5298, %v5283
    %v5302 = vsel %vm1134, %v5298, %v5284
    %v5303 = vsel %vm1135, %v5298, %v5285
    %v5304 = vsel %vm1136, %v5298, %v5286
    %v5305 = vsel %vm1137, %v5298, %v5287
    %v5306 = vsel %vm1138, %v5298, %v5288
    %v5307 = vsel %vm1139, %v5298, %v5289
    %v5308 = vsel %vm1140, %v5298, %v5290
    %v5309 = vsel %vm1141, %v5298, %v5291
    %v5310 = vsel %vm1142, %v5298, %v5292
    %v5311 = vsel %vm1143, %v5298, %v5293
    %v5312 = vsel %vm1144, %v5298, %v5294
    %v5313 = vsel %vm1145, %v5298, %v5295
    %v5314 = vsel %vm1146, %v5298, %v5296
    %s5315 = sld [smem:[#allocation2 + $0xc87]]
    %v5316 = vstv %s5315
    %v5317 = vsel %vm1165, %v5316, %v5299
    %v5318 = vsel %vm1166, %v5316, %v5300
    %v5319 = vsel %vm1167, %v5316, %v5301
    %v5320 = vsel %vm1168, %v5316, %v5302
    %v5321 = vsel %vm1169, %v5316, %v5303
    %v5322 = vsel %vm1170, %v5316, %v5304
    %v5323 = vsel %vm1171, %v5316, %v5305
    %v5324 = vsel %vm1172, %v5316, %v5306
    %v5325 = vsel %vm1173, %v5316, %v5307
    %v5326 = vsel %vm1174, %v5316, %v5308
    %v5327 = vsel %vm1175, %v5316, %v5309
    %v5328 = vsel %vm1176, %v5316, %v5310
    %v5329 = vsel %vm1177, %v5316, %v5311
    %v5330 = vsel %vm1178, %v5316, %v5312
    %v5331 = vsel %vm1179, %v5316, %v5313
    %v5332 = vsel %vm1180, %v5316, %v5314
    %s5333 = sld [smem:[#allocation2 + $0xd07]]
    %v5334 = vstv %s5333
    %v5335 = vsel %vm1199, %v5334, %v5317
    %v5336 = vsel %vm1200, %v5334, %v5318
    %v5337 = vsel %vm1201, %v5334, %v5319
    %v5338 = vsel %vm1202, %v5334, %v5320
    %v5339 = vsel %vm1203, %v5334, %v5321
    %v5340 = vsel %vm1204, %v5334, %v5322
    %v5341 = vsel %vm1205, %v5334, %v5323
    %v5342 = vsel %vm1206, %v5334, %v5324
    %v5343 = vsel %vm1207, %v5334, %v5325
    %v5344 = vsel %vm1208, %v5334, %v5326
    %v5345 = vsel %vm1209, %v5334, %v5327
    %v5346 = vsel %vm1210, %v5334, %v5328
    %v5347 = vsel %vm1211, %v5334, %v5329
    %v5348 = vsel %vm1212, %v5334, %v5330
    %v5349 = vsel %vm1213, %v5334, %v5331
    %v5350 = vsel %vm1214, %v5334, %v5332
    %s5351 = sld [smem:[#allocation2 + $0xd87]]
    %v5352 = vstv %s5351
    %v5353 = vsel %vm1233, %v5352, %v5335
    %v5354 = vsel %vm1234, %v5352, %v5336
    %v5355 = vsel %vm1235, %v5352, %v5337
    %v5356 = vsel %vm1236, %v5352, %v5338
    %v5357 = vsel %vm1237, %v5352, %v5339
    %v5358 = vsel %vm1238, %v5352, %v5340
    %v5359 = vsel %vm1239, %v5352, %v5341
    %v5360 = vsel %vm1240, %v5352, %v5342
    %v5361 = vsel %vm1241, %v5352, %v5343
    %v5362 = vsel %vm1242, %v5352, %v5344
    %v5363 = vsel %vm1243, %v5352, %v5345
    %v5364 = vsel %vm1244, %v5352, %v5346
    %v5365 = vsel %vm1245, %v5352, %v5347
    %v5366 = vsel %vm1246, %v5352, %v5348
    %v5367 = vsel %vm1247, %v5352, %v5349
    %v5368 = vsel %vm1248, %v5352, %v5350
    %s5369 = sld [smem:[#allocation2 + $0xe07]]
    %v5370 = vstv %s5369
    %v5371 = vsel %vm1267, %v5370, %v5353
    %v5372 = vsel %vm1268, %v5370, %v5354
    %v5373 = vsel %vm1269, %v5370, %v5355
    %v5374 = vsel %vm1270, %v5370, %v5356
    %v5375 = vsel %vm1271, %v5370, %v5357
    %v5376 = vsel %vm1272, %v5370, %v5358
    %v5377 = vsel %vm1273, %v5370, %v5359
    %v5378 = vsel %vm1274, %v5370, %v5360
    %v5379 = vsel %vm1275, %v5370, %v5361
    %v5380 = vsel %vm1276, %v5370, %v5362
    %v5381 = vsel %vm1277, %v5370, %v5363
    %v5382 = vsel %vm1278, %v5370, %v5364
    %v5383 = vsel %vm1279, %v5370, %v5365
    %v5384 = vsel %vm1280, %v5370, %v5366
    %v5385 = vsel %vm1281, %v5370, %v5367
    %v5386 = vsel %vm1282, %v5370, %v5368
    %s5387 = sld [smem:[#allocation2 + $0xe87]]
    %v5388 = vstv %s5387
    %v5389 = vsel %vm1301, %v5388, %v5371
    %v5390 = vsel %vm1302, %v5388, %v5372
    %v5391 = vsel %vm1303, %v5388, %v5373
    %v5392 = vsel %vm1304, %v5388, %v5374
    %v5393 = vsel %vm1305, %v5388, %v5375
    %v5394 = vsel %vm1306, %v5388, %v5376
    %v5395 = vsel %vm1307, %v5388, %v5377
    %v5396 = vsel %vm1308, %v5388, %v5378
    %v5397 = vsel %vm1309, %v5388, %v5379
    %v5398 = vsel %vm1310, %v5388, %v5380
    %v5399 = vsel %vm1311, %v5388, %v5381
    %v5400 = vsel %vm1312, %v5388, %v5382
    %v5401 = vsel %vm1313, %v5388, %v5383
    %v5402 = vsel %vm1314, %v5388, %v5384
    %v5403 = vsel %vm1315, %v5388, %v5385
    %v5404 = vsel %vm1316, %v5388, %v5386
    %s5405 = sld [smem:[#allocation2 + $0xf07]]
    %v5406 = vstv %s5405
    %v5407 = vsel %vm1335, %v5406, %v5389
    %v5408 = vsel %vm1336, %v5406, %v5390
    %v5409 = vsel %vm1337, %v5406, %v5391
    %v5410 = vsel %vm1338, %v5406, %v5392
    %v5411 = vsel %vm1339, %v5406, %v5393
    %v5412 = vsel %vm1340, %v5406, %v5394
    %v5413 = vsel %vm1341, %v5406, %v5395
    %v5414 = vsel %vm1342, %v5406, %v5396
    %v5415 = vsel %vm1343, %v5406, %v5397
    %v5416 = vsel %vm1344, %v5406, %v5398
    %v5417 = vsel %vm1345, %v5406, %v5399
    %v5418 = vsel %vm1346, %v5406, %v5400
    %v5419 = vsel %vm1347, %v5406, %v5401
    %v5420 = vsel %vm1348, %v5406, %v5402
    %v5421 = vsel %vm1349, %v5406, %v5403
    %v5422 = vsel %vm1350, %v5406, %v5404
    %s5423 = sld [smem:[#allocation2 + $0xf87]]
    %v5424 = vstv %s5423
    %v5425 = vsel %vm1369, %v5424, %v5407
    %v5426 = vsel %vm1370, %v5424, %v5408
    %v5427 = vsel %vm1371, %v5424, %v5409
    %v5428 = vsel %vm1372, %v5424, %v5410
    %v5429 = vsel %vm1373, %v5424, %v5411
    %v5430 = vsel %vm1374, %v5424, %v5412
    %v5431 = vsel %vm1375, %v5424, %v5413
    %v5432 = vsel %vm1376, %v5424, %v5414
    %v5433 = vsel %vm1377, %v5424, %v5415
    %v5434 = vsel %vm1378, %v5424, %v5416
    %v5435 = vsel %vm1379, %v5424, %v5417
    %v5436 = vsel %vm1380, %v5424, %v5418
    %v5437 = vsel %vm1381, %v5424, %v5419
    %v5438 = vsel %vm1382, %v5424, %v5420
    %v5439 = vsel %vm1383, %v5424, %v5421
    %v5440 = vsel %vm1384, %v5424, %v5422
    %s5441 = scalar_lea.vmem [#allocation5], 896
    %5442 = vst [vmem:[%s5441] sm:$0xff] %v5425
    %5443 = vst [vmem:[%s5441 + $0x8] sm:$0xff] %v5426
    %5444 = vst [vmem:[%s5441 + $0x10] sm:$0xff] %v5427
    %5445 = vst [vmem:[%s5441 + $0x18] sm:$0xff] %v5428
    %5446 = vst [vmem:[%s5441 + $0x20] sm:$0xff] %v5429
    %5447 = vst [vmem:[%s5441 + $0x28] sm:$0xff] %v5430
    %5448 = vst [vmem:[%s5441 + $0x30] sm:$0xff] %v5431
    %5449 = vst [vmem:[%s5441 + $0x38] sm:$0xff] %v5432
    %5450 = vst [vmem:[%s5441 + $0x40] sm:$0xff] %v5433
    %5451 = vst [vmem:[%s5441 + $0x48] sm:$0xff] %v5434
    %5452 = vst [vmem:[%s5441 + $0x50] sm:$0xff] %v5435
    %5453 = vst [vmem:[%s5441 + $0x58] sm:$0xff] %v5436
    %5454 = vst [vmem:[%s5441 + $0x60] sm:$0xff] %v5437
    %5455 = vst [vmem:[%s5441 + $0x68] sm:$0xff] %v5438
    %5456 = vst [vmem:[%s5441 + $0x70] sm:$0xff] %v5439
    %5457 = vst [vmem:[%s5441 + $0x78] sm:$0xff] %v5440
    // Predicated region
    $region10: #{tpu_custom_call.1} parent=1 // pred_check
      _
    $region11: #{tpu_custom_call.1} parent=1 // pred_check_branch
      %5459 = sbr.rel (0) target = $region13
    $region12: #{tpu_custom_call.1} parent=1 // pred_region
      %5461 = vsyncadd [#allocation3], 0
      %s5462 = sshll.u32 [#allocation5], 4
      %s5463 = int_to_ptr.vmem [resolvable:$true] %s5462
      %s5464 = sshll.u32 %s1, 4
      %s5465 = int_to_ptr.hbm [resolvable:$true] %s5464
      %5470 = dma.vmem_to_hbm [thread:$0]  %s5463, 16384, %s5465, [#allocation3], 128, 128, 8
    $region13: #{tpu_custom_call.1} parent=1 // pred_fallthru
      _
    // Predicated region
    $region14: #{tpu_custom_call.1} parent=1 // pred_check
      _
    $region15: #{tpu_custom_call.1} parent=1 // pred_check_branch
      %5472 = sbr.rel (0) target = $region17
    $region16: #{tpu_custom_call.1} parent=1 // pred_region
      %5474 = dma.done [#allocation3], 16384
    $region17: #{tpu_custom_call.1} parent=1 // pred_fallthru
      _
    %5475 = vsyncpa [#allocation3], 1
    %5476 = vsyncpa [#allocation4], 1

</llo_original>
